<compile_context>
chip_gen: v7x
topology: tpu7x:2x2x1
jax: 0.10.0
libtpu: 0.0.40
codegen_flags: <defaults>
</compile_context>

<pallas_src>
import math

import jax
import jax.numpy as jnp
import numpy as np
from jax.experimental import pallas as pl
from jax.experimental.pallas import tpu as pltpu


def _dual_attn_kernel(
    x_dt_ref, x_td_ref, h0_ref, c0_ref,
    we_w_ref, we_b_ref, ue_w_ref, ue_b_ref, ve_w_ref,
    w_ih_ref, w_hh_ref, b_g_ref,
    ud_w_ref, ud_b_ref, vd_w_ref,
    out_w_ref, out_b_ref,
    logits_ref, beta_ref,
    enc_ref,
):
    Bblk, D, T = x_dt_ref.shape
    m = h0_ref.shape[1]

    # ---------------- loop-invariant precompute (hoisted) ----------------
    x_dt = x_dt_ref[...]                                            # (Bblk, D, T)
    ue_x = (jnp.dot(x_dt.reshape(Bblk * D, T), ue_w_ref[...],
                    preferred_element_type=jnp.float32)
            + ue_b_ref[...]).reshape(Bblk, D, T)                    # Ue(x), once
    x_td = x_td_ref[...]                                            # (Bblk, T, D)

    we_w = we_w_ref[...]                                            # (2m, T)
    we_b = we_b_ref[...]                                            # (1, T)
    ve_w = ve_w_ref[...]                                            # (1, T)
    w_ih = w_ih_ref[...]                                            # (D, 4m)
    w_hh = w_hh_ref[...]                                            # (m, 4m)
    b_g = b_g_ref[...]                                              # (1, 4m)

    h = h0_ref[...]                                                 # (Bblk, m)
    c = c0_ref[...]                                                 # (Bblk, m)

    for t in range(T):                      # static unroll (T is small here)
        # ---------------- input attention ----------------
        hc = jnp.concatenate([h, c], axis=1)                        # (Bblk, 2m)
        we_hc = jnp.dot(hc, we_w, preferred_element_type=jnp.float32) + we_b   # (Bblk, T)
        pre = jnp.tanh(ue_x + we_hc[:, None, :])                    # (Bblk, D, T)
        # ve(.) ; ve_b dropped: a constant shift cancels in the softmax below.
        e = jnp.sum(pre * ve_w, axis=-1)                            # (Bblk, D)
        e = e - jnp.max(e, axis=-1, keepdims=True)
        p = jnp.exp(e)
        alpha = p * pl.reciprocal(jnp.sum(p, axis=-1, keepdims=True), approx=False)
        x_til = alpha * x_td[:, t, :]                               # (Bblk, D) static slice

        # ---------------- fused LSTM cell (gate order i, f, g, o) ----------------
        gates = (jnp.dot(x_til, w_ih, preferred_element_type=jnp.float32)
                 + jnp.dot(h, w_hh, preferred_element_type=jnp.float32)
                 + b_g)                                             # (Bblk, 4m)
        gi = jax.nn.sigmoid(gates[:, 0:m])
        gf = jax.nn.sigmoid(gates[:, m:2 * m])
        gg = jnp.tanh(gates[:, 2 * m:3 * m])
        go = jax.nn.sigmoid(gates[:, 3 * m:4 * m])
        c = gf * c + gi * gg
        h = go * jnp.tanh(c)
        enc_ref[:, t, :] = h                                        # encoder output @ step t

    # ---------------- temporal attention + output head ----------------
    enc = enc_ref[...]                                              # (Bblk, T, m)
    ud = jnp.tanh(jnp.dot(enc.reshape(Bblk * T, m), ud_w_ref[...],
                          preferred_element_type=jnp.float32)
                  + ud_b_ref[...]).reshape(Bblk, T, m)
    l = jnp.sum(ud * vd_w_ref[...], axis=-1)                        # (Bblk, T); vd_b dropped (softmax-invariant)
    l = l - jnp.max(l, axis=-1, keepdims=True)
    pb = jnp.exp(l)
    beta = pb * pl.reciprocal(jnp.sum(pb, axis=-1, keepdims=True), approx=False)
    beta_ref[...] = beta                                            # lane-dense (T on lanes)

    cvec = jnp.sum(beta[:, :, None] * enc, axis=1)                  # (Bblk, m) == beta^T @ enc
    logits_ref[...] = (jnp.dot(cvec, out_w_ref[...], preferred_element_type=jnp.float32)
                       + out_b_ref[...])


def dual_attn_rnn_forward(x, hidden_state, params, *, block_b=8):
    """x: (T, B, D) f32; hidden_state: (h0, c0) each (1, B, m).
    Returns (logits (B, O), beta (B, T)) — matches torch forward's (logits, squeeze(beta))."""
    T, B, D = x.shape
    h0, c0 = hidden_state
    m = h0.shape[-1]
    O = params['out_w'].shape[0]

    # Batch tile: multiple of 8 (sublane rule).  VMEM budget note: dominant blocks are
    # x (Bblk*D*T), enc scratch (Bblk*T*m) -> with the real m=256 a Bblk of 64-128 fits
    # v5e/v6e (128 MiB); use roughly half on v7x (64 MiB VMEM).
    Bblk = max(8, (block_b // 8) * 8)
    Bp = -(-B // Bblk) * Bblk            # pad batch up to a multiple of Bblk

    f32 = jnp.float32
    x_dt = jnp.transpose(x, (1, 2, 0)).astype(f32)    # (B, D, T) for Ue(x)
    x_td = jnp.transpose(x, (1, 0, 2)).astype(f32)    # (B, T, D) for x[:, t] slices
    h0b = h0[0].astype(f32)                           # (B, m)
    c0b = c0[0].astype(f32)

    def pad_b(a):
        padb = Bp - a.shape[0]
        if padb == 0:
            return a
        return jnp.pad(a, ((0, padb),) + ((0, 0),) * (a.ndim - 1))

    x_dt, x_td, h0b, c0b = pad_b(x_dt), pad_b(x_td), pad_b(h0b), pad_b(c0b)

    # ---- packed parameters (glue: transpose / fuse for lane-major matmuls) ----
    We_pk = params['We_w'].T                                  # (2m, T)  fused We_h|We_c
    We_b = params['We_b'].reshape(1, T)
    Ue_T = params['Ue_w'].T                                   # (T, T)
    Ue_b = params['Ue_b'].reshape(1, T)
    ve_w = params['ve_w'].reshape(1, T)
    W_ih_pk = params['W_ih'].T                                # (D, 4m) gates i,f,g,o packed
    W_hh_pk = params['W_hh'].T                                # (m, 4m)
    b_pk = (params['b_ih'] + params['b_hh']).reshape(1, 4 * m)
    Ud_T = params['Ud_w'].T                                   # (m, m)
    Ud_b = params['Ud_b'].reshape(1, m)
    vd_w = params['vd_w'].reshape(1, m)
    out_T = params['out_w'].T                                 # (m, O)
    out_b = params['out_b'].reshape(1, O)

    weight_args = tuple(w.astype(f32) for w in
                        (We_pk, We_b, Ue_T, Ue_b, ve_w,
                         W_ih_pk, W_hh_pk, b_pk,
                         Ud_T, Ud_b, vd_w, out_T, out_b))

    batch3 = lambda i: (i, 0, 0)
    batch2 = lambda i: (i, 0)
    wmap = lambda i: (0, 0)

    in_specs = ([pl.BlockSpec((Bblk, D, T), batch3),          # x (B, D, T)
                 pl.BlockSpec((Bblk, T, D), batch3),          # x (B, T, D)
                 pl.BlockSpec((Bblk, m), batch2),             # h0
                 pl.BlockSpec((Bblk, m), batch2)]             # c0
                + [pl.BlockSpec(w.shape, wmap) for w in weight_args])
    out_specs = (pl.BlockSpec((Bblk, O), batch2),
                 pl.BlockSpec((Bblk, T), batch2))             # lane-dense beta
    out_shape = (jax.ShapeDtypeStruct((Bp, O), f32),
                 jax.ShapeDtypeStruct((Bp, T), f32))

    logits, beta = pl.pallas_call(
        _dual_attn_kernel,
        grid=(Bp // Bblk,),
        in_specs=in_specs,
        out_specs=out_specs,
        out_shape=out_shape,
        scratch_shapes=[pltpu.VMEM((Bblk, T, m), jnp.float32)],   # encoder outputs per block
        compiler_params=pltpu.CompilerParams(dimension_semantics=("parallel",)),
    )(x_dt, x_td, h0b, c0b, *weight_args)

    return logits[:B], beta[:B]


def reference_forward(x, hidden_state, params):
    """Plain-JAX replica of the PyTorch forward (for correctness checking)."""
    T, B, D = x.shape
    h, c = hidden_state
    h, c = h[0], c[0]                                          # (B, m)
    xp = jnp.transpose(x, (1, 2, 0))                           # (B, D, T)
    ue_x = jnp.einsum('bdt,st->bds', xp, params['Ue_w']) + params['Ue_b']
    outs = []
    for t in range(T):
        hc = jnp.concatenate([h, c], axis=1)
        we_hc = hc @ params['We_w'].T + params['We_b']         # (B, T)
        pre = jnp.tanh(we_hc[:, None, :] + ue_x)               # (B, D, T)
        e = jnp.einsum('bdt,t->bd', pre, params['ve_w'][0]) + params['ve_b'][0]
        alpha = jax.nn.softmax(e, axis=1)
        x_tilde = alpha * xp[:, :, t]
        gates = (x_tilde @ params['W_ih'].T + params['b_ih']
                 + h @ params['W_hh'].T + params['b_hh'])
        gi, gf, gg, go = jnp.split(gates, 4, axis=1)
        gi, gf, go = jax.nn.sigmoid(gi), jax.nn.sigmoid(gf), jax.nn.sigmoid(go)
        gg = jnp.tanh(gg)
        c = gf * c + gi * gg
        h = go * jnp.tanh(c)
        outs.append(h)
    enc = jnp.stack(outs, axis=1)                              # (B, T, m)
    ud = jnp.tanh(enc @ params['Ud_w'].T + params['Ud_b'])
    l = jnp.einsum('btm,m->bt', ud, params['vd_w'][0]) + params['vd_b'][0]
    beta = jax.nn.softmax(l, axis=1)
    cvec = jnp.einsum('bt,btm->bm', beta, enc)
    logits = cvec @ params['out_w'].T + params['out_b']
    return logits, beta


if __name__ == "__main__":
    # Small shapes consistent with the module's forward:
    #   x: (seq_length T, batch B, input_dim D); hidden size m (256 in the original, shrunk here).
    # B=10 with Bblk=8 exercises both the batch-tiled grid (2 steps) and the padding path.
    T, B, D, m, O = 8, 10, 4, 32, 3

    key = jax.random.PRNGKey(0)
    k = jax.random.split(key, 18)

    def u(kk, shape, fan_in):
        bound = 1.0 / math.sqrt(fan_in)
        return jax.random.uniform(kk, shape, jnp.float32, minval=-bound, maxval=bound)

    params = {
        # LSTM(input_dim=D, hidden=m): PyTorch layout (4m, D)/(4m, m), gate order i,f,g,o
        'W_ih': u(k[0], (4 * m, D), m), 'W_hh': u(k[1], (4 * m, m), m),
        'b_ih': u(k[2], (4 * m,), m), 'b_hh': u(k[3], (4 * m,), m),
        'We_w': u(k[4], (T, 2 * m), 2 * m), 'We_b': u(k[5], (T,), 2 * m),   # Linear(2m, T)
        'Ue_w': u(k[6], (T, T), T), 'Ue_b': u(k[7], (T,), T),               # Linear(T, T)
        've_w': u(k[8], (1, T), T), 've_b': u(k[9], (1,), T),               # Linear(T, 1)
        'Ud_w': u(k[10], (m, m), m), 'Ud_b': u(k[11], (m,), m),             # Linear(m, m)
        'vd_w': u(k[12], (1, m), m), 'vd_b': u(k[13], (1,), m),             # Linear(m, 1)
        'out_w': u(k[14], (O, m), m), 'out_b': u(k[15], (O,), m),           # Linear(m, output_dim)
    }

    x = jax.random.normal(k[16], (T, B, D), jnp.float32)
    h0 = jnp.zeros((1, B, m), jnp.float32)   # == init_hidden(batch_size)
    c0 = jnp.zeros((1, B, m), jnp.float32)

    logits, beta = dual_attn_rnn_forward(x, (h0, c0), params, block_b=8)
    jax.block_until_ready((logits, beta))

    ref_logits, ref_beta = reference_forward(x, (h0, c0), params)
    np.testing.assert_allclose(np.asarray(logits), np.asarray(ref_logits), rtol=1e-4, atol=1e-5)
    np.testing.assert_allclose(np.asarray(beta), np.asarray(ref_beta), rtol=1e-4, atol=1e-5)
    assert logits.shape == (B, O) and beta.shape == (B, T)

    print("KERNEL_OK")
</pallas_src>

<mosaic_0001>
module attributes {stable_mosaic.version = 11 : i64} {
  func.func @_dual_attn_kernel(%arg0: i32, %arg1: memref<8x4x8xf32, #tpu.memory_space<vmem>>, %arg2: memref<8x8x4xf32, #tpu.memory_space<vmem>>, %arg3: memref<8x32xf32, #tpu.memory_space<vmem>>, %arg4: memref<8x32xf32, #tpu.memory_space<vmem>>, %arg5: memref<64x8xf32, #tpu.memory_space<vmem>>, %arg6: memref<1x8xf32, #tpu.memory_space<vmem>>, %arg7: memref<8x8xf32, #tpu.memory_space<vmem>>, %arg8: memref<1x8xf32, #tpu.memory_space<vmem>>, %arg9: memref<1x8xf32, #tpu.memory_space<vmem>>, %arg10: memref<4x128xf32, #tpu.memory_space<vmem>>, %arg11: memref<32x128xf32, #tpu.memory_space<vmem>>, %arg12: memref<1x128xf32, #tpu.memory_space<vmem>>, %arg13: memref<32x32xf32, #tpu.memory_space<vmem>>, %arg14: memref<1x32xf32, #tpu.memory_space<vmem>>, %arg15: memref<1x32xf32, #tpu.memory_space<vmem>>, %arg16: memref<32x3xf32, #tpu.memory_space<vmem>>, %arg17: memref<1x3xf32, #tpu.memory_space<vmem>>, %arg18: memref<8x3xf32, #tpu.memory_space<vmem>>, %arg19: memref<8x8xf32, #tpu.memory_space<vmem>>, %arg20: memref<8x8x32xf32, #tpu.memory_space<vmem>>) attributes {dimension_semantics = [#tpu.dimension_semantics<parallel>], iteration_bounds = array<i64: 2>, scalar_prefetch = 0 : i64, scratch_operands = 1 : i64, tpu.core_type = #tpu.core_type<tc>, window_params = [{transform_indices = @transform_0, window_bounds = array<i64: 8, 4, 8>}, {transform_indices = @transform_1, window_bounds = array<i64: 8, 8, 4>}, {transform_indices = @transform_2, window_bounds = array<i64: 8, 32>}, {transform_indices = @transform_3, window_bounds = array<i64: 8, 32>}, {pipeline_mode = #tpu.pipeline_mode<synchronous>, transform_indices = @transform_4, window_bounds = array<i64: 64, 8>}, {pipeline_mode = #tpu.pipeline_mode<synchronous>, transform_indices = @transform_5, window_bounds = array<i64: 1, 8>}, {pipeline_mode = #tpu.pipeline_mode<synchronous>, transform_indices = @transform_6, window_bounds = array<i64: 8, 8>}, {pipeline_mode = #tpu.pipeline_mode<synchronous>, transform_indices = @transform_7, window_bounds = array<i64: 1, 8>}, {pipeline_mode = #tpu.pipeline_mode<synchronous>, transform_indices = @transform_8, window_bounds = array<i64: 1, 8>}, {pipeline_mode = #tpu.pipeline_mode<synchronous>, transform_indices = @transform_9, window_bounds = array<i64: 4, 128>}, {pipeline_mode = #tpu.pipeline_mode<synchronous>, transform_indices = @transform_10, window_bounds = array<i64: 32, 128>}, {pipeline_mode = #tpu.pipeline_mode<synchronous>, transform_indices = @transform_11, window_bounds = array<i64: 1, 128>}, {pipeline_mode = #tpu.pipeline_mode<synchronous>, transform_indices = @transform_12, window_bounds = array<i64: 32, 32>}, {pipeline_mode = #tpu.pipeline_mode<synchronous>, transform_indices = @transform_13, window_bounds = array<i64: 1, 32>}, {pipeline_mode = #tpu.pipeline_mode<synchronous>, transform_indices = @transform_14, window_bounds = array<i64: 1, 32>}, {pipeline_mode = #tpu.pipeline_mode<synchronous>, transform_indices = @transform_15, window_bounds = array<i64: 32, 3>}, {pipeline_mode = #tpu.pipeline_mode<synchronous>, transform_indices = @transform_16, window_bounds = array<i64: 1, 3>}, {transform_indices = @transform_17, window_bounds = array<i64: 8, 3>}, {transform_indices = @transform_18, window_bounds = array<i64: 8, 8>}]} {
    %c0 = arith.constant 0 : index
    %c0_0 = arith.constant 0 : index
    %c0_1 = arith.constant 0 : index
    %0 = vector.load %arg1[%c0, %c0_0, %c0_1] : memref<8x4x8xf32, #tpu.memory_space<vmem>>, vector<8x4x8xf32>
    %1 = vector.shape_cast %0 : vector<8x4x8xf32> to vector<32x8xf32>
    %c0_2 = arith.constant 0 : index
    %c0_3 = arith.constant 0 : index
    %2 = vector.load %arg7[%c0_2, %c0_3] : memref<8x8xf32, #tpu.memory_space<vmem>>, vector<8x8xf32>
    %cst = arith.constant dense<0.000000e+00> : vector<32x8xf32>
    %3 = tpu.matmul %1, %2, %cst {dimension_numbers = #tpu.dot_dimension_numbers<[1], [0], [0], [1], [0, 0, 1, 1], [], []>} : vector<32x8xf32>, vector<8x8xf32>, vector<32x8xf32> -> vector<32x8xf32>
    %c0_4 = arith.constant 0 : index
    %c0_5 = arith.constant 0 : index
    %4 = vector.load %arg8[%c0_4, %c0_5] : memref<1x8xf32, #tpu.memory_space<vmem>>, vector<1x8xf32>
    %5 = vector.broadcast %4 : vector<1x8xf32> to vector<32x8xf32>
    %6 = arith.addf %3, %5 : vector<32x8xf32>
    %7 = vector.shape_cast %6 : vector<32x8xf32> to vector<8x4x8xf32>
    %c0_6 = arith.constant 0 : index
    %c0_7 = arith.constant 0 : index
    %c0_8 = arith.constant 0 : index
    %8 = vector.load %arg2[%c0_6, %c0_7, %c0_8] : memref<8x8x4xf32, #tpu.memory_space<vmem>>, vector<8x8x4xf32>
    %c0_9 = arith.constant 0 : index
    %c0_10 = arith.constant 0 : index
    %9 = vector.load %arg5[%c0_9, %c0_10] : memref<64x8xf32, #tpu.memory_space<vmem>>, vector<64x8xf32>
    %c0_11 = arith.constant 0 : index
    %c0_12 = arith.constant 0 : index
    %10 = vector.load %arg6[%c0_11, %c0_12] : memref<1x8xf32, #tpu.memory_space<vmem>>, vector<1x8xf32>
    %c0_13 = arith.constant 0 : index
    %c0_14 = arith.constant 0 : index
    %11 = vector.load %arg9[%c0_13, %c0_14] : memref<1x8xf32, #tpu.memory_space<vmem>>, vector<1x8xf32>
    %c0_15 = arith.constant 0 : index
    %c0_16 = arith.constant 0 : index
    %12 = vector.load %arg10[%c0_15, %c0_16] : memref<4x128xf32, #tpu.memory_space<vmem>>, vector<4x128xf32>
    %c0_17 = arith.constant 0 : index
    %c0_18 = arith.constant 0 : index
    %13 = vector.load %arg11[%c0_17, %c0_18] : memref<32x128xf32, #tpu.memory_space<vmem>>, vector<32x128xf32>
    %c0_19 = arith.constant 0 : index
    %c0_20 = arith.constant 0 : index
    %14 = vector.load %arg12[%c0_19, %c0_20] : memref<1x128xf32, #tpu.memory_space<vmem>>, vector<1x128xf32>
    %c0_21 = arith.constant 0 : index
    %c0_22 = arith.constant 0 : index
    %15 = vector.load %arg3[%c0_21, %c0_22] : memref<8x32xf32, #tpu.memory_space<vmem>>, vector<8x32xf32>
    %c0_23 = arith.constant 0 : index
    %c0_24 = arith.constant 0 : index
    %16 = vector.load %arg4[%c0_23, %c0_24] : memref<8x32xf32, #tpu.memory_space<vmem>>, vector<8x32xf32>
    %17 = tpu.concatenate %15, %16 in 1 : vector<8x32xf32>, vector<8x32xf32> -> vector<8x64xf32>
    %cst_25 = arith.constant dense<0.000000e+00> : vector<8x8xf32>
    %18 = tpu.matmul %17, %9, %cst_25 {dimension_numbers = #tpu.dot_dimension_numbers<[1], [0], [0], [1], [0, 0, 1, 1], [], []>} : vector<8x64xf32>, vector<64x8xf32>, vector<8x8xf32> -> vector<8x8xf32>
    %19 = vector.broadcast %10 : vector<1x8xf32> to vector<8x8xf32>
    %20 = arith.addf %18, %19 : vector<8x8xf32>
    %21 = vector.shape_cast %20 : vector<8x8xf32> to vector<8x1x8xf32>
    %22 = vector.broadcast %21 : vector<8x1x8xf32> to vector<8x4x8xf32>
    %23 = arith.addf %7, %22 : vector<8x4x8xf32>
    %24 = math.tanh %23 : vector<8x4x8xf32>
    %25 = vector.shape_cast %11 : vector<1x8xf32> to vector<1x1x8xf32>
    %26 = vector.broadcast %25 : vector<1x1x8xf32> to vector<8x4x8xf32>
    %27 = arith.mulf %24, %26 : vector<8x4x8xf32>
    %cst_26 = arith.constant dense<0.000000e+00> : vector<8x4xf32>
    %28 = vector.multi_reduction <add>, %27, %cst_26 [2] : vector<8x4x8xf32> to vector<8x4xf32>
    %cst_27 = arith.constant dense<0xFF800000> : vector<8xf32>
    %29 = vector.multi_reduction <maximumf>, %28, %cst_27 [1] : vector<8x4xf32> to vector<8xf32>
    %30 = vector.shape_cast %29 : vector<8xf32> to vector<8x1xf32>
    %31 = vector.broadcast %30 : vector<8x1xf32> to vector<8x4xf32>
    %32 = arith.subf %28, %31 : vector<8x4xf32>
    %33 = math.exp %32 : vector<8x4xf32>
    %cst_28 = arith.constant dense<0.000000e+00> : vector<8xf32>
    %34 = vector.multi_reduction <add>, %33, %cst_28 [1] : vector<8x4xf32> to vector<8xf32>
    %35 = vector.shape_cast %34 : vector<8xf32> to vector<8x1xf32>
    %36 = tpu.reciprocal %35 : vector<8x1xf32> -> vector<8x1xf32>
    %37 = vector.broadcast %36 : vector<8x1xf32> to vector<8x4xf32>
    %38 = arith.mulf %33, %37 : vector<8x4xf32>
    %39 = vector.extract_strided_slice %8 {offsets = [0, 0, 0], sizes = [8, 1, 4], strides = [1, 1, 1]} : vector<8x8x4xf32> to vector<8x1x4xf32>
    %40 = vector.shape_cast %39 : vector<8x1x4xf32> to vector<8x4xf32>
    %41 = arith.mulf %38, %40 : vector<8x4xf32>
    %cst_29 = arith.constant dense<0.000000e+00> : vector<8x128xf32>
    %42 = tpu.matmul %41, %12, %cst_29 {dimension_numbers = #tpu.dot_dimension_numbers<[1], [0], [0], [1], [0, 0, 1, 1], [], []>} : vector<8x4xf32>, vector<4x128xf32>, vector<8x128xf32> -> vector<8x128xf32>
    %cst_30 = arith.constant dense<0.000000e+00> : vector<8x128xf32>
    %43 = tpu.matmul %15, %13, %cst_30 {dimension_numbers = #tpu.dot_dimension_numbers<[1], [0], [0], [1], [0, 0, 1, 1], [], []>} : vector<8x32xf32>, vector<32x128xf32>, vector<8x128xf32> -> vector<8x128xf32>
    %44 = arith.addf %42, %43 : vector<8x128xf32>
    %45 = vector.broadcast %14 : vector<1x128xf32> to vector<8x128xf32>
    %46 = arith.addf %44, %45 : vector<8x128xf32>
    %47 = vector.extract_strided_slice %46 {offsets = [0, 0], sizes = [8, 32], strides = [1, 1]} : vector<8x128xf32> to vector<8x32xf32>
    %48 = arith.negf %47 : vector<8x32xf32>
    %49 = math.exp %48 : vector<8x32xf32>
    %cst_31 = arith.constant 1.000000e+00 : f32
    %50 = vector.broadcast %cst_31 : f32 to vector<8x32xf32>
    %51 = arith.addf %50, %49 : vector<8x32xf32>
    %52 = arith.divf %50, %51 : vector<8x32xf32>
    %53 = vector.extract_strided_slice %46 {offsets = [0, 32], sizes = [8, 32], strides = [1, 1]} : vector<8x128xf32> to vector<8x32xf32>
    %54 = arith.negf %53 : vector<8x32xf32>
    %55 = math.exp %54 : vector<8x32xf32>
    %cst_32 = arith.constant 1.000000e+00 : f32
    %56 = vector.broadcast %cst_32 : f32 to vector<8x32xf32>
    %57 = arith.addf %56, %55 : vector<8x32xf32>
    %58 = arith.divf %56, %57 : vector<8x32xf32>
    %59 = vector.extract_strided_slice %46 {offsets = [0, 64], sizes = [8, 32], strides = [1, 1]} : vector<8x128xf32> to vector<8x32xf32>
    %60 = math.tanh %59 : vector<8x32xf32>
    %61 = vector.extract_strided_slice %46 {offsets = [0, 96], sizes = [8, 32], strides = [1, 1]} : vector<8x128xf32> to vector<8x32xf32>
    %62 = arith.negf %61 : vector<8x32xf32>
    %63 = math.exp %62 : vector<8x32xf32>
    %cst_33 = arith.constant 1.000000e+00 : f32
    %64 = vector.broadcast %cst_33 : f32 to vector<8x32xf32>
    %65 = arith.addf %64, %63 : vector<8x32xf32>
    %66 = arith.divf %64, %65 : vector<8x32xf32>
    %67 = arith.mulf %58, %16 : vector<8x32xf32>
    %68 = arith.mulf %52, %60 : vector<8x32xf32>
    %69 = arith.addf %67, %68 : vector<8x32xf32>
    %70 = math.tanh %69 : vector<8x32xf32>
    %71 = arith.mulf %66, %70 : vector<8x32xf32>
    %c0_34 = arith.constant 0 : index
    %c0_35 = arith.constant 0 : index
    %c0_36 = arith.constant 0 : index
    %72 = vector.load %arg20[%c0_34, %c0_35, %c0_36] : memref<8x8x32xf32, #tpu.memory_space<vmem>>, vector<8x1x32xf32>
    %73 = vector.shape_cast %72 : vector<8x1x32xf32> to vector<8x32xf32>
    %74 = vector.shape_cast %71 : vector<8x32xf32> to vector<8x1x32xf32>
    tpu.vector_store %arg20[%c0_34, %c0_35, %c0_36], %74 {strides = array<i32>} : memref<8x8x32xf32, #tpu.memory_space<vmem>>, vector<8x1x32xf32>,
    %75 = tpu.concatenate %71, %69 in 1 : vector<8x32xf32>, vector<8x32xf32> -> vector<8x64xf32>
    %cst_37 = arith.constant dense<0.000000e+00> : vector<8x8xf32>
    %76 = tpu.matmul %75, %9, %cst_37 {dimension_numbers = #tpu.dot_dimension_numbers<[1], [0], [0], [1], [0, 0, 1, 1], [], []>} : vector<8x64xf32>, vector<64x8xf32>, vector<8x8xf32> -> vector<8x8xf32>
    %77 = vector.broadcast %10 : vector<1x8xf32> to vector<8x8xf32>
    %78 = arith.addf %76, %77 : vector<8x8xf32>
    %79 = vector.shape_cast %78 : vector<8x8xf32> to vector<8x1x8xf32>
    %80 = vector.broadcast %79 : vector<8x1x8xf32> to vector<8x4x8xf32>
    %81 = arith.addf %7, %80 : vector<8x4x8xf32>
    %82 = math.tanh %81 : vector<8x4x8xf32>
    %83 = vector.shape_cast %11 : vector<1x8xf32> to vector<1x1x8xf32>
    %84 = vector.broadcast %83 : vector<1x1x8xf32> to vector<8x4x8xf32>
    %85 = arith.mulf %82, %84 : vector<8x4x8xf32>
    %cst_38 = arith.constant dense<0.000000e+00> : vector<8x4xf32>
    %86 = vector.multi_reduction <add>, %85, %cst_38 [2] : vector<8x4x8xf32> to vector<8x4xf32>
    %cst_39 = arith.constant dense<0xFF800000> : vector<8xf32>
    %87 = vector.multi_reduction <maximumf>, %86, %cst_39 [1] : vector<8x4xf32> to vector<8xf32>
    %88 = vector.shape_cast %87 : vector<8xf32> to vector<8x1xf32>
    %89 = vector.broadcast %88 : vector<8x1xf32> to vector<8x4xf32>
    %90 = arith.subf %86, %89 : vector<8x4xf32>
    %91 = math.exp %90 : vector<8x4xf32>
    %cst_40 = arith.constant dense<0.000000e+00> : vector<8xf32>
    %92 = vector.multi_reduction <add>, %91, %cst_40 [1] : vector<8x4xf32> to vector<8xf32>
    %93 = vector.shape_cast %92 : vector<8xf32> to vector<8x1xf32>
    %94 = tpu.reciprocal %93 : vector<8x1xf32> -> vector<8x1xf32>
    %95 = vector.broadcast %94 : vector<8x1xf32> to vector<8x4xf32>
    %96 = arith.mulf %91, %95 : vector<8x4xf32>
    %97 = vector.extract_strided_slice %8 {offsets = [0, 1, 0], sizes = [8, 1, 4], strides = [1, 1, 1]} : vector<8x8x4xf32> to vector<8x1x4xf32>
    %98 = vector.shape_cast %97 : vector<8x1x4xf32> to vector<8x4xf32>
    %99 = arith.mulf %96, %98 : vector<8x4xf32>
    %cst_41 = arith.constant dense<0.000000e+00> : vector<8x128xf32>
    %100 = tpu.matmul %99, %12, %cst_41 {dimension_numbers = #tpu.dot_dimension_numbers<[1], [0], [0], [1], [0, 0, 1, 1], [], []>} : vector<8x4xf32>, vector<4x128xf32>, vector<8x128xf32> -> vector<8x128xf32>
    %cst_42 = arith.constant dense<0.000000e+00> : vector<8x128xf32>
    %101 = tpu.matmul %71, %13, %cst_42 {dimension_numbers = #tpu.dot_dimension_numbers<[1], [0], [0], [1], [0, 0, 1, 1], [], []>} : vector<8x32xf32>, vector<32x128xf32>, vector<8x128xf32> -> vector<8x128xf32>
    %102 = arith.addf %100, %101 : vector<8x128xf32>
    %103 = vector.broadcast %14 : vector<1x128xf32> to vector<8x128xf32>
    %104 = arith.addf %102, %103 : vector<8x128xf32>
    %105 = vector.extract_strided_slice %104 {offsets = [0, 0], sizes = [8, 32], strides = [1, 1]} : vector<8x128xf32> to vector<8x32xf32>
    %106 = arith.negf %105 : vector<8x32xf32>
    %107 = math.exp %106 : vector<8x32xf32>
    %cst_43 = arith.constant 1.000000e+00 : f32
    %108 = vector.broadcast %cst_43 : f32 to vector<8x32xf32>
    %109 = arith.addf %108, %107 : vector<8x32xf32>
    %110 = arith.divf %108, %109 : vector<8x32xf32>
    %111 = vector.extract_strided_slice %104 {offsets = [0, 32], sizes = [8, 32], strides = [1, 1]} : vector<8x128xf32> to vector<8x32xf32>
    %112 = arith.negf %111 : vector<8x32xf32>
    %113 = math.exp %112 : vector<8x32xf32>
    %cst_44 = arith.constant 1.000000e+00 : f32
    %114 = vector.broadcast %cst_44 : f32 to vector<8x32xf32>
    %115 = arith.addf %114, %113 : vector<8x32xf32>
    %116 = arith.divf %114, %115 : vector<8x32xf32>
    %117 = vector.extract_strided_slice %104 {offsets = [0, 64], sizes = [8, 32], strides = [1, 1]} : vector<8x128xf32> to vector<8x32xf32>
    %118 = math.tanh %117 : vector<8x32xf32>
    %119 = vector.extract_strided_slice %104 {offsets = [0, 96], sizes = [8, 32], strides = [1, 1]} : vector<8x128xf32> to vector<8x32xf32>
    %120 = arith.negf %119 : vector<8x32xf32>
    %121 = math.exp %120 : vector<8x32xf32>
    %cst_45 = arith.constant 1.000000e+00 : f32
    %122 = vector.broadcast %cst_45 : f32 to vector<8x32xf32>
    %123 = arith.addf %122, %121 : vector<8x32xf32>
    %124 = arith.divf %122, %123 : vector<8x32xf32>
    %125 = arith.mulf %116, %69 : vector<8x32xf32>
    %126 = arith.mulf %110, %118 : vector<8x32xf32>
    %127 = arith.addf %125, %126 : vector<8x32xf32>
    %128 = math.tanh %127 : vector<8x32xf32>
    %129 = arith.mulf %124, %128 : vector<8x32xf32>
    %c0_46 = arith.constant 0 : index
    %c1 = arith.constant 1 : index
    %c0_47 = arith.constant 0 : index
    %130 = vector.load %arg20[%c0_46, %c1, %c0_47] : memref<8x8x32xf32, #tpu.memory_space<vmem>>, vector<8x1x32xf32>
    %131 = vector.shape_cast %130 : vector<8x1x32xf32> to vector<8x32xf32>
    %132 = vector.shape_cast %129 : vector<8x32xf32> to vector<8x1x32xf32>
    tpu.vector_store %arg20[%c0_46, %c1, %c0_47], %132 {strides = array<i32>} : memref<8x8x32xf32, #tpu.memory_space<vmem>>, vector<8x1x32xf32>,
    %133 = tpu.concatenate %129, %127 in 1 : vector<8x32xf32>, vector<8x32xf32> -> vector<8x64xf32>
    %cst_48 = arith.constant dense<0.000000e+00> : vector<8x8xf32>
    %134 = tpu.matmul %133, %9, %cst_48 {dimension_numbers = #tpu.dot_dimension_numbers<[1], [0], [0], [1], [0, 0, 1, 1], [], []>} : vector<8x64xf32>, vector<64x8xf32>, vector<8x8xf32> -> vector<8x8xf32>
    %135 = vector.broadcast %10 : vector<1x8xf32> to vector<8x8xf32>
    %136 = arith.addf %134, %135 : vector<8x8xf32>
    %137 = vector.shape_cast %136 : vector<8x8xf32> to vector<8x1x8xf32>
    %138 = vector.broadcast %137 : vector<8x1x8xf32> to vector<8x4x8xf32>
    %139 = arith.addf %7, %138 : vector<8x4x8xf32>
    %140 = math.tanh %139 : vector<8x4x8xf32>
    %141 = vector.shape_cast %11 : vector<1x8xf32> to vector<1x1x8xf32>
    %142 = vector.broadcast %141 : vector<1x1x8xf32> to vector<8x4x8xf32>
    %143 = arith.mulf %140, %142 : vector<8x4x8xf32>
    %cst_49 = arith.constant dense<0.000000e+00> : vector<8x4xf32>
    %144 = vector.multi_reduction <add>, %143, %cst_49 [2] : vector<8x4x8xf32> to vector<8x4xf32>
    %cst_50 = arith.constant dense<0xFF800000> : vector<8xf32>
    %145 = vector.multi_reduction <maximumf>, %144, %cst_50 [1] : vector<8x4xf32> to vector<8xf32>
    %146 = vector.shape_cast %145 : vector<8xf32> to vector<8x1xf32>
    %147 = vector.broadcast %146 : vector<8x1xf32> to vector<8x4xf32>
    %148 = arith.subf %144, %147 : vector<8x4xf32>
    %149 = math.exp %148 : vector<8x4xf32>
    %cst_51 = arith.constant dense<0.000000e+00> : vector<8xf32>
    %150 = vector.multi_reduction <add>, %149, %cst_51 [1] : vector<8x4xf32> to vector<8xf32>
    %151 = vector.shape_cast %150 : vector<8xf32> to vector<8x1xf32>
    %152 = tpu.reciprocal %151 : vector<8x1xf32> -> vector<8x1xf32>
    %153 = vector.broadcast %152 : vector<8x1xf32> to vector<8x4xf32>
    %154 = arith.mulf %149, %153 : vector<8x4xf32>
    %155 = vector.extract_strided_slice %8 {offsets = [0, 2, 0], sizes = [8, 1, 4], strides = [1, 1, 1]} : vector<8x8x4xf32> to vector<8x1x4xf32>
    %156 = vector.shape_cast %155 : vector<8x1x4xf32> to vector<8x4xf32>
    %157 = arith.mulf %154, %156 : vector<8x4xf32>
    %cst_52 = arith.constant dense<0.000000e+00> : vector<8x128xf32>
    %158 = tpu.matmul %157, %12, %cst_52 {dimension_numbers = #tpu.dot_dimension_numbers<[1], [0], [0], [1], [0, 0, 1, 1], [], []>} : vector<8x4xf32>, vector<4x128xf32>, vector<8x128xf32> -> vector<8x128xf32>
    %cst_53 = arith.constant dense<0.000000e+00> : vector<8x128xf32>
    %159 = tpu.matmul %129, %13, %cst_53 {dimension_numbers = #tpu.dot_dimension_numbers<[1], [0], [0], [1], [0, 0, 1, 1], [], []>} : vector<8x32xf32>, vector<32x128xf32>, vector<8x128xf32> -> vector<8x128xf32>
    %160 = arith.addf %158, %159 : vector<8x128xf32>
    %161 = vector.broadcast %14 : vector<1x128xf32> to vector<8x128xf32>
    %162 = arith.addf %160, %161 : vector<8x128xf32>
    %163 = vector.extract_strided_slice %162 {offsets = [0, 0], sizes = [8, 32], strides = [1, 1]} : vector<8x128xf32> to vector<8x32xf32>
    %164 = arith.negf %163 : vector<8x32xf32>
    %165 = math.exp %164 : vector<8x32xf32>
    %cst_54 = arith.constant 1.000000e+00 : f32
    %166 = vector.broadcast %cst_54 : f32 to vector<8x32xf32>
    %167 = arith.addf %166, %165 : vector<8x32xf32>
    %168 = arith.divf %166, %167 : vector<8x32xf32>
    %169 = vector.extract_strided_slice %162 {offsets = [0, 32], sizes = [8, 32], strides = [1, 1]} : vector<8x128xf32> to vector<8x32xf32>
    %170 = arith.negf %169 : vector<8x32xf32>
    %171 = math.exp %170 : vector<8x32xf32>
    %cst_55 = arith.constant 1.000000e+00 : f32
    %172 = vector.broadcast %cst_55 : f32 to vector<8x32xf32>
    %173 = arith.addf %172, %171 : vector<8x32xf32>
    %174 = arith.divf %172, %173 : vector<8x32xf32>
    %175 = vector.extract_strided_slice %162 {offsets = [0, 64], sizes = [8, 32], strides = [1, 1]} : vector<8x128xf32> to vector<8x32xf32>
    %176 = math.tanh %175 : vector<8x32xf32>
    %177 = vector.extract_strided_slice %162 {offsets = [0, 96], sizes = [8, 32], strides = [1, 1]} : vector<8x128xf32> to vector<8x32xf32>
    %178 = arith.negf %177 : vector<8x32xf32>
    %179 = math.exp %178 : vector<8x32xf32>
    %cst_56 = arith.constant 1.000000e+00 : f32
    %180 = vector.broadcast %cst_56 : f32 to vector<8x32xf32>
    %181 = arith.addf %180, %179 : vector<8x32xf32>
    %182 = arith.divf %180, %181 : vector<8x32xf32>
    %183 = arith.mulf %174, %127 : vector<8x32xf32>
    %184 = arith.mulf %168, %176 : vector<8x32xf32>
    %185 = arith.addf %183, %184 : vector<8x32xf32>
    %186 = math.tanh %185 : vector<8x32xf32>
    %187 = arith.mulf %182, %186 : vector<8x32xf32>
    %c0_57 = arith.constant 0 : index
    %c2 = arith.constant 2 : index
    %c0_58 = arith.constant 0 : index
    %188 = vector.load %arg20[%c0_57, %c2, %c0_58] : memref<8x8x32xf32, #tpu.memory_space<vmem>>, vector<8x1x32xf32>
    %189 = vector.shape_cast %188 : vector<8x1x32xf32> to vector<8x32xf32>
    %190 = vector.shape_cast %187 : vector<8x32xf32> to vector<8x1x32xf32>
    tpu.vector_store %arg20[%c0_57, %c2, %c0_58], %190 {strides = array<i32>} : memref<8x8x32xf32, #tpu.memory_space<vmem>>, vector<8x1x32xf32>,
    %191 = tpu.concatenate %187, %185 in 1 : vector<8x32xf32>, vector<8x32xf32> -> vector<8x64xf32>
    %cst_59 = arith.constant dense<0.000000e+00> : vector<8x8xf32>
    %192 = tpu.matmul %191, %9, %cst_59 {dimension_numbers = #tpu.dot_dimension_numbers<[1], [0], [0], [1], [0, 0, 1, 1], [], []>} : vector<8x64xf32>, vector<64x8xf32>, vector<8x8xf32> -> vector<8x8xf32>
    %193 = vector.broadcast %10 : vector<1x8xf32> to vector<8x8xf32>
    %194 = arith.addf %192, %193 : vector<8x8xf32>
    %195 = vector.shape_cast %194 : vector<8x8xf32> to vector<8x1x8xf32>
    %196 = vector.broadcast %195 : vector<8x1x8xf32> to vector<8x4x8xf32>
    %197 = arith.addf %7, %196 : vector<8x4x8xf32>
    %198 = math.tanh %197 : vector<8x4x8xf32>
    %199 = vector.shape_cast %11 : vector<1x8xf32> to vector<1x1x8xf32>
    %200 = vector.broadcast %199 : vector<1x1x8xf32> to vector<8x4x8xf32>
    %201 = arith.mulf %198, %200 : vector<8x4x8xf32>
    %cst_60 = arith.constant dense<0.000000e+00> : vector<8x4xf32>
    %202 = vector.multi_reduction <add>, %201, %cst_60 [2] : vector<8x4x8xf32> to vector<8x4xf32>
    %cst_61 = arith.constant dense<0xFF800000> : vector<8xf32>
    %203 = vector.multi_reduction <maximumf>, %202, %cst_61 [1] : vector<8x4xf32> to vector<8xf32>
    %204 = vector.shape_cast %203 : vector<8xf32> to vector<8x1xf32>
    %205 = vector.broadcast %204 : vector<8x1xf32> to vector<8x4xf32>
    %206 = arith.subf %202, %205 : vector<8x4xf32>
    %207 = math.exp %206 : vector<8x4xf32>
    %cst_62 = arith.constant dense<0.000000e+00> : vector<8xf32>
    %208 = vector.multi_reduction <add>, %207, %cst_62 [1] : vector<8x4xf32> to vector<8xf32>
    %209 = vector.shape_cast %208 : vector<8xf32> to vector<8x1xf32>
    %210 = tpu.reciprocal %209 : vector<8x1xf32> -> vector<8x1xf32>
    %211 = vector.broadcast %210 : vector<8x1xf32> to vector<8x4xf32>
    %212 = arith.mulf %207, %211 : vector<8x4xf32>
    %213 = vector.extract_strided_slice %8 {offsets = [0, 3, 0], sizes = [8, 1, 4], strides = [1, 1, 1]} : vector<8x8x4xf32> to vector<8x1x4xf32>
    %214 = vector.shape_cast %213 : vector<8x1x4xf32> to vector<8x4xf32>
    %215 = arith.mulf %212, %214 : vector<8x4xf32>
    %cst_63 = arith.constant dense<0.000000e+00> : vector<8x128xf32>
    %216 = tpu.matmul %215, %12, %cst_63 {dimension_numbers = #tpu.dot_dimension_numbers<[1], [0], [0], [1], [0, 0, 1, 1], [], []>} : vector<8x4xf32>, vector<4x128xf32>, vector<8x128xf32> -> vector<8x128xf32>
    %cst_64 = arith.constant dense<0.000000e+00> : vector<8x128xf32>
    %217 = tpu.matmul %187, %13, %cst_64 {dimension_numbers = #tpu.dot_dimension_numbers<[1], [0], [0], [1], [0, 0, 1, 1], [], []>} : vector<8x32xf32>, vector<32x128xf32>, vector<8x128xf32> -> vector<8x128xf32>
    %218 = arith.addf %216, %217 : vector<8x128xf32>
    %219 = vector.broadcast %14 : vector<1x128xf32> to vector<8x128xf32>
    %220 = arith.addf %218, %219 : vector<8x128xf32>
    %221 = vector.extract_strided_slice %220 {offsets = [0, 0], sizes = [8, 32], strides = [1, 1]} : vector<8x128xf32> to vector<8x32xf32>
    %222 = arith.negf %221 : vector<8x32xf32>
    %223 = math.exp %222 : vector<8x32xf32>
    %cst_65 = arith.constant 1.000000e+00 : f32
    %224 = vector.broadcast %cst_65 : f32 to vector<8x32xf32>
    %225 = arith.addf %224, %223 : vector<8x32xf32>
    %226 = arith.divf %224, %225 : vector<8x32xf32>
    %227 = vector.extract_strided_slice %220 {offsets = [0, 32], sizes = [8, 32], strides = [1, 1]} : vector<8x128xf32> to vector<8x32xf32>
    %228 = arith.negf %227 : vector<8x32xf32>
    %229 = math.exp %228 : vector<8x32xf32>
    %cst_66 = arith.constant 1.000000e+00 : f32
    %230 = vector.broadcast %cst_66 : f32 to vector<8x32xf32>
    %231 = arith.addf %230, %229 : vector<8x32xf32>
    %232 = arith.divf %230, %231 : vector<8x32xf32>
    %233 = vector.extract_strided_slice %220 {offsets = [0, 64], sizes = [8, 32], strides = [1, 1]} : vector<8x128xf32> to vector<8x32xf32>
    %234 = math.tanh %233 : vector<8x32xf32>
    %235 = vector.extract_strided_slice %220 {offsets = [0, 96], sizes = [8, 32], strides = [1, 1]} : vector<8x128xf32> to vector<8x32xf32>
    %236 = arith.negf %235 : vector<8x32xf32>
    %237 = math.exp %236 : vector<8x32xf32>
    %cst_67 = arith.constant 1.000000e+00 : f32
    %238 = vector.broadcast %cst_67 : f32 to vector<8x32xf32>
    %239 = arith.addf %238, %237 : vector<8x32xf32>
    %240 = arith.divf %238, %239 : vector<8x32xf32>
    %241 = arith.mulf %232, %185 : vector<8x32xf32>
    %242 = arith.mulf %226, %234 : vector<8x32xf32>
    %243 = arith.addf %241, %242 : vector<8x32xf32>
    %244 = math.tanh %243 : vector<8x32xf32>
    %245 = arith.mulf %240, %244 : vector<8x32xf32>
    %c0_68 = arith.constant 0 : index
    %c3 = arith.constant 3 : index
    %c0_69 = arith.constant 0 : index
    %246 = vector.load %arg20[%c0_68, %c3, %c0_69] : memref<8x8x32xf32, #tpu.memory_space<vmem>>, vector<8x1x32xf32>
    %247 = vector.shape_cast %246 : vector<8x1x32xf32> to vector<8x32xf32>
    %248 = vector.shape_cast %245 : vector<8x32xf32> to vector<8x1x32xf32>
    tpu.vector_store %arg20[%c0_68, %c3, %c0_69], %248 {strides = array<i32>} : memref<8x8x32xf32, #tpu.memory_space<vmem>>, vector<8x1x32xf32>,
    %249 = tpu.concatenate %245, %243 in 1 : vector<8x32xf32>, vector<8x32xf32> -> vector<8x64xf32>
    %cst_70 = arith.constant dense<0.000000e+00> : vector<8x8xf32>
    %250 = tpu.matmul %249, %9, %cst_70 {dimension_numbers = #tpu.dot_dimension_numbers<[1], [0], [0], [1], [0, 0, 1, 1], [], []>} : vector<8x64xf32>, vector<64x8xf32>, vector<8x8xf32> -> vector<8x8xf32>
    %251 = vector.broadcast %10 : vector<1x8xf32> to vector<8x8xf32>
    %252 = arith.addf %250, %251 : vector<8x8xf32>
    %253 = vector.shape_cast %252 : vector<8x8xf32> to vector<8x1x8xf32>
    %254 = vector.broadcast %253 : vector<8x1x8xf32> to vector<8x4x8xf32>
    %255 = arith.addf %7, %254 : vector<8x4x8xf32>
    %256 = math.tanh %255 : vector<8x4x8xf32>
    %257 = vector.shape_cast %11 : vector<1x8xf32> to vector<1x1x8xf32>
    %258 = vector.broadcast %257 : vector<1x1x8xf32> to vector<8x4x8xf32>
    %259 = arith.mulf %256, %258 : vector<8x4x8xf32>
    %cst_71 = arith.constant dense<0.000000e+00> : vector<8x4xf32>
    %260 = vector.multi_reduction <add>, %259, %cst_71 [2] : vector<8x4x8xf32> to vector<8x4xf32>
    %cst_72 = arith.constant dense<0xFF800000> : vector<8xf32>
    %261 = vector.multi_reduction <maximumf>, %260, %cst_72 [1] : vector<8x4xf32> to vector<8xf32>
    %262 = vector.shape_cast %261 : vector<8xf32> to vector<8x1xf32>
    %263 = vector.broadcast %262 : vector<8x1xf32> to vector<8x4xf32>
    %264 = arith.subf %260, %263 : vector<8x4xf32>
    %265 = math.exp %264 : vector<8x4xf32>
    %cst_73 = arith.constant dense<0.000000e+00> : vector<8xf32>
    %266 = vector.multi_reduction <add>, %265, %cst_73 [1] : vector<8x4xf32> to vector<8xf32>
    %267 = vector.shape_cast %266 : vector<8xf32> to vector<8x1xf32>
    %268 = tpu.reciprocal %267 : vector<8x1xf32> -> vector<8x1xf32>
    %269 = vector.broadcast %268 : vector<8x1xf32> to vector<8x4xf32>
    %270 = arith.mulf %265, %269 : vector<8x4xf32>
    %271 = vector.extract_strided_slice %8 {offsets = [0, 4, 0], sizes = [8, 1, 4], strides = [1, 1, 1]} : vector<8x8x4xf32> to vector<8x1x4xf32>
    %272 = vector.shape_cast %271 : vector<8x1x4xf32> to vector<8x4xf32>
    %273 = arith.mulf %270, %272 : vector<8x4xf32>
    %cst_74 = arith.constant dense<0.000000e+00> : vector<8x128xf32>
    %274 = tpu.matmul %273, %12, %cst_74 {dimension_numbers = #tpu.dot_dimension_numbers<[1], [0], [0], [1], [0, 0, 1, 1], [], []>} : vector<8x4xf32>, vector<4x128xf32>, vector<8x128xf32> -> vector<8x128xf32>
    %cst_75 = arith.constant dense<0.000000e+00> : vector<8x128xf32>
    %275 = tpu.matmul %245, %13, %cst_75 {dimension_numbers = #tpu.dot_dimension_numbers<[1], [0], [0], [1], [0, 0, 1, 1], [], []>} : vector<8x32xf32>, vector<32x128xf32>, vector<8x128xf32> -> vector<8x128xf32>
    %276 = arith.addf %274, %275 : vector<8x128xf32>
    %277 = vector.broadcast %14 : vector<1x128xf32> to vector<8x128xf32>
    %278 = arith.addf %276, %277 : vector<8x128xf32>
    %279 = vector.extract_strided_slice %278 {offsets = [0, 0], sizes = [8, 32], strides = [1, 1]} : vector<8x128xf32> to vector<8x32xf32>
    %280 = arith.negf %279 : vector<8x32xf32>
    %281 = math.exp %280 : vector<8x32xf32>
    %cst_76 = arith.constant 1.000000e+00 : f32
    %282 = vector.broadcast %cst_76 : f32 to vector<8x32xf32>
    %283 = arith.addf %282, %281 : vector<8x32xf32>
    %284 = arith.divf %282, %283 : vector<8x32xf32>
    %285 = vector.extract_strided_slice %278 {offsets = [0, 32], sizes = [8, 32], strides = [1, 1]} : vector<8x128xf32> to vector<8x32xf32>
    %286 = arith.negf %285 : vector<8x32xf32>
    %287 = math.exp %286 : vector<8x32xf32>
    %cst_77 = arith.constant 1.000000e+00 : f32
    %288 = vector.broadcast %cst_77 : f32 to vector<8x32xf32>
    %289 = arith.addf %288, %287 : vector<8x32xf32>
    %290 = arith.divf %288, %289 : vector<8x32xf32>
    %291 = vector.extract_strided_slice %278 {offsets = [0, 64], sizes = [8, 32], strides = [1, 1]} : vector<8x128xf32> to vector<8x32xf32>
    %292 = math.tanh %291 : vector<8x32xf32>
    %293 = vector.extract_strided_slice %278 {offsets = [0, 96], sizes = [8, 32], strides = [1, 1]} : vector<8x128xf32> to vector<8x32xf32>
    %294 = arith.negf %293 : vector<8x32xf32>
    %295 = math.exp %294 : vector<8x32xf32>
    %cst_78 = arith.constant 1.000000e+00 : f32
    %296 = vector.broadcast %cst_78 : f32 to vector<8x32xf32>
    %297 = arith.addf %296, %295 : vector<8x32xf32>
    %298 = arith.divf %296, %297 : vector<8x32xf32>
    %299 = arith.mulf %290, %243 : vector<8x32xf32>
    %300 = arith.mulf %284, %292 : vector<8x32xf32>
    %301 = arith.addf %299, %300 : vector<8x32xf32>
    %302 = math.tanh %301 : vector<8x32xf32>
    %303 = arith.mulf %298, %302 : vector<8x32xf32>
    %c0_79 = arith.constant 0 : index
    %c4 = arith.constant 4 : index
    %c0_80 = arith.constant 0 : index
    %304 = vector.load %arg20[%c0_79, %c4, %c0_80] : memref<8x8x32xf32, #tpu.memory_space<vmem>>, vector<8x1x32xf32>
    %305 = vector.shape_cast %304 : vector<8x1x32xf32> to vector<8x32xf32>
    %306 = vector.shape_cast %303 : vector<8x32xf32> to vector<8x1x32xf32>
    tpu.vector_store %arg20[%c0_79, %c4, %c0_80], %306 {strides = array<i32>} : memref<8x8x32xf32, #tpu.memory_space<vmem>>, vector<8x1x32xf32>,
    %307 = tpu.concatenate %303, %301 in 1 : vector<8x32xf32>, vector<8x32xf32> -> vector<8x64xf32>
    %cst_81 = arith.constant dense<0.000000e+00> : vector<8x8xf32>
    %308 = tpu.matmul %307, %9, %cst_81 {dimension_numbers = #tpu.dot_dimension_numbers<[1], [0], [0], [1], [0, 0, 1, 1], [], []>} : vector<8x64xf32>, vector<64x8xf32>, vector<8x8xf32> -> vector<8x8xf32>
    %309 = vector.broadcast %10 : vector<1x8xf32> to vector<8x8xf32>
    %310 = arith.addf %308, %309 : vector<8x8xf32>
    %311 = vector.shape_cast %310 : vector<8x8xf32> to vector<8x1x8xf32>
    %312 = vector.broadcast %311 : vector<8x1x8xf32> to vector<8x4x8xf32>
    %313 = arith.addf %7, %312 : vector<8x4x8xf32>
    %314 = math.tanh %313 : vector<8x4x8xf32>
    %315 = vector.shape_cast %11 : vector<1x8xf32> to vector<1x1x8xf32>
    %316 = vector.broadcast %315 : vector<1x1x8xf32> to vector<8x4x8xf32>
    %317 = arith.mulf %314, %316 : vector<8x4x8xf32>
    %cst_82 = arith.constant dense<0.000000e+00> : vector<8x4xf32>
    %318 = vector.multi_reduction <add>, %317, %cst_82 [2] : vector<8x4x8xf32> to vector<8x4xf32>
    %cst_83 = arith.constant dense<0xFF800000> : vector<8xf32>
    %319 = vector.multi_reduction <maximumf>, %318, %cst_83 [1] : vector<8x4xf32> to vector<8xf32>
    %320 = vector.shape_cast %319 : vector<8xf32> to vector<8x1xf32>
    %321 = vector.broadcast %320 : vector<8x1xf32> to vector<8x4xf32>
    %322 = arith.subf %318, %321 : vector<8x4xf32>
    %323 = math.exp %322 : vector<8x4xf32>
    %cst_84 = arith.constant dense<0.000000e+00> : vector<8xf32>
    %324 = vector.multi_reduction <add>, %323, %cst_84 [1] : vector<8x4xf32> to vector<8xf32>
    %325 = vector.shape_cast %324 : vector<8xf32> to vector<8x1xf32>
    %326 = tpu.reciprocal %325 : vector<8x1xf32> -> vector<8x1xf32>
    %327 = vector.broadcast %326 : vector<8x1xf32> to vector<8x4xf32>
    %328 = arith.mulf %323, %327 : vector<8x4xf32>
    %329 = vector.extract_strided_slice %8 {offsets = [0, 5, 0], sizes = [8, 1, 4], strides = [1, 1, 1]} : vector<8x8x4xf32> to vector<8x1x4xf32>
    %330 = vector.shape_cast %329 : vector<8x1x4xf32> to vector<8x4xf32>
    %331 = arith.mulf %328, %330 : vector<8x4xf32>
    %cst_85 = arith.constant dense<0.000000e+00> : vector<8x128xf32>
    %332 = tpu.matmul %331, %12, %cst_85 {dimension_numbers = #tpu.dot_dimension_numbers<[1], [0], [0], [1], [0, 0, 1, 1], [], []>} : vector<8x4xf32>, vector<4x128xf32>, vector<8x128xf32> -> vector<8x128xf32>
    %cst_86 = arith.constant dense<0.000000e+00> : vector<8x128xf32>
    %333 = tpu.matmul %303, %13, %cst_86 {dimension_numbers = #tpu.dot_dimension_numbers<[1], [0], [0], [1], [0, 0, 1, 1], [], []>} : vector<8x32xf32>, vector<32x128xf32>, vector<8x128xf32> -> vector<8x128xf32>
    %334 = arith.addf %332, %333 : vector<8x128xf32>
    %335 = vector.broadcast %14 : vector<1x128xf32> to vector<8x128xf32>
    %336 = arith.addf %334, %335 : vector<8x128xf32>
    %337 = vector.extract_strided_slice %336 {offsets = [0, 0], sizes = [8, 32], strides = [1, 1]} : vector<8x128xf32> to vector<8x32xf32>
    %338 = arith.negf %337 : vector<8x32xf32>
    %339 = math.exp %338 : vector<8x32xf32>
    %cst_87 = arith.constant 1.000000e+00 : f32
    %340 = vector.broadcast %cst_87 : f32 to vector<8x32xf32>
    %341 = arith.addf %340, %339 : vector<8x32xf32>
    %342 = arith.divf %340, %341 : vector<8x32xf32>
    %343 = vector.extract_strided_slice %336 {offsets = [0, 32], sizes = [8, 32], strides = [1, 1]} : vector<8x128xf32> to vector<8x32xf32>
    %344 = arith.negf %343 : vector<8x32xf32>
    %345 = math.exp %344 : vector<8x32xf32>
    %cst_88 = arith.constant 1.000000e+00 : f32
    %346 = vector.broadcast %cst_88 : f32 to vector<8x32xf32>
    %347 = arith.addf %346, %345 : vector<8x32xf32>
    %348 = arith.divf %346, %347 : vector<8x32xf32>
    %349 = vector.extract_strided_slice %336 {offsets = [0, 64], sizes = [8, 32], strides = [1, 1]} : vector<8x128xf32> to vector<8x32xf32>
    %350 = math.tanh %349 : vector<8x32xf32>
    %351 = vector.extract_strided_slice %336 {offsets = [0, 96], sizes = [8, 32], strides = [1, 1]} : vector<8x128xf32> to vector<8x32xf32>
    %352 = arith.negf %351 : vector<8x32xf32>
    %353 = math.exp %352 : vector<8x32xf32>
    %cst_89 = arith.constant 1.000000e+00 : f32
    %354 = vector.broadcast %cst_89 : f32 to vector<8x32xf32>
    %355 = arith.addf %354, %353 : vector<8x32xf32>
    %356 = arith.divf %354, %355 : vector<8x32xf32>
    %357 = arith.mulf %348, %301 : vector<8x32xf32>
    %358 = arith.mulf %342, %350 : vector<8x32xf32>
    %359 = arith.addf %357, %358 : vector<8x32xf32>
    %360 = math.tanh %359 : vector<8x32xf32>
    %361 = arith.mulf %356, %360 : vector<8x32xf32>
    %c0_90 = arith.constant 0 : index
    %c5 = arith.constant 5 : index
    %c0_91 = arith.constant 0 : index
    %362 = vector.load %arg20[%c0_90, %c5, %c0_91] : memref<8x8x32xf32, #tpu.memory_space<vmem>>, vector<8x1x32xf32>
    %363 = vector.shape_cast %362 : vector<8x1x32xf32> to vector<8x32xf32>
    %364 = vector.shape_cast %361 : vector<8x32xf32> to vector<8x1x32xf32>
    tpu.vector_store %arg20[%c0_90, %c5, %c0_91], %364 {strides = array<i32>} : memref<8x8x32xf32, #tpu.memory_space<vmem>>, vector<8x1x32xf32>,
    %365 = tpu.concatenate %361, %359 in 1 : vector<8x32xf32>, vector<8x32xf32> -> vector<8x64xf32>
    %cst_92 = arith.constant dense<0.000000e+00> : vector<8x8xf32>
    %366 = tpu.matmul %365, %9, %cst_92 {dimension_numbers = #tpu.dot_dimension_numbers<[1], [0], [0], [1], [0, 0, 1, 1], [], []>} : vector<8x64xf32>, vector<64x8xf32>, vector<8x8xf32> -> vector<8x8xf32>
    %367 = vector.broadcast %10 : vector<1x8xf32> to vector<8x8xf32>
    %368 = arith.addf %366, %367 : vector<8x8xf32>
    %369 = vector.shape_cast %368 : vector<8x8xf32> to vector<8x1x8xf32>
    %370 = vector.broadcast %369 : vector<8x1x8xf32> to vector<8x4x8xf32>
    %371 = arith.addf %7, %370 : vector<8x4x8xf32>
    %372 = math.tanh %371 : vector<8x4x8xf32>
    %373 = vector.shape_cast %11 : vector<1x8xf32> to vector<1x1x8xf32>
    %374 = vector.broadcast %373 : vector<1x1x8xf32> to vector<8x4x8xf32>
    %375 = arith.mulf %372, %374 : vector<8x4x8xf32>
    %cst_93 = arith.constant dense<0.000000e+00> : vector<8x4xf32>
    %376 = vector.multi_reduction <add>, %375, %cst_93 [2] : vector<8x4x8xf32> to vector<8x4xf32>
    %cst_94 = arith.constant dense<0xFF800000> : vector<8xf32>
    %377 = vector.multi_reduction <maximumf>, %376, %cst_94 [1] : vector<8x4xf32> to vector<8xf32>
    %378 = vector.shape_cast %377 : vector<8xf32> to vector<8x1xf32>
    %379 = vector.broadcast %378 : vector<8x1xf32> to vector<8x4xf32>
    %380 = arith.subf %376, %379 : vector<8x4xf32>
    %381 = math.exp %380 : vector<8x4xf32>
    %cst_95 = arith.constant dense<0.000000e+00> : vector<8xf32>
    %382 = vector.multi_reduction <add>, %381, %cst_95 [1] : vector<8x4xf32> to vector<8xf32>
    %383 = vector.shape_cast %382 : vector<8xf32> to vector<8x1xf32>
    %384 = tpu.reciprocal %383 : vector<8x1xf32> -> vector<8x1xf32>
    %385 = vector.broadcast %384 : vector<8x1xf32> to vector<8x4xf32>
    %386 = arith.mulf %381, %385 : vector<8x4xf32>
    %387 = vector.extract_strided_slice %8 {offsets = [0, 6, 0], sizes = [8, 1, 4], strides = [1, 1, 1]} : vector<8x8x4xf32> to vector<8x1x4xf32>
    %388 = vector.shape_cast %387 : vector<8x1x4xf32> to vector<8x4xf32>
    %389 = arith.mulf %386, %388 : vector<8x4xf32>
    %cst_96 = arith.constant dense<0.000000e+00> : vector<8x128xf32>
    %390 = tpu.matmul %389, %12, %cst_96 {dimension_numbers = #tpu.dot_dimension_numbers<[1], [0], [0], [1], [0, 0, 1, 1], [], []>} : vector<8x4xf32>, vector<4x128xf32>, vector<8x128xf32> -> vector<8x128xf32>
    %cst_97 = arith.constant dense<0.000000e+00> : vector<8x128xf32>
    %391 = tpu.matmul %361, %13, %cst_97 {dimension_numbers = #tpu.dot_dimension_numbers<[1], [0], [0], [1], [0, 0, 1, 1], [], []>} : vector<8x32xf32>, vector<32x128xf32>, vector<8x128xf32> -> vector<8x128xf32>
    %392 = arith.addf %390, %391 : vector<8x128xf32>
    %393 = vector.broadcast %14 : vector<1x128xf32> to vector<8x128xf32>
    %394 = arith.addf %392, %393 : vector<8x128xf32>
    %395 = vector.extract_strided_slice %394 {offsets = [0, 0], sizes = [8, 32], strides = [1, 1]} : vector<8x128xf32> to vector<8x32xf32>
    %396 = arith.negf %395 : vector<8x32xf32>
    %397 = math.exp %396 : vector<8x32xf32>
    %cst_98 = arith.constant 1.000000e+00 : f32
    %398 = vector.broadcast %cst_98 : f32 to vector<8x32xf32>
    %399 = arith.addf %398, %397 : vector<8x32xf32>
    %400 = arith.divf %398, %399 : vector<8x32xf32>
    %401 = vector.extract_strided_slice %394 {offsets = [0, 32], sizes = [8, 32], strides = [1, 1]} : vector<8x128xf32> to vector<8x32xf32>
    %402 = arith.negf %401 : vector<8x32xf32>
    %403 = math.exp %402 : vector<8x32xf32>
    %cst_99 = arith.constant 1.000000e+00 : f32
    %404 = vector.broadcast %cst_99 : f32 to vector<8x32xf32>
    %405 = arith.addf %404, %403 : vector<8x32xf32>
    %406 = arith.divf %404, %405 : vector<8x32xf32>
    %407 = vector.extract_strided_slice %394 {offsets = [0, 64], sizes = [8, 32], strides = [1, 1]} : vector<8x128xf32> to vector<8x32xf32>
    %408 = math.tanh %407 : vector<8x32xf32>
    %409 = vector.extract_strided_slice %394 {offsets = [0, 96], sizes = [8, 32], strides = [1, 1]} : vector<8x128xf32> to vector<8x32xf32>
    %410 = arith.negf %409 : vector<8x32xf32>
    %411 = math.exp %410 : vector<8x32xf32>
    %cst_100 = arith.constant 1.000000e+00 : f32
    %412 = vector.broadcast %cst_100 : f32 to vector<8x32xf32>
    %413 = arith.addf %412, %411 : vector<8x32xf32>
    %414 = arith.divf %412, %413 : vector<8x32xf32>
    %415 = arith.mulf %406, %359 : vector<8x32xf32>
    %416 = arith.mulf %400, %408 : vector<8x32xf32>
    %417 = arith.addf %415, %416 : vector<8x32xf32>
    %418 = math.tanh %417 : vector<8x32xf32>
    %419 = arith.mulf %414, %418 : vector<8x32xf32>
    %c0_101 = arith.constant 0 : index
    %c6 = arith.constant 6 : index
    %c0_102 = arith.constant 0 : index
    %420 = vector.load %arg20[%c0_101, %c6, %c0_102] : memref<8x8x32xf32, #tpu.memory_space<vmem>>, vector<8x1x32xf32>
    %421 = vector.shape_cast %420 : vector<8x1x32xf32> to vector<8x32xf32>
    %422 = vector.shape_cast %419 : vector<8x32xf32> to vector<8x1x32xf32>
    tpu.vector_store %arg20[%c0_101, %c6, %c0_102], %422 {strides = array<i32>} : memref<8x8x32xf32, #tpu.memory_space<vmem>>, vector<8x1x32xf32>,
    %423 = tpu.concatenate %419, %417 in 1 : vector<8x32xf32>, vector<8x32xf32> -> vector<8x64xf32>
    %cst_103 = arith.constant dense<0.000000e+00> : vector<8x8xf32>
    %424 = tpu.matmul %423, %9, %cst_103 {dimension_numbers = #tpu.dot_dimension_numbers<[1], [0], [0], [1], [0, 0, 1, 1], [], []>} : vector<8x64xf32>, vector<64x8xf32>, vector<8x8xf32> -> vector<8x8xf32>
    %425 = vector.broadcast %10 : vector<1x8xf32> to vector<8x8xf32>
    %426 = arith.addf %424, %425 : vector<8x8xf32>
    %427 = vector.shape_cast %426 : vector<8x8xf32> to vector<8x1x8xf32>
    %428 = vector.broadcast %427 : vector<8x1x8xf32> to vector<8x4x8xf32>
    %429 = arith.addf %7, %428 : vector<8x4x8xf32>
    %430 = math.tanh %429 : vector<8x4x8xf32>
    %431 = vector.shape_cast %11 : vector<1x8xf32> to vector<1x1x8xf32>
    %432 = vector.broadcast %431 : vector<1x1x8xf32> to vector<8x4x8xf32>
    %433 = arith.mulf %430, %432 : vector<8x4x8xf32>
    %cst_104 = arith.constant dense<0.000000e+00> : vector<8x4xf32>
    %434 = vector.multi_reduction <add>, %433, %cst_104 [2] : vector<8x4x8xf32> to vector<8x4xf32>
    %cst_105 = arith.constant dense<0xFF800000> : vector<8xf32>
    %435 = vector.multi_reduction <maximumf>, %434, %cst_105 [1] : vector<8x4xf32> to vector<8xf32>
    %436 = vector.shape_cast %435 : vector<8xf32> to vector<8x1xf32>
    %437 = vector.broadcast %436 : vector<8x1xf32> to vector<8x4xf32>
    %438 = arith.subf %434, %437 : vector<8x4xf32>
    %439 = math.exp %438 : vector<8x4xf32>
    %cst_106 = arith.constant dense<0.000000e+00> : vector<8xf32>
    %440 = vector.multi_reduction <add>, %439, %cst_106 [1] : vector<8x4xf32> to vector<8xf32>
    %441 = vector.shape_cast %440 : vector<8xf32> to vector<8x1xf32>
    %442 = tpu.reciprocal %441 : vector<8x1xf32> -> vector<8x1xf32>
    %443 = vector.broadcast %442 : vector<8x1xf32> to vector<8x4xf32>
    %444 = arith.mulf %439, %443 : vector<8x4xf32>
    %445 = vector.extract_strided_slice %8 {offsets = [0, 7, 0], sizes = [8, 1, 4], strides = [1, 1, 1]} : vector<8x8x4xf32> to vector<8x1x4xf32>
    %446 = vector.shape_cast %445 : vector<8x1x4xf32> to vector<8x4xf32>
    %447 = arith.mulf %444, %446 : vector<8x4xf32>
    %cst_107 = arith.constant dense<0.000000e+00> : vector<8x128xf32>
    %448 = tpu.matmul %447, %12, %cst_107 {dimension_numbers = #tpu.dot_dimension_numbers<[1], [0], [0], [1], [0, 0, 1, 1], [], []>} : vector<8x4xf32>, vector<4x128xf32>, vector<8x128xf32> -> vector<8x128xf32>
    %cst_108 = arith.constant dense<0.000000e+00> : vector<8x128xf32>
    %449 = tpu.matmul %419, %13, %cst_108 {dimension_numbers = #tpu.dot_dimension_numbers<[1], [0], [0], [1], [0, 0, 1, 1], [], []>} : vector<8x32xf32>, vector<32x128xf32>, vector<8x128xf32> -> vector<8x128xf32>
    %450 = arith.addf %448, %449 : vector<8x128xf32>
    %451 = vector.broadcast %14 : vector<1x128xf32> to vector<8x128xf32>
    %452 = arith.addf %450, %451 : vector<8x128xf32>
    %453 = vector.extract_strided_slice %452 {offsets = [0, 0], sizes = [8, 32], strides = [1, 1]} : vector<8x128xf32> to vector<8x32xf32>
    %454 = arith.negf %453 : vector<8x32xf32>
    %455 = math.exp %454 : vector<8x32xf32>
    %cst_109 = arith.constant 1.000000e+00 : f32
    %456 = vector.broadcast %cst_109 : f32 to vector<8x32xf32>
    %457 = arith.addf %456, %455 : vector<8x32xf32>
    %458 = arith.divf %456, %457 : vector<8x32xf32>
    %459 = vector.extract_strided_slice %452 {offsets = [0, 32], sizes = [8, 32], strides = [1, 1]} : vector<8x128xf32> to vector<8x32xf32>
    %460 = arith.negf %459 : vector<8x32xf32>
    %461 = math.exp %460 : vector<8x32xf32>
    %cst_110 = arith.constant 1.000000e+00 : f32
    %462 = vector.broadcast %cst_110 : f32 to vector<8x32xf32>
    %463 = arith.addf %462, %461 : vector<8x32xf32>
    %464 = arith.divf %462, %463 : vector<8x32xf32>
    %465 = vector.extract_strided_slice %452 {offsets = [0, 64], sizes = [8, 32], strides = [1, 1]} : vector<8x128xf32> to vector<8x32xf32>
    %466 = math.tanh %465 : vector<8x32xf32>
    %467 = vector.extract_strided_slice %452 {offsets = [0, 96], sizes = [8, 32], strides = [1, 1]} : vector<8x128xf32> to vector<8x32xf32>
    %468 = arith.negf %467 : vector<8x32xf32>
    %469 = math.exp %468 : vector<8x32xf32>
    %cst_111 = arith.constant 1.000000e+00 : f32
    %470 = vector.broadcast %cst_111 : f32 to vector<8x32xf32>
    %471 = arith.addf %470, %469 : vector<8x32xf32>
    %472 = arith.divf %470, %471 : vector<8x32xf32>
    %473 = arith.mulf %464, %417 : vector<8x32xf32>
    %474 = arith.mulf %458, %466 : vector<8x32xf32>
    %475 = arith.addf %473, %474 : vector<8x32xf32>
    %476 = math.tanh %475 : vector<8x32xf32>
    %477 = arith.mulf %472, %476 : vector<8x32xf32>
    %c0_112 = arith.constant 0 : index
    %c7 = arith.constant 7 : index
    %c0_113 = arith.constant 0 : index
    %478 = vector.load %arg20[%c0_112, %c7, %c0_113] : memref<8x8x32xf32, #tpu.memory_space<vmem>>, vector<8x1x32xf32>
    %479 = vector.shape_cast %478 : vector<8x1x32xf32> to vector<8x32xf32>
    %480 = vector.shape_cast %477 : vector<8x32xf32> to vector<8x1x32xf32>
    tpu.vector_store %arg20[%c0_112, %c7, %c0_113], %480 {strides = array<i32>} : memref<8x8x32xf32, #tpu.memory_space<vmem>>, vector<8x1x32xf32>,
    %c0_114 = arith.constant 0 : index
    %c0_115 = arith.constant 0 : index
    %c0_116 = arith.constant 0 : index
    %481 = vector.load %arg20[%c0_114, %c0_115, %c0_116] : memref<8x8x32xf32, #tpu.memory_space<vmem>>, vector<8x8x32xf32>
    %482 = vector.shape_cast %481 : vector<8x8x32xf32> to vector<64x32xf32>
    %c0_117 = arith.constant 0 : index
    %c0_118 = arith.constant 0 : index
    %483 = vector.load %arg13[%c0_117, %c0_118] : memref<32x32xf32, #tpu.memory_space<vmem>>, vector<32x32xf32>
    %cst_119 = arith.constant dense<0.000000e+00> : vector<64x32xf32>
    %484 = tpu.matmul %482, %483, %cst_119 {dimension_numbers = #tpu.dot_dimension_numbers<[1], [0], [0], [1], [0, 0, 1, 1], [], []>} : vector<64x32xf32>, vector<32x32xf32>, vector<64x32xf32> -> vector<64x32xf32>
    %c0_120 = arith.constant 0 : index
    %c0_121 = arith.constant 0 : index
    %485 = vector.load %arg14[%c0_120, %c0_121] : memref<1x32xf32, #tpu.memory_space<vmem>>, vector<1x32xf32>
    %486 = vector.broadcast %485 : vector<1x32xf32> to vector<64x32xf32>
    %487 = arith.addf %484, %486 : vector<64x32xf32>
    %488 = math.tanh %487 : vector<64x32xf32>
    %489 = vector.shape_cast %488 : vector<64x32xf32> to vector<8x8x32xf32>
    %c0_122 = arith.constant 0 : index
    %c0_123 = arith.constant 0 : index
    %490 = vector.load %arg15[%c0_122, %c0_123] : memref<1x32xf32, #tpu.memory_space<vmem>>, vector<1x32xf32>
    %491 = vector.shape_cast %490 : vector<1x32xf32> to vector<1x1x32xf32>
    %492 = vector.broadcast %491 : vector<1x1x32xf32> to vector<8x8x32xf32>
    %493 = arith.mulf %489, %492 : vector<8x8x32xf32>
    %cst_124 = arith.constant dense<0.000000e+00> : vector<8x8xf32>
    %494 = vector.multi_reduction <add>, %493, %cst_124 [2] : vector<8x8x32xf32> to vector<8x8xf32>
    %cst_125 = arith.constant dense<0xFF800000> : vector<8xf32>
    %495 = vector.multi_reduction <maximumf>, %494, %cst_125 [1] : vector<8x8xf32> to vector<8xf32>
    %496 = vector.shape_cast %495 : vector<8xf32> to vector<8x1xf32>
    %497 = vector.broadcast %496 : vector<8x1xf32> to vector<8x8xf32>
    %498 = arith.subf %494, %497 : vector<8x8xf32>
    %499 = math.exp %498 : vector<8x8xf32>
    %cst_126 = arith.constant dense<0.000000e+00> : vector<8xf32>
    %500 = vector.multi_reduction <add>, %499, %cst_126 [1] : vector<8x8xf32> to vector<8xf32>
    %501 = vector.shape_cast %500 : vector<8xf32> to vector<8x1xf32>
    %502 = tpu.reciprocal %501 : vector<8x1xf32> -> vector<8x1xf32>
    %503 = vector.broadcast %502 : vector<8x1xf32> to vector<8x8xf32>
    %504 = arith.mulf %499, %503 : vector<8x8xf32>
    %c0_127 = arith.constant 0 : index
    %c0_128 = arith.constant 0 : index
    %505 = vector.load %arg19[%c0_127, %c0_128] : memref<8x8xf32, #tpu.memory_space<vmem>>, vector<8x8xf32>
    tpu.vector_store %arg19[%c0_127, %c0_128], %504 {strides = array<i32>} : memref<8x8xf32, #tpu.memory_space<vmem>>, vector<8x8xf32>,
    %506 = vector.shape_cast %504 : vector<8x8xf32> to vector<8x8x1xf32>
    %507 = vector.broadcast %506 : vector<8x8x1xf32> to vector<8x8x32xf32>
    %508 = arith.mulf %507, %481 : vector<8x8x32xf32>
    %cst_129 = arith.constant dense<0.000000e+00> : vector<8x32xf32>
    %509 = vector.multi_reduction <add>, %508, %cst_129 [1] : vector<8x8x32xf32> to vector<8x32xf32>
    %c0_130 = arith.constant 0 : index
    %c0_131 = arith.constant 0 : index
    %510 = vector.load %arg16[%c0_130, %c0_131] : memref<32x3xf32, #tpu.memory_space<vmem>>, vector<32x3xf32>
    %cst_132 = arith.constant dense<0.000000e+00> : vector<8x3xf32>
    %511 = tpu.matmul %509, %510, %cst_132 {dimension_numbers = #tpu.dot_dimension_numbers<[1], [0], [0], [1], [0, 0, 1, 1], [], []>} : vector<8x32xf32>, vector<32x3xf32>, vector<8x3xf32> -> vector<8x3xf32>
    %c0_133 = arith.constant 0 : index
    %c0_134 = arith.constant 0 : index
    %512 = vector.load %arg17[%c0_133, %c0_134] : memref<1x3xf32, #tpu.memory_space<vmem>>, vector<1x3xf32>
    %513 = vector.broadcast %512 : vector<1x3xf32> to vector<8x3xf32>
    %514 = arith.addf %511, %513 : vector<8x3xf32>
    %c0_135 = arith.constant 0 : index
    %c0_136 = arith.constant 0 : index
    %515 = vector.load %arg18[%c0_135, %c0_136] : memref<8x3xf32, #tpu.memory_space<vmem>>, vector<8x3xf32>
    tpu.vector_store %arg18[%c0_135, %c0_136], %514 {strides = array<i32>} : memref<8x3xf32, #tpu.memory_space<vmem>>, vector<8x3xf32>,
    return
  }
  func.func @transform_0(%arg0: i32) -> (i32, i32, i32) {
    %c0_i32 = arith.constant 0 : i32
    %c0_i32_0 = arith.constant 0 : i32
    %c0_i32_1 = arith.constant 0 : i32
    return %arg0, %c0_i32, %c0_i32_0 : i32, i32, i32
  }
  func.func @transform_1(%arg0: i32) -> (i32, i32, i32) {
    %c0_i32 = arith.constant 0 : i32
    %c0_i32_0 = arith.constant 0 : i32
    %c0_i32_1 = arith.constant 0 : i32
    return %arg0, %c0_i32, %c0_i32_0 : i32, i32, i32
  }
  func.func @transform_2(%arg0: i32) -> (i32, i32) {
    %c0_i32 = arith.constant 0 : i32
    %c0_i32_0 = arith.constant 0 : i32
    return %arg0, %c0_i32 : i32, i32
  }
  func.func @transform_3(%arg0: i32) -> (i32, i32) {
    %c0_i32 = arith.constant 0 : i32
    %c0_i32_0 = arith.constant 0 : i32
    return %arg0, %c0_i32 : i32, i32
  }
  func.func @transform_4(%arg0: i32) -> (i32, i32) {
    %c0_i32 = arith.constant 0 : i32
    %c0_i32_0 = arith.constant 0 : i32
    %c0_i32_1 = arith.constant 0 : i32
    return %c0_i32, %c0_i32_0 : i32, i32
  }
  func.func @transform_5(%arg0: i32) -> (i32, i32) {
    %c0_i32 = arith.constant 0 : i32
    %c0_i32_0 = arith.constant 0 : i32
    %c0_i32_1 = arith.constant 0 : i32
    return %c0_i32, %c0_i32_0 : i32, i32
  }
  func.func @transform_6(%arg0: i32) -> (i32, i32) {
    %c0_i32 = arith.constant 0 : i32
    %c0_i32_0 = arith.constant 0 : i32
    %c0_i32_1 = arith.constant 0 : i32
    return %c0_i32, %c0_i32_0 : i32, i32
  }
  func.func @transform_7(%arg0: i32) -> (i32, i32) {
    %c0_i32 = arith.constant 0 : i32
    %c0_i32_0 = arith.constant 0 : i32
    %c0_i32_1 = arith.constant 0 : i32
    return %c0_i32, %c0_i32_0 : i32, i32
  }
  func.func @transform_8(%arg0: i32) -> (i32, i32) {
    %c0_i32 = arith.constant 0 : i32
    %c0_i32_0 = arith.constant 0 : i32
    %c0_i32_1 = arith.constant 0 : i32
    return %c0_i32, %c0_i32_0 : i32, i32
  }
  func.func @transform_9(%arg0: i32) -> (i32, i32) {
    %c0_i32 = arith.constant 0 : i32
    %c0_i32_0 = arith.constant 0 : i32
    %c0_i32_1 = arith.constant 0 : i32
    return %c0_i32, %c0_i32_0 : i32, i32
  }
  func.func @transform_10(%arg0: i32) -> (i32, i32) {
    %c0_i32 = arith.constant 0 : i32
    %c0_i32_0 = arith.constant 0 : i32
    %c0_i32_1 = arith.constant 0 : i32
    return %c0_i32, %c0_i32_0 : i32, i32
  }
  func.func @transform_11(%arg0: i32) -> (i32, i32) {
    %c0_i32 = arith.constant 0 : i32
    %c0_i32_0 = arith.constant 0 : i32
    %c0_i32_1 = arith.constant 0 : i32
    return %c0_i32, %c0_i32_0 : i32, i32
  }
  func.func @transform_12(%arg0: i32) -> (i32, i32) {
    %c0_i32 = arith.constant 0 : i32
    %c0_i32_0 = arith.constant 0 : i32
    %c0_i32_1 = arith.constant 0 : i32
    return %c0_i32, %c0_i32_0 : i32, i32
  }
  func.func @transform_13(%arg0: i32) -> (i32, i32) {
    %c0_i32 = arith.constant 0 : i32
    %c0_i32_0 = arith.constant 0 : i32
    %c0_i32_1 = arith.constant 0 : i32
    return %c0_i32, %c0_i32_0 : i32, i32
  }
  func.func @transform_14(%arg0: i32) -> (i32, i32) {
    %c0_i32 = arith.constant 0 : i32
    %c0_i32_0 = arith.constant 0 : i32
    %c0_i32_1 = arith.constant 0 : i32
    return %c0_i32, %c0_i32_0 : i32, i32
  }
  func.func @transform_15(%arg0: i32) -> (i32, i32) {
    %c0_i32 = arith.constant 0 : i32
    %c0_i32_0 = arith.constant 0 : i32
    %c0_i32_1 = arith.constant 0 : i32
    return %c0_i32, %c0_i32_0 : i32, i32
  }
  func.func @transform_16(%arg0: i32) -> (i32, i32) {
    %c0_i32 = arith.constant 0 : i32
    %c0_i32_0 = arith.constant 0 : i32
    %c0_i32_1 = arith.constant 0 : i32
    return %c0_i32, %c0_i32_0 : i32, i32
  }
  func.func @transform_17(%arg0: i32) -> (i32, i32) {
    %c0_i32 = arith.constant 0 : i32
    %c0_i32_0 = arith.constant 0 : i32
    return %arg0, %c0_i32 : i32, i32
  }
  func.func @transform_18(%arg0: i32) -> (i32, i32) {
    %c0_i32 = arith.constant 0 : i32
    %c0_i32_0 = arith.constant 0 : i32
    return %arg0, %c0_i32 : i32, i32
  }
}

</mosaic_0001>

<llo_original>
// kernel: tpu_custom_call.1
$region0: #{tpu_custom_call.1}
  #allocation0 [shape = 'u32[]', space=smem, size = 0x4, offset = 0x4, fixed_abs, tag = 'smem constant byte address 0x4 - core index']
  #allocation1 [shape = 'u32[144,128]{1,0:T(1,128)}', space=vmem, size = 0x12000, scoped, tag = 'internal scratch']
  #allocation2 [shape = 'f32[8,8,32]{2,1,0:T(8,128)}', space=vmem, size = 0x8000, scoped, tag = 'scratch operand']
  %s0 = inlined_call_operand.vmem [shape: f32[16,4,8], index: 0, kind: input, shape index: {}]
  %s1 = inlined_call_operand.vmem [shape: f32[16,8,4], index: 1, kind: input, shape index: {}]
  %s2 = inlined_call_operand.vmem [shape: f32[16,32], index: 2, kind: input, shape index: {}]
  %s3 = inlined_call_operand.vmem [shape: f32[16,32], index: 3, kind: input, shape index: {}]
  %s4 = inlined_call_operand.vmem [shape: f32[64,8], index: 4, kind: input, shape index: {}]
  %s5 = inlined_call_operand.vmem [shape: f32[1,8], index: 5, kind: input, shape index: {}]
  %s6 = inlined_call_operand.vmem [shape: f32[8,8], index: 6, kind: input, shape index: {}]
  %s7 = inlined_call_operand.vmem [shape: f32[1,8], index: 7, kind: input, shape index: {}]
  %s8 = inlined_call_operand.vmem [shape: f32[1,8], index: 8, kind: input, shape index: {}]
  %s9 = inlined_call_operand.vmem [shape: f32[4,128], index: 9, kind: input, shape index: {}]
  %s10 = inlined_call_operand.vmem [shape: f32[32,128], index: 10, kind: input, shape index: {}]
  %s11 = inlined_call_operand.vmem [shape: f32[1,128], index: 11, kind: input, shape index: {}]
  %s12 = inlined_call_operand.vmem [shape: f32[32,32], index: 12, kind: input, shape index: {}]
  %s13 = inlined_call_operand.vmem [shape: f32[1,32], index: 13, kind: input, shape index: {}]
  %s14 = inlined_call_operand.vmem [shape: f32[1,32], index: 14, kind: input, shape index: {}]
  %s15 = inlined_call_operand.vmem [shape: f32[32,3], index: 15, kind: input, shape index: {}]
  %s16 = inlined_call_operand.vmem [shape: f32[1,3], index: 16, kind: input, shape index: {}]
  %s17 = inlined_call_operand.vmem [shape: f32[16,3], index: 17, kind: output, shape index: {0}]
  %s18 = inlined_call_operand.vmem [shape: f32[16,8], index: 18, kind: output, shape index: {1}]
  %19 = xla_tuple %s17, %s18
  %s20 = sld [smem:[#allocation0]]
  $region109: #{tpu_custom_call.1} parent=0
    _
  %s22 = ssub.s32 1, %s20
  %s23 = scalar_select 0, %s22, %s20
  loop: start=0, step=1, limit=4
  $region2: #{tpu_custom_call.1} parent=0 // loop_pre_header
    _
  $region3: #{tpu_custom_call.1} parent=0 // loop_header
    %s25 = sphi 0, %s29
    %p26 = scmp.ge.s32.totalorder %s25, 4
    %s35 = sphi 0, %s37
    %s38 = sphi 0, %s35
    %s39 = sphi 0, %s38
    %s55 = sphi 0, %s39
    %s61 = sphi 0, %s63
    %s64 = sphi 0, %s61
    %s65 = sphi 0, %s64
    %s81 = sphi 0, %s65
    %s87 = sphi 0, %s89
    %s90 = sphi 0, %s87
    %s91 = sphi 0, %s90
    %s107 = sphi 0, %s91
    %s113 = sphi 0, %s115
    %s116 = sphi 0, %s113
    %s117 = sphi 0, %s116
    %s133 = sphi 0, %s117
    %s137 = sphi 0, %s137
    %s139 = sphi 0, %s137
    %s140 = sphi 0, %s139
    %s154 = sphi 0, %s140
    %s158 = sphi 0, %s158
    %s160 = sphi 0, %s158
    %s161 = sphi 0, %s160
    %s175 = sphi 0, %s161
    %s179 = sphi 0, %s179
    %s181 = sphi 0, %s179
    %s182 = sphi 0, %s181
    %s196 = sphi 0, %s182
    %s200 = sphi 0, %s200
    %s202 = sphi 0, %s200
    %s203 = sphi 0, %s202
    %s217 = sphi 0, %s203
    %s221 = sphi 0, %s221
    %s223 = sphi 0, %s221
    %s224 = sphi 0, %s223
    %s238 = sphi 0, %s224
    %s242 = sphi 0, %s242
    %s244 = sphi 0, %s242
    %s245 = sphi 0, %s244
    %s259 = sphi 0, %s245
    %s263 = sphi 0, %s263
    %s265 = sphi 0, %s263
    %s266 = sphi 0, %s265
    %s280 = sphi 0, %s266
    %s284 = sphi 0, %s284
    %s286 = sphi 0, %s284
    %s287 = sphi 0, %s286
    %s301 = sphi 0, %s287
    %s305 = sphi 0, %s305
    %s307 = sphi 0, %s305
    %s308 = sphi 0, %s307
    %s322 = sphi 0, %s308
    %s326 = sphi 0, %s326
    %s328 = sphi 0, %s326
    %s329 = sphi 0, %s328
    %s343 = sphi 0, %s329
    %s347 = sphi 0, %s347
    %s349 = sphi 0, %s347
    %s350 = sphi 0, %s349
    %s364 = sphi 0, %s350
    %s368 = sphi 0, %s368
    %s370 = sphi 0, %s368
    %s371 = sphi 0, %s370
    %s385 = sphi 0, %s371
    %s389 = sphi 0, %s389
    %s391 = sphi 0, %s389
    %s392 = sphi 0, %s391
    %s406 = sphi 0, %s392
    %s412 = sphi 0, %s414
    %s415 = sphi 0, %s412
    %s416 = sphi 0, %s415
    %s432 = sphi 0, %s416
    %s438 = sphi 0, %s440
    %s441 = sphi 0, %s438
    %s442 = sphi 0, %s441
    %s458 = sphi 0, %s442
  $region4: #{tpu_custom_call.1} parent=0 // loop_header_branch
    %28 = sbr.rel (%p26) target = $region8
  $region5: #{tpu_custom_call.1} parent=0 // loop_body
    %s30 = ssub.s32 %s25, 1
    %s31 = ssub.s32 %s25, 2
    %s32 = sadd.s32 %s25, 1
    %s33 = ssub.s32 %s25, %s32
    %p34 = scmp.eq.s32.totalorder %s33, 0
    %s36 = sadd.s32 %s35, 1
    %s37 = scalar_select %p34, %s35, %s36
    %p40 = pneg %p34
    %p41 = scmp.eq.s32.totalorder %s25, 1
    %p42 = por %p40, %p41
    %p43 = scmp.ne.s32.totalorder %s35, %s38
    %p44 = scmp.eq.s32.totalorder %s25, 0
    %p45 = por %p43, %p44
    %p46 = scmp.ne.s32.totalorder %s35, %s38
    %p47 = scmp.eq.s32.totalorder %s30, 1
    %p48 = por %p46, %p47
    %p49 = scmp.ne.s32.totalorder %s38, %s39
    %p50 = scmp.eq.s32.totalorder %s30, 0
    %p51 = por %p49, %p50
    %p52 = scmp.ne.s32.totalorder %s38, %s39
    %p53 = scmp.eq.s32.totalorder %s31, 1
    %p54 = por %p52, %p53
    %p56 = scmp.ne.s32.totalorder %s39, %s55
    %p57 = scmp.eq.s32.totalorder %s31, 0
    %p58 = por %p56, %p57
    %s59 = ssub.s32 %s25, %s32
    %p60 = scmp.eq.s32.totalorder %s59, 0
    %s62 = sadd.s32 %s61, 1
    %s63 = scalar_select %p60, %s61, %s62
    %p66 = pneg %p60
    %p67 = scmp.eq.s32.totalorder %s25, 1
    %p68 = por %p66, %p67
    %p69 = scmp.ne.s32.totalorder %s61, %s64
    %p70 = scmp.eq.s32.totalorder %s25, 0
    %p71 = por %p69, %p70
    %p72 = scmp.ne.s32.totalorder %s61, %s64
    %p73 = scmp.eq.s32.totalorder %s30, 1
    %p74 = por %p72, %p73
    %p75 = scmp.ne.s32.totalorder %s64, %s65
    %p76 = scmp.eq.s32.totalorder %s30, 0
    %p77 = por %p75, %p76
    %p78 = scmp.ne.s32.totalorder %s64, %s65
    %p79 = scmp.eq.s32.totalorder %s31, 1
    %p80 = por %p78, %p79
    %p82 = scmp.ne.s32.totalorder %s65, %s81
    %p83 = scmp.eq.s32.totalorder %s31, 0
    %p84 = por %p82, %p83
    %s85 = ssub.s32 %s25, %s32
    %p86 = scmp.eq.s32.totalorder %s85, 0
    %s88 = sadd.s32 %s87, 1
    %s89 = scalar_select %p86, %s87, %s88
    %p92 = pneg %p86
    %p93 = scmp.eq.s32.totalorder %s25, 1
    %p94 = por %p92, %p93
    %p95 = scmp.ne.s32.totalorder %s87, %s90
    %p96 = scmp.eq.s32.totalorder %s25, 0
    %p97 = por %p95, %p96
    %p98 = scmp.ne.s32.totalorder %s87, %s90
    %p99 = scmp.eq.s32.totalorder %s30, 1
    %p100 = por %p98, %p99
    %p101 = scmp.ne.s32.totalorder %s90, %s91
    %p102 = scmp.eq.s32.totalorder %s30, 0
    %p103 = por %p101, %p102
    %p104 = scmp.ne.s32.totalorder %s90, %s91
    %p105 = scmp.eq.s32.totalorder %s31, 1
    %p106 = por %p104, %p105
    %p108 = scmp.ne.s32.totalorder %s91, %s107
    %p109 = scmp.eq.s32.totalorder %s31, 0
    %p110 = por %p108, %p109
    %s111 = ssub.s32 %s25, %s32
    %p112 = scmp.eq.s32.totalorder %s111, 0
    %s114 = sadd.s32 %s113, 1
    %s115 = scalar_select %p112, %s113, %s114
    %p118 = pneg %p112
    %p119 = scmp.eq.s32.totalorder %s25, 1
    %p120 = por %p118, %p119
    %p121 = scmp.ne.s32.totalorder %s113, %s116
    %p122 = scmp.eq.s32.totalorder %s25, 0
    %p123 = por %p121, %p122
    %p124 = scmp.ne.s32.totalorder %s113, %s116
    %p125 = scmp.eq.s32.totalorder %s30, 1
    %p126 = por %p124, %p125
    %p127 = scmp.ne.s32.totalorder %s116, %s117
    %p128 = scmp.eq.s32.totalorder %s30, 0
    %p129 = por %p127, %p128
    %p130 = scmp.ne.s32.totalorder %s116, %s117
    %p131 = scmp.eq.s32.totalorder %s31, 1
    %p132 = por %p130, %p131
    %p134 = scmp.ne.s32.totalorder %s117, %s133
    %p135 = scmp.eq.s32.totalorder %s31, 0
    %p136 = por %p134, %p135
    %s138 = sadd.s32 %s137, 1
    %p141 = scmp.eq.s32.totalorder %s25, 1
    %p142 = scmp.ne.s32.totalorder %s137, %s139
    %p143 = scmp.eq.s32.totalorder %s25, 0
    %p144 = por %p142, %p143
    %p145 = scmp.ne.s32.totalorder %s137, %s139
    %p146 = scmp.eq.s32.totalorder %s30, 1
    %p147 = por %p145, %p146
    %p148 = scmp.ne.s32.totalorder %s139, %s140
    %p149 = scmp.eq.s32.totalorder %s30, 0
    %p150 = por %p148, %p149
    %p151 = scmp.ne.s32.totalorder %s139, %s140
    %p152 = scmp.eq.s32.totalorder %s31, 1
    %p153 = por %p151, %p152
    %p155 = scmp.ne.s32.totalorder %s140, %s154
    %p156 = scmp.eq.s32.totalorder %s31, 0
    %p157 = por %p155, %p156
    %s159 = sadd.s32 %s158, 1
    %p162 = scmp.eq.s32.totalorder %s25, 1
    %p163 = scmp.ne.s32.totalorder %s158, %s160
    %p164 = scmp.eq.s32.totalorder %s25, 0
    %p165 = por %p163, %p164
    %p166 = scmp.ne.s32.totalorder %s158, %s160
    %p167 = scmp.eq.s32.totalorder %s30, 1
    %p168 = por %p166, %p167
    %p169 = scmp.ne.s32.totalorder %s160, %s161
    %p170 = scmp.eq.s32.totalorder %s30, 0
    %p171 = por %p169, %p170
    %p172 = scmp.ne.s32.totalorder %s160, %s161
    %p173 = scmp.eq.s32.totalorder %s31, 1
    %p174 = por %p172, %p173
    %p176 = scmp.ne.s32.totalorder %s161, %s175
    %p177 = scmp.eq.s32.totalorder %s31, 0
    %p178 = por %p176, %p177
    %s180 = sadd.s32 %s179, 1
    %p183 = scmp.eq.s32.totalorder %s25, 1
    %p184 = scmp.ne.s32.totalorder %s179, %s181
    %p185 = scmp.eq.s32.totalorder %s25, 0
    %p186 = por %p184, %p185
    %p187 = scmp.ne.s32.totalorder %s179, %s181
    %p188 = scmp.eq.s32.totalorder %s30, 1
    %p189 = por %p187, %p188
    %p190 = scmp.ne.s32.totalorder %s181, %s182
    %p191 = scmp.eq.s32.totalorder %s30, 0
    %p192 = por %p190, %p191
    %p193 = scmp.ne.s32.totalorder %s181, %s182
    %p194 = scmp.eq.s32.totalorder %s31, 1
    %p195 = por %p193, %p194
    %p197 = scmp.ne.s32.totalorder %s182, %s196
    %p198 = scmp.eq.s32.totalorder %s31, 0
    %p199 = por %p197, %p198
    %s201 = sadd.s32 %s200, 1
    %p204 = scmp.eq.s32.totalorder %s25, 1
    %p205 = scmp.ne.s32.totalorder %s200, %s202
    %p206 = scmp.eq.s32.totalorder %s25, 0
    %p207 = por %p205, %p206
    %p208 = scmp.ne.s32.totalorder %s200, %s202
    %p209 = scmp.eq.s32.totalorder %s30, 1
    %p210 = por %p208, %p209
    %p211 = scmp.ne.s32.totalorder %s202, %s203
    %p212 = scmp.eq.s32.totalorder %s30, 0
    %p213 = por %p211, %p212
    %p214 = scmp.ne.s32.totalorder %s202, %s203
    %p215 = scmp.eq.s32.totalorder %s31, 1
    %p216 = por %p214, %p215
    %p218 = scmp.ne.s32.totalorder %s203, %s217
    %p219 = scmp.eq.s32.totalorder %s31, 0
    %p220 = por %p218, %p219
    %s222 = sadd.s32 %s221, 1
    %p225 = scmp.eq.s32.totalorder %s25, 1
    %p226 = scmp.ne.s32.totalorder %s221, %s223
    %p227 = scmp.eq.s32.totalorder %s25, 0
    %p228 = por %p226, %p227
    %p229 = scmp.ne.s32.totalorder %s221, %s223
    %p230 = scmp.eq.s32.totalorder %s30, 1
    %p231 = por %p229, %p230
    %p232 = scmp.ne.s32.totalorder %s223, %s224
    %p233 = scmp.eq.s32.totalorder %s30, 0
    %p234 = por %p232, %p233
    %p235 = scmp.ne.s32.totalorder %s223, %s224
    %p236 = scmp.eq.s32.totalorder %s31, 1
    %p237 = por %p235, %p236
    %p239 = scmp.ne.s32.totalorder %s224, %s238
    %p240 = scmp.eq.s32.totalorder %s31, 0
    %p241 = por %p239, %p240
    %s243 = sadd.s32 %s242, 1
    %p246 = scmp.eq.s32.totalorder %s25, 1
    %p247 = scmp.ne.s32.totalorder %s242, %s244
    %p248 = scmp.eq.s32.totalorder %s25, 0
    %p249 = por %p247, %p248
    %p250 = scmp.ne.s32.totalorder %s242, %s244
    %p251 = scmp.eq.s32.totalorder %s30, 1
    %p252 = por %p250, %p251
    %p253 = scmp.ne.s32.totalorder %s244, %s245
    %p254 = scmp.eq.s32.totalorder %s30, 0
    %p255 = por %p253, %p254
    %p256 = scmp.ne.s32.totalorder %s244, %s245
    %p257 = scmp.eq.s32.totalorder %s31, 1
    %p258 = por %p256, %p257
    %p260 = scmp.ne.s32.totalorder %s245, %s259
    %p261 = scmp.eq.s32.totalorder %s31, 0
    %p262 = por %p260, %p261
    %s264 = sadd.s32 %s263, 1
    %p267 = scmp.eq.s32.totalorder %s25, 1
    %p268 = scmp.ne.s32.totalorder %s263, %s265
    %p269 = scmp.eq.s32.totalorder %s25, 0
    %p270 = por %p268, %p269
    %p271 = scmp.ne.s32.totalorder %s263, %s265
    %p272 = scmp.eq.s32.totalorder %s30, 1
    %p273 = por %p271, %p272
    %p274 = scmp.ne.s32.totalorder %s265, %s266
    %p275 = scmp.eq.s32.totalorder %s30, 0
    %p276 = por %p274, %p275
    %p277 = scmp.ne.s32.totalorder %s265, %s266
    %p278 = scmp.eq.s32.totalorder %s31, 1
    %p279 = por %p277, %p278
    %p281 = scmp.ne.s32.totalorder %s266, %s280
    %p282 = scmp.eq.s32.totalorder %s31, 0
    %p283 = por %p281, %p282
    %s285 = sadd.s32 %s284, 1
    %p288 = scmp.eq.s32.totalorder %s25, 1
    %p289 = scmp.ne.s32.totalorder %s284, %s286
    %p290 = scmp.eq.s32.totalorder %s25, 0
    %p291 = por %p289, %p290
    %p292 = scmp.ne.s32.totalorder %s284, %s286
    %p293 = scmp.eq.s32.totalorder %s30, 1
    %p294 = por %p292, %p293
    %p295 = scmp.ne.s32.totalorder %s286, %s287
    %p296 = scmp.eq.s32.totalorder %s30, 0
    %p297 = por %p295, %p296
    %p298 = scmp.ne.s32.totalorder %s286, %s287
    %p299 = scmp.eq.s32.totalorder %s31, 1
    %p300 = por %p298, %p299
    %p302 = scmp.ne.s32.totalorder %s287, %s301
    %p303 = scmp.eq.s32.totalorder %s31, 0
    %p304 = por %p302, %p303
    %s306 = sadd.s32 %s305, 1
    %p309 = scmp.eq.s32.totalorder %s25, 1
    %p310 = scmp.ne.s32.totalorder %s305, %s307
    %p311 = scmp.eq.s32.totalorder %s25, 0
    %p312 = por %p310, %p311
    %p313 = scmp.ne.s32.totalorder %s305, %s307
    %p314 = scmp.eq.s32.totalorder %s30, 1
    %p315 = por %p313, %p314
    %p316 = scmp.ne.s32.totalorder %s307, %s308
    %p317 = scmp.eq.s32.totalorder %s30, 0
    %p318 = por %p316, %p317
    %p319 = scmp.ne.s32.totalorder %s307, %s308
    %p320 = scmp.eq.s32.totalorder %s31, 1
    %p321 = por %p319, %p320
    %p323 = scmp.ne.s32.totalorder %s308, %s322
    %p324 = scmp.eq.s32.totalorder %s31, 0
    %p325 = por %p323, %p324
    %s327 = sadd.s32 %s326, 1
    %p330 = scmp.eq.s32.totalorder %s25, 1
    %p331 = scmp.ne.s32.totalorder %s326, %s328
    %p332 = scmp.eq.s32.totalorder %s25, 0
    %p333 = por %p331, %p332
    %p334 = scmp.ne.s32.totalorder %s326, %s328
    %p335 = scmp.eq.s32.totalorder %s30, 1
    %p336 = por %p334, %p335
    %p337 = scmp.ne.s32.totalorder %s328, %s329
    %p338 = scmp.eq.s32.totalorder %s30, 0
    %p339 = por %p337, %p338
    %p340 = scmp.ne.s32.totalorder %s328, %s329
    %p341 = scmp.eq.s32.totalorder %s31, 1
    %p342 = por %p340, %p341
    %p344 = scmp.ne.s32.totalorder %s329, %s343
    %p345 = scmp.eq.s32.totalorder %s31, 0
    %p346 = por %p344, %p345
    %s348 = sadd.s32 %s347, 1
    %p351 = scmp.eq.s32.totalorder %s25, 1
    %p352 = scmp.ne.s32.totalorder %s347, %s349
    %p353 = scmp.eq.s32.totalorder %s25, 0
    %p354 = por %p352, %p353
    %p355 = scmp.ne.s32.totalorder %s347, %s349
    %p356 = scmp.eq.s32.totalorder %s30, 1
    %p357 = por %p355, %p356
    %p358 = scmp.ne.s32.totalorder %s349, %s350
    %p359 = scmp.eq.s32.totalorder %s30, 0
    %p360 = por %p358, %p359
    %p361 = scmp.ne.s32.totalorder %s349, %s350
    %p362 = scmp.eq.s32.totalorder %s31, 1
    %p363 = por %p361, %p362
    %p365 = scmp.ne.s32.totalorder %s350, %s364
    %p366 = scmp.eq.s32.totalorder %s31, 0
    %p367 = por %p365, %p366
    %s369 = sadd.s32 %s368, 1
    %p372 = scmp.eq.s32.totalorder %s25, 1
    %p373 = scmp.ne.s32.totalorder %s368, %s370
    %p374 = scmp.eq.s32.totalorder %s25, 0
    %p375 = por %p373, %p374
    %p376 = scmp.ne.s32.totalorder %s368, %s370
    %p377 = scmp.eq.s32.totalorder %s30, 1
    %p378 = por %p376, %p377
    %p379 = scmp.ne.s32.totalorder %s370, %s371
    %p380 = scmp.eq.s32.totalorder %s30, 0
    %p381 = por %p379, %p380
    %p382 = scmp.ne.s32.totalorder %s370, %s371
    %p383 = scmp.eq.s32.totalorder %s31, 1
    %p384 = por %p382, %p383
    %p386 = scmp.ne.s32.totalorder %s371, %s385
    %p387 = scmp.eq.s32.totalorder %s31, 0
    %p388 = por %p386, %p387
    %s390 = sadd.s32 %s389, 1
    %p393 = scmp.eq.s32.totalorder %s25, 1
    %p394 = scmp.ne.s32.totalorder %s389, %s391
    %p395 = scmp.eq.s32.totalorder %s25, 0
    %p396 = por %p394, %p395
    %p397 = scmp.ne.s32.totalorder %s389, %s391
    %p398 = scmp.eq.s32.totalorder %s30, 1
    %p399 = por %p397, %p398
    %p400 = scmp.ne.s32.totalorder %s391, %s392
    %p401 = scmp.eq.s32.totalorder %s30, 0
    %p402 = por %p400, %p401
    %p403 = scmp.ne.s32.totalorder %s391, %s392
    %p404 = scmp.eq.s32.totalorder %s31, 1
    %p405 = por %p403, %p404
    %p407 = scmp.ne.s32.totalorder %s392, %s406
    %p408 = scmp.eq.s32.totalorder %s31, 0
    %p409 = por %p407, %p408
    %s410 = ssub.s32 %s25, %s32
    %p411 = scmp.eq.s32.totalorder %s410, 0
    %s413 = sadd.s32 %s412, 1
    %s414 = scalar_select %p411, %s412, %s413
    %p417 = pneg %p411
    %p418 = scmp.eq.s32.totalorder %s25, 1
    %p419 = por %p417, %p418
    %p420 = scmp.ne.s32.totalorder %s412, %s415
    %p421 = scmp.eq.s32.totalorder %s25, 0
    %p422 = por %p420, %p421
    %p423 = scmp.ne.s32.totalorder %s412, %s415
    %p424 = scmp.eq.s32.totalorder %s30, 1
    %p425 = por %p423, %p424
    %p426 = scmp.ne.s32.totalorder %s415, %s416
    %p427 = scmp.eq.s32.totalorder %s30, 0
    %p428 = por %p426, %p427
    %p429 = scmp.ne.s32.totalorder %s415, %s416
    %p430 = scmp.eq.s32.totalorder %s31, 1
    %p431 = por %p429, %p430
    %p433 = scmp.ne.s32.totalorder %s416, %s432
    %p434 = scmp.eq.s32.totalorder %s31, 0
    %p435 = por %p433, %p434
    %s436 = ssub.s32 %s25, %s32
    %p437 = scmp.eq.s32.totalorder %s436, 0
    %s439 = sadd.s32 %s438, 1
    %s440 = scalar_select %p437, %s438, %s439
    %p443 = pneg %p437
    %p444 = scmp.eq.s32.totalorder %s25, 1
    %p445 = por %p443, %p444
    %p446 = scmp.ne.s32.totalorder %s438, %s441
    %p447 = scmp.eq.s32.totalorder %s25, 0
    %p448 = por %p446, %p447
    %p449 = scmp.ne.s32.totalorder %s438, %s441
    %p450 = scmp.eq.s32.totalorder %s30, 1
    %p451 = por %p449, %p450
    %p452 = scmp.ne.s32.totalorder %s441, %s442
    %p453 = scmp.eq.s32.totalorder %s30, 0
    %p454 = por %p452, %p453
    %p455 = scmp.ne.s32.totalorder %s441, %s442
    %p456 = scmp.eq.s32.totalorder %s31, 1
    %p457 = por %p455, %p456
    %p459 = scmp.ne.s32.totalorder %s442, %s458
    %p460 = scmp.eq.s32.totalorder %s31, 0
    %p461 = por %p459, %p460
    %p462 = scmp.le.s32.totalorder 1, %s25
    %p463 = scmp.lt.s32.totalorder %s25, 3
    %p464 = pnand %p462, %p463
    %p465 = pneg %p464
    // Predicated region
    $region9: #{tpu_custom_call.1} parent=5 // pred_check
      _
    $region10: #{tpu_custom_call.1} parent=5 // pred_check_branch
      %467 = sbr.rel (%p464) target = $region12
    $region11: #{tpu_custom_call.1} parent=5 // pred_region
      %s468 = ssub.s32 %s25, 1
      // Predicated region
      $region13: #{tpu_custom_call.1} parent=11 // pred_check
        %p469 = pneg %p150
      $region14: #{tpu_custom_call.1} parent=11 // pred_check_branch
        %471 = sbr.rel (%p469) target = $region16
      $region15: #{tpu_custom_call.1} parent=11 // pred_region
        _
      $region16: #{tpu_custom_call.1} parent=11 // pred_fallthru
        _
      // Predicated region
      $region17: #{tpu_custom_call.1} parent=11 // pred_check
        %p472 = pneg %p171
      $region18: #{tpu_custom_call.1} parent=11 // pred_check_branch
        %474 = sbr.rel (%p472) target = $region20
      $region19: #{tpu_custom_call.1} parent=11 // pred_region
        _
      $region20: #{tpu_custom_call.1} parent=11 // pred_fallthru
        _
      // Predicated region
      $region21: #{tpu_custom_call.1} parent=11 // pred_check
        %p475 = pneg %p192
      $region22: #{tpu_custom_call.1} parent=11 // pred_check_branch
        %477 = sbr.rel (%p475) target = $region24
      $region23: #{tpu_custom_call.1} parent=11 // pred_region
        _
      $region24: #{tpu_custom_call.1} parent=11 // pred_fallthru
        _
      // Predicated region
      $region25: #{tpu_custom_call.1} parent=11 // pred_check
        %p478 = pneg %p213
      $region26: #{tpu_custom_call.1} parent=11 // pred_check_branch
        %480 = sbr.rel (%p478) target = $region28
      $region27: #{tpu_custom_call.1} parent=11 // pred_region
        _
      $region28: #{tpu_custom_call.1} parent=11 // pred_fallthru
        _
      // Predicated region
      $region29: #{tpu_custom_call.1} parent=11 // pred_check
        %p481 = pneg %p234
      $region30: #{tpu_custom_call.1} parent=11 // pred_check_branch
        %483 = sbr.rel (%p481) target = $region32
      $region31: #{tpu_custom_call.1} parent=11 // pred_region
        _
      $region32: #{tpu_custom_call.1} parent=11 // pred_fallthru
        _
      // Predicated region
      $region33: #{tpu_custom_call.1} parent=11 // pred_check
        %p484 = pneg %p255
      $region34: #{tpu_custom_call.1} parent=11 // pred_check_branch
        %486 = sbr.rel (%p484) target = $region36
      $region35: #{tpu_custom_call.1} parent=11 // pred_region
        _
      $region36: #{tpu_custom_call.1} parent=11 // pred_fallthru
        _
      // Predicated region
      $region37: #{tpu_custom_call.1} parent=11 // pred_check
        %p487 = pneg %p276
      $region38: #{tpu_custom_call.1} parent=11 // pred_check_branch
        %489 = sbr.rel (%p487) target = $region40
      $region39: #{tpu_custom_call.1} parent=11 // pred_region
        _
      $region40: #{tpu_custom_call.1} parent=11 // pred_fallthru
        _
      // Predicated region
      $region41: #{tpu_custom_call.1} parent=11 // pred_check
        %p490 = pneg %p297
      $region42: #{tpu_custom_call.1} parent=11 // pred_check_branch
        %492 = sbr.rel (%p490) target = $region44
      $region43: #{tpu_custom_call.1} parent=11 // pred_region
        _
      $region44: #{tpu_custom_call.1} parent=11 // pred_fallthru
        _
      // Predicated region
      $region45: #{tpu_custom_call.1} parent=11 // pred_check
        %p493 = pneg %p318
      $region46: #{tpu_custom_call.1} parent=11 // pred_check_branch
        %495 = sbr.rel (%p493) target = $region48
      $region47: #{tpu_custom_call.1} parent=11 // pred_region
        _
      $region48: #{tpu_custom_call.1} parent=11 // pred_fallthru
        _
      // Predicated region
      $region49: #{tpu_custom_call.1} parent=11 // pred_check
        %p496 = pneg %p339
      $region50: #{tpu_custom_call.1} parent=11 // pred_check_branch
        %498 = sbr.rel (%p496) target = $region52
      $region51: #{tpu_custom_call.1} parent=11 // pred_region
        _
      $region52: #{tpu_custom_call.1} parent=11 // pred_fallthru
        _
      // Predicated region
      $region53: #{tpu_custom_call.1} parent=11 // pred_check
        %p499 = pneg %p360
      $region54: #{tpu_custom_call.1} parent=11 // pred_check_branch
        %501 = sbr.rel (%p499) target = $region56
      $region55: #{tpu_custom_call.1} parent=11 // pred_region
        _
      $region56: #{tpu_custom_call.1} parent=11 // pred_fallthru
        _
      // Predicated region
      $region57: #{tpu_custom_call.1} parent=11 // pred_check
        %p502 = pneg %p381
      $region58: #{tpu_custom_call.1} parent=11 // pred_check_branch
        %504 = sbr.rel (%p502) target = $region60
      $region59: #{tpu_custom_call.1} parent=11 // pred_region
        _
      $region60: #{tpu_custom_call.1} parent=11 // pred_fallthru
        _
      // Predicated region
      $region61: #{tpu_custom_call.1} parent=11 // pred_check
        %p505 = pneg %p402
      $region62: #{tpu_custom_call.1} parent=11 // pred_check_branch
        %507 = sbr.rel (%p505) target = $region64
      $region63: #{tpu_custom_call.1} parent=11 // pred_region
        _
      $region64: #{tpu_custom_call.1} parent=11 // pred_fallthru
        _
    $region12: #{tpu_custom_call.1} parent=5 // pred_fallthru
      _
    %p508 = scmp.lt.s32.totalorder %s25, 2
    // Predicated region
    $region65: #{tpu_custom_call.1} parent=5 // pred_check
      %p509 = pneg %p508
    $region66: #{tpu_custom_call.1} parent=5 // pred_check_branch
      %511 = sbr.rel (%p509) target = $region68
    $region67: #{tpu_custom_call.1} parent=5 // pred_region
      // Predicated region
      $region69: #{tpu_custom_call.1} parent=67 // pred_check
        %p512 = pneg %p45
      $region70: #{tpu_custom_call.1} parent=67 // pred_check_branch
        %514 = sbr.rel (%p512) target = $region72
      $region71: #{tpu_custom_call.1} parent=67 // pred_region
        %s515 = smul.u32 8, %s25
        %p516 = scmp.lt.s32.totalorder %s515, 15
        %s517 = scalar_select %p516, %s515, 15
        %s518 = smul.addr %s517, 4
        %s519 = scalar_lea.vmem %s0, %s518
        %s520 = smul.u32 8, %s25
      $region72: #{tpu_custom_call.1} parent=67 // pred_fallthru
        _
      // Predicated region
      $region73: #{tpu_custom_call.1} parent=67 // pred_check
        %p521 = pneg %p71
      $region74: #{tpu_custom_call.1} parent=67 // pred_check_branch
        %523 = sbr.rel (%p521) target = $region76
      $region75: #{tpu_custom_call.1} parent=67 // pred_region
        %s524 = smul.u32 8, %s25
        %p525 = scmp.lt.s32.totalorder %s524, 15
        %s526 = scalar_select %p525, %s524, 15
        %s527 = smul.addr %s526, 8
        %s528 = scalar_lea.vmem %s1, %s527
        %s529 = smul.u32 8, %s25
      $region76: #{tpu_custom_call.1} parent=67 // pred_fallthru
        _
      // Predicated region
      $region77: #{tpu_custom_call.1} parent=67 // pred_check
        %p530 = pneg %p97
      $region78: #{tpu_custom_call.1} parent=67 // pred_check_branch
        %532 = sbr.rel (%p530) target = $region80
      $region79: #{tpu_custom_call.1} parent=67 // pred_region
        %p533 = scmp.lt.s32.totalorder %s25, 1
        %s534 = scalar_select %p533, %s25, 1
        %s535 = smul.addr %s534, 8
        %s536 = scalar_lea.vmem %s2, %s535
      $region80: #{tpu_custom_call.1} parent=67 // pred_fallthru
        _
      // Predicated region
      $region81: #{tpu_custom_call.1} parent=67 // pred_check
        %p537 = pneg %p123
      $region82: #{tpu_custom_call.1} parent=67 // pred_check_branch
        %539 = sbr.rel (%p537) target = $region84
      $region83: #{tpu_custom_call.1} parent=67 // pred_region
        %p540 = scmp.lt.s32.totalorder %s25, 1
        %s541 = scalar_select %p540, %s25, 1
        %s542 = smul.addr %s541, 8
        %s543 = scalar_lea.vmem %s3, %s542
      $region84: #{tpu_custom_call.1} parent=67 // pred_fallthru
        _
    $region68: #{tpu_custom_call.1} parent=5 // pred_fallthru
      _
    %p544 = scmp.le.s32.totalorder 1, %s25
    %p545 = scmp.lt.s32.totalorder %s25, 3
    %p546 = pnand %p544, %p545
    %p547 = pneg %p546
    // Predicated region
    $region85: #{tpu_custom_call.1} parent=5 // pred_check
      _
    $region86: #{tpu_custom_call.1} parent=5 // pred_check_branch
      %549 = sbr.rel (%p546) target = $region88
    $region87: #{tpu_custom_call.1} parent=5 // pred_region
      %s550 = ssub.s32 %s25, 1
      %s551 = smul.u32 8, %s30
      %p552 = scmp.lt.s32.totalorder %s551, 15
      %s553 = scalar_select %p552, %s551, 15
      %s554 = smul.addr %s553, 4
      %s555 = scalar_lea.vmem %s0, %s554
      %p556 = pneg %p51
      %p557 = pneg %p48
      %s558 = smul.u32 8, %s30
      %p559 = scmp.lt.s32.totalorder %s558, 15
      %s560 = scalar_select %p559, %s558, 15
      %s561 = smul.addr %s560, 8
      %s562 = scalar_lea.vmem %s1, %s561
      %p563 = pneg %p77
      %p564 = pneg %p74
      %p565 = scmp.lt.s32.totalorder %s30, 1
      %s566 = scalar_select %p565, %s30, 1
      %s567 = smul.addr %s566, 8
      %s568 = scalar_lea.vmem %s2, %s567
      %p569 = pneg %p103
      %p570 = pneg %p100
      %p571 = scmp.lt.s32.totalorder %s30, 1
      %s572 = scalar_select %p571, %s30, 1
      %s573 = smul.addr %s572, 8
      %s574 = scalar_lea.vmem %s3, %s573
      %p575 = pneg %p129
      %p576 = pneg %p126
      %p577 = pneg %p150
      %p578 = pneg %p147
      %p579 = pneg %p171
      %p580 = pneg %p168
      %p581 = pneg %p192
      %p582 = pneg %p189
      %p583 = pneg %p213
      %p584 = pneg %p210
      %p585 = pneg %p234
      %p586 = pneg %p231
      %p587 = pneg %p255
      %p588 = pneg %p252
      %p589 = pneg %p276
      %p590 = pneg %p273
      %p591 = pneg %p297
      %p592 = pneg %p294
      %p593 = pneg %p318
      %p594 = pneg %p315
      %p595 = pneg %p339
      %p596 = pneg %p336
      %p597 = pneg %p360
      %p598 = pneg %p357
      %p599 = pneg %p381
      %p600 = pneg %p378
      %p601 = pneg %p402
      %p602 = pneg %p399
      %p603 = pneg %p428
      %p604 = pneg %p425
      %p605 = scmp.lt.s32.totalorder %s30, 1
      %s606 = scalar_select %p605, %s30, 1
      %s607 = smul.addr %s606, 8
      %s608 = scalar_lea.vmem %s17, %s607
      %p609 = pneg %p454
      %p610 = pneg %p451
      %p611 = scmp.lt.s32.totalorder %s30, 1
      %s612 = scalar_select %p611, %s30, 1
      %s613 = smul.addr %s612, 8
      %s614 = scalar_lea.vmem %s18, %s613
      %s615 = smul.u32 8, %s30
      %p616 = scmp.lt.s32.totalorder %s615, 15
      %s617 = scalar_select %p616, %s615, 15
      %s618 = smul.addr %s617, 4
      %s619 = scalar_lea.vmem %s0, %s618
      %s620 = smul.u32 8, %s30
      %s621 = smul.u32 8, %s30
      %p622 = scmp.lt.s32.totalorder %s621, 15
      %s623 = scalar_select %p622, %s621, 15
      %s624 = smul.addr %s623, 8
      %s625 = scalar_lea.vmem %s1, %s624
      %s626 = smul.u32 8, %s30
      %p627 = scmp.lt.s32.totalorder %s30, 1
      %s628 = scalar_select %p627, %s30, 1
      %s629 = smul.addr %s628, 8
      %s630 = scalar_lea.vmem %s2, %s629
      %p631 = scmp.lt.s32.totalorder %s30, 1
      %s632 = scalar_select %p631, %s30, 1
      %s633 = smul.addr %s632, 8
      %s634 = scalar_lea.vmem %s3, %s633
      %p635 = scmp.lt.s32.totalorder %s30, 1
      %s636 = scalar_select %p635, %s30, 1
      %s637 = smul.addr %s636, 8
      %s638 = scalar_lea.vmem %s17, %s637
      %p639 = scmp.lt.s32.totalorder %s30, 1
      %s640 = scalar_select %p639, %s30, 1
      %s641 = smul.addr %s640, 8
      %s642 = scalar_lea.vmem %s18, %s641
      %v643 = vld [vmem:[%s619] sm:$0xf]
      %v644 = vld [vmem:[%s619 + $0x4] sm:$0xf]
      %v645 = vld [vmem:[%s619 + $0x8] sm:$0xf]
      %v646 = vld [vmem:[%s619 + $0xc] sm:$0xf]
      %v647 = vld [vmem:[%s619 + $0x10] sm:$0xf]
      %v648 = vld [vmem:[%s619 + $0x14] sm:$0xf]
      %v649 = vld [vmem:[%s619 + $0x18] sm:$0xf]
      %v650 = vld [vmem:[%s619 + $0x1c] sm:$0xf]
      %v651 = vld [vmem:[%s6] sm:$0xff]
      %v652 = vld [vmem:[%s7] sm:$0x1]
      %v654 = vlaneseq
      %v655 = vshrl.u32 %v654, 7
      %v656 = vsub.s32 0, %v655
      %v657 = vrot.slane %v652, %v656
      %v667 = vcombine.low %v643, %v644
      %v668 = vcombine.low %v645, %v646
      %v669 = vcombine.low %v647, %v648
      %v670 = vcombine.low %v649, %v650
      %vm671 = vcmask 64512
      %v672 = vsel %vm671, %v667, 0
      %v674 = vsel %vm671, %v668, 0
      %v676 = vsel %vm671, %v669, 0
      %v678 = vsel %vm671, %v670, 0
      %680 = vmatprep.subr.mxu0 0.0
      %681 = vmatpush1.msra.mxu0 %v651
      %682 = vmatprep.subr.mxu0 0.0
      %683 = vmatpush1.msra.mxu0 0.0
      %684 = vmatprep.subr.mxu0 0.0
      %685 = vmatpush1.msra.mxu0 0.0
      %686 = vmatprep.subr.mxu0 0.0
      %687 = vmatpush1.msra.mxu0 0.0
      %688 = vmatprep.subr.mxu0 0.0
      %689 = vmatpush1.msra.mxu0 0.0
      %690 = vmatprep.subr.mxu0 0.0
      %691 = vmatpush1.msra.mxu0 0.0
      %692 = vmatprep.subr.mxu0 0.0
      %693 = vmatpush1.msra.mxu0 0.0
      %694 = vmatprep.subr.mxu0 0.0
      %695 = vmatpush1.msra.mxu0 0.0
      %696 = vmatprep.subr.mxu0 0.0
      %697 = vmatpush1.msra.mxu0 0.0
      %698 = vmatprep.subr.mxu0 0.0
      %699 = vmatpush1.msra.mxu0 0.0
      %700 = vmatprep.subr.mxu0 0.0
      %701 = vmatpush1.msra.mxu0 0.0
      %702 = vmatprep.subr.mxu0 0.0
      %703 = vmatpush1.msra.mxu0 0.0
      %704 = vmatprep.subr.mxu0 0.0
      %705 = vmatpush1.msra.mxu0 0.0
      %706 = vmatprep.subr.mxu0 0.0
      %707 = vmatpush1.msra.mxu0 0.0
      %708 = vmatprep.subr.mxu0 0.0
      %709 = vmatpush1.msra.mxu0 0.0
      %710 = vmatprep.subr.mxu0 0.0
      %711 = vmatpush1.msra.mxu0 0.0
      %712 = vmatprep.subr.mxu0 0.0
      %713 = vmatpush1.msra.mxu0 0.0
      %714 = vmatprep.subr.mxu0 0.0
      %715 = vmatpush1.msra.mxu0 0.0
      %716 = vmatprep.subr.mxu0 0.0
      %717 = vmatpush1.msra.mxu0 0.0
      %718 = vmatprep.subr.mxu0 0.0
      %719 = vmatpush1.msra.mxu0 0.0
      %720 = vmatprep.subr.mxu0 0.0
      %721 = vmatpush1.msra.mxu0 0.0
      %722 = vmatprep.subr.mxu0 0.0
      %723 = vmatpush1.msra.mxu0 0.0
      %724 = vmatprep.subr.mxu0 0.0
      %725 = vmatpush1.msra.mxu0 0.0
      %726 = vmatprep.subr.mxu0 0.0
      %727 = vmatpush1.msra.mxu0 0.0
      %728 = vmatprep.subr.mxu0 0.0
      %729 = vmatpush1.msra.mxu0 0.0
      %730 = vmatprep.subr.mxu0 0.0
      %731 = vmatpush1.msra.mxu0 0.0
      %732 = vmatprep.subr.mxu0 0.0
      %733 = vmatpush1.msra.mxu0 0.0
      %734 = vmatprep.subr.mxu0 0.0
      %735 = vmatpush1.msra.mxu0 0.0
      %736 = vmatprep.subr.mxu0 0.0
      %737 = vmatpush1.msra.mxu0 0.0
      %738 = vmatprep.subr.mxu0 0.0
      %739 = vmatpush1.msra.mxu0 0.0
      %740 = vmatprep.subr.mxu0 0.0
      %741 = vmatpush1.msra.mxu0 0.0
      %742 = vmatprep.subr.mxu0 0.0
      %743 = vmatpush1.msra.mxu0 0.0
      %744 = vmatprep.mubr.f32.mxu0 0.0
      %745 = vmatmul.mubr.f32.gmra.mrb[0].mxu0 %v672
      %v746 = vpop.f32.mrb[0].mxu0
      %v747 = vadd.f32 %v657, %v746
      %v748 = vpop.f32.mrb[0].mxu0
      %749 = vmatprep.mubr.f32.mxu0 0.0
      %750 = vmatmul.mubr.f32.gmra.mrb[0].mxu0 %v674
      %v751 = vpop.f32.mrb[0].mxu0
      %v752 = vadd.f32 %v657, %v751
      %v753 = vpop.f32.mrb[0].mxu0
      %754 = vmatprep.mubr.f32.mxu0 0.0
      %755 = vmatmul.mubr.f32.gmra.mrb[0].mxu0 %v676
      %v756 = vpop.f32.mrb[0].mxu0
      %v757 = vadd.f32 %v657, %v756
      %v758 = vpop.f32.mrb[0].mxu0
      %759 = vmatprep.mubr.f32.mxu0 0.0
      %760 = vmatmul.mubr.f32.gmra.mrb[0].mxu0 %v678
      %v761 = vpop.f32.mrb[0].mxu0
      %v762 = vadd.f32 %v657, %v761
      %v763 = vpop.f32.mrb[0].mxu0
      %764 = vdwg.mxu0
      %v769 = vcombine.high %v747, %v747
      %v770 = vcombine.high %v752, %v752
      %v771 = vcombine.high %v757, %v757
      %v772 = vcombine.high %v762, %v762
      %v777 = vld [vmem:[%s625] sm:$0xff]
      %v778 = vld [vmem:[%s625 + $0x8] sm:$0xff]
      %v779 = vld [vmem:[%s625 + $0x10] sm:$0xff]
      %v780 = vld [vmem:[%s625 + $0x18] sm:$0xff]
      %v781 = vld [vmem:[%s625 + $0x20] sm:$0xff]
      %v782 = vld [vmem:[%s625 + $0x28] sm:$0xff]
      %v783 = vld [vmem:[%s625 + $0x30] sm:$0xff]
      %v784 = vld [vmem:[%s625 + $0x38] sm:$0xff]
      %v785 = vld [vmem:[%s4] sm:$0xff]
      %v786 = vld [vmem:[%s4 + $0x8] sm:$0xff]
      %v787 = vld [vmem:[%s4 + $0x10] sm:$0xff]
      %v788 = vld [vmem:[%s4 + $0x18] sm:$0xff]
      %v789 = vld [vmem:[%s4 + $0x20] sm:$0xff]
      %v790 = vld [vmem:[%s4 + $0x28] sm:$0xff]
      %v791 = vld [vmem:[%s4 + $0x30] sm:$0xff]
      %v792 = vld [vmem:[%s4 + $0x38] sm:$0xff]
      %v793 = vld [vmem:[%s5] sm:$0x1]
      %v794 = vld [vmem:[%s8] sm:$0x1]
      %v795 = vld [vmem:[%s9] sm:$0xf]
      %v796 = vld [vmem:[%s10] sm:$0xff]
      %v797 = vld [vmem:[%s10 + $0x8] sm:$0xff]
      %v798 = vld [vmem:[%s10 + $0x10] sm:$0xff]
      %v799 = vld [vmem:[%s10 + $0x18] sm:$0xff]
      %v800 = vld [vmem:[%s11] sm:$0x1]
      %v801 = vld [vmem:[%s630] sm:$0xff]
      %v802 = vld [vmem:[%s634] sm:$0xff]
      %804 = vrot.lane.b32.xlu0 %v802, 32
      %v805 = vpop.permute.xlu0 %804
      %vm807 = vcmask 261120
      %v808 = vsel %vm807, %v801, %v805
      %v810 = vlaneseq
      %v811 = vshrl.u32 %v810, 7
      %v812 = vsub.s32 0, %v811
      %v813 = vrot.slane %v793, %v812
      %vm815 = vcmask 523264
      %v817 = vsel %vm815, %v808, 0
      %819 = vmatprep.subr.mxu0 0.0
      %820 = vmatpush1.msra.mxu0 %v785
      %821 = vmatprep.subr.mxu0 0.0
      %822 = vmatpush1.msra.mxu0 %v786
      %823 = vmatprep.subr.mxu0 0.0
      %824 = vmatpush1.msra.mxu0 %v787
      %825 = vmatprep.subr.mxu0 0.0
      %826 = vmatpush1.msra.mxu0 %v788
      %827 = vmatprep.subr.mxu0 0.0
      %828 = vmatpush1.msra.mxu0 %v789
      %829 = vmatprep.subr.mxu0 0.0
      %830 = vmatpush1.msra.mxu0 %v790
      %831 = vmatprep.subr.mxu0 0.0
      %832 = vmatpush1.msra.mxu0 %v791
      %833 = vmatprep.subr.mxu0 0.0
      %834 = vmatpush1.msra.mxu0 %v792
      %835 = vmatprep.subr.mxu0 0.0
      %836 = vmatpush1.msra.mxu0 0.0
      %837 = vmatprep.subr.mxu0 0.0
      %838 = vmatpush1.msra.mxu0 0.0
      %839 = vmatprep.subr.mxu0 0.0
      %840 = vmatpush1.msra.mxu0 0.0
      %841 = vmatprep.subr.mxu0 0.0
      %842 = vmatpush1.msra.mxu0 0.0
      %843 = vmatprep.subr.mxu0 0.0
      %844 = vmatpush1.msra.mxu0 0.0
      %845 = vmatprep.subr.mxu0 0.0
      %846 = vmatpush1.msra.mxu0 0.0
      %847 = vmatprep.subr.mxu0 0.0
      %848 = vmatpush1.msra.mxu0 0.0
      %849 = vmatprep.subr.mxu0 0.0
      %850 = vmatpush1.msra.mxu0 0.0
      %851 = vmatprep.subr.mxu0 0.0
      %852 = vmatpush1.msra.mxu0 0.0
      %853 = vmatprep.subr.mxu0 0.0
      %854 = vmatpush1.msra.mxu0 0.0
      %855 = vmatprep.subr.mxu0 0.0
      %856 = vmatpush1.msra.mxu0 0.0
      %857 = vmatprep.subr.mxu0 0.0
      %858 = vmatpush1.msra.mxu0 0.0
      %859 = vmatprep.subr.mxu0 0.0
      %860 = vmatpush1.msra.mxu0 0.0
      %861 = vmatprep.subr.mxu0 0.0
      %862 = vmatpush1.msra.mxu0 0.0
      %863 = vmatprep.subr.mxu0 0.0
      %864 = vmatpush1.msra.mxu0 0.0
      %865 = vmatprep.subr.mxu0 0.0
      %866 = vmatpush1.msra.mxu0 0.0
      %867 = vmatprep.subr.mxu0 0.0
      %868 = vmatpush1.msra.mxu0 0.0
      %869 = vmatprep.subr.mxu0 0.0
      %870 = vmatpush1.msra.mxu0 0.0
      %871 = vmatprep.subr.mxu0 0.0
      %872 = vmatpush1.msra.mxu0 0.0
      %873 = vmatprep.subr.mxu0 0.0
      %874 = vmatpush1.msra.mxu0 0.0
      %875 = vmatprep.subr.mxu0 0.0
      %876 = vmatpush1.msra.mxu0 0.0
      %877 = vmatprep.subr.mxu0 0.0
      %878 = vmatpush1.msra.mxu0 0.0
      %879 = vmatprep.subr.mxu0 0.0
      %880 = vmatpush1.msra.mxu0 0.0
      %881 = vmatprep.subr.mxu0 0.0
      %882 = vmatpush1.msra.mxu0 0.0
      %883 = vmatprep.mubr.f32.mxu0 0.0
      %884 = vmatmul.mubr.f32.gmra.mrb[0].mxu0 %v817
      %v885 = vpop.f32.mrb[0].mxu0
      %v886 = vadd.f32 %v813, %v885
      %v887 = vpop.f32.mrb[0].mxu0
      %888 = vdwg.mxu0
      %v890 = vcombine.high %v886, %v886
      %v892 = vunpack.c.l.s4 1966171168
      %v893 = vunpack.c.0.s8 %v892
      %v894 = vlaneseq
      %v895 = vshrl.u32 %v894, 7
      %v896 = vsub.s32 %v893, %v895
      %v897 = vrot.slane %v886, %v896
      %v899 = vunpack.c.l.s4 1966171168
      %v900 = vunpack.c.0.s8 %v899
      %v901 = vlaneseq
      %v902 = vshrl.u32 %v901, 7
      %v903 = vsub.s32 %v900, %v902
      %v904 = vrot.slane %v890, %v903
      %v905 = vcombine.high %v897, %v897
      %v906 = vcombine.high %v904, %v904
      %v908 = vunpack.c.l.s4 1966171168
      %v909 = vunpack.c.0.s8 %v908
      %v910 = vlaneseq
      %v911 = vshrl.u32 %v910, 7
      %v912 = vsub.s32 %v909, %v911
      %v913 = vrot.slane %v897, %v912
      %v915 = vunpack.c.l.s4 1966171168
      %v916 = vunpack.c.0.s8 %v915
      %v917 = vlaneseq
      %v918 = vshrl.u32 %v917, 7
      %v919 = vsub.s32 %v916, %v918
      %v920 = vrot.slane %v904, %v919
      %v922 = vunpack.c.l.s4 1966171168
      %v923 = vunpack.c.0.s8 %v922
      %v924 = vlaneseq
      %v925 = vshrl.u32 %v924, 7
      %v926 = vsub.s32 %v923, %v925
      %v927 = vrot.slane %v905, %v926
      %v929 = vunpack.c.l.s4 1966171168
      %v930 = vunpack.c.0.s8 %v929
      %v931 = vlaneseq
      %v932 = vshrl.u32 %v931, 7
      %v933 = vsub.s32 %v930, %v932
      %v934 = vrot.slane %v906, %v933
      %v935 = vcombine.high %v913, %v913
      %v936 = vcombine.high %v920, %v920
      %v937 = vcombine.high %v927, %v927
      %v938 = vcombine.high %v934, %v934
      %v939 = vlaneseq
      %v940 = vshrl.u32 %v939, 7
      %v941 = vsub.s32 0, %v940
      %v942 = vrot.slane %v913, %v941
      %v943 = vlaneseq
      %v944 = vshrl.u32 %v943, 7
      %v945 = vsub.s32 0, %v944
      %v946 = vrot.slane %v927, %v945
      %v947 = vlaneseq
      %v948 = vshrl.u32 %v947, 7
      %v949 = vsub.s32 0, %v948
      %v950 = vrot.slane %v935, %v949
      %v951 = vlaneseq
      %v952 = vshrl.u32 %v951, 7
      %v953 = vsub.s32 0, %v952
      %v954 = vrot.slane %v937, %v953
      %v955 = vlaneseq
      %v956 = vshrl.u32 %v955, 7
      %v957 = vsub.s32 0, %v956
      %v958 = vrot.slane %v920, %v957
      %v959 = vlaneseq
      %v960 = vshrl.u32 %v959, 7
      %v961 = vsub.s32 0, %v960
      %v962 = vrot.slane %v934, %v961
      %v963 = vlaneseq
      %v964 = vshrl.u32 %v963, 7
      %v965 = vsub.s32 0, %v964
      %v966 = vrot.slane %v936, %v965
      %v967 = vlaneseq
      %v968 = vshrl.u32 %v967, 7
      %v969 = vsub.s32 0, %v968
      %v970 = vrot.slane %v938, %v969
      %v979 = vadd.f32 %v747, %v942
      %v980 = vadd.f32 %v769, %v946
      %v981 = vadd.f32 %v752, %v950
      %v982 = vadd.f32 %v770, %v954
      %v983 = vadd.f32 %v757, %v958
      %v984 = vadd.f32 %v771, %v962
      %v985 = vadd.f32 %v762, %v966
      %v986 = vadd.f32 %v772, %v970
      %v987 = vtanh.pop %v979
      %v988 = vtanh.pop %v980
      %v989 = vtanh.pop %v981
      %v990 = vtanh.pop %v982
      %v991 = vtanh.pop %v983
      %v992 = vtanh.pop %v984
      %v993 = vtanh.pop %v985
      %v994 = vtanh.pop %v986
      %v996 = vlaneseq
      %v997 = vshrl.u32 %v996, 7
      %v998 = vsub.s32 0, %v997
      %v999 = vrot.slane %v794, %v998
      %v1001 = vmul.f32 %v987, %v999
      %v1002 = vmul.f32 %v988, %v999
      %v1003 = vmul.f32 %v989, %v999
      %v1004 = vmul.f32 %v990, %v999
      %v1005 = vmul.f32 %v991, %v999
      %v1006 = vmul.f32 %v992, %v999
      %v1007 = vmul.f32 %v993, %v999
      %v1008 = vmul.f32 %v994, %v999
      %vm1009 = vcmask 60416
      %v1010 = vsel %vm1009, %v1001, 0.0
      %1011 = vadd.xlane.f32.xlu0 %v1010
      %v1012 = vpop.xlane.xlu0 %1011
      %v1013 = vsel %vm1009, %v1002, 0.0
      %1014 = vadd.xlane.f32.xlu0 %v1013
      %v1015 = vpop.xlane.xlu0 %1014
      %v1016 = vsel %vm1009, %v1003, 0.0
      %1017 = vadd.xlane.f32.xlu0 %v1016
      %v1018 = vpop.xlane.xlu0 %1017
      %v1019 = vsel %vm1009, %v1004, 0.0
      %1020 = vadd.xlane.f32.xlu0 %v1019
      %v1021 = vpop.xlane.xlu0 %1020
      %v1022 = vsel %vm1009, %v1005, 0.0
      %1023 = vadd.xlane.f32.xlu0 %v1022
      %v1024 = vpop.xlane.xlu0 %1023
      %v1025 = vsel %vm1009, %v1006, 0.0
      %1026 = vadd.xlane.f32.xlu0 %v1025
      %v1027 = vpop.xlane.xlu0 %1026
      %v1028 = vsel %vm1009, %v1007, 0.0
      %1029 = vadd.xlane.f32.xlu0 %v1028
      %v1030 = vpop.xlane.xlu0 %1029
      %v1031 = vsel %vm1009, %v1008, 0.0
      %1032 = vadd.xlane.f32.xlu0 %v1031
      %v1033 = vpop.xlane.xlu0 %1032
      %v1042 = vlaneseq
      %v1043 = vand.u32 %v1042, 127
      %v1044 = vlaneseq
      %v1045 = vshrl.u32 %v1044, 7
      %v1046 = vsub.s32 %v1043, %v1045
      %v1047 = vrot.slane %v1012, %v1046
      %v1048 = vlaneseq
      %v1049 = vshrl.u32 %v1048, 7
      %v1050 = vsub.s32 %v1043, %v1049
      %v1051 = vrot.slane %v1015, %v1050
      %v1052 = vlaneseq
      %v1053 = vshrl.u32 %v1052, 7
      %v1054 = vsub.s32 %v1043, %v1053
      %v1055 = vrot.slane %v1018, %v1054
      %v1056 = vlaneseq
      %v1057 = vshrl.u32 %v1056, 7
      %v1058 = vsub.s32 %v1043, %v1057
      %v1059 = vrot.slane %v1021, %v1058
      %v1060 = vlaneseq
      %v1061 = vshrl.u32 %v1060, 7
      %v1062 = vsub.s32 %v1043, %v1061
      %v1063 = vrot.slane %v1024, %v1062
      %v1064 = vlaneseq
      %v1065 = vshrl.u32 %v1064, 7
      %v1066 = vsub.s32 %v1043, %v1065
      %v1067 = vrot.slane %v1027, %v1066
      %v1068 = vlaneseq
      %v1069 = vshrl.u32 %v1068, 7
      %v1070 = vsub.s32 %v1043, %v1069
      %v1071 = vrot.slane %v1030, %v1070
      %v1072 = vlaneseq
      %v1073 = vshrl.u32 %v1072, 7
      %v1074 = vsub.s32 %v1043, %v1073
      %v1075 = vrot.slane %v1033, %v1074
      %vm1076 = vcmask 1041409
      %v1077 = vsel %vm1076, %v1051, %v1047
      %vm1078 = vcmask 1042434
      %v1079 = vsel %vm1078, %v1055, %v1077
      %vm1080 = vcmask 1043459
      %v1081 = vsel %vm1080, %v1059, %v1079
      %vm1082 = vcmask 1044484
      %v1083 = vsel %vm1082, %v1063, %v1081
      %vm1084 = vcmask 1045509
      %v1085 = vsel %vm1084, %v1067, %v1083
      %vm1086 = vcmask 1046534
      %v1087 = vsel %vm1086, %v1071, %v1085
      %vm1088 = vcmask 1047559
      %v1089 = vsel %vm1088, %v1075, %v1087
      %vm1091 = vcmask 31744
      %v1092 = vsel %vm1091, %v1089, -inf
      %1093 = vmax.xlane.f32.xlu0 %v1092
      %v1094 = vpop.xlane.xlu0 %1093
      %v1096 = vlaneseq
      %v1097 = vshrl.u32 %v1096, 7
      %v1098 = vsub.s32 0, %v1097
      %v1099 = vrot.slane %v1094, %v1098
      %v1100 = vlaneseq
      %v1101 = vshrl.u32 %v1100, 7
      %v1102 = vsub.s32 1, %v1101
      %v1103 = vrot.slane %v1094, %v1102
      %v1104 = vlaneseq
      %v1105 = vshrl.u32 %v1104, 7
      %v1106 = vsub.s32 2, %v1105
      %v1107 = vrot.slane %v1094, %v1106
      %v1108 = vlaneseq
      %v1109 = vshrl.u32 %v1108, 7
      %v1110 = vsub.s32 3, %v1109
      %v1111 = vrot.slane %v1094, %v1110
      %v1112 = vlaneseq
      %v1113 = vshrl.u32 %v1112, 7
      %v1114 = vsub.s32 4, %v1113
      %v1115 = vrot.slane %v1094, %v1114
      %v1116 = vlaneseq
      %v1117 = vshrl.u32 %v1116, 7
      %v1118 = vsub.s32 5, %v1117
      %v1119 = vrot.slane %v1094, %v1118
      %v1120 = vlaneseq
      %v1121 = vshrl.u32 %v1120, 7
      %v1122 = vsub.s32 6, %v1121
      %v1123 = vrot.slane %v1094, %v1122
      %v1124 = vlaneseq
      %v1125 = vshrl.u32 %v1124, 7
      %v1126 = vsub.s32 7, %v1125
      %v1127 = vrot.slane %v1094, %v1126
      %v1136 = vsub.f32 %v1012, %v1099
      %v1137 = vsub.f32 %v1015, %v1103
      %v1138 = vsub.f32 %v1018, %v1107
      %v1139 = vsub.f32 %v1021, %v1111
      %v1140 = vsub.f32 %v1024, %v1115
      %v1141 = vsub.f32 %v1027, %v1119
      %v1142 = vsub.f32 %v1030, %v1123
      %v1143 = vsub.f32 %v1033, %v1127
      %v1144 = vmul.f32 %v1136, 1.442695
      %v1145 = vpow.pop %v1144
      %v1146 = vmul.f32 %v1137, 1.442695
      %v1147 = vpow.pop %v1146
      %v1148 = vmul.f32 %v1138, 1.442695
      %v1149 = vpow.pop %v1148
      %v1150 = vmul.f32 %v1139, 1.442695
      %v1151 = vpow.pop %v1150
      %v1152 = vmul.f32 %v1140, 1.442695
      %v1153 = vpow.pop %v1152
      %v1154 = vmul.f32 %v1141, 1.442695
      %v1155 = vpow.pop %v1154
      %v1156 = vmul.f32 %v1142, 1.442695
      %v1157 = vpow.pop %v1156
      %v1158 = vmul.f32 %v1143, 1.442695
      %v1159 = vpow.pop %v1158
      %1168 = vset.pattern.permute.xlu0 0
      %1169 = vperm.xlu0 %1168, %v1145
      %v1170 = vpop.permute.xlu0 %1169
      %1171 = vset.pattern.permute.xlu0 0
      %1172 = vperm.xlu0 %1171, %v1147
      %v1173 = vpop.permute.xlu0 %1172
      %1174 = vset.pattern.permute.xlu0 0
      %1175 = vperm.xlu0 %1174, %v1149
      %v1176 = vpop.permute.xlu0 %1175
      %1177 = vset.pattern.permute.xlu0 0
      %1178 = vperm.xlu0 %1177, %v1151
      %v1179 = vpop.permute.xlu0 %1178
      %1180 = vset.pattern.permute.xlu0 0
      %1181 = vperm.xlu0 %1180, %v1153
      %v1182 = vpop.permute.xlu0 %1181
      %1183 = vset.pattern.permute.xlu0 0
      %1184 = vperm.xlu0 %1183, %v1155
      %v1185 = vpop.permute.xlu0 %1184
      %1186 = vset.pattern.permute.xlu0 0
      %1187 = vperm.xlu0 %1186, %v1157
      %v1188 = vpop.permute.xlu0 %1187
      %1189 = vset.pattern.permute.xlu0 0
      %1190 = vperm.xlu0 %1189, %v1159
      %v1191 = vpop.permute.xlu0 %1190
      %v1192 = vlaneseq
      %v1193 = vshrl.u32 %v1192, 7
      %v1194 = vsub.s32 %v1043, %v1193
      %v1195 = vrot.slane %v1170, %v1194
      %v1196 = vlaneseq
      %v1197 = vshrl.u32 %v1196, 7
      %v1198 = vsub.s32 %v1043, %v1197
      %v1199 = vrot.slane %v1173, %v1198
      %v1200 = vlaneseq
      %v1201 = vshrl.u32 %v1200, 7
      %v1202 = vsub.s32 %v1043, %v1201
      %v1203 = vrot.slane %v1176, %v1202
      %v1204 = vlaneseq
      %v1205 = vshrl.u32 %v1204, 7
      %v1206 = vsub.s32 %v1043, %v1205
      %v1207 = vrot.slane %v1179, %v1206
      %v1208 = vlaneseq
      %v1209 = vshrl.u32 %v1208, 7
      %v1210 = vsub.s32 %v1043, %v1209
      %v1211 = vrot.slane %v1182, %v1210
      %v1212 = vlaneseq
      %v1213 = vshrl.u32 %v1212, 7
      %v1214 = vsub.s32 %v1043, %v1213
      %v1215 = vrot.slane %v1185, %v1214
      %v1216 = vlaneseq
      %v1217 = vshrl.u32 %v1216, 7
      %v1218 = vsub.s32 %v1043, %v1217
      %v1219 = vrot.slane %v1188, %v1218
      %v1220 = vlaneseq
      %v1221 = vshrl.u32 %v1220, 7
      %v1222 = vsub.s32 %v1043, %v1221
      %v1223 = vrot.slane %v1191, %v1222
      %v1224 = vsel %vm1076, %v1199, %v1195
      %v1225 = vsel %vm1078, %v1203, %v1224
      %v1226 = vsel %vm1080, %v1207, %v1225
      %v1227 = vsel %vm1082, %v1211, %v1226
      %v1228 = vsel %vm1084, %v1215, %v1227
      %v1229 = vsel %vm1086, %v1219, %v1228
      %v1230 = vsel %vm1088, %v1223, %v1229
      %v1232 = vsel %vm1091, %v1230, 0.0
      %1233 = vadd.xlane.f32.xlu0 %v1232
      %v1234 = vpop.xlane.xlu0 %1233
      %v1235 = vrcp.pop %v1234
      %v1237 = vlaneseq
      %v1238 = vshrl.u32 %v1237, 7
      %v1239 = vsub.s32 0, %v1238
      %v1240 = vrot.slane %v1235, %v1239
      %v1241 = vlaneseq
      %v1242 = vshrl.u32 %v1241, 7
      %v1243 = vsub.s32 1, %v1242
      %v1244 = vrot.slane %v1235, %v1243
      %v1245 = vlaneseq
      %v1246 = vshrl.u32 %v1245, 7
      %v1247 = vsub.s32 2, %v1246
      %v1248 = vrot.slane %v1235, %v1247
      %v1249 = vlaneseq
      %v1250 = vshrl.u32 %v1249, 7
      %v1251 = vsub.s32 3, %v1250
      %v1252 = vrot.slane %v1235, %v1251
      %v1253 = vlaneseq
      %v1254 = vshrl.u32 %v1253, 7
      %v1255 = vsub.s32 4, %v1254
      %v1256 = vrot.slane %v1235, %v1255
      %v1257 = vlaneseq
      %v1258 = vshrl.u32 %v1257, 7
      %v1259 = vsub.s32 5, %v1258
      %v1260 = vrot.slane %v1235, %v1259
      %v1261 = vlaneseq
      %v1262 = vshrl.u32 %v1261, 7
      %v1263 = vsub.s32 6, %v1262
      %v1264 = vrot.slane %v1235, %v1263
      %v1265 = vlaneseq
      %v1266 = vshrl.u32 %v1265, 7
      %v1267 = vsub.s32 7, %v1266
      %v1268 = vrot.slane %v1235, %v1267
      %v1277 = vmul.f32 %v1145, %v1240
      %v1278 = vmul.f32 %v1147, %v1244
      %v1279 = vmul.f32 %v1149, %v1248
      %v1280 = vmul.f32 %v1151, %v1252
      %v1281 = vmul.f32 %v1153, %v1256
      %v1282 = vmul.f32 %v1155, %v1260
      %v1283 = vmul.f32 %v1157, %v1264
      %v1284 = vmul.f32 %v1159, %v1268
      %v1293 = vlaneseq
      %v1294 = vshrl.u32 %v1293, 7
      %v1295 = vsub.s32 0, %v1294
      %v1296 = vrot.slane %v777, %v1295
      %1298 = vbcast.lane.b32.xlu0 %v1296, 256
      %v1299 = vpop.permute.xlu0 %1298
      %v1300 = vlaneseq
      %v1301 = vshrl.u32 %v1300, 7
      %v1302 = vsub.s32 0, %v1301
      %v1303 = vrot.slane %v778, %v1302
      %1305 = vbcast.lane.b32.xlu0 %v1303, 256
      %v1306 = vpop.permute.xlu0 %1305
      %v1307 = vlaneseq
      %v1308 = vshrl.u32 %v1307, 7
      %v1309 = vsub.s32 0, %v1308
      %v1310 = vrot.slane %v779, %v1309
      %1312 = vbcast.lane.b32.xlu0 %v1310, 256
      %v1313 = vpop.permute.xlu0 %1312
      %v1314 = vlaneseq
      %v1315 = vshrl.u32 %v1314, 7
      %v1316 = vsub.s32 0, %v1315
      %v1317 = vrot.slane %v780, %v1316
      %1319 = vbcast.lane.b32.xlu0 %v1317, 256
      %v1320 = vpop.permute.xlu0 %1319
      %v1321 = vlaneseq
      %v1322 = vshrl.u32 %v1321, 7
      %v1323 = vsub.s32 0, %v1322
      %v1324 = vrot.slane %v781, %v1323
      %1326 = vbcast.lane.b32.xlu0 %v1324, 256
      %v1327 = vpop.permute.xlu0 %1326
      %v1328 = vlaneseq
      %v1329 = vshrl.u32 %v1328, 7
      %v1330 = vsub.s32 0, %v1329
      %v1331 = vrot.slane %v782, %v1330
      %1333 = vbcast.lane.b32.xlu0 %v1331, 256
      %v1334 = vpop.permute.xlu0 %1333
      %v1335 = vlaneseq
      %v1336 = vshrl.u32 %v1335, 7
      %v1337 = vsub.s32 0, %v1336
      %v1338 = vrot.slane %v783, %v1337
      %1340 = vbcast.lane.b32.xlu0 %v1338, 256
      %v1341 = vpop.permute.xlu0 %1340
      %v1342 = vlaneseq
      %v1343 = vshrl.u32 %v1342, 7
      %v1344 = vsub.s32 0, %v1343
      %v1345 = vrot.slane %v784, %v1344
      %1347 = vbcast.lane.b32.xlu0 %v1345, 256
      %v1348 = vpop.permute.xlu0 %1347
      %v1357 = vmul.f32 %v1277, %v1299
      %v1358 = vmul.f32 %v1278, %v1306
      %v1359 = vmul.f32 %v1279, %v1313
      %v1360 = vmul.f32 %v1280, %v1320
      %v1361 = vmul.f32 %v1281, %v1327
      %v1362 = vmul.f32 %v1282, %v1334
      %v1363 = vmul.f32 %v1283, %v1341
      %v1364 = vmul.f32 %v1284, %v1348
      %v1366 = vsel %vm807, %v801, 0
      %1368 = vmatprep.subr.mxu0 0.0
      %1369 = vmatpush1.msra.mxu0 %v796
      %1370 = vmatprep.subr.mxu0 0.0
      %1371 = vmatpush1.msra.mxu0 %v797
      %1372 = vmatprep.subr.mxu0 0.0
      %1373 = vmatpush1.msra.mxu0 %v798
      %1374 = vmatprep.subr.mxu0 0.0
      %1375 = vmatpush1.msra.mxu0 %v799
      %1376 = vmatprep.subr.mxu0 0.0
      %1377 = vmatpush1.msra.mxu0 0.0
      %1378 = vmatprep.subr.mxu0 0.0
      %1379 = vmatpush1.msra.mxu0 0.0
      %1380 = vmatprep.subr.mxu0 0.0
      %1381 = vmatpush1.msra.mxu0 0.0
      %1382 = vmatprep.subr.mxu0 0.0
      %1383 = vmatpush1.msra.mxu0 0.0
      %1384 = vmatprep.subr.mxu0 0.0
      %1385 = vmatpush1.msra.mxu0 0.0
      %1386 = vmatprep.subr.mxu0 0.0
      %1387 = vmatpush1.msra.mxu0 0.0
      %1388 = vmatprep.subr.mxu0 0.0
      %1389 = vmatpush1.msra.mxu0 0.0
      %1390 = vmatprep.subr.mxu0 0.0
      %1391 = vmatpush1.msra.mxu0 0.0
      %1392 = vmatprep.subr.mxu0 0.0
      %1393 = vmatpush1.msra.mxu0 0.0
      %1394 = vmatprep.subr.mxu0 0.0
      %1395 = vmatpush1.msra.mxu0 0.0
      %1396 = vmatprep.subr.mxu0 0.0
      %1397 = vmatpush1.msra.mxu0 0.0
      %1398 = vmatprep.subr.mxu0 0.0
      %1399 = vmatpush1.msra.mxu0 0.0
      %1400 = vmatprep.subr.mxu0 0.0
      %1401 = vmatpush1.msra.mxu0 0.0
      %1402 = vmatprep.subr.mxu0 0.0
      %1403 = vmatpush1.msra.mxu0 0.0
      %1404 = vmatprep.subr.mxu0 0.0
      %1405 = vmatpush1.msra.mxu0 0.0
      %1406 = vmatprep.subr.mxu0 0.0
      %1407 = vmatpush1.msra.mxu0 0.0
      %1408 = vmatprep.subr.mxu0 0.0
      %1409 = vmatpush1.msra.mxu0 0.0
      %1410 = vmatprep.subr.mxu0 0.0
      %1411 = vmatpush1.msra.mxu0 0.0
      %1412 = vmatprep.subr.mxu0 0.0
      %1413 = vmatpush1.msra.mxu0 0.0
      %1414 = vmatprep.subr.mxu0 0.0
      %1415 = vmatpush1.msra.mxu0 0.0
      %1416 = vmatprep.subr.mxu0 0.0
      %1417 = vmatpush1.msra.mxu0 0.0
      %1418 = vmatprep.subr.mxu0 0.0
      %1419 = vmatpush1.msra.mxu0 0.0
      %1420 = vmatprep.subr.mxu0 0.0
      %1421 = vmatpush1.msra.mxu0 0.0
      %1422 = vmatprep.subr.mxu0 0.0
      %1423 = vmatpush1.msra.mxu0 0.0
      %1424 = vmatprep.subr.mxu0 0.0
      %1425 = vmatpush1.msra.mxu0 0.0
      %1426 = vmatprep.subr.mxu0 0.0
      %1427 = vmatpush1.msra.mxu0 0.0
      %1428 = vmatprep.subr.mxu0 0.0
      %1429 = vmatpush1.msra.mxu0 0.0
      %1430 = vmatprep.subr.mxu0 0.0
      %1431 = vmatpush1.msra.mxu0 0.0
      %1432 = vmatprep.mubr.f32.mxu0 0.0
      %1433 = vmatmul.mubr.f32.gmra.mrb[0].mxu0 %v1366
      %v1434 = vpop.f32.mrb[0].mxu0
      %v1435 = vadd.f32 0.0, %v1434
      %v1436 = vpop.f32.mrb[0].mxu0
      %1437 = vdwg.mxu0
      %1446 = vset.pattern.permute.xlu0 0
      %1447 = vperm.xlu0 %1446, %v1357
      %v1448 = vpop.permute.xlu0 %1447
      %1449 = vset.pattern.permute.xlu0 0
      %1450 = vperm.xlu0 %1449, %v1358
      %v1451 = vpop.permute.xlu0 %1450
      %1452 = vset.pattern.permute.xlu0 0
      %1453 = vperm.xlu0 %1452, %v1359
      %v1454 = vpop.permute.xlu0 %1453
      %1455 = vset.pattern.permute.xlu0 0
      %1456 = vperm.xlu0 %1455, %v1360
      %v1457 = vpop.permute.xlu0 %1456
      %1458 = vset.pattern.permute.xlu0 0
      %1459 = vperm.xlu0 %1458, %v1361
      %v1460 = vpop.permute.xlu0 %1459
      %1461 = vset.pattern.permute.xlu0 0
      %1462 = vperm.xlu0 %1461, %v1362
      %v1463 = vpop.permute.xlu0 %1462
      %1464 = vset.pattern.permute.xlu0 0
      %1465 = vperm.xlu0 %1464, %v1363
      %v1466 = vpop.permute.xlu0 %1465
      %1467 = vset.pattern.permute.xlu0 0
      %1468 = vperm.xlu0 %1467, %v1364
      %v1469 = vpop.permute.xlu0 %1468
      %v1470 = vlaneseq
      %v1471 = vshrl.u32 %v1470, 7
      %v1472 = vsub.s32 %v1043, %v1471
      %v1473 = vrot.slane %v1448, %v1472
      %v1474 = vlaneseq
      %v1475 = vshrl.u32 %v1474, 7
      %v1476 = vsub.s32 %v1043, %v1475
      %v1477 = vrot.slane %v1451, %v1476
      %v1478 = vlaneseq
      %v1479 = vshrl.u32 %v1478, 7
      %v1480 = vsub.s32 %v1043, %v1479
      %v1481 = vrot.slane %v1454, %v1480
      %v1482 = vlaneseq
      %v1483 = vshrl.u32 %v1482, 7
      %v1484 = vsub.s32 %v1043, %v1483
      %v1485 = vrot.slane %v1457, %v1484
      %v1486 = vlaneseq
      %v1487 = vshrl.u32 %v1486, 7
      %v1488 = vsub.s32 %v1043, %v1487
      %v1489 = vrot.slane %v1460, %v1488
      %v1490 = vlaneseq
      %v1491 = vshrl.u32 %v1490, 7
      %v1492 = vsub.s32 %v1043, %v1491
      %v1493 = vrot.slane %v1463, %v1492
      %v1494 = vlaneseq
      %v1495 = vshrl.u32 %v1494, 7
      %v1496 = vsub.s32 %v1043, %v1495
      %v1497 = vrot.slane %v1466, %v1496
      %v1498 = vlaneseq
      %v1499 = vshrl.u32 %v1498, 7
      %v1500 = vsub.s32 %v1043, %v1499
      %v1501 = vrot.slane %v1469, %v1500
      %v1502 = vsel %vm1076, %v1477, %v1473
      %v1503 = vsel %vm1078, %v1481, %v1502
      %v1504 = vsel %vm1080, %v1485, %v1503
      %v1505 = vsel %vm1082, %v1489, %v1504
      %v1506 = vsel %vm1084, %v1493, %v1505
      %v1507 = vsel %vm1086, %v1497, %v1506
      %v1508 = vsel %vm1088, %v1501, %v1507
      %v1509 = vsel %vm1091, %v1508, 0
      %vm1511 = vcmask 1043456
      %v1513 = vsel %vm1511, %v795, 0
      %1515 = vmatprep.subr.mxu0 0.0
      %1516 = vmatpush1.msra.mxu0 %v1513
      %1517 = vmatprep.subr.mxu0 0.0
      %1518 = vmatpush1.msra.mxu0 0.0
      %1519 = vmatprep.subr.mxu0 0.0
      %1520 = vmatpush1.msra.mxu0 0.0
      %1521 = vmatprep.subr.mxu0 0.0
      %1522 = vmatpush1.msra.mxu0 0.0
      %1523 = vmatprep.subr.mxu0 0.0
      %1524 = vmatpush1.msra.mxu0 0.0
      %1525 = vmatprep.subr.mxu0 0.0
      %1526 = vmatpush1.msra.mxu0 0.0
      %1527 = vmatprep.subr.mxu0 0.0
      %1528 = vmatpush1.msra.mxu0 0.0
      %1529 = vmatprep.subr.mxu0 0.0
      %1530 = vmatpush1.msra.mxu0 0.0
      %1531 = vmatprep.subr.mxu0 0.0
      %1532 = vmatpush1.msra.mxu0 0.0
      %1533 = vmatprep.subr.mxu0 0.0
      %1534 = vmatpush1.msra.mxu0 0.0
      %1535 = vmatprep.subr.mxu0 0.0
      %1536 = vmatpush1.msra.mxu0 0.0
      %1537 = vmatprep.subr.mxu0 0.0
      %1538 = vmatpush1.msra.mxu0 0.0
      %1539 = vmatprep.subr.mxu0 0.0
      %1540 = vmatpush1.msra.mxu0 0.0
      %1541 = vmatprep.subr.mxu0 0.0
      %1542 = vmatpush1.msra.mxu0 0.0
      %1543 = vmatprep.subr.mxu0 0.0
      %1544 = vmatpush1.msra.mxu0 0.0
      %1545 = vmatprep.subr.mxu0 0.0
      %1546 = vmatpush1.msra.mxu0 0.0
      %1547 = vmatprep.subr.mxu0 0.0
      %1548 = vmatpush1.msra.mxu0 0.0
      %1549 = vmatprep.subr.mxu0 0.0
      %1550 = vmatpush1.msra.mxu0 0.0
      %1551 = vmatprep.subr.mxu0 0.0
      %1552 = vmatpush1.msra.mxu0 0.0
      %1553 = vmatprep.subr.mxu0 0.0
      %1554 = vmatpush1.msra.mxu0 0.0
      %1555 = vmatprep.subr.mxu0 0.0
      %1556 = vmatpush1.msra.mxu0 0.0
      %1557 = vmatprep.subr.mxu0 0.0
      %1558 = vmatpush1.msra.mxu0 0.0
      %1559 = vmatprep.subr.mxu0 0.0
      %1560 = vmatpush1.msra.mxu0 0.0
      %1561 = vmatprep.subr.mxu0 0.0
      %1562 = vmatpush1.msra.mxu0 0.0
      %1563 = vmatprep.subr.mxu0 0.0
      %1564 = vmatpush1.msra.mxu0 0.0
      %1565 = vmatprep.subr.mxu0 0.0
      %1566 = vmatpush1.msra.mxu0 0.0
      %1567 = vmatprep.subr.mxu0 0.0
      %1568 = vmatpush1.msra.mxu0 0.0
      %1569 = vmatprep.subr.mxu0 0.0
      %1570 = vmatpush1.msra.mxu0 0.0
      %1571 = vmatprep.subr.mxu0 0.0
      %1572 = vmatpush1.msra.mxu0 0.0
      %1573 = vmatprep.subr.mxu0 0.0
      %1574 = vmatpush1.msra.mxu0 0.0
      %1575 = vmatprep.subr.mxu0 0.0
      %1576 = vmatpush1.msra.mxu0 0.0
      %1577 = vmatprep.subr.mxu0 0.0
      %1578 = vmatpush1.msra.mxu0 0.0
      %1579 = vmatprep.mubr.f32.mxu0 0.0
      %1580 = vmatmul.mubr.f32.gmra.mrb[0].mxu0 %v1509
      %v1581 = vpop.f32.mrb[0].mxu0
      %v1582 = vadd.f32 %v1435, %v1581
      %v1583 = vpop.f32.mrb[0].mxu0
      %1584 = vdwg.mxu0
      %v1586 = vlaneseq
      %v1587 = vshrl.u32 %v1586, 7
      %v1588 = vsub.s32 0, %v1587
      %v1589 = vrot.slane %v800, %v1588
      %v1591 = vadd.f32 %v1582, %v1589
      %v1592 = vxor.u32 %v1591, 2147483648
      %v1593 = vmul.f32 %v1592, 1.442695
      %v1594 = vpow.pop %v1593
      %v1595 = vadd.f32 %v1594, 1.0
      %v1596 = vrcp.pop %v1595
      %v1597 = vmul.f32 1.0, %v1596
      %v1598 = vtanh.pop %v1591
      %v1599 = vmul.f32 %v1597, %v805
      %1601 = vrot.lane.b32.xlu0 %v1598, 64
      %v1602 = vpop.permute.xlu0 %1601
      %v1604 = vmul.f32 %v1597, %v1602
      %1606 = vrot.lane.b32.xlu0 %v1604, 32
      %v1607 = vpop.permute.xlu0 %1606
      %v1609 = vadd.f32 %v1599, %v1607
      %v1610 = vtanh.pop %v1609
      %1612 = vrot.lane.b32.xlu0 %v1610, 64
      %v1613 = vpop.permute.xlu0 %1612
      %v1615 = vmul.f32 %v1597, %v1613
      %v1617 = vcombine.high %v1615, %v1615
      %v1619 = vunpack.c.l.s4 1966171168
      %v1620 = vunpack.c.0.s8 %v1619
      %v1621 = vlaneseq
      %v1622 = vshrl.u32 %v1621, 7
      %v1623 = vsub.s32 %v1620, %v1622
      %v1624 = vrot.slane %v1615, %v1623
      %v1626 = vunpack.c.l.s4 1966171168
      %v1627 = vunpack.c.0.s8 %v1626
      %v1628 = vlaneseq
      %v1629 = vshrl.u32 %v1628, 7
      %v1630 = vsub.s32 %v1627, %v1629
      %v1631 = vrot.slane %v1617, %v1630
      %v1632 = vcombine.high %v1624, %v1624
      %v1633 = vcombine.high %v1631, %v1631
      %v1635 = vunpack.c.l.s4 1966171168
      %v1636 = vunpack.c.0.s8 %v1635
      %v1637 = vlaneseq
      %v1638 = vshrl.u32 %v1637, 7
      %v1639 = vsub.s32 %v1636, %v1638
      %v1640 = vrot.slane %v1624, %v1639
      %v1642 = vunpack.c.l.s4 1966171168
      %v1643 = vunpack.c.0.s8 %v1642
      %v1644 = vlaneseq
      %v1645 = vshrl.u32 %v1644, 7
      %v1646 = vsub.s32 %v1643, %v1645
      %v1647 = vrot.slane %v1631, %v1646
      %v1649 = vunpack.c.l.s4 1966171168
      %v1650 = vunpack.c.0.s8 %v1649
      %v1651 = vlaneseq
      %v1652 = vshrl.u32 %v1651, 7
      %v1653 = vsub.s32 %v1650, %v1652
      %v1654 = vrot.slane %v1632, %v1653
      %v1656 = vunpack.c.l.s4 1966171168
      %v1657 = vunpack.c.0.s8 %v1656
      %v1658 = vlaneseq
      %v1659 = vshrl.u32 %v1658, 7
      %v1660 = vsub.s32 %v1657, %v1659
      %v1661 = vrot.slane %v1633, %v1660
      %v1662 = vcombine.high %v1640, %v1640
      %v1663 = vcombine.high %v1647, %v1647
      %v1664 = vcombine.high %v1654, %v1654
      %v1665 = vcombine.high %v1661, %v1661
      %v1666 = vlaneseq
      %v1667 = vshrl.u32 %v1666, 7
      %v1668 = vsub.s32 0, %v1667
      %v1669 = vrot.slane %v1640, %v1668
      %v1670 = vlaneseq
      %v1671 = vshrl.u32 %v1670, 7
      %v1672 = vsub.s32 0, %v1671
      %v1673 = vrot.slane %v1654, %v1672
      %v1674 = vlaneseq
      %v1675 = vshrl.u32 %v1674, 7
      %v1676 = vsub.s32 0, %v1675
      %v1677 = vrot.slane %v1662, %v1676
      %v1678 = vlaneseq
      %v1679 = vshrl.u32 %v1678, 7
      %v1680 = vsub.s32 0, %v1679
      %v1681 = vrot.slane %v1664, %v1680
      %v1682 = vlaneseq
      %v1683 = vshrl.u32 %v1682, 7
      %v1684 = vsub.s32 0, %v1683
      %v1685 = vrot.slane %v1647, %v1684
      %v1686 = vlaneseq
      %v1687 = vshrl.u32 %v1686, 7
      %v1688 = vsub.s32 0, %v1687
      %v1689 = vrot.slane %v1661, %v1688
      %v1690 = vlaneseq
      %v1691 = vshrl.u32 %v1690, 7
      %v1692 = vsub.s32 0, %v1691
      %v1693 = vrot.slane %v1663, %v1692
      %v1694 = vlaneseq
      %v1695 = vshrl.u32 %v1694, 7
      %v1696 = vsub.s32 0, %v1695
      %v1697 = vrot.slane %v1665, %v1696
      %1698 = vrot.lane.b32.xlu0 %v1669, 32
      %v1699 = vpop.permute.xlu0 %1698
      %1700 = vrot.lane.b32.xlu0 %v1673, 32
      %v1701 = vpop.permute.xlu0 %1700
      %1702 = vrot.lane.b32.xlu0 %v1677, 32
      %v1703 = vpop.permute.xlu0 %1702
      %1704 = vrot.lane.b32.xlu0 %v1681, 32
      %v1705 = vpop.permute.xlu0 %1704
      %1706 = vrot.lane.b32.xlu0 %v1685, 32
      %v1707 = vpop.permute.xlu0 %1706
      %1708 = vrot.lane.b32.xlu0 %v1689, 32
      %v1709 = vpop.permute.xlu0 %1708
      %1710 = vrot.lane.b32.xlu0 %v1693, 32
      %v1711 = vpop.permute.xlu0 %1710
      %1712 = vrot.lane.b32.xlu0 %v1697, 32
      %v1713 = vpop.permute.xlu0 %1712
      %vm1722 = vcmask 253952
      %1723 = vst.msk [vmem:[#allocation2] sm:$0x1] %vm1722, %v1699
      %1724 = vst.msk [vmem:[#allocation2 + $0x8] sm:$0x1] %vm1722, %v1701
      %1725 = vst.msk [vmem:[#allocation2 + $0x10] sm:$0x1] %vm1722, %v1703
      %1726 = vst.msk [vmem:[#allocation2 + $0x18] sm:$0x1] %vm1722, %v1705
      %1727 = vst.msk [vmem:[#allocation2 + $0x20] sm:$0x1] %vm1722, %v1707
      %1728 = vst.msk [vmem:[#allocation2 + $0x28] sm:$0x1] %vm1722, %v1709
      %1729 = vst.msk [vmem:[#allocation2 + $0x30] sm:$0x1] %vm1722, %v1711
      %1730 = vst.msk [vmem:[#allocation2 + $0x38] sm:$0x1] %vm1722, %v1713
      %1731 = vrot.lane.b32.xlu0 %v1615, 32
      %v1732 = vpop.permute.xlu0 %1731
      %v1734 = vsel %vm807, %v1732, %v1609
      %v1736 = vsel %vm815, %v1734, 0
      %1738 = vmatprep.subr.mxu0 0.0
      %1739 = vmatpush1.msra.mxu0 %v785
      %1740 = vmatprep.subr.mxu0 0.0
      %1741 = vmatpush1.msra.mxu0 %v786
      %1742 = vmatprep.subr.mxu0 0.0
      %1743 = vmatpush1.msra.mxu0 %v787
      %1744 = vmatprep.subr.mxu0 0.0
      %1745 = vmatpush1.msra.mxu0 %v788
      %1746 = vmatprep.subr.mxu0 0.0
      %1747 = vmatpush1.msra.mxu0 %v789
      %1748 = vmatprep.subr.mxu0 0.0
      %1749 = vmatpush1.msra.mxu0 %v790
      %1750 = vmatprep.subr.mxu0 0.0
      %1751 = vmatpush1.msra.mxu0 %v791
      %1752 = vmatprep.subr.mxu0 0.0
      %1753 = vmatpush1.msra.mxu0 %v792
      %1754 = vmatprep.subr.mxu0 0.0
      %1755 = vmatpush1.msra.mxu0 0.0
      %1756 = vmatprep.subr.mxu0 0.0
      %1757 = vmatpush1.msra.mxu0 0.0
      %1758 = vmatprep.subr.mxu0 0.0
      %1759 = vmatpush1.msra.mxu0 0.0
      %1760 = vmatprep.subr.mxu0 0.0
      %1761 = vmatpush1.msra.mxu0 0.0
      %1762 = vmatprep.subr.mxu0 0.0
      %1763 = vmatpush1.msra.mxu0 0.0
      %1764 = vmatprep.subr.mxu0 0.0
      %1765 = vmatpush1.msra.mxu0 0.0
      %1766 = vmatprep.subr.mxu0 0.0
      %1767 = vmatpush1.msra.mxu0 0.0
      %1768 = vmatprep.subr.mxu0 0.0
      %1769 = vmatpush1.msra.mxu0 0.0
      %1770 = vmatprep.subr.mxu0 0.0
      %1771 = vmatpush1.msra.mxu0 0.0
      %1772 = vmatprep.subr.mxu0 0.0
      %1773 = vmatpush1.msra.mxu0 0.0
      %1774 = vmatprep.subr.mxu0 0.0
      %1775 = vmatpush1.msra.mxu0 0.0
      %1776 = vmatprep.subr.mxu0 0.0
      %1777 = vmatpush1.msra.mxu0 0.0
      %1778 = vmatprep.subr.mxu0 0.0
      %1779 = vmatpush1.msra.mxu0 0.0
      %1780 = vmatprep.subr.mxu0 0.0
      %1781 = vmatpush1.msra.mxu0 0.0
      %1782 = vmatprep.subr.mxu0 0.0
      %1783 = vmatpush1.msra.mxu0 0.0
      %1784 = vmatprep.subr.mxu0 0.0
      %1785 = vmatpush1.msra.mxu0 0.0
      %1786 = vmatprep.subr.mxu0 0.0
      %1787 = vmatpush1.msra.mxu0 0.0
      %1788 = vmatprep.subr.mxu0 0.0
      %1789 = vmatpush1.msra.mxu0 0.0
      %1790 = vmatprep.subr.mxu0 0.0
      %1791 = vmatpush1.msra.mxu0 0.0
      %1792 = vmatprep.subr.mxu0 0.0
      %1793 = vmatpush1.msra.mxu0 0.0
      %1794 = vmatprep.subr.mxu0 0.0
      %1795 = vmatpush1.msra.mxu0 0.0
      %1796 = vmatprep.subr.mxu0 0.0
      %1797 = vmatpush1.msra.mxu0 0.0
      %1798 = vmatprep.subr.mxu0 0.0
      %1799 = vmatpush1.msra.mxu0 0.0
      %1800 = vmatprep.subr.mxu0 0.0
      %1801 = vmatpush1.msra.mxu0 0.0
      %1802 = vmatprep.mubr.f32.mxu0 0.0
      %1803 = vmatmul.mubr.f32.gmra.mrb[0].mxu0 %v1736
      %v1804 = vpop.f32.mrb[0].mxu0
      %v1805 = vadd.f32 %v813, %v1804
      %v1806 = vpop.f32.mrb[0].mxu0
      %1807 = vdwg.mxu0
      %v1809 = vcombine.high %v1805, %v1805
      %v1811 = vunpack.c.l.s4 1966171168
      %v1812 = vunpack.c.0.s8 %v1811
      %v1813 = vlaneseq
      %v1814 = vshrl.u32 %v1813, 7
      %v1815 = vsub.s32 %v1812, %v1814
      %v1816 = vrot.slane %v1805, %v1815
      %v1818 = vunpack.c.l.s4 1966171168
      %v1819 = vunpack.c.0.s8 %v1818
      %v1820 = vlaneseq
      %v1821 = vshrl.u32 %v1820, 7
      %v1822 = vsub.s32 %v1819, %v1821
      %v1823 = vrot.slane %v1809, %v1822
      %v1824 = vcombine.high %v1816, %v1816
      %v1825 = vcombine.high %v1823, %v1823
      %v1827 = vunpack.c.l.s4 1966171168
      %v1828 = vunpack.c.0.s8 %v1827
      %v1829 = vlaneseq
      %v1830 = vshrl.u32 %v1829, 7
      %v1831 = vsub.s32 %v1828, %v1830
      %v1832 = vrot.slane %v1816, %v1831
      %v1834 = vunpack.c.l.s4 1966171168
      %v1835 = vunpack.c.0.s8 %v1834
      %v1836 = vlaneseq
      %v1837 = vshrl.u32 %v1836, 7
      %v1838 = vsub.s32 %v1835, %v1837
      %v1839 = vrot.slane %v1823, %v1838
      %v1841 = vunpack.c.l.s4 1966171168
      %v1842 = vunpack.c.0.s8 %v1841
      %v1843 = vlaneseq
      %v1844 = vshrl.u32 %v1843, 7
      %v1845 = vsub.s32 %v1842, %v1844
      %v1846 = vrot.slane %v1824, %v1845
      %v1848 = vunpack.c.l.s4 1966171168
      %v1849 = vunpack.c.0.s8 %v1848
      %v1850 = vlaneseq
      %v1851 = vshrl.u32 %v1850, 7
      %v1852 = vsub.s32 %v1849, %v1851
      %v1853 = vrot.slane %v1825, %v1852
      %v1854 = vcombine.high %v1832, %v1832
      %v1855 = vcombine.high %v1839, %v1839
      %v1856 = vcombine.high %v1846, %v1846
      %v1857 = vcombine.high %v1853, %v1853
      %v1858 = vlaneseq
      %v1859 = vshrl.u32 %v1858, 7
      %v1860 = vsub.s32 0, %v1859
      %v1861 = vrot.slane %v1832, %v1860
      %v1862 = vlaneseq
      %v1863 = vshrl.u32 %v1862, 7
      %v1864 = vsub.s32 0, %v1863
      %v1865 = vrot.slane %v1846, %v1864
      %v1866 = vlaneseq
      %v1867 = vshrl.u32 %v1866, 7
      %v1868 = vsub.s32 0, %v1867
      %v1869 = vrot.slane %v1854, %v1868
      %v1870 = vlaneseq
      %v1871 = vshrl.u32 %v1870, 7
      %v1872 = vsub.s32 0, %v1871
      %v1873 = vrot.slane %v1856, %v1872
      %v1874 = vlaneseq
      %v1875 = vshrl.u32 %v1874, 7
      %v1876 = vsub.s32 0, %v1875
      %v1877 = vrot.slane %v1839, %v1876
      %v1878 = vlaneseq
      %v1879 = vshrl.u32 %v1878, 7
      %v1880 = vsub.s32 0, %v1879
      %v1881 = vrot.slane %v1853, %v1880
      %v1882 = vlaneseq
      %v1883 = vshrl.u32 %v1882, 7
      %v1884 = vsub.s32 0, %v1883
      %v1885 = vrot.slane %v1855, %v1884
      %v1886 = vlaneseq
      %v1887 = vshrl.u32 %v1886, 7
      %v1888 = vsub.s32 0, %v1887
      %v1889 = vrot.slane %v1857, %v1888
      %v1898 = vadd.f32 %v747, %v1861
      %v1899 = vadd.f32 %v769, %v1865
      %v1900 = vadd.f32 %v752, %v1869
      %v1901 = vadd.f32 %v770, %v1873
      %v1902 = vadd.f32 %v757, %v1877
      %v1903 = vadd.f32 %v771, %v1881
      %v1904 = vadd.f32 %v762, %v1885
      %v1905 = vadd.f32 %v772, %v1889
      %v1906 = vtanh.pop %v1898
      %v1907 = vtanh.pop %v1899
      %v1908 = vtanh.pop %v1900
      %v1909 = vtanh.pop %v1901
      %v1910 = vtanh.pop %v1902
      %v1911 = vtanh.pop %v1903
      %v1912 = vtanh.pop %v1904
      %v1913 = vtanh.pop %v1905
      %v1914 = vmul.f32 %v1906, %v999
      %v1915 = vmul.f32 %v1907, %v999
      %v1916 = vmul.f32 %v1908, %v999
      %v1917 = vmul.f32 %v1909, %v999
      %v1918 = vmul.f32 %v1910, %v999
      %v1919 = vmul.f32 %v1911, %v999
      %v1920 = vmul.f32 %v1912, %v999
      %v1921 = vmul.f32 %v1913, %v999
      %v1922 = vsel %vm1009, %v1914, 0.0
      %1923 = vadd.xlane.f32.xlu0 %v1922
      %v1924 = vpop.xlane.xlu0 %1923
      %v1925 = vsel %vm1009, %v1915, 0.0
      %1926 = vadd.xlane.f32.xlu0 %v1925
      %v1927 = vpop.xlane.xlu0 %1926
      %v1928 = vsel %vm1009, %v1916, 0.0
      %1929 = vadd.xlane.f32.xlu0 %v1928
      %v1930 = vpop.xlane.xlu0 %1929
      %v1931 = vsel %vm1009, %v1917, 0.0
      %1932 = vadd.xlane.f32.xlu0 %v1931
      %v1933 = vpop.xlane.xlu0 %1932
      %v1934 = vsel %vm1009, %v1918, 0.0
      %1935 = vadd.xlane.f32.xlu0 %v1934
      %v1936 = vpop.xlane.xlu0 %1935
      %v1937 = vsel %vm1009, %v1919, 0.0
      %1938 = vadd.xlane.f32.xlu0 %v1937
      %v1939 = vpop.xlane.xlu0 %1938
      %v1940 = vsel %vm1009, %v1920, 0.0
      %1941 = vadd.xlane.f32.xlu0 %v1940
      %v1942 = vpop.xlane.xlu0 %1941
      %v1943 = vsel %vm1009, %v1921, 0.0
      %1944 = vadd.xlane.f32.xlu0 %v1943
      %v1945 = vpop.xlane.xlu0 %1944
      %v1954 = vlaneseq
      %v1955 = vshrl.u32 %v1954, 7
      %v1956 = vsub.s32 %v1043, %v1955
      %v1957 = vrot.slane %v1924, %v1956
      %v1958 = vlaneseq
      %v1959 = vshrl.u32 %v1958, 7
      %v1960 = vsub.s32 %v1043, %v1959
      %v1961 = vrot.slane %v1927, %v1960
      %v1962 = vlaneseq
      %v1963 = vshrl.u32 %v1962, 7
      %v1964 = vsub.s32 %v1043, %v1963
      %v1965 = vrot.slane %v1930, %v1964
      %v1966 = vlaneseq
      %v1967 = vshrl.u32 %v1966, 7
      %v1968 = vsub.s32 %v1043, %v1967
      %v1969 = vrot.slane %v1933, %v1968
      %v1970 = vlaneseq
      %v1971 = vshrl.u32 %v1970, 7
      %v1972 = vsub.s32 %v1043, %v1971
      %v1973 = vrot.slane %v1936, %v1972
      %v1974 = vlaneseq
      %v1975 = vshrl.u32 %v1974, 7
      %v1976 = vsub.s32 %v1043, %v1975
      %v1977 = vrot.slane %v1939, %v1976
      %v1978 = vlaneseq
      %v1979 = vshrl.u32 %v1978, 7
      %v1980 = vsub.s32 %v1043, %v1979
      %v1981 = vrot.slane %v1942, %v1980
      %v1982 = vlaneseq
      %v1983 = vshrl.u32 %v1982, 7
      %v1984 = vsub.s32 %v1043, %v1983
      %v1985 = vrot.slane %v1945, %v1984
      %v1986 = vsel %vm1076, %v1961, %v1957
      %v1987 = vsel %vm1078, %v1965, %v1986
      %v1988 = vsel %vm1080, %v1969, %v1987
      %v1989 = vsel %vm1082, %v1973, %v1988
      %v1990 = vsel %vm1084, %v1977, %v1989
      %v1991 = vsel %vm1086, %v1981, %v1990
      %v1992 = vsel %vm1088, %v1985, %v1991
      %v1994 = vsel %vm1091, %v1992, -inf
      %1995 = vmax.xlane.f32.xlu0 %v1994
      %v1996 = vpop.xlane.xlu0 %1995
      %v1998 = vlaneseq
      %v1999 = vshrl.u32 %v1998, 7
      %v2000 = vsub.s32 0, %v1999
      %v2001 = vrot.slane %v1996, %v2000
      %v2002 = vlaneseq
      %v2003 = vshrl.u32 %v2002, 7
      %v2004 = vsub.s32 1, %v2003
      %v2005 = vrot.slane %v1996, %v2004
      %v2006 = vlaneseq
      %v2007 = vshrl.u32 %v2006, 7
      %v2008 = vsub.s32 2, %v2007
      %v2009 = vrot.slane %v1996, %v2008
      %v2010 = vlaneseq
      %v2011 = vshrl.u32 %v2010, 7
      %v2012 = vsub.s32 3, %v2011
      %v2013 = vrot.slane %v1996, %v2012
      %v2014 = vlaneseq
      %v2015 = vshrl.u32 %v2014, 7
      %v2016 = vsub.s32 4, %v2015
      %v2017 = vrot.slane %v1996, %v2016
      %v2018 = vlaneseq
      %v2019 = vshrl.u32 %v2018, 7
      %v2020 = vsub.s32 5, %v2019
      %v2021 = vrot.slane %v1996, %v2020
      %v2022 = vlaneseq
      %v2023 = vshrl.u32 %v2022, 7
      %v2024 = vsub.s32 6, %v2023
      %v2025 = vrot.slane %v1996, %v2024
      %v2026 = vlaneseq
      %v2027 = vshrl.u32 %v2026, 7
      %v2028 = vsub.s32 7, %v2027
      %v2029 = vrot.slane %v1996, %v2028
      %v2038 = vsub.f32 %v1924, %v2001
      %v2039 = vsub.f32 %v1927, %v2005
      %v2040 = vsub.f32 %v1930, %v2009
      %v2041 = vsub.f32 %v1933, %v2013
      %v2042 = vsub.f32 %v1936, %v2017
      %v2043 = vsub.f32 %v1939, %v2021
      %v2044 = vsub.f32 %v1942, %v2025
      %v2045 = vsub.f32 %v1945, %v2029
      %v2046 = vmul.f32 %v2038, 1.442695
      %v2047 = vpow.pop %v2046
      %v2048 = vmul.f32 %v2039, 1.442695
      %v2049 = vpow.pop %v2048
      %v2050 = vmul.f32 %v2040, 1.442695
      %v2051 = vpow.pop %v2050
      %v2052 = vmul.f32 %v2041, 1.442695
      %v2053 = vpow.pop %v2052
      %v2054 = vmul.f32 %v2042, 1.442695
      %v2055 = vpow.pop %v2054
      %v2056 = vmul.f32 %v2043, 1.442695
      %v2057 = vpow.pop %v2056
      %v2058 = vmul.f32 %v2044, 1.442695
      %v2059 = vpow.pop %v2058
      %v2060 = vmul.f32 %v2045, 1.442695
      %v2061 = vpow.pop %v2060
      %2070 = vset.pattern.permute.xlu0 0
      %2071 = vperm.xlu0 %2070, %v2047
      %v2072 = vpop.permute.xlu0 %2071
      %2073 = vset.pattern.permute.xlu0 0
      %2074 = vperm.xlu0 %2073, %v2049
      %v2075 = vpop.permute.xlu0 %2074
      %2076 = vset.pattern.permute.xlu0 0
      %2077 = vperm.xlu0 %2076, %v2051
      %v2078 = vpop.permute.xlu0 %2077
      %2079 = vset.pattern.permute.xlu0 0
      %2080 = vperm.xlu0 %2079, %v2053
      %v2081 = vpop.permute.xlu0 %2080
      %2082 = vset.pattern.permute.xlu0 0
      %2083 = vperm.xlu0 %2082, %v2055
      %v2084 = vpop.permute.xlu0 %2083
      %2085 = vset.pattern.permute.xlu0 0
      %2086 = vperm.xlu0 %2085, %v2057
      %v2087 = vpop.permute.xlu0 %2086
      %2088 = vset.pattern.permute.xlu0 0
      %2089 = vperm.xlu0 %2088, %v2059
      %v2090 = vpop.permute.xlu0 %2089
      %2091 = vset.pattern.permute.xlu0 0
      %2092 = vperm.xlu0 %2091, %v2061
      %v2093 = vpop.permute.xlu0 %2092
      %v2094 = vlaneseq
      %v2095 = vshrl.u32 %v2094, 7
      %v2096 = vsub.s32 %v1043, %v2095
      %v2097 = vrot.slane %v2072, %v2096
      %v2098 = vlaneseq
      %v2099 = vshrl.u32 %v2098, 7
      %v2100 = vsub.s32 %v1043, %v2099
      %v2101 = vrot.slane %v2075, %v2100
      %v2102 = vlaneseq
      %v2103 = vshrl.u32 %v2102, 7
      %v2104 = vsub.s32 %v1043, %v2103
      %v2105 = vrot.slane %v2078, %v2104
      %v2106 = vlaneseq
      %v2107 = vshrl.u32 %v2106, 7
      %v2108 = vsub.s32 %v1043, %v2107
      %v2109 = vrot.slane %v2081, %v2108
      %v2110 = vlaneseq
      %v2111 = vshrl.u32 %v2110, 7
      %v2112 = vsub.s32 %v1043, %v2111
      %v2113 = vrot.slane %v2084, %v2112
      %v2114 = vlaneseq
      %v2115 = vshrl.u32 %v2114, 7
      %v2116 = vsub.s32 %v1043, %v2115
      %v2117 = vrot.slane %v2087, %v2116
      %v2118 = vlaneseq
      %v2119 = vshrl.u32 %v2118, 7
      %v2120 = vsub.s32 %v1043, %v2119
      %v2121 = vrot.slane %v2090, %v2120
      %v2122 = vlaneseq
      %v2123 = vshrl.u32 %v2122, 7
      %v2124 = vsub.s32 %v1043, %v2123
      %v2125 = vrot.slane %v2093, %v2124
      %v2126 = vsel %vm1076, %v2101, %v2097
      %v2127 = vsel %vm1078, %v2105, %v2126
      %v2128 = vsel %vm1080, %v2109, %v2127
      %v2129 = vsel %vm1082, %v2113, %v2128
      %v2130 = vsel %vm1084, %v2117, %v2129
      %v2131 = vsel %vm1086, %v2121, %v2130
      %v2132 = vsel %vm1088, %v2125, %v2131
      %v2134 = vsel %vm1091, %v2132, 0.0
      %2135 = vadd.xlane.f32.xlu0 %v2134
      %v2136 = vpop.xlane.xlu0 %2135
      %v2137 = vrcp.pop %v2136
      %v2139 = vlaneseq
      %v2140 = vshrl.u32 %v2139, 7
      %v2141 = vsub.s32 0, %v2140
      %v2142 = vrot.slane %v2137, %v2141
      %v2143 = vlaneseq
      %v2144 = vshrl.u32 %v2143, 7
      %v2145 = vsub.s32 1, %v2144
      %v2146 = vrot.slane %v2137, %v2145
      %v2147 = vlaneseq
      %v2148 = vshrl.u32 %v2147, 7
      %v2149 = vsub.s32 2, %v2148
      %v2150 = vrot.slane %v2137, %v2149
      %v2151 = vlaneseq
      %v2152 = vshrl.u32 %v2151, 7
      %v2153 = vsub.s32 3, %v2152
      %v2154 = vrot.slane %v2137, %v2153
      %v2155 = vlaneseq
      %v2156 = vshrl.u32 %v2155, 7
      %v2157 = vsub.s32 4, %v2156
      %v2158 = vrot.slane %v2137, %v2157
      %v2159 = vlaneseq
      %v2160 = vshrl.u32 %v2159, 7
      %v2161 = vsub.s32 5, %v2160
      %v2162 = vrot.slane %v2137, %v2161
      %v2163 = vlaneseq
      %v2164 = vshrl.u32 %v2163, 7
      %v2165 = vsub.s32 6, %v2164
      %v2166 = vrot.slane %v2137, %v2165
      %v2167 = vlaneseq
      %v2168 = vshrl.u32 %v2167, 7
      %v2169 = vsub.s32 7, %v2168
      %v2170 = vrot.slane %v2137, %v2169
      %v2179 = vmul.f32 %v2047, %v2142
      %v2180 = vmul.f32 %v2049, %v2146
      %v2181 = vmul.f32 %v2051, %v2150
      %v2182 = vmul.f32 %v2053, %v2154
      %v2183 = vmul.f32 %v2055, %v2158
      %v2184 = vmul.f32 %v2057, %v2162
      %v2185 = vmul.f32 %v2059, %v2166
      %v2186 = vmul.f32 %v2061, %v2170
      %v2187 = vlaneseq
      %v2188 = vshrl.u32 %v2187, 7
      %v2189 = vsub.s32 1, %v2188
      %v2190 = vrot.slane %v777, %v2189
      %2192 = vbcast.lane.b32.xlu0 %v2190, 256
      %v2193 = vpop.permute.xlu0 %2192
      %v2194 = vlaneseq
      %v2195 = vshrl.u32 %v2194, 7
      %v2196 = vsub.s32 1, %v2195
      %v2197 = vrot.slane %v778, %v2196
      %2199 = vbcast.lane.b32.xlu0 %v2197, 256
      %v2200 = vpop.permute.xlu0 %2199
      %v2201 = vlaneseq
      %v2202 = vshrl.u32 %v2201, 7
      %v2203 = vsub.s32 1, %v2202
      %v2204 = vrot.slane %v779, %v2203
      %2206 = vbcast.lane.b32.xlu0 %v2204, 256
      %v2207 = vpop.permute.xlu0 %2206
      %v2208 = vlaneseq
      %v2209 = vshrl.u32 %v2208, 7
      %v2210 = vsub.s32 1, %v2209
      %v2211 = vrot.slane %v780, %v2210
      %2213 = vbcast.lane.b32.xlu0 %v2211, 256
      %v2214 = vpop.permute.xlu0 %2213
      %v2215 = vlaneseq
      %v2216 = vshrl.u32 %v2215, 7
      %v2217 = vsub.s32 1, %v2216
      %v2218 = vrot.slane %v781, %v2217
      %2220 = vbcast.lane.b32.xlu0 %v2218, 256
      %v2221 = vpop.permute.xlu0 %2220
      %v2222 = vlaneseq
      %v2223 = vshrl.u32 %v2222, 7
      %v2224 = vsub.s32 1, %v2223
      %v2225 = vrot.slane %v782, %v2224
      %2227 = vbcast.lane.b32.xlu0 %v2225, 256
      %v2228 = vpop.permute.xlu0 %2227
      %v2229 = vlaneseq
      %v2230 = vshrl.u32 %v2229, 7
      %v2231 = vsub.s32 1, %v2230
      %v2232 = vrot.slane %v783, %v2231
      %2234 = vbcast.lane.b32.xlu0 %v2232, 256
      %v2235 = vpop.permute.xlu0 %2234
      %v2236 = vlaneseq
      %v2237 = vshrl.u32 %v2236, 7
      %v2238 = vsub.s32 1, %v2237
      %v2239 = vrot.slane %v784, %v2238
      %2241 = vbcast.lane.b32.xlu0 %v2239, 256
      %v2242 = vpop.permute.xlu0 %2241
      %v2251 = vmul.f32 %v2179, %v2193
      %v2252 = vmul.f32 %v2180, %v2200
      %v2253 = vmul.f32 %v2181, %v2207
      %v2254 = vmul.f32 %v2182, %v2214
      %v2255 = vmul.f32 %v2183, %v2221
      %v2256 = vmul.f32 %v2184, %v2228
      %v2257 = vmul.f32 %v2185, %v2235
      %v2258 = vmul.f32 %v2186, %v2242
      %v2259 = vsel %vm807, %v1732, 0
      %2261 = vmatprep.subr.mxu0 0.0
      %2262 = vmatpush1.msra.mxu0 %v796
      %2263 = vmatprep.subr.mxu0 0.0
      %2264 = vmatpush1.msra.mxu0 %v797
      %2265 = vmatprep.subr.mxu0 0.0
      %2266 = vmatpush1.msra.mxu0 %v798
      %2267 = vmatprep.subr.mxu0 0.0
      %2268 = vmatpush1.msra.mxu0 %v799
      %2269 = vmatprep.subr.mxu0 0.0
      %2270 = vmatpush1.msra.mxu0 0.0
      %2271 = vmatprep.subr.mxu0 0.0
      %2272 = vmatpush1.msra.mxu0 0.0
      %2273 = vmatprep.subr.mxu0 0.0
      %2274 = vmatpush1.msra.mxu0 0.0
      %2275 = vmatprep.subr.mxu0 0.0
      %2276 = vmatpush1.msra.mxu0 0.0
      %2277 = vmatprep.subr.mxu0 0.0
      %2278 = vmatpush1.msra.mxu0 0.0
      %2279 = vmatprep.subr.mxu0 0.0
      %2280 = vmatpush1.msra.mxu0 0.0
      %2281 = vmatprep.subr.mxu0 0.0
      %2282 = vmatpush1.msra.mxu0 0.0
      %2283 = vmatprep.subr.mxu0 0.0
      %2284 = vmatpush1.msra.mxu0 0.0
      %2285 = vmatprep.subr.mxu0 0.0
      %2286 = vmatpush1.msra.mxu0 0.0
      %2287 = vmatprep.subr.mxu0 0.0
      %2288 = vmatpush1.msra.mxu0 0.0
      %2289 = vmatprep.subr.mxu0 0.0
      %2290 = vmatpush1.msra.mxu0 0.0
      %2291 = vmatprep.subr.mxu0 0.0
      %2292 = vmatpush1.msra.mxu0 0.0
      %2293 = vmatprep.subr.mxu0 0.0
      %2294 = vmatpush1.msra.mxu0 0.0
      %2295 = vmatprep.subr.mxu0 0.0
      %2296 = vmatpush1.msra.mxu0 0.0
      %2297 = vmatprep.subr.mxu0 0.0
      %2298 = vmatpush1.msra.mxu0 0.0
      %2299 = vmatprep.subr.mxu0 0.0
      %2300 = vmatpush1.msra.mxu0 0.0
      %2301 = vmatprep.subr.mxu0 0.0
      %2302 = vmatpush1.msra.mxu0 0.0
      %2303 = vmatprep.subr.mxu0 0.0
      %2304 = vmatpush1.msra.mxu0 0.0
      %2305 = vmatprep.subr.mxu0 0.0
      %2306 = vmatpush1.msra.mxu0 0.0
      %2307 = vmatprep.subr.mxu0 0.0
      %2308 = vmatpush1.msra.mxu0 0.0
      %2309 = vmatprep.subr.mxu0 0.0
      %2310 = vmatpush1.msra.mxu0 0.0
      %2311 = vmatprep.subr.mxu0 0.0
      %2312 = vmatpush1.msra.mxu0 0.0
      %2313 = vmatprep.subr.mxu0 0.0
      %2314 = vmatpush1.msra.mxu0 0.0
      %2315 = vmatprep.subr.mxu0 0.0
      %2316 = vmatpush1.msra.mxu0 0.0
      %2317 = vmatprep.subr.mxu0 0.0
      %2318 = vmatpush1.msra.mxu0 0.0
      %2319 = vmatprep.subr.mxu0 0.0
      %2320 = vmatpush1.msra.mxu0 0.0
      %2321 = vmatprep.subr.mxu0 0.0
      %2322 = vmatpush1.msra.mxu0 0.0
      %2323 = vmatprep.subr.mxu0 0.0
      %2324 = vmatpush1.msra.mxu0 0.0
      %2325 = vmatprep.mubr.f32.mxu0 0.0
      %2326 = vmatmul.mubr.f32.gmra.mrb[0].mxu0 %v2259
      %v2327 = vpop.f32.mrb[0].mxu0
      %v2328 = vadd.f32 0.0, %v2327
      %v2329 = vpop.f32.mrb[0].mxu0
      %2330 = vdwg.mxu0
      %2339 = vset.pattern.permute.xlu0 0
      %2340 = vperm.xlu0 %2339, %v2251
      %v2341 = vpop.permute.xlu0 %2340
      %2342 = vset.pattern.permute.xlu0 0
      %2343 = vperm.xlu0 %2342, %v2252
      %v2344 = vpop.permute.xlu0 %2343
      %2345 = vset.pattern.permute.xlu0 0
      %2346 = vperm.xlu0 %2345, %v2253
      %v2347 = vpop.permute.xlu0 %2346
      %2348 = vset.pattern.permute.xlu0 0
      %2349 = vperm.xlu0 %2348, %v2254
      %v2350 = vpop.permute.xlu0 %2349
      %2351 = vset.pattern.permute.xlu0 0
      %2352 = vperm.xlu0 %2351, %v2255
      %v2353 = vpop.permute.xlu0 %2352
      %2354 = vset.pattern.permute.xlu0 0
      %2355 = vperm.xlu0 %2354, %v2256
      %v2356 = vpop.permute.xlu0 %2355
      %2357 = vset.pattern.permute.xlu0 0
      %2358 = vperm.xlu0 %2357, %v2257
      %v2359 = vpop.permute.xlu0 %2358
      %2360 = vset.pattern.permute.xlu0 0
      %2361 = vperm.xlu0 %2360, %v2258
      %v2362 = vpop.permute.xlu0 %2361
      %v2363 = vlaneseq
      %v2364 = vshrl.u32 %v2363, 7
      %v2365 = vsub.s32 %v1043, %v2364
      %v2366 = vrot.slane %v2341, %v2365
      %v2367 = vlaneseq
      %v2368 = vshrl.u32 %v2367, 7
      %v2369 = vsub.s32 %v1043, %v2368
      %v2370 = vrot.slane %v2344, %v2369
      %v2371 = vlaneseq
      %v2372 = vshrl.u32 %v2371, 7
      %v2373 = vsub.s32 %v1043, %v2372
      %v2374 = vrot.slane %v2347, %v2373
      %v2375 = vlaneseq
      %v2376 = vshrl.u32 %v2375, 7
      %v2377 = vsub.s32 %v1043, %v2376
      %v2378 = vrot.slane %v2350, %v2377
      %v2379 = vlaneseq
      %v2380 = vshrl.u32 %v2379, 7
      %v2381 = vsub.s32 %v1043, %v2380
      %v2382 = vrot.slane %v2353, %v2381
      %v2383 = vlaneseq
      %v2384 = vshrl.u32 %v2383, 7
      %v2385 = vsub.s32 %v1043, %v2384
      %v2386 = vrot.slane %v2356, %v2385
      %v2387 = vlaneseq
      %v2388 = vshrl.u32 %v2387, 7
      %v2389 = vsub.s32 %v1043, %v2388
      %v2390 = vrot.slane %v2359, %v2389
      %v2391 = vlaneseq
      %v2392 = vshrl.u32 %v2391, 7
      %v2393 = vsub.s32 %v1043, %v2392
      %v2394 = vrot.slane %v2362, %v2393
      %v2395 = vsel %vm1076, %v2370, %v2366
      %v2396 = vsel %vm1078, %v2374, %v2395
      %v2397 = vsel %vm1080, %v2378, %v2396
      %v2398 = vsel %vm1082, %v2382, %v2397
      %v2399 = vsel %vm1084, %v2386, %v2398
      %v2400 = vsel %vm1086, %v2390, %v2399
      %v2401 = vsel %vm1088, %v2394, %v2400
      %v2402 = vsel %vm1091, %v2401, 0
      %2404 = vmatprep.subr.mxu0 0.0
      %2405 = vmatpush1.msra.mxu0 %v1513
      %2406 = vmatprep.subr.mxu0 0.0
      %2407 = vmatpush1.msra.mxu0 0.0
      %2408 = vmatprep.subr.mxu0 0.0
      %2409 = vmatpush1.msra.mxu0 0.0
      %2410 = vmatprep.subr.mxu0 0.0
      %2411 = vmatpush1.msra.mxu0 0.0
      %2412 = vmatprep.subr.mxu0 0.0
      %2413 = vmatpush1.msra.mxu0 0.0
      %2414 = vmatprep.subr.mxu0 0.0
      %2415 = vmatpush1.msra.mxu0 0.0
      %2416 = vmatprep.subr.mxu0 0.0
      %2417 = vmatpush1.msra.mxu0 0.0
      %2418 = vmatprep.subr.mxu0 0.0
      %2419 = vmatpush1.msra.mxu0 0.0
      %2420 = vmatprep.subr.mxu0 0.0
      %2421 = vmatpush1.msra.mxu0 0.0
      %2422 = vmatprep.subr.mxu0 0.0
      %2423 = vmatpush1.msra.mxu0 0.0
      %2424 = vmatprep.subr.mxu0 0.0
      %2425 = vmatpush1.msra.mxu0 0.0
      %2426 = vmatprep.subr.mxu0 0.0
      %2427 = vmatpush1.msra.mxu0 0.0
      %2428 = vmatprep.subr.mxu0 0.0
      %2429 = vmatpush1.msra.mxu0 0.0
      %2430 = vmatprep.subr.mxu0 0.0
      %2431 = vmatpush1.msra.mxu0 0.0
      %2432 = vmatprep.subr.mxu0 0.0
      %2433 = vmatpush1.msra.mxu0 0.0
      %2434 = vmatprep.subr.mxu0 0.0
      %2435 = vmatpush1.msra.mxu0 0.0
      %2436 = vmatprep.subr.mxu0 0.0
      %2437 = vmatpush1.msra.mxu0 0.0
      %2438 = vmatprep.subr.mxu0 0.0
      %2439 = vmatpush1.msra.mxu0 0.0
      %2440 = vmatprep.subr.mxu0 0.0
      %2441 = vmatpush1.msra.mxu0 0.0
      %2442 = vmatprep.subr.mxu0 0.0
      %2443 = vmatpush1.msra.mxu0 0.0
      %2444 = vmatprep.subr.mxu0 0.0
      %2445 = vmatpush1.msra.mxu0 0.0
      %2446 = vmatprep.subr.mxu0 0.0
      %2447 = vmatpush1.msra.mxu0 0.0
      %2448 = vmatprep.subr.mxu0 0.0
      %2449 = vmatpush1.msra.mxu0 0.0
      %2450 = vmatprep.subr.mxu0 0.0
      %2451 = vmatpush1.msra.mxu0 0.0
      %2452 = vmatprep.subr.mxu0 0.0
      %2453 = vmatpush1.msra.mxu0 0.0
      %2454 = vmatprep.subr.mxu0 0.0
      %2455 = vmatpush1.msra.mxu0 0.0
      %2456 = vmatprep.subr.mxu0 0.0
      %2457 = vmatpush1.msra.mxu0 0.0
      %2458 = vmatprep.subr.mxu0 0.0
      %2459 = vmatpush1.msra.mxu0 0.0
      %2460 = vmatprep.subr.mxu0 0.0
      %2461 = vmatpush1.msra.mxu0 0.0
      %2462 = vmatprep.subr.mxu0 0.0
      %2463 = vmatpush1.msra.mxu0 0.0
      %2464 = vmatprep.subr.mxu0 0.0
      %2465 = vmatpush1.msra.mxu0 0.0
      %2466 = vmatprep.subr.mxu0 0.0
      %2467 = vmatpush1.msra.mxu0 0.0
      %2468 = vmatprep.mubr.f32.mxu0 0.0
      %2469 = vmatmul.mubr.f32.gmra.mrb[0].mxu0 %v2402
      %v2470 = vpop.f32.mrb[0].mxu0
      %v2471 = vadd.f32 %v2328, %v2470
      %v2472 = vpop.f32.mrb[0].mxu0
      %2473 = vdwg.mxu0
      %v2474 = vadd.f32 %v2471, %v1589
      %v2475 = vxor.u32 %v2474, 2147483648
      %v2476 = vmul.f32 %v2475, 1.442695
      %v2477 = vpow.pop %v2476
      %v2478 = vadd.f32 %v2477, 1.0
      %v2479 = vrcp.pop %v2478
      %v2480 = vmul.f32 1.0, %v2479
      %v2481 = vtanh.pop %v2474
      %v2482 = vmul.f32 %v2480, %v1609
      %2484 = vrot.lane.b32.xlu0 %v2481, 64
      %v2485 = vpop.permute.xlu0 %2484
      %v2487 = vmul.f32 %v2480, %v2485
      %2489 = vrot.lane.b32.xlu0 %v2487, 32
      %v2490 = vpop.permute.xlu0 %2489
      %v2492 = vadd.f32 %v2482, %v2490
      %v2493 = vtanh.pop %v2492
      %2495 = vrot.lane.b32.xlu0 %v2493, 64
      %v2496 = vpop.permute.xlu0 %2495
      %v2498 = vmul.f32 %v2480, %v2496
      %v2500 = vcombine.high %v2498, %v2498
      %v2502 = vunpack.c.l.s4 1966171168
      %v2503 = vunpack.c.0.s8 %v2502
      %v2504 = vlaneseq
      %v2505 = vshrl.u32 %v2504, 7
      %v2506 = vsub.s32 %v2503, %v2505
      %v2507 = vrot.slane %v2498, %v2506
      %v2509 = vunpack.c.l.s4 1966171168
      %v2510 = vunpack.c.0.s8 %v2509
      %v2511 = vlaneseq
      %v2512 = vshrl.u32 %v2511, 7
      %v2513 = vsub.s32 %v2510, %v2512
      %v2514 = vrot.slane %v2500, %v2513
      %v2515 = vcombine.high %v2507, %v2507
      %v2516 = vcombine.high %v2514, %v2514
      %v2518 = vunpack.c.l.s4 1966171168
      %v2519 = vunpack.c.0.s8 %v2518
      %v2520 = vlaneseq
      %v2521 = vshrl.u32 %v2520, 7
      %v2522 = vsub.s32 %v2519, %v2521
      %v2523 = vrot.slane %v2507, %v2522
      %v2525 = vunpack.c.l.s4 1966171168
      %v2526 = vunpack.c.0.s8 %v2525
      %v2527 = vlaneseq
      %v2528 = vshrl.u32 %v2527, 7
      %v2529 = vsub.s32 %v2526, %v2528
      %v2530 = vrot.slane %v2514, %v2529
      %v2532 = vunpack.c.l.s4 1966171168
      %v2533 = vunpack.c.0.s8 %v2532
      %v2534 = vlaneseq
      %v2535 = vshrl.u32 %v2534, 7
      %v2536 = vsub.s32 %v2533, %v2535
      %v2537 = vrot.slane %v2515, %v2536
      %v2539 = vunpack.c.l.s4 1966171168
      %v2540 = vunpack.c.0.s8 %v2539
      %v2541 = vlaneseq
      %v2542 = vshrl.u32 %v2541, 7
      %v2543 = vsub.s32 %v2540, %v2542
      %v2544 = vrot.slane %v2516, %v2543
      %v2545 = vcombine.high %v2523, %v2523
      %v2546 = vcombine.high %v2530, %v2530
      %v2547 = vcombine.high %v2537, %v2537
      %v2548 = vcombine.high %v2544, %v2544
      %v2549 = vlaneseq
      %v2550 = vshrl.u32 %v2549, 7
      %v2551 = vsub.s32 0, %v2550
      %v2552 = vrot.slane %v2523, %v2551
      %v2553 = vlaneseq
      %v2554 = vshrl.u32 %v2553, 7
      %v2555 = vsub.s32 0, %v2554
      %v2556 = vrot.slane %v2537, %v2555
      %v2557 = vlaneseq
      %v2558 = vshrl.u32 %v2557, 7
      %v2559 = vsub.s32 0, %v2558
      %v2560 = vrot.slane %v2545, %v2559
      %v2561 = vlaneseq
      %v2562 = vshrl.u32 %v2561, 7
      %v2563 = vsub.s32 0, %v2562
      %v2564 = vrot.slane %v2547, %v2563
      %v2565 = vlaneseq
      %v2566 = vshrl.u32 %v2565, 7
      %v2567 = vsub.s32 0, %v2566
      %v2568 = vrot.slane %v2530, %v2567
      %v2569 = vlaneseq
      %v2570 = vshrl.u32 %v2569, 7
      %v2571 = vsub.s32 0, %v2570
      %v2572 = vrot.slane %v2544, %v2571
      %v2573 = vlaneseq
      %v2574 = vshrl.u32 %v2573, 7
      %v2575 = vsub.s32 0, %v2574
      %v2576 = vrot.slane %v2546, %v2575
      %v2577 = vlaneseq
      %v2578 = vshrl.u32 %v2577, 7
      %v2579 = vsub.s32 0, %v2578
      %v2580 = vrot.slane %v2548, %v2579
      %2581 = vrot.lane.b32.xlu0 %v2552, 32
      %v2582 = vpop.permute.xlu0 %2581
      %2583 = vrot.lane.b32.xlu0 %v2556, 32
      %v2584 = vpop.permute.xlu0 %2583
      %2585 = vrot.lane.b32.xlu0 %v2560, 32
      %v2586 = vpop.permute.xlu0 %2585
      %2587 = vrot.lane.b32.xlu0 %v2564, 32
      %v2588 = vpop.permute.xlu0 %2587
      %2589 = vrot.lane.b32.xlu0 %v2568, 32
      %v2590 = vpop.permute.xlu0 %2589
      %2591 = vrot.lane.b32.xlu0 %v2572, 32
      %v2592 = vpop.permute.xlu0 %2591
      %2593 = vrot.lane.b32.xlu0 %v2576, 32
      %v2594 = vpop.permute.xlu0 %2593
      %2595 = vrot.lane.b32.xlu0 %v2580, 32
      %v2596 = vpop.permute.xlu0 %2595
      %2605 = vst.msk [vmem:[#allocation2 + $0x1] sm:$0x1] %vm1722, %v2582
      %2606 = vst.msk [vmem:[#allocation2 + $0x9] sm:$0x1] %vm1722, %v2584
      %2607 = vst.msk [vmem:[#allocation2 + $0x11] sm:$0x1] %vm1722, %v2586
      %2608 = vst.msk [vmem:[#allocation2 + $0x19] sm:$0x1] %vm1722, %v2588
      %2609 = vst.msk [vmem:[#allocation2 + $0x21] sm:$0x1] %vm1722, %v2590
      %2610 = vst.msk [vmem:[#allocation2 + $0x29] sm:$0x1] %vm1722, %v2592
      %2611 = vst.msk [vmem:[#allocation2 + $0x31] sm:$0x1] %vm1722, %v2594
      %2612 = vst.msk [vmem:[#allocation2 + $0x39] sm:$0x1] %vm1722, %v2596
      %2613 = vrot.lane.b32.xlu0 %v2498, 32
      %v2614 = vpop.permute.xlu0 %2613
      %v2616 = vsel %vm807, %v2614, %v2492
      %v2618 = vsel %vm815, %v2616, 0
      %2620 = vmatprep.subr.mxu0 0.0
      %2621 = vmatpush1.msra.mxu0 %v785
      %2622 = vmatprep.subr.mxu0 0.0
      %2623 = vmatpush1.msra.mxu0 %v786
      %2624 = vmatprep.subr.mxu0 0.0
      %2625 = vmatpush1.msra.mxu0 %v787
      %2626 = vmatprep.subr.mxu0 0.0
      %2627 = vmatpush1.msra.mxu0 %v788
      %2628 = vmatprep.subr.mxu0 0.0
      %2629 = vmatpush1.msra.mxu0 %v789
      %2630 = vmatprep.subr.mxu0 0.0
      %2631 = vmatpush1.msra.mxu0 %v790
      %2632 = vmatprep.subr.mxu0 0.0
      %2633 = vmatpush1.msra.mxu0 %v791
      %2634 = vmatprep.subr.mxu0 0.0
      %2635 = vmatpush1.msra.mxu0 %v792
      %2636 = vmatprep.subr.mxu0 0.0
      %2637 = vmatpush1.msra.mxu0 0.0
      %2638 = vmatprep.subr.mxu0 0.0
      %2639 = vmatpush1.msra.mxu0 0.0
      %2640 = vmatprep.subr.mxu0 0.0
      %2641 = vmatpush1.msra.mxu0 0.0
      %2642 = vmatprep.subr.mxu0 0.0
      %2643 = vmatpush1.msra.mxu0 0.0
      %2644 = vmatprep.subr.mxu0 0.0
      %2645 = vmatpush1.msra.mxu0 0.0
      %2646 = vmatprep.subr.mxu0 0.0
      %2647 = vmatpush1.msra.mxu0 0.0
      %2648 = vmatprep.subr.mxu0 0.0
      %2649 = vmatpush1.msra.mxu0 0.0
      %2650 = vmatprep.subr.mxu0 0.0
      %2651 = vmatpush1.msra.mxu0 0.0
      %2652 = vmatprep.subr.mxu0 0.0
      %2653 = vmatpush1.msra.mxu0 0.0
      %2654 = vmatprep.subr.mxu0 0.0
      %2655 = vmatpush1.msra.mxu0 0.0
      %2656 = vmatprep.subr.mxu0 0.0
      %2657 = vmatpush1.msra.mxu0 0.0
      %2658 = vmatprep.subr.mxu0 0.0
      %2659 = vmatpush1.msra.mxu0 0.0
      %2660 = vmatprep.subr.mxu0 0.0
      %2661 = vmatpush1.msra.mxu0 0.0
      %2662 = vmatprep.subr.mxu0 0.0
      %2663 = vmatpush1.msra.mxu0 0.0
      %2664 = vmatprep.subr.mxu0 0.0
      %2665 = vmatpush1.msra.mxu0 0.0
      %2666 = vmatprep.subr.mxu0 0.0
      %2667 = vmatpush1.msra.mxu0 0.0
      %2668 = vmatprep.subr.mxu0 0.0
      %2669 = vmatpush1.msra.mxu0 0.0
      %2670 = vmatprep.subr.mxu0 0.0
      %2671 = vmatpush1.msra.mxu0 0.0
      %2672 = vmatprep.subr.mxu0 0.0
      %2673 = vmatpush1.msra.mxu0 0.0
      %2674 = vmatprep.subr.mxu0 0.0
      %2675 = vmatpush1.msra.mxu0 0.0
      %2676 = vmatprep.subr.mxu0 0.0
      %2677 = vmatpush1.msra.mxu0 0.0
      %2678 = vmatprep.subr.mxu0 0.0
      %2679 = vmatpush1.msra.mxu0 0.0
      %2680 = vmatprep.subr.mxu0 0.0
      %2681 = vmatpush1.msra.mxu0 0.0
      %2682 = vmatprep.subr.mxu0 0.0
      %2683 = vmatpush1.msra.mxu0 0.0
      %2684 = vmatprep.mubr.f32.mxu0 0.0
      %2685 = vmatmul.mubr.f32.gmra.mrb[0].mxu0 %v2618
      %v2686 = vpop.f32.mrb[0].mxu0
      %v2687 = vadd.f32 %v813, %v2686
      %v2688 = vpop.f32.mrb[0].mxu0
      %2689 = vdwg.mxu0
      %v2691 = vcombine.high %v2687, %v2687
      %v2693 = vunpack.c.l.s4 1966171168
      %v2694 = vunpack.c.0.s8 %v2693
      %v2695 = vlaneseq
      %v2696 = vshrl.u32 %v2695, 7
      %v2697 = vsub.s32 %v2694, %v2696
      %v2698 = vrot.slane %v2687, %v2697
      %v2700 = vunpack.c.l.s4 1966171168
      %v2701 = vunpack.c.0.s8 %v2700
      %v2702 = vlaneseq
      %v2703 = vshrl.u32 %v2702, 7
      %v2704 = vsub.s32 %v2701, %v2703
      %v2705 = vrot.slane %v2691, %v2704
      %v2706 = vcombine.high %v2698, %v2698
      %v2707 = vcombine.high %v2705, %v2705
      %v2709 = vunpack.c.l.s4 1966171168
      %v2710 = vunpack.c.0.s8 %v2709
      %v2711 = vlaneseq
      %v2712 = vshrl.u32 %v2711, 7
      %v2713 = vsub.s32 %v2710, %v2712
      %v2714 = vrot.slane %v2698, %v2713
      %v2716 = vunpack.c.l.s4 1966171168
      %v2717 = vunpack.c.0.s8 %v2716
      %v2718 = vlaneseq
      %v2719 = vshrl.u32 %v2718, 7
      %v2720 = vsub.s32 %v2717, %v2719
      %v2721 = vrot.slane %v2705, %v2720
      %v2723 = vunpack.c.l.s4 1966171168
      %v2724 = vunpack.c.0.s8 %v2723
      %v2725 = vlaneseq
      %v2726 = vshrl.u32 %v2725, 7
      %v2727 = vsub.s32 %v2724, %v2726
      %v2728 = vrot.slane %v2706, %v2727
      %v2730 = vunpack.c.l.s4 1966171168
      %v2731 = vunpack.c.0.s8 %v2730
      %v2732 = vlaneseq
      %v2733 = vshrl.u32 %v2732, 7
      %v2734 = vsub.s32 %v2731, %v2733
      %v2735 = vrot.slane %v2707, %v2734
      %v2736 = vcombine.high %v2714, %v2714
      %v2737 = vcombine.high %v2721, %v2721
      %v2738 = vcombine.high %v2728, %v2728
      %v2739 = vcombine.high %v2735, %v2735
      %v2740 = vlaneseq
      %v2741 = vshrl.u32 %v2740, 7
      %v2742 = vsub.s32 0, %v2741
      %v2743 = vrot.slane %v2714, %v2742
      %v2744 = vlaneseq
      %v2745 = vshrl.u32 %v2744, 7
      %v2746 = vsub.s32 0, %v2745
      %v2747 = vrot.slane %v2728, %v2746
      %v2748 = vlaneseq
      %v2749 = vshrl.u32 %v2748, 7
      %v2750 = vsub.s32 0, %v2749
      %v2751 = vrot.slane %v2736, %v2750
      %v2752 = vlaneseq
      %v2753 = vshrl.u32 %v2752, 7
      %v2754 = vsub.s32 0, %v2753
      %v2755 = vrot.slane %v2738, %v2754
      %v2756 = vlaneseq
      %v2757 = vshrl.u32 %v2756, 7
      %v2758 = vsub.s32 0, %v2757
      %v2759 = vrot.slane %v2721, %v2758
      %v2760 = vlaneseq
      %v2761 = vshrl.u32 %v2760, 7
      %v2762 = vsub.s32 0, %v2761
      %v2763 = vrot.slane %v2735, %v2762
      %v2764 = vlaneseq
      %v2765 = vshrl.u32 %v2764, 7
      %v2766 = vsub.s32 0, %v2765
      %v2767 = vrot.slane %v2737, %v2766
      %v2768 = vlaneseq
      %v2769 = vshrl.u32 %v2768, 7
      %v2770 = vsub.s32 0, %v2769
      %v2771 = vrot.slane %v2739, %v2770
      %v2780 = vadd.f32 %v747, %v2743
      %v2781 = vadd.f32 %v769, %v2747
      %v2782 = vadd.f32 %v752, %v2751
      %v2783 = vadd.f32 %v770, %v2755
      %v2784 = vadd.f32 %v757, %v2759
      %v2785 = vadd.f32 %v771, %v2763
      %v2786 = vadd.f32 %v762, %v2767
      %v2787 = vadd.f32 %v772, %v2771
      %v2788 = vtanh.pop %v2780
      %v2789 = vtanh.pop %v2781
      %v2790 = vtanh.pop %v2782
      %v2791 = vtanh.pop %v2783
      %v2792 = vtanh.pop %v2784
      %v2793 = vtanh.pop %v2785
      %v2794 = vtanh.pop %v2786
      %v2795 = vtanh.pop %v2787
      %v2796 = vmul.f32 %v2788, %v999
      %v2797 = vmul.f32 %v2789, %v999
      %v2798 = vmul.f32 %v2790, %v999
      %v2799 = vmul.f32 %v2791, %v999
      %v2800 = vmul.f32 %v2792, %v999
      %v2801 = vmul.f32 %v2793, %v999
      %v2802 = vmul.f32 %v2794, %v999
      %v2803 = vmul.f32 %v2795, %v999
      %v2804 = vsel %vm1009, %v2796, 0.0
      %2805 = vadd.xlane.f32.xlu0 %v2804
      %v2806 = vpop.xlane.xlu0 %2805
      %v2807 = vsel %vm1009, %v2797, 0.0
      %2808 = vadd.xlane.f32.xlu0 %v2807
      %v2809 = vpop.xlane.xlu0 %2808
      %v2810 = vsel %vm1009, %v2798, 0.0
      %2811 = vadd.xlane.f32.xlu0 %v2810
      %v2812 = vpop.xlane.xlu0 %2811
      %v2813 = vsel %vm1009, %v2799, 0.0
      %2814 = vadd.xlane.f32.xlu0 %v2813
      %v2815 = vpop.xlane.xlu0 %2814
      %v2816 = vsel %vm1009, %v2800, 0.0
      %2817 = vadd.xlane.f32.xlu0 %v2816
      %v2818 = vpop.xlane.xlu0 %2817
      %v2819 = vsel %vm1009, %v2801, 0.0
      %2820 = vadd.xlane.f32.xlu0 %v2819
      %v2821 = vpop.xlane.xlu0 %2820
      %v2822 = vsel %vm1009, %v2802, 0.0
      %2823 = vadd.xlane.f32.xlu0 %v2822
      %v2824 = vpop.xlane.xlu0 %2823
      %v2825 = vsel %vm1009, %v2803, 0.0
      %2826 = vadd.xlane.f32.xlu0 %v2825
      %v2827 = vpop.xlane.xlu0 %2826
      %v2836 = vlaneseq
      %v2837 = vshrl.u32 %v2836, 7
      %v2838 = vsub.s32 %v1043, %v2837
      %v2839 = vrot.slane %v2806, %v2838
      %v2840 = vlaneseq
      %v2841 = vshrl.u32 %v2840, 7
      %v2842 = vsub.s32 %v1043, %v2841
      %v2843 = vrot.slane %v2809, %v2842
      %v2844 = vlaneseq
      %v2845 = vshrl.u32 %v2844, 7
      %v2846 = vsub.s32 %v1043, %v2845
      %v2847 = vrot.slane %v2812, %v2846
      %v2848 = vlaneseq
      %v2849 = vshrl.u32 %v2848, 7
      %v2850 = vsub.s32 %v1043, %v2849
      %v2851 = vrot.slane %v2815, %v2850
      %v2852 = vlaneseq
      %v2853 = vshrl.u32 %v2852, 7
      %v2854 = vsub.s32 %v1043, %v2853
      %v2855 = vrot.slane %v2818, %v2854
      %v2856 = vlaneseq
      %v2857 = vshrl.u32 %v2856, 7
      %v2858 = vsub.s32 %v1043, %v2857
      %v2859 = vrot.slane %v2821, %v2858
      %v2860 = vlaneseq
      %v2861 = vshrl.u32 %v2860, 7
      %v2862 = vsub.s32 %v1043, %v2861
      %v2863 = vrot.slane %v2824, %v2862
      %v2864 = vlaneseq
      %v2865 = vshrl.u32 %v2864, 7
      %v2866 = vsub.s32 %v1043, %v2865
      %v2867 = vrot.slane %v2827, %v2866
      %v2868 = vsel %vm1076, %v2843, %v2839
      %v2869 = vsel %vm1078, %v2847, %v2868
      %v2870 = vsel %vm1080, %v2851, %v2869
      %v2871 = vsel %vm1082, %v2855, %v2870
      %v2872 = vsel %vm1084, %v2859, %v2871
      %v2873 = vsel %vm1086, %v2863, %v2872
      %v2874 = vsel %vm1088, %v2867, %v2873
      %v2876 = vsel %vm1091, %v2874, -inf
      %2877 = vmax.xlane.f32.xlu0 %v2876
      %v2878 = vpop.xlane.xlu0 %2877
      %v2880 = vlaneseq
      %v2881 = vshrl.u32 %v2880, 7
      %v2882 = vsub.s32 0, %v2881
      %v2883 = vrot.slane %v2878, %v2882
      %v2884 = vlaneseq
      %v2885 = vshrl.u32 %v2884, 7
      %v2886 = vsub.s32 1, %v2885
      %v2887 = vrot.slane %v2878, %v2886
      %v2888 = vlaneseq
      %v2889 = vshrl.u32 %v2888, 7
      %v2890 = vsub.s32 2, %v2889
      %v2891 = vrot.slane %v2878, %v2890
      %v2892 = vlaneseq
      %v2893 = vshrl.u32 %v2892, 7
      %v2894 = vsub.s32 3, %v2893
      %v2895 = vrot.slane %v2878, %v2894
      %v2896 = vlaneseq
      %v2897 = vshrl.u32 %v2896, 7
      %v2898 = vsub.s32 4, %v2897
      %v2899 = vrot.slane %v2878, %v2898
      %v2900 = vlaneseq
      %v2901 = vshrl.u32 %v2900, 7
      %v2902 = vsub.s32 5, %v2901
      %v2903 = vrot.slane %v2878, %v2902
      %v2904 = vlaneseq
      %v2905 = vshrl.u32 %v2904, 7
      %v2906 = vsub.s32 6, %v2905
      %v2907 = vrot.slane %v2878, %v2906
      %v2908 = vlaneseq
      %v2909 = vshrl.u32 %v2908, 7
      %v2910 = vsub.s32 7, %v2909
      %v2911 = vrot.slane %v2878, %v2910
      %v2920 = vsub.f32 %v2806, %v2883
      %v2921 = vsub.f32 %v2809, %v2887
      %v2922 = vsub.f32 %v2812, %v2891
      %v2923 = vsub.f32 %v2815, %v2895
      %v2924 = vsub.f32 %v2818, %v2899
      %v2925 = vsub.f32 %v2821, %v2903
      %v2926 = vsub.f32 %v2824, %v2907
      %v2927 = vsub.f32 %v2827, %v2911
      %v2928 = vmul.f32 %v2920, 1.442695
      %v2929 = vpow.pop %v2928
      %v2930 = vmul.f32 %v2921, 1.442695
      %v2931 = vpow.pop %v2930
      %v2932 = vmul.f32 %v2922, 1.442695
      %v2933 = vpow.pop %v2932
      %v2934 = vmul.f32 %v2923, 1.442695
      %v2935 = vpow.pop %v2934
      %v2936 = vmul.f32 %v2924, 1.442695
      %v2937 = vpow.pop %v2936
      %v2938 = vmul.f32 %v2925, 1.442695
      %v2939 = vpow.pop %v2938
      %v2940 = vmul.f32 %v2926, 1.442695
      %v2941 = vpow.pop %v2940
      %v2942 = vmul.f32 %v2927, 1.442695
      %v2943 = vpow.pop %v2942
      %2952 = vset.pattern.permute.xlu0 0
      %2953 = vperm.xlu0 %2952, %v2929
      %v2954 = vpop.permute.xlu0 %2953
      %2955 = vset.pattern.permute.xlu0 0
      %2956 = vperm.xlu0 %2955, %v2931
      %v2957 = vpop.permute.xlu0 %2956
      %2958 = vset.pattern.permute.xlu0 0
      %2959 = vperm.xlu0 %2958, %v2933
      %v2960 = vpop.permute.xlu0 %2959
      %2961 = vset.pattern.permute.xlu0 0
      %2962 = vperm.xlu0 %2961, %v2935
      %v2963 = vpop.permute.xlu0 %2962
      %2964 = vset.pattern.permute.xlu0 0
      %2965 = vperm.xlu0 %2964, %v2937
      %v2966 = vpop.permute.xlu0 %2965
      %2967 = vset.pattern.permute.xlu0 0
      %2968 = vperm.xlu0 %2967, %v2939
      %v2969 = vpop.permute.xlu0 %2968
      %2970 = vset.pattern.permute.xlu0 0
      %2971 = vperm.xlu0 %2970, %v2941
      %v2972 = vpop.permute.xlu0 %2971
      %2973 = vset.pattern.permute.xlu0 0
      %2974 = vperm.xlu0 %2973, %v2943
      %v2975 = vpop.permute.xlu0 %2974
      %v2976 = vlaneseq
      %v2977 = vshrl.u32 %v2976, 7
      %v2978 = vsub.s32 %v1043, %v2977
      %v2979 = vrot.slane %v2954, %v2978
      %v2980 = vlaneseq
      %v2981 = vshrl.u32 %v2980, 7
      %v2982 = vsub.s32 %v1043, %v2981
      %v2983 = vrot.slane %v2957, %v2982
      %v2984 = vlaneseq
      %v2985 = vshrl.u32 %v2984, 7
      %v2986 = vsub.s32 %v1043, %v2985
      %v2987 = vrot.slane %v2960, %v2986
      %v2988 = vlaneseq
      %v2989 = vshrl.u32 %v2988, 7
      %v2990 = vsub.s32 %v1043, %v2989
      %v2991 = vrot.slane %v2963, %v2990
      %v2992 = vlaneseq
      %v2993 = vshrl.u32 %v2992, 7
      %v2994 = vsub.s32 %v1043, %v2993
      %v2995 = vrot.slane %v2966, %v2994
      %v2996 = vlaneseq
      %v2997 = vshrl.u32 %v2996, 7
      %v2998 = vsub.s32 %v1043, %v2997
      %v2999 = vrot.slane %v2969, %v2998
      %v3000 = vlaneseq
      %v3001 = vshrl.u32 %v3000, 7
      %v3002 = vsub.s32 %v1043, %v3001
      %v3003 = vrot.slane %v2972, %v3002
      %v3004 = vlaneseq
      %v3005 = vshrl.u32 %v3004, 7
      %v3006 = vsub.s32 %v1043, %v3005
      %v3007 = vrot.slane %v2975, %v3006
      %v3008 = vsel %vm1076, %v2983, %v2979
      %v3009 = vsel %vm1078, %v2987, %v3008
      %v3010 = vsel %vm1080, %v2991, %v3009
      %v3011 = vsel %vm1082, %v2995, %v3010
      %v3012 = vsel %vm1084, %v2999, %v3011
      %v3013 = vsel %vm1086, %v3003, %v3012
      %v3014 = vsel %vm1088, %v3007, %v3013
      %v3016 = vsel %vm1091, %v3014, 0.0
      %3017 = vadd.xlane.f32.xlu0 %v3016
      %v3018 = vpop.xlane.xlu0 %3017
      %v3019 = vrcp.pop %v3018
      %v3021 = vlaneseq
      %v3022 = vshrl.u32 %v3021, 7
      %v3023 = vsub.s32 0, %v3022
      %v3024 = vrot.slane %v3019, %v3023
      %v3025 = vlaneseq
      %v3026 = vshrl.u32 %v3025, 7
      %v3027 = vsub.s32 1, %v3026
      %v3028 = vrot.slane %v3019, %v3027
      %v3029 = vlaneseq
      %v3030 = vshrl.u32 %v3029, 7
      %v3031 = vsub.s32 2, %v3030
      %v3032 = vrot.slane %v3019, %v3031
      %v3033 = vlaneseq
      %v3034 = vshrl.u32 %v3033, 7
      %v3035 = vsub.s32 3, %v3034
      %v3036 = vrot.slane %v3019, %v3035
      %v3037 = vlaneseq
      %v3038 = vshrl.u32 %v3037, 7
      %v3039 = vsub.s32 4, %v3038
      %v3040 = vrot.slane %v3019, %v3039
      %v3041 = vlaneseq
      %v3042 = vshrl.u32 %v3041, 7
      %v3043 = vsub.s32 5, %v3042
      %v3044 = vrot.slane %v3019, %v3043
      %v3045 = vlaneseq
      %v3046 = vshrl.u32 %v3045, 7
      %v3047 = vsub.s32 6, %v3046
      %v3048 = vrot.slane %v3019, %v3047
      %v3049 = vlaneseq
      %v3050 = vshrl.u32 %v3049, 7
      %v3051 = vsub.s32 7, %v3050
      %v3052 = vrot.slane %v3019, %v3051
      %v3061 = vmul.f32 %v2929, %v3024
      %v3062 = vmul.f32 %v2931, %v3028
      %v3063 = vmul.f32 %v2933, %v3032
      %v3064 = vmul.f32 %v2935, %v3036
      %v3065 = vmul.f32 %v2937, %v3040
      %v3066 = vmul.f32 %v2939, %v3044
      %v3067 = vmul.f32 %v2941, %v3048
      %v3068 = vmul.f32 %v2943, %v3052
      %v3069 = vlaneseq
      %v3070 = vshrl.u32 %v3069, 7
      %v3071 = vsub.s32 2, %v3070
      %v3072 = vrot.slane %v777, %v3071
      %3074 = vbcast.lane.b32.xlu0 %v3072, 256
      %v3075 = vpop.permute.xlu0 %3074
      %v3076 = vlaneseq
      %v3077 = vshrl.u32 %v3076, 7
      %v3078 = vsub.s32 2, %v3077
      %v3079 = vrot.slane %v778, %v3078
      %3081 = vbcast.lane.b32.xlu0 %v3079, 256
      %v3082 = vpop.permute.xlu0 %3081
      %v3083 = vlaneseq
      %v3084 = vshrl.u32 %v3083, 7
      %v3085 = vsub.s32 2, %v3084
      %v3086 = vrot.slane %v779, %v3085
      %3088 = vbcast.lane.b32.xlu0 %v3086, 256
      %v3089 = vpop.permute.xlu0 %3088
      %v3090 = vlaneseq
      %v3091 = vshrl.u32 %v3090, 7
      %v3092 = vsub.s32 2, %v3091
      %v3093 = vrot.slane %v780, %v3092
      %3095 = vbcast.lane.b32.xlu0 %v3093, 256
      %v3096 = vpop.permute.xlu0 %3095
      %v3097 = vlaneseq
      %v3098 = vshrl.u32 %v3097, 7
      %v3099 = vsub.s32 2, %v3098
      %v3100 = vrot.slane %v781, %v3099
      %3102 = vbcast.lane.b32.xlu0 %v3100, 256
      %v3103 = vpop.permute.xlu0 %3102
      %v3104 = vlaneseq
      %v3105 = vshrl.u32 %v3104, 7
      %v3106 = vsub.s32 2, %v3105
      %v3107 = vrot.slane %v782, %v3106
      %3109 = vbcast.lane.b32.xlu0 %v3107, 256
      %v3110 = vpop.permute.xlu0 %3109
      %v3111 = vlaneseq
      %v3112 = vshrl.u32 %v3111, 7
      %v3113 = vsub.s32 2, %v3112
      %v3114 = vrot.slane %v783, %v3113
      %3116 = vbcast.lane.b32.xlu0 %v3114, 256
      %v3117 = vpop.permute.xlu0 %3116
      %v3118 = vlaneseq
      %v3119 = vshrl.u32 %v3118, 7
      %v3120 = vsub.s32 2, %v3119
      %v3121 = vrot.slane %v784, %v3120
      %3123 = vbcast.lane.b32.xlu0 %v3121, 256
      %v3124 = vpop.permute.xlu0 %3123
      %v3133 = vmul.f32 %v3061, %v3075
      %v3134 = vmul.f32 %v3062, %v3082
      %v3135 = vmul.f32 %v3063, %v3089
      %v3136 = vmul.f32 %v3064, %v3096
      %v3137 = vmul.f32 %v3065, %v3103
      %v3138 = vmul.f32 %v3066, %v3110
      %v3139 = vmul.f32 %v3067, %v3117
      %v3140 = vmul.f32 %v3068, %v3124
      %v3141 = vsel %vm807, %v2614, 0
      %3143 = vmatprep.subr.mxu0 0.0
      %3144 = vmatpush1.msra.mxu0 %v796
      %3145 = vmatprep.subr.mxu0 0.0
      %3146 = vmatpush1.msra.mxu0 %v797
      %3147 = vmatprep.subr.mxu0 0.0
      %3148 = vmatpush1.msra.mxu0 %v798
      %3149 = vmatprep.subr.mxu0 0.0
      %3150 = vmatpush1.msra.mxu0 %v799
      %3151 = vmatprep.subr.mxu0 0.0
      %3152 = vmatpush1.msra.mxu0 0.0
      %3153 = vmatprep.subr.mxu0 0.0
      %3154 = vmatpush1.msra.mxu0 0.0
      %3155 = vmatprep.subr.mxu0 0.0
      %3156 = vmatpush1.msra.mxu0 0.0
      %3157 = vmatprep.subr.mxu0 0.0
      %3158 = vmatpush1.msra.mxu0 0.0
      %3159 = vmatprep.subr.mxu0 0.0
      %3160 = vmatpush1.msra.mxu0 0.0
      %3161 = vmatprep.subr.mxu0 0.0
      %3162 = vmatpush1.msra.mxu0 0.0
      %3163 = vmatprep.subr.mxu0 0.0
      %3164 = vmatpush1.msra.mxu0 0.0
      %3165 = vmatprep.subr.mxu0 0.0
      %3166 = vmatpush1.msra.mxu0 0.0
      %3167 = vmatprep.subr.mxu0 0.0
      %3168 = vmatpush1.msra.mxu0 0.0
      %3169 = vmatprep.subr.mxu0 0.0
      %3170 = vmatpush1.msra.mxu0 0.0
      %3171 = vmatprep.subr.mxu0 0.0
      %3172 = vmatpush1.msra.mxu0 0.0
      %3173 = vmatprep.subr.mxu0 0.0
      %3174 = vmatpush1.msra.mxu0 0.0
      %3175 = vmatprep.subr.mxu0 0.0
      %3176 = vmatpush1.msra.mxu0 0.0
      %3177 = vmatprep.subr.mxu0 0.0
      %3178 = vmatpush1.msra.mxu0 0.0
      %3179 = vmatprep.subr.mxu0 0.0
      %3180 = vmatpush1.msra.mxu0 0.0
      %3181 = vmatprep.subr.mxu0 0.0
      %3182 = vmatpush1.msra.mxu0 0.0
      %3183 = vmatprep.subr.mxu0 0.0
      %3184 = vmatpush1.msra.mxu0 0.0
      %3185 = vmatprep.subr.mxu0 0.0
      %3186 = vmatpush1.msra.mxu0 0.0
      %3187 = vmatprep.subr.mxu0 0.0
      %3188 = vmatpush1.msra.mxu0 0.0
      %3189 = vmatprep.subr.mxu0 0.0
      %3190 = vmatpush1.msra.mxu0 0.0
      %3191 = vmatprep.subr.mxu0 0.0
      %3192 = vmatpush1.msra.mxu0 0.0
      %3193 = vmatprep.subr.mxu0 0.0
      %3194 = vmatpush1.msra.mxu0 0.0
      %3195 = vmatprep.subr.mxu0 0.0
      %3196 = vmatpush1.msra.mxu0 0.0
      %3197 = vmatprep.subr.mxu0 0.0
      %3198 = vmatpush1.msra.mxu0 0.0
      %3199 = vmatprep.subr.mxu0 0.0
      %3200 = vmatpush1.msra.mxu0 0.0
      %3201 = vmatprep.subr.mxu0 0.0
      %3202 = vmatpush1.msra.mxu0 0.0
      %3203 = vmatprep.subr.mxu0 0.0
      %3204 = vmatpush1.msra.mxu0 0.0
      %3205 = vmatprep.subr.mxu0 0.0
      %3206 = vmatpush1.msra.mxu0 0.0
      %3207 = vmatprep.mubr.f32.mxu0 0.0
      %3208 = vmatmul.mubr.f32.gmra.mrb[0].mxu0 %v3141
      %v3209 = vpop.f32.mrb[0].mxu0
      %v3210 = vadd.f32 0.0, %v3209
      %v3211 = vpop.f32.mrb[0].mxu0
      %3212 = vdwg.mxu0
      %3221 = vset.pattern.permute.xlu0 0
      %3222 = vperm.xlu0 %3221, %v3133
      %v3223 = vpop.permute.xlu0 %3222
      %3224 = vset.pattern.permute.xlu0 0
      %3225 = vperm.xlu0 %3224, %v3134
      %v3226 = vpop.permute.xlu0 %3225
      %3227 = vset.pattern.permute.xlu0 0
      %3228 = vperm.xlu0 %3227, %v3135
      %v3229 = vpop.permute.xlu0 %3228
      %3230 = vset.pattern.permute.xlu0 0
      %3231 = vperm.xlu0 %3230, %v3136
      %v3232 = vpop.permute.xlu0 %3231
      %3233 = vset.pattern.permute.xlu0 0
      %3234 = vperm.xlu0 %3233, %v3137
      %v3235 = vpop.permute.xlu0 %3234
      %3236 = vset.pattern.permute.xlu0 0
      %3237 = vperm.xlu0 %3236, %v3138
      %v3238 = vpop.permute.xlu0 %3237
      %3239 = vset.pattern.permute.xlu0 0
      %3240 = vperm.xlu0 %3239, %v3139
      %v3241 = vpop.permute.xlu0 %3240
      %3242 = vset.pattern.permute.xlu0 0
      %3243 = vperm.xlu0 %3242, %v3140
      %v3244 = vpop.permute.xlu0 %3243
      %v3245 = vlaneseq
      %v3246 = vshrl.u32 %v3245, 7
      %v3247 = vsub.s32 %v1043, %v3246
      %v3248 = vrot.slane %v3223, %v3247
      %v3249 = vlaneseq
      %v3250 = vshrl.u32 %v3249, 7
      %v3251 = vsub.s32 %v1043, %v3250
      %v3252 = vrot.slane %v3226, %v3251
      %v3253 = vlaneseq
      %v3254 = vshrl.u32 %v3253, 7
      %v3255 = vsub.s32 %v1043, %v3254
      %v3256 = vrot.slane %v3229, %v3255
      %v3257 = vlaneseq
      %v3258 = vshrl.u32 %v3257, 7
      %v3259 = vsub.s32 %v1043, %v3258
      %v3260 = vrot.slane %v3232, %v3259
      %v3261 = vlaneseq
      %v3262 = vshrl.u32 %v3261, 7
      %v3263 = vsub.s32 %v1043, %v3262
      %v3264 = vrot.slane %v3235, %v3263
      %v3265 = vlaneseq
      %v3266 = vshrl.u32 %v3265, 7
      %v3267 = vsub.s32 %v1043, %v3266
      %v3268 = vrot.slane %v3238, %v3267
      %v3269 = vlaneseq
      %v3270 = vshrl.u32 %v3269, 7
      %v3271 = vsub.s32 %v1043, %v3270
      %v3272 = vrot.slane %v3241, %v3271
      %v3273 = vlaneseq
      %v3274 = vshrl.u32 %v3273, 7
      %v3275 = vsub.s32 %v1043, %v3274
      %v3276 = vrot.slane %v3244, %v3275
      %v3277 = vsel %vm1076, %v3252, %v3248
      %v3278 = vsel %vm1078, %v3256, %v3277
      %v3279 = vsel %vm1080, %v3260, %v3278
      %v3280 = vsel %vm1082, %v3264, %v3279
      %v3281 = vsel %vm1084, %v3268, %v3280
      %v3282 = vsel %vm1086, %v3272, %v3281
      %v3283 = vsel %vm1088, %v3276, %v3282
      %v3284 = vsel %vm1091, %v3283, 0
      %3286 = vmatprep.subr.mxu0 0.0
      %3287 = vmatpush1.msra.mxu0 %v1513
      %3288 = vmatprep.subr.mxu0 0.0
      %3289 = vmatpush1.msra.mxu0 0.0
      %3290 = vmatprep.subr.mxu0 0.0
      %3291 = vmatpush1.msra.mxu0 0.0
      %3292 = vmatprep.subr.mxu0 0.0
      %3293 = vmatpush1.msra.mxu0 0.0
      %3294 = vmatprep.subr.mxu0 0.0
      %3295 = vmatpush1.msra.mxu0 0.0
      %3296 = vmatprep.subr.mxu0 0.0
      %3297 = vmatpush1.msra.mxu0 0.0
      %3298 = vmatprep.subr.mxu0 0.0
      %3299 = vmatpush1.msra.mxu0 0.0
      %3300 = vmatprep.subr.mxu0 0.0
      %3301 = vmatpush1.msra.mxu0 0.0
      %3302 = vmatprep.subr.mxu0 0.0
      %3303 = vmatpush1.msra.mxu0 0.0
      %3304 = vmatprep.subr.mxu0 0.0
      %3305 = vmatpush1.msra.mxu0 0.0
      %3306 = vmatprep.subr.mxu0 0.0
      %3307 = vmatpush1.msra.mxu0 0.0
      %3308 = vmatprep.subr.mxu0 0.0
      %3309 = vmatpush1.msra.mxu0 0.0
      %3310 = vmatprep.subr.mxu0 0.0
      %3311 = vmatpush1.msra.mxu0 0.0
      %3312 = vmatprep.subr.mxu0 0.0
      %3313 = vmatpush1.msra.mxu0 0.0
      %3314 = vmatprep.subr.mxu0 0.0
      %3315 = vmatpush1.msra.mxu0 0.0
      %3316 = vmatprep.subr.mxu0 0.0
      %3317 = vmatpush1.msra.mxu0 0.0
      %3318 = vmatprep.subr.mxu0 0.0
      %3319 = vmatpush1.msra.mxu0 0.0
      %3320 = vmatprep.subr.mxu0 0.0
      %3321 = vmatpush1.msra.mxu0 0.0
      %3322 = vmatprep.subr.mxu0 0.0
      %3323 = vmatpush1.msra.mxu0 0.0
      %3324 = vmatprep.subr.mxu0 0.0
      %3325 = vmatpush1.msra.mxu0 0.0
      %3326 = vmatprep.subr.mxu0 0.0
      %3327 = vmatpush1.msra.mxu0 0.0
      %3328 = vmatprep.subr.mxu0 0.0
      %3329 = vmatpush1.msra.mxu0 0.0
      %3330 = vmatprep.subr.mxu0 0.0
      %3331 = vmatpush1.msra.mxu0 0.0
      %3332 = vmatprep.subr.mxu0 0.0
      %3333 = vmatpush1.msra.mxu0 0.0
      %3334 = vmatprep.subr.mxu0 0.0
      %3335 = vmatpush1.msra.mxu0 0.0
      %3336 = vmatprep.subr.mxu0 0.0
      %3337 = vmatpush1.msra.mxu0 0.0
      %3338 = vmatprep.subr.mxu0 0.0
      %3339 = vmatpush1.msra.mxu0 0.0
      %3340 = vmatprep.subr.mxu0 0.0
      %3341 = vmatpush1.msra.mxu0 0.0
      %3342 = vmatprep.subr.mxu0 0.0
      %3343 = vmatpush1.msra.mxu0 0.0
      %3344 = vmatprep.subr.mxu0 0.0
      %3345 = vmatpush1.msra.mxu0 0.0
      %3346 = vmatprep.subr.mxu0 0.0
      %3347 = vmatpush1.msra.mxu0 0.0
      %3348 = vmatprep.subr.mxu0 0.0
      %3349 = vmatpush1.msra.mxu0 0.0
      %3350 = vmatprep.mubr.f32.mxu0 0.0
      %3351 = vmatmul.mubr.f32.gmra.mrb[0].mxu0 %v3284
      %v3352 = vpop.f32.mrb[0].mxu0
      %v3353 = vadd.f32 %v3210, %v3352
      %v3354 = vpop.f32.mrb[0].mxu0
      %3355 = vdwg.mxu0
      %v3356 = vadd.f32 %v3353, %v1589
      %v3357 = vxor.u32 %v3356, 2147483648
      %v3358 = vmul.f32 %v3357, 1.442695
      %v3359 = vpow.pop %v3358
      %v3360 = vadd.f32 %v3359, 1.0
      %v3361 = vrcp.pop %v3360
      %v3362 = vmul.f32 1.0, %v3361
      %v3363 = vtanh.pop %v3356
      %v3364 = vmul.f32 %v3362, %v2492
      %3366 = vrot.lane.b32.xlu0 %v3363, 64
      %v3367 = vpop.permute.xlu0 %3366
      %v3369 = vmul.f32 %v3362, %v3367
      %3371 = vrot.lane.b32.xlu0 %v3369, 32
      %v3372 = vpop.permute.xlu0 %3371
      %v3374 = vadd.f32 %v3364, %v3372
      %v3375 = vtanh.pop %v3374
      %3377 = vrot.lane.b32.xlu0 %v3375, 64
      %v3378 = vpop.permute.xlu0 %3377
      %v3380 = vmul.f32 %v3362, %v3378
      %v3382 = vcombine.high %v3380, %v3380
      %v3384 = vunpack.c.l.s4 1966171168
      %v3385 = vunpack.c.0.s8 %v3384
      %v3386 = vlaneseq
      %v3387 = vshrl.u32 %v3386, 7
      %v3388 = vsub.s32 %v3385, %v3387
      %v3389 = vrot.slane %v3380, %v3388
      %v3391 = vunpack.c.l.s4 1966171168
      %v3392 = vunpack.c.0.s8 %v3391
      %v3393 = vlaneseq
      %v3394 = vshrl.u32 %v3393, 7
      %v3395 = vsub.s32 %v3392, %v3394
      %v3396 = vrot.slane %v3382, %v3395
      %v3397 = vcombine.high %v3389, %v3389
      %v3398 = vcombine.high %v3396, %v3396
      %v3400 = vunpack.c.l.s4 1966171168
      %v3401 = vunpack.c.0.s8 %v3400
      %v3402 = vlaneseq
      %v3403 = vshrl.u32 %v3402, 7
      %v3404 = vsub.s32 %v3401, %v3403
      %v3405 = vrot.slane %v3389, %v3404
      %v3407 = vunpack.c.l.s4 1966171168
      %v3408 = vunpack.c.0.s8 %v3407
      %v3409 = vlaneseq
      %v3410 = vshrl.u32 %v3409, 7
      %v3411 = vsub.s32 %v3408, %v3410
      %v3412 = vrot.slane %v3396, %v3411
      %v3414 = vunpack.c.l.s4 1966171168
      %v3415 = vunpack.c.0.s8 %v3414
      %v3416 = vlaneseq
      %v3417 = vshrl.u32 %v3416, 7
      %v3418 = vsub.s32 %v3415, %v3417
      %v3419 = vrot.slane %v3397, %v3418
      %v3421 = vunpack.c.l.s4 1966171168
      %v3422 = vunpack.c.0.s8 %v3421
      %v3423 = vlaneseq
      %v3424 = vshrl.u32 %v3423, 7
      %v3425 = vsub.s32 %v3422, %v3424
      %v3426 = vrot.slane %v3398, %v3425
      %v3427 = vcombine.high %v3405, %v3405
      %v3428 = vcombine.high %v3412, %v3412
      %v3429 = vcombine.high %v3419, %v3419
      %v3430 = vcombine.high %v3426, %v3426
      %v3431 = vlaneseq
      %v3432 = vshrl.u32 %v3431, 7
      %v3433 = vsub.s32 0, %v3432
      %v3434 = vrot.slane %v3405, %v3433
      %v3435 = vlaneseq
      %v3436 = vshrl.u32 %v3435, 7
      %v3437 = vsub.s32 0, %v3436
      %v3438 = vrot.slane %v3419, %v3437
      %v3439 = vlaneseq
      %v3440 = vshrl.u32 %v3439, 7
      %v3441 = vsub.s32 0, %v3440
      %v3442 = vrot.slane %v3427, %v3441
      %v3443 = vlaneseq
      %v3444 = vshrl.u32 %v3443, 7
      %v3445 = vsub.s32 0, %v3444
      %v3446 = vrot.slane %v3429, %v3445
      %v3447 = vlaneseq
      %v3448 = vshrl.u32 %v3447, 7
      %v3449 = vsub.s32 0, %v3448
      %v3450 = vrot.slane %v3412, %v3449
      %v3451 = vlaneseq
      %v3452 = vshrl.u32 %v3451, 7
      %v3453 = vsub.s32 0, %v3452
      %v3454 = vrot.slane %v3426, %v3453
      %v3455 = vlaneseq
      %v3456 = vshrl.u32 %v3455, 7
      %v3457 = vsub.s32 0, %v3456
      %v3458 = vrot.slane %v3428, %v3457
      %v3459 = vlaneseq
      %v3460 = vshrl.u32 %v3459, 7
      %v3461 = vsub.s32 0, %v3460
      %v3462 = vrot.slane %v3430, %v3461
      %3463 = vrot.lane.b32.xlu0 %v3434, 32
      %v3464 = vpop.permute.xlu0 %3463
      %3465 = vrot.lane.b32.xlu0 %v3438, 32
      %v3466 = vpop.permute.xlu0 %3465
      %3467 = vrot.lane.b32.xlu0 %v3442, 32
      %v3468 = vpop.permute.xlu0 %3467
      %3469 = vrot.lane.b32.xlu0 %v3446, 32
      %v3470 = vpop.permute.xlu0 %3469
      %3471 = vrot.lane.b32.xlu0 %v3450, 32
      %v3472 = vpop.permute.xlu0 %3471
      %3473 = vrot.lane.b32.xlu0 %v3454, 32
      %v3474 = vpop.permute.xlu0 %3473
      %3475 = vrot.lane.b32.xlu0 %v3458, 32
      %v3476 = vpop.permute.xlu0 %3475
      %3477 = vrot.lane.b32.xlu0 %v3462, 32
      %v3478 = vpop.permute.xlu0 %3477
      %3487 = vst.msk [vmem:[#allocation2 + $0x2] sm:$0x1] %vm1722, %v3464
      %3488 = vst.msk [vmem:[#allocation2 + $0xa] sm:$0x1] %vm1722, %v3466
      %3489 = vst.msk [vmem:[#allocation2 + $0x12] sm:$0x1] %vm1722, %v3468
      %3490 = vst.msk [vmem:[#allocation2 + $0x1a] sm:$0x1] %vm1722, %v3470
      %3491 = vst.msk [vmem:[#allocation2 + $0x22] sm:$0x1] %vm1722, %v3472
      %3492 = vst.msk [vmem:[#allocation2 + $0x2a] sm:$0x1] %vm1722, %v3474
      %3493 = vst.msk [vmem:[#allocation2 + $0x32] sm:$0x1] %vm1722, %v3476
      %3494 = vst.msk [vmem:[#allocation2 + $0x3a] sm:$0x1] %vm1722, %v3478
      %3495 = vrot.lane.b32.xlu0 %v3380, 32
      %v3496 = vpop.permute.xlu0 %3495
      %v3498 = vsel %vm807, %v3496, %v3374
      %v3500 = vsel %vm815, %v3498, 0
      %3502 = vmatprep.subr.mxu0 0.0
      %3503 = vmatpush1.msra.mxu0 %v785
      %3504 = vmatprep.subr.mxu0 0.0
      %3505 = vmatpush1.msra.mxu0 %v786
      %3506 = vmatprep.subr.mxu0 0.0
      %3507 = vmatpush1.msra.mxu0 %v787
      %3508 = vmatprep.subr.mxu0 0.0
      %3509 = vmatpush1.msra.mxu0 %v788
      %3510 = vmatprep.subr.mxu0 0.0
      %3511 = vmatpush1.msra.mxu0 %v789
      %3512 = vmatprep.subr.mxu0 0.0
      %3513 = vmatpush1.msra.mxu0 %v790
      %3514 = vmatprep.subr.mxu0 0.0
      %3515 = vmatpush1.msra.mxu0 %v791
      %3516 = vmatprep.subr.mxu0 0.0
      %3517 = vmatpush1.msra.mxu0 %v792
      %3518 = vmatprep.subr.mxu0 0.0
      %3519 = vmatpush1.msra.mxu0 0.0
      %3520 = vmatprep.subr.mxu0 0.0
      %3521 = vmatpush1.msra.mxu0 0.0
      %3522 = vmatprep.subr.mxu0 0.0
      %3523 = vmatpush1.msra.mxu0 0.0
      %3524 = vmatprep.subr.mxu0 0.0
      %3525 = vmatpush1.msra.mxu0 0.0
      %3526 = vmatprep.subr.mxu0 0.0
      %3527 = vmatpush1.msra.mxu0 0.0
      %3528 = vmatprep.subr.mxu0 0.0
      %3529 = vmatpush1.msra.mxu0 0.0
      %3530 = vmatprep.subr.mxu0 0.0
      %3531 = vmatpush1.msra.mxu0 0.0
      %3532 = vmatprep.subr.mxu0 0.0
      %3533 = vmatpush1.msra.mxu0 0.0
      %3534 = vmatprep.subr.mxu0 0.0
      %3535 = vmatpush1.msra.mxu0 0.0
      %3536 = vmatprep.subr.mxu0 0.0
      %3537 = vmatpush1.msra.mxu0 0.0
      %3538 = vmatprep.subr.mxu0 0.0
      %3539 = vmatpush1.msra.mxu0 0.0
      %3540 = vmatprep.subr.mxu0 0.0
      %3541 = vmatpush1.msra.mxu0 0.0
      %3542 = vmatprep.subr.mxu0 0.0
      %3543 = vmatpush1.msra.mxu0 0.0
      %3544 = vmatprep.subr.mxu0 0.0
      %3545 = vmatpush1.msra.mxu0 0.0
      %3546 = vmatprep.subr.mxu0 0.0
      %3547 = vmatpush1.msra.mxu0 0.0
      %3548 = vmatprep.subr.mxu0 0.0
      %3549 = vmatpush1.msra.mxu0 0.0
      %3550 = vmatprep.subr.mxu0 0.0
      %3551 = vmatpush1.msra.mxu0 0.0
      %3552 = vmatprep.subr.mxu0 0.0
      %3553 = vmatpush1.msra.mxu0 0.0
      %3554 = vmatprep.subr.mxu0 0.0
      %3555 = vmatpush1.msra.mxu0 0.0
      %3556 = vmatprep.subr.mxu0 0.0
      %3557 = vmatpush1.msra.mxu0 0.0
      %3558 = vmatprep.subr.mxu0 0.0
      %3559 = vmatpush1.msra.mxu0 0.0
      %3560 = vmatprep.subr.mxu0 0.0
      %3561 = vmatpush1.msra.mxu0 0.0
      %3562 = vmatprep.subr.mxu0 0.0
      %3563 = vmatpush1.msra.mxu0 0.0
      %3564 = vmatprep.subr.mxu0 0.0
      %3565 = vmatpush1.msra.mxu0 0.0
      %3566 = vmatprep.mubr.f32.mxu0 0.0
      %3567 = vmatmul.mubr.f32.gmra.mrb[0].mxu0 %v3500
      %v3568 = vpop.f32.mrb[0].mxu0
      %v3569 = vadd.f32 %v813, %v3568
      %v3570 = vpop.f32.mrb[0].mxu0
      %3571 = vdwg.mxu0
      %v3573 = vcombine.high %v3569, %v3569
      %v3575 = vunpack.c.l.s4 1966171168
      %v3576 = vunpack.c.0.s8 %v3575
      %v3577 = vlaneseq
      %v3578 = vshrl.u32 %v3577, 7
      %v3579 = vsub.s32 %v3576, %v3578
      %v3580 = vrot.slane %v3569, %v3579
      %v3582 = vunpack.c.l.s4 1966171168
      %v3583 = vunpack.c.0.s8 %v3582
      %v3584 = vlaneseq
      %v3585 = vshrl.u32 %v3584, 7
      %v3586 = vsub.s32 %v3583, %v3585
      %v3587 = vrot.slane %v3573, %v3586
      %v3588 = vcombine.high %v3580, %v3580
      %v3589 = vcombine.high %v3587, %v3587
      %v3591 = vunpack.c.l.s4 1966171168
      %v3592 = vunpack.c.0.s8 %v3591
      %v3593 = vlaneseq
      %v3594 = vshrl.u32 %v3593, 7
      %v3595 = vsub.s32 %v3592, %v3594
      %v3596 = vrot.slane %v3580, %v3595
      %v3598 = vunpack.c.l.s4 1966171168
      %v3599 = vunpack.c.0.s8 %v3598
      %v3600 = vlaneseq
      %v3601 = vshrl.u32 %v3600, 7
      %v3602 = vsub.s32 %v3599, %v3601
      %v3603 = vrot.slane %v3587, %v3602
      %v3605 = vunpack.c.l.s4 1966171168
      %v3606 = vunpack.c.0.s8 %v3605
      %v3607 = vlaneseq
      %v3608 = vshrl.u32 %v3607, 7
      %v3609 = vsub.s32 %v3606, %v3608
      %v3610 = vrot.slane %v3588, %v3609
      %v3612 = vunpack.c.l.s4 1966171168
      %v3613 = vunpack.c.0.s8 %v3612
      %v3614 = vlaneseq
      %v3615 = vshrl.u32 %v3614, 7
      %v3616 = vsub.s32 %v3613, %v3615
      %v3617 = vrot.slane %v3589, %v3616
      %v3618 = vcombine.high %v3596, %v3596
      %v3619 = vcombine.high %v3603, %v3603
      %v3620 = vcombine.high %v3610, %v3610
      %v3621 = vcombine.high %v3617, %v3617
      %v3622 = vlaneseq
      %v3623 = vshrl.u32 %v3622, 7
      %v3624 = vsub.s32 0, %v3623
      %v3625 = vrot.slane %v3596, %v3624
      %v3626 = vlaneseq
      %v3627 = vshrl.u32 %v3626, 7
      %v3628 = vsub.s32 0, %v3627
      %v3629 = vrot.slane %v3610, %v3628
      %v3630 = vlaneseq
      %v3631 = vshrl.u32 %v3630, 7
      %v3632 = vsub.s32 0, %v3631
      %v3633 = vrot.slane %v3618, %v3632
      %v3634 = vlaneseq
      %v3635 = vshrl.u32 %v3634, 7
      %v3636 = vsub.s32 0, %v3635
      %v3637 = vrot.slane %v3620, %v3636
      %v3638 = vlaneseq
      %v3639 = vshrl.u32 %v3638, 7
      %v3640 = vsub.s32 0, %v3639
      %v3641 = vrot.slane %v3603, %v3640
      %v3642 = vlaneseq
      %v3643 = vshrl.u32 %v3642, 7
      %v3644 = vsub.s32 0, %v3643
      %v3645 = vrot.slane %v3617, %v3644
      %v3646 = vlaneseq
      %v3647 = vshrl.u32 %v3646, 7
      %v3648 = vsub.s32 0, %v3647
      %v3649 = vrot.slane %v3619, %v3648
      %v3650 = vlaneseq
      %v3651 = vshrl.u32 %v3650, 7
      %v3652 = vsub.s32 0, %v3651
      %v3653 = vrot.slane %v3621, %v3652
      %v3662 = vadd.f32 %v747, %v3625
      %v3663 = vadd.f32 %v769, %v3629
      %v3664 = vadd.f32 %v752, %v3633
      %v3665 = vadd.f32 %v770, %v3637
      %v3666 = vadd.f32 %v757, %v3641
      %v3667 = vadd.f32 %v771, %v3645
      %v3668 = vadd.f32 %v762, %v3649
      %v3669 = vadd.f32 %v772, %v3653
      %v3670 = vtanh.pop %v3662
      %v3671 = vtanh.pop %v3663
      %v3672 = vtanh.pop %v3664
      %v3673 = vtanh.pop %v3665
      %v3674 = vtanh.pop %v3666
      %v3675 = vtanh.pop %v3667
      %v3676 = vtanh.pop %v3668
      %v3677 = vtanh.pop %v3669
      %v3678 = vmul.f32 %v3670, %v999
      %v3679 = vmul.f32 %v3671, %v999
      %v3680 = vmul.f32 %v3672, %v999
      %v3681 = vmul.f32 %v3673, %v999
      %v3682 = vmul.f32 %v3674, %v999
      %v3683 = vmul.f32 %v3675, %v999
      %v3684 = vmul.f32 %v3676, %v999
      %v3685 = vmul.f32 %v3677, %v999
      %v3686 = vsel %vm1009, %v3678, 0.0
      %3687 = vadd.xlane.f32.xlu0 %v3686
      %v3688 = vpop.xlane.xlu0 %3687
      %v3689 = vsel %vm1009, %v3679, 0.0
      %3690 = vadd.xlane.f32.xlu0 %v3689
      %v3691 = vpop.xlane.xlu0 %3690
      %v3692 = vsel %vm1009, %v3680, 0.0
      %3693 = vadd.xlane.f32.xlu0 %v3692
      %v3694 = vpop.xlane.xlu0 %3693
      %v3695 = vsel %vm1009, %v3681, 0.0
      %3696 = vadd.xlane.f32.xlu0 %v3695
      %v3697 = vpop.xlane.xlu0 %3696
      %v3698 = vsel %vm1009, %v3682, 0.0
      %3699 = vadd.xlane.f32.xlu0 %v3698
      %v3700 = vpop.xlane.xlu0 %3699
      %v3701 = vsel %vm1009, %v3683, 0.0
      %3702 = vadd.xlane.f32.xlu0 %v3701
      %v3703 = vpop.xlane.xlu0 %3702
      %v3704 = vsel %vm1009, %v3684, 0.0
      %3705 = vadd.xlane.f32.xlu0 %v3704
      %v3706 = vpop.xlane.xlu0 %3705
      %v3707 = vsel %vm1009, %v3685, 0.0
      %3708 = vadd.xlane.f32.xlu0 %v3707
      %v3709 = vpop.xlane.xlu0 %3708
      %v3718 = vlaneseq
      %v3719 = vshrl.u32 %v3718, 7
      %v3720 = vsub.s32 %v1043, %v3719
      %v3721 = vrot.slane %v3688, %v3720
      %v3722 = vlaneseq
      %v3723 = vshrl.u32 %v3722, 7
      %v3724 = vsub.s32 %v1043, %v3723
      %v3725 = vrot.slane %v3691, %v3724
      %v3726 = vlaneseq
      %v3727 = vshrl.u32 %v3726, 7
      %v3728 = vsub.s32 %v1043, %v3727
      %v3729 = vrot.slane %v3694, %v3728
      %v3730 = vlaneseq
      %v3731 = vshrl.u32 %v3730, 7
      %v3732 = vsub.s32 %v1043, %v3731
      %v3733 = vrot.slane %v3697, %v3732
      %v3734 = vlaneseq
      %v3735 = vshrl.u32 %v3734, 7
      %v3736 = vsub.s32 %v1043, %v3735
      %v3737 = vrot.slane %v3700, %v3736
      %v3738 = vlaneseq
      %v3739 = vshrl.u32 %v3738, 7
      %v3740 = vsub.s32 %v1043, %v3739
      %v3741 = vrot.slane %v3703, %v3740
      %v3742 = vlaneseq
      %v3743 = vshrl.u32 %v3742, 7
      %v3744 = vsub.s32 %v1043, %v3743
      %v3745 = vrot.slane %v3706, %v3744
      %v3746 = vlaneseq
      %v3747 = vshrl.u32 %v3746, 7
      %v3748 = vsub.s32 %v1043, %v3747
      %v3749 = vrot.slane %v3709, %v3748
      %v3750 = vsel %vm1076, %v3725, %v3721
      %v3751 = vsel %vm1078, %v3729, %v3750
      %v3752 = vsel %vm1080, %v3733, %v3751
      %v3753 = vsel %vm1082, %v3737, %v3752
      %v3754 = vsel %vm1084, %v3741, %v3753
      %v3755 = vsel %vm1086, %v3745, %v3754
      %v3756 = vsel %vm1088, %v3749, %v3755
      %v3758 = vsel %vm1091, %v3756, -inf
      %3759 = vmax.xlane.f32.xlu0 %v3758
      %v3760 = vpop.xlane.xlu0 %3759
      %v3762 = vlaneseq
      %v3763 = vshrl.u32 %v3762, 7
      %v3764 = vsub.s32 0, %v3763
      %v3765 = vrot.slane %v3760, %v3764
      %v3766 = vlaneseq
      %v3767 = vshrl.u32 %v3766, 7
      %v3768 = vsub.s32 1, %v3767
      %v3769 = vrot.slane %v3760, %v3768
      %v3770 = vlaneseq
      %v3771 = vshrl.u32 %v3770, 7
      %v3772 = vsub.s32 2, %v3771
      %v3773 = vrot.slane %v3760, %v3772
      %v3774 = vlaneseq
      %v3775 = vshrl.u32 %v3774, 7
      %v3776 = vsub.s32 3, %v3775
      %v3777 = vrot.slane %v3760, %v3776
      %v3778 = vlaneseq
      %v3779 = vshrl.u32 %v3778, 7
      %v3780 = vsub.s32 4, %v3779
      %v3781 = vrot.slane %v3760, %v3780
      %v3782 = vlaneseq
      %v3783 = vshrl.u32 %v3782, 7
      %v3784 = vsub.s32 5, %v3783
      %v3785 = vrot.slane %v3760, %v3784
      %v3786 = vlaneseq
      %v3787 = vshrl.u32 %v3786, 7
      %v3788 = vsub.s32 6, %v3787
      %v3789 = vrot.slane %v3760, %v3788
      %v3790 = vlaneseq
      %v3791 = vshrl.u32 %v3790, 7
      %v3792 = vsub.s32 7, %v3791
      %v3793 = vrot.slane %v3760, %v3792
      %v3802 = vsub.f32 %v3688, %v3765
      %v3803 = vsub.f32 %v3691, %v3769
      %v3804 = vsub.f32 %v3694, %v3773
      %v3805 = vsub.f32 %v3697, %v3777
      %v3806 = vsub.f32 %v3700, %v3781
      %v3807 = vsub.f32 %v3703, %v3785
      %v3808 = vsub.f32 %v3706, %v3789
      %v3809 = vsub.f32 %v3709, %v3793
      %v3810 = vmul.f32 %v3802, 1.442695
      %v3811 = vpow.pop %v3810
      %v3812 = vmul.f32 %v3803, 1.442695
      %v3813 = vpow.pop %v3812
      %v3814 = vmul.f32 %v3804, 1.442695
      %v3815 = vpow.pop %v3814
      %v3816 = vmul.f32 %v3805, 1.442695
      %v3817 = vpow.pop %v3816
      %v3818 = vmul.f32 %v3806, 1.442695
      %v3819 = vpow.pop %v3818
      %v3820 = vmul.f32 %v3807, 1.442695
      %v3821 = vpow.pop %v3820
      %v3822 = vmul.f32 %v3808, 1.442695
      %v3823 = vpow.pop %v3822
      %v3824 = vmul.f32 %v3809, 1.442695
      %v3825 = vpow.pop %v3824
      %3834 = vset.pattern.permute.xlu0 0
      %3835 = vperm.xlu0 %3834, %v3811
      %v3836 = vpop.permute.xlu0 %3835
      %3837 = vset.pattern.permute.xlu0 0
      %3838 = vperm.xlu0 %3837, %v3813
      %v3839 = vpop.permute.xlu0 %3838
      %3840 = vset.pattern.permute.xlu0 0
      %3841 = vperm.xlu0 %3840, %v3815
      %v3842 = vpop.permute.xlu0 %3841
      %3843 = vset.pattern.permute.xlu0 0
      %3844 = vperm.xlu0 %3843, %v3817
      %v3845 = vpop.permute.xlu0 %3844
      %3846 = vset.pattern.permute.xlu0 0
      %3847 = vperm.xlu0 %3846, %v3819
      %v3848 = vpop.permute.xlu0 %3847
      %3849 = vset.pattern.permute.xlu0 0
      %3850 = vperm.xlu0 %3849, %v3821
      %v3851 = vpop.permute.xlu0 %3850
      %3852 = vset.pattern.permute.xlu0 0
      %3853 = vperm.xlu0 %3852, %v3823
      %v3854 = vpop.permute.xlu0 %3853
      %3855 = vset.pattern.permute.xlu0 0
      %3856 = vperm.xlu0 %3855, %v3825
      %v3857 = vpop.permute.xlu0 %3856
      %v3858 = vlaneseq
      %v3859 = vshrl.u32 %v3858, 7
      %v3860 = vsub.s32 %v1043, %v3859
      %v3861 = vrot.slane %v3836, %v3860
      %v3862 = vlaneseq
      %v3863 = vshrl.u32 %v3862, 7
      %v3864 = vsub.s32 %v1043, %v3863
      %v3865 = vrot.slane %v3839, %v3864
      %v3866 = vlaneseq
      %v3867 = vshrl.u32 %v3866, 7
      %v3868 = vsub.s32 %v1043, %v3867
      %v3869 = vrot.slane %v3842, %v3868
      %v3870 = vlaneseq
      %v3871 = vshrl.u32 %v3870, 7
      %v3872 = vsub.s32 %v1043, %v3871
      %v3873 = vrot.slane %v3845, %v3872
      %v3874 = vlaneseq
      %v3875 = vshrl.u32 %v3874, 7
      %v3876 = vsub.s32 %v1043, %v3875
      %v3877 = vrot.slane %v3848, %v3876
      %v3878 = vlaneseq
      %v3879 = vshrl.u32 %v3878, 7
      %v3880 = vsub.s32 %v1043, %v3879
      %v3881 = vrot.slane %v3851, %v3880
      %v3882 = vlaneseq
      %v3883 = vshrl.u32 %v3882, 7
      %v3884 = vsub.s32 %v1043, %v3883
      %v3885 = vrot.slane %v3854, %v3884
      %v3886 = vlaneseq
      %v3887 = vshrl.u32 %v3886, 7
      %v3888 = vsub.s32 %v1043, %v3887
      %v3889 = vrot.slane %v3857, %v3888
      %v3890 = vsel %vm1076, %v3865, %v3861
      %v3891 = vsel %vm1078, %v3869, %v3890
      %v3892 = vsel %vm1080, %v3873, %v3891
      %v3893 = vsel %vm1082, %v3877, %v3892
      %v3894 = vsel %vm1084, %v3881, %v3893
      %v3895 = vsel %vm1086, %v3885, %v3894
      %v3896 = vsel %vm1088, %v3889, %v3895
      %v3898 = vsel %vm1091, %v3896, 0.0
      %3899 = vadd.xlane.f32.xlu0 %v3898
      %v3900 = vpop.xlane.xlu0 %3899
      %v3901 = vrcp.pop %v3900
      %v3903 = vlaneseq
      %v3904 = vshrl.u32 %v3903, 7
      %v3905 = vsub.s32 0, %v3904
      %v3906 = vrot.slane %v3901, %v3905
      %v3907 = vlaneseq
      %v3908 = vshrl.u32 %v3907, 7
      %v3909 = vsub.s32 1, %v3908
      %v3910 = vrot.slane %v3901, %v3909
      %v3911 = vlaneseq
      %v3912 = vshrl.u32 %v3911, 7
      %v3913 = vsub.s32 2, %v3912
      %v3914 = vrot.slane %v3901, %v3913
      %v3915 = vlaneseq
      %v3916 = vshrl.u32 %v3915, 7
      %v3917 = vsub.s32 3, %v3916
      %v3918 = vrot.slane %v3901, %v3917
      %v3919 = vlaneseq
      %v3920 = vshrl.u32 %v3919, 7
      %v3921 = vsub.s32 4, %v3920
      %v3922 = vrot.slane %v3901, %v3921
      %v3923 = vlaneseq
      %v3924 = vshrl.u32 %v3923, 7
      %v3925 = vsub.s32 5, %v3924
      %v3926 = vrot.slane %v3901, %v3925
      %v3927 = vlaneseq
      %v3928 = vshrl.u32 %v3927, 7
      %v3929 = vsub.s32 6, %v3928
      %v3930 = vrot.slane %v3901, %v3929
      %v3931 = vlaneseq
      %v3932 = vshrl.u32 %v3931, 7
      %v3933 = vsub.s32 7, %v3932
      %v3934 = vrot.slane %v3901, %v3933
      %v3943 = vmul.f32 %v3811, %v3906
      %v3944 = vmul.f32 %v3813, %v3910
      %v3945 = vmul.f32 %v3815, %v3914
      %v3946 = vmul.f32 %v3817, %v3918
      %v3947 = vmul.f32 %v3819, %v3922
      %v3948 = vmul.f32 %v3821, %v3926
      %v3949 = vmul.f32 %v3823, %v3930
      %v3950 = vmul.f32 %v3825, %v3934
      %v3951 = vlaneseq
      %v3952 = vshrl.u32 %v3951, 7
      %v3953 = vsub.s32 3, %v3952
      %v3954 = vrot.slane %v777, %v3953
      %3956 = vbcast.lane.b32.xlu0 %v3954, 256
      %v3957 = vpop.permute.xlu0 %3956
      %v3958 = vlaneseq
      %v3959 = vshrl.u32 %v3958, 7
      %v3960 = vsub.s32 3, %v3959
      %v3961 = vrot.slane %v778, %v3960
      %3963 = vbcast.lane.b32.xlu0 %v3961, 256
      %v3964 = vpop.permute.xlu0 %3963
      %v3965 = vlaneseq
      %v3966 = vshrl.u32 %v3965, 7
      %v3967 = vsub.s32 3, %v3966
      %v3968 = vrot.slane %v779, %v3967
      %3970 = vbcast.lane.b32.xlu0 %v3968, 256
      %v3971 = vpop.permute.xlu0 %3970
      %v3972 = vlaneseq
      %v3973 = vshrl.u32 %v3972, 7
      %v3974 = vsub.s32 3, %v3973
      %v3975 = vrot.slane %v780, %v3974
      %3977 = vbcast.lane.b32.xlu0 %v3975, 256
      %v3978 = vpop.permute.xlu0 %3977
      %v3979 = vlaneseq
      %v3980 = vshrl.u32 %v3979, 7
      %v3981 = vsub.s32 3, %v3980
      %v3982 = vrot.slane %v781, %v3981
      %3984 = vbcast.lane.b32.xlu0 %v3982, 256
      %v3985 = vpop.permute.xlu0 %3984
      %v3986 = vlaneseq
      %v3987 = vshrl.u32 %v3986, 7
      %v3988 = vsub.s32 3, %v3987
      %v3989 = vrot.slane %v782, %v3988
      %3991 = vbcast.lane.b32.xlu0 %v3989, 256
      %v3992 = vpop.permute.xlu0 %3991
      %v3993 = vlaneseq
      %v3994 = vshrl.u32 %v3993, 7
      %v3995 = vsub.s32 3, %v3994
      %v3996 = vrot.slane %v783, %v3995
      %3998 = vbcast.lane.b32.xlu0 %v3996, 256
      %v3999 = vpop.permute.xlu0 %3998
      %v4000 = vlaneseq
      %v4001 = vshrl.u32 %v4000, 7
      %v4002 = vsub.s32 3, %v4001
      %v4003 = vrot.slane %v784, %v4002
      %4005 = vbcast.lane.b32.xlu0 %v4003, 256
      %v4006 = vpop.permute.xlu0 %4005
      %v4015 = vmul.f32 %v3943, %v3957
      %v4016 = vmul.f32 %v3944, %v3964
      %v4017 = vmul.f32 %v3945, %v3971
      %v4018 = vmul.f32 %v3946, %v3978
      %v4019 = vmul.f32 %v3947, %v3985
      %v4020 = vmul.f32 %v3948, %v3992
      %v4021 = vmul.f32 %v3949, %v3999
      %v4022 = vmul.f32 %v3950, %v4006
      %v4023 = vsel %vm807, %v3496, 0
      %4025 = vmatprep.subr.mxu0 0.0
      %4026 = vmatpush1.msra.mxu0 %v796
      %4027 = vmatprep.subr.mxu0 0.0
      %4028 = vmatpush1.msra.mxu0 %v797
      %4029 = vmatprep.subr.mxu0 0.0
      %4030 = vmatpush1.msra.mxu0 %v798
      %4031 = vmatprep.subr.mxu0 0.0
      %4032 = vmatpush1.msra.mxu0 %v799
      %4033 = vmatprep.subr.mxu0 0.0
      %4034 = vmatpush1.msra.mxu0 0.0
      %4035 = vmatprep.subr.mxu0 0.0
      %4036 = vmatpush1.msra.mxu0 0.0
      %4037 = vmatprep.subr.mxu0 0.0
      %4038 = vmatpush1.msra.mxu0 0.0
      %4039 = vmatprep.subr.mxu0 0.0
      %4040 = vmatpush1.msra.mxu0 0.0
      %4041 = vmatprep.subr.mxu0 0.0
      %4042 = vmatpush1.msra.mxu0 0.0
      %4043 = vmatprep.subr.mxu0 0.0
      %4044 = vmatpush1.msra.mxu0 0.0
      %4045 = vmatprep.subr.mxu0 0.0
      %4046 = vmatpush1.msra.mxu0 0.0
      %4047 = vmatprep.subr.mxu0 0.0
      %4048 = vmatpush1.msra.mxu0 0.0
      %4049 = vmatprep.subr.mxu0 0.0
      %4050 = vmatpush1.msra.mxu0 0.0
      %4051 = vmatprep.subr.mxu0 0.0
      %4052 = vmatpush1.msra.mxu0 0.0
      %4053 = vmatprep.subr.mxu0 0.0
      %4054 = vmatpush1.msra.mxu0 0.0
      %4055 = vmatprep.subr.mxu0 0.0
      %4056 = vmatpush1.msra.mxu0 0.0
      %4057 = vmatprep.subr.mxu0 0.0
      %4058 = vmatpush1.msra.mxu0 0.0
      %4059 = vmatprep.subr.mxu0 0.0
      %4060 = vmatpush1.msra.mxu0 0.0
      %4061 = vmatprep.subr.mxu0 0.0
      %4062 = vmatpush1.msra.mxu0 0.0
      %4063 = vmatprep.subr.mxu0 0.0
      %4064 = vmatpush1.msra.mxu0 0.0
      %4065 = vmatprep.subr.mxu0 0.0
      %4066 = vmatpush1.msra.mxu0 0.0
      %4067 = vmatprep.subr.mxu0 0.0
      %4068 = vmatpush1.msra.mxu0 0.0
      %4069 = vmatprep.subr.mxu0 0.0
      %4070 = vmatpush1.msra.mxu0 0.0
      %4071 = vmatprep.subr.mxu0 0.0
      %4072 = vmatpush1.msra.mxu0 0.0
      %4073 = vmatprep.subr.mxu0 0.0
      %4074 = vmatpush1.msra.mxu0 0.0
      %4075 = vmatprep.subr.mxu0 0.0
      %4076 = vmatpush1.msra.mxu0 0.0
      %4077 = vmatprep.subr.mxu0 0.0
      %4078 = vmatpush1.msra.mxu0 0.0
      %4079 = vmatprep.subr.mxu0 0.0
      %4080 = vmatpush1.msra.mxu0 0.0
      %4081 = vmatprep.subr.mxu0 0.0
      %4082 = vmatpush1.msra.mxu0 0.0
      %4083 = vmatprep.subr.mxu0 0.0
      %4084 = vmatpush1.msra.mxu0 0.0
      %4085 = vmatprep.subr.mxu0 0.0
      %4086 = vmatpush1.msra.mxu0 0.0
      %4087 = vmatprep.subr.mxu0 0.0
      %4088 = vmatpush1.msra.mxu0 0.0
      %4089 = vmatprep.mubr.f32.mxu0 0.0
      %4090 = vmatmul.mubr.f32.gmra.mrb[0].mxu0 %v4023
      %v4091 = vpop.f32.mrb[0].mxu0
      %v4092 = vadd.f32 0.0, %v4091
      %v4093 = vpop.f32.mrb[0].mxu0
      %4094 = vdwg.mxu0
      %4103 = vset.pattern.permute.xlu0 0
      %4104 = vperm.xlu0 %4103, %v4015
      %v4105 = vpop.permute.xlu0 %4104
      %4106 = vset.pattern.permute.xlu0 0
      %4107 = vperm.xlu0 %4106, %v4016
      %v4108 = vpop.permute.xlu0 %4107
      %4109 = vset.pattern.permute.xlu0 0
      %4110 = vperm.xlu0 %4109, %v4017
      %v4111 = vpop.permute.xlu0 %4110
      %4112 = vset.pattern.permute.xlu0 0
      %4113 = vperm.xlu0 %4112, %v4018
      %v4114 = vpop.permute.xlu0 %4113
      %4115 = vset.pattern.permute.xlu0 0
      %4116 = vperm.xlu0 %4115, %v4019
      %v4117 = vpop.permute.xlu0 %4116
      %4118 = vset.pattern.permute.xlu0 0
      %4119 = vperm.xlu0 %4118, %v4020
      %v4120 = vpop.permute.xlu0 %4119
      %4121 = vset.pattern.permute.xlu0 0
      %4122 = vperm.xlu0 %4121, %v4021
      %v4123 = vpop.permute.xlu0 %4122
      %4124 = vset.pattern.permute.xlu0 0
      %4125 = vperm.xlu0 %4124, %v4022
      %v4126 = vpop.permute.xlu0 %4125
      %v4127 = vlaneseq
      %v4128 = vshrl.u32 %v4127, 7
      %v4129 = vsub.s32 %v1043, %v4128
      %v4130 = vrot.slane %v4105, %v4129
      %v4131 = vlaneseq
      %v4132 = vshrl.u32 %v4131, 7
      %v4133 = vsub.s32 %v1043, %v4132
      %v4134 = vrot.slane %v4108, %v4133
      %v4135 = vlaneseq
      %v4136 = vshrl.u32 %v4135, 7
      %v4137 = vsub.s32 %v1043, %v4136
      %v4138 = vrot.slane %v4111, %v4137
      %v4139 = vlaneseq
      %v4140 = vshrl.u32 %v4139, 7
      %v4141 = vsub.s32 %v1043, %v4140
      %v4142 = vrot.slane %v4114, %v4141
      %v4143 = vlaneseq
      %v4144 = vshrl.u32 %v4143, 7
      %v4145 = vsub.s32 %v1043, %v4144
      %v4146 = vrot.slane %v4117, %v4145
      %v4147 = vlaneseq
      %v4148 = vshrl.u32 %v4147, 7
      %v4149 = vsub.s32 %v1043, %v4148
      %v4150 = vrot.slane %v4120, %v4149
      %v4151 = vlaneseq
      %v4152 = vshrl.u32 %v4151, 7
      %v4153 = vsub.s32 %v1043, %v4152
      %v4154 = vrot.slane %v4123, %v4153
      %v4155 = vlaneseq
      %v4156 = vshrl.u32 %v4155, 7
      %v4157 = vsub.s32 %v1043, %v4156
      %v4158 = vrot.slane %v4126, %v4157
      %v4159 = vsel %vm1076, %v4134, %v4130
      %v4160 = vsel %vm1078, %v4138, %v4159
      %v4161 = vsel %vm1080, %v4142, %v4160
      %v4162 = vsel %vm1082, %v4146, %v4161
      %v4163 = vsel %vm1084, %v4150, %v4162
      %v4164 = vsel %vm1086, %v4154, %v4163
      %v4165 = vsel %vm1088, %v4158, %v4164
      %v4166 = vsel %vm1091, %v4165, 0
      %4168 = vmatprep.subr.mxu0 0.0
      %4169 = vmatpush1.msra.mxu0 %v1513
      %4170 = vmatprep.subr.mxu0 0.0
      %4171 = vmatpush1.msra.mxu0 0.0
      %4172 = vmatprep.subr.mxu0 0.0
      %4173 = vmatpush1.msra.mxu0 0.0
      %4174 = vmatprep.subr.mxu0 0.0
      %4175 = vmatpush1.msra.mxu0 0.0
      %4176 = vmatprep.subr.mxu0 0.0
      %4177 = vmatpush1.msra.mxu0 0.0
      %4178 = vmatprep.subr.mxu0 0.0
      %4179 = vmatpush1.msra.mxu0 0.0
      %4180 = vmatprep.subr.mxu0 0.0
      %4181 = vmatpush1.msra.mxu0 0.0
      %4182 = vmatprep.subr.mxu0 0.0
      %4183 = vmatpush1.msra.mxu0 0.0
      %4184 = vmatprep.subr.mxu0 0.0
      %4185 = vmatpush1.msra.mxu0 0.0
      %4186 = vmatprep.subr.mxu0 0.0
      %4187 = vmatpush1.msra.mxu0 0.0
      %4188 = vmatprep.subr.mxu0 0.0
      %4189 = vmatpush1.msra.mxu0 0.0
      %4190 = vmatprep.subr.mxu0 0.0
      %4191 = vmatpush1.msra.mxu0 0.0
      %4192 = vmatprep.subr.mxu0 0.0
      %4193 = vmatpush1.msra.mxu0 0.0
      %4194 = vmatprep.subr.mxu0 0.0
      %4195 = vmatpush1.msra.mxu0 0.0
      %4196 = vmatprep.subr.mxu0 0.0
      %4197 = vmatpush1.msra.mxu0 0.0
      %4198 = vmatprep.subr.mxu0 0.0
      %4199 = vmatpush1.msra.mxu0 0.0
      %4200 = vmatprep.subr.mxu0 0.0
      %4201 = vmatpush1.msra.mxu0 0.0
      %4202 = vmatprep.subr.mxu0 0.0
      %4203 = vmatpush1.msra.mxu0 0.0
      %4204 = vmatprep.subr.mxu0 0.0
      %4205 = vmatpush1.msra.mxu0 0.0
      %4206 = vmatprep.subr.mxu0 0.0
      %4207 = vmatpush1.msra.mxu0 0.0
      %4208 = vmatprep.subr.mxu0 0.0
      %4209 = vmatpush1.msra.mxu0 0.0
      %4210 = vmatprep.subr.mxu0 0.0
      %4211 = vmatpush1.msra.mxu0 0.0
      %4212 = vmatprep.subr.mxu0 0.0
      %4213 = vmatpush1.msra.mxu0 0.0
      %4214 = vmatprep.subr.mxu0 0.0
      %4215 = vmatpush1.msra.mxu0 0.0
      %4216 = vmatprep.subr.mxu0 0.0
      %4217 = vmatpush1.msra.mxu0 0.0
      %4218 = vmatprep.subr.mxu0 0.0
      %4219 = vmatpush1.msra.mxu0 0.0
      %4220 = vmatprep.subr.mxu0 0.0
      %4221 = vmatpush1.msra.mxu0 0.0
      %4222 = vmatprep.subr.mxu0 0.0
      %4223 = vmatpush1.msra.mxu0 0.0
      %4224 = vmatprep.subr.mxu0 0.0
      %4225 = vmatpush1.msra.mxu0 0.0
      %4226 = vmatprep.subr.mxu0 0.0
      %4227 = vmatpush1.msra.mxu0 0.0
      %4228 = vmatprep.subr.mxu0 0.0
      %4229 = vmatpush1.msra.mxu0 0.0
      %4230 = vmatprep.subr.mxu0 0.0
      %4231 = vmatpush1.msra.mxu0 0.0
      %4232 = vmatprep.mubr.f32.mxu0 0.0
      %4233 = vmatmul.mubr.f32.gmra.mrb[0].mxu0 %v4166
      %v4234 = vpop.f32.mrb[0].mxu0
      %v4235 = vadd.f32 %v4092, %v4234
      %v4236 = vpop.f32.mrb[0].mxu0
      %4237 = vdwg.mxu0
      %v4238 = vadd.f32 %v4235, %v1589
      %v4239 = vxor.u32 %v4238, 2147483648
      %v4240 = vmul.f32 %v4239, 1.442695
      %v4241 = vpow.pop %v4240
      %v4242 = vadd.f32 %v4241, 1.0
      %v4243 = vrcp.pop %v4242
      %v4244 = vmul.f32 1.0, %v4243
      %v4245 = vtanh.pop %v4238
      %v4246 = vmul.f32 %v4244, %v3374
      %4248 = vrot.lane.b32.xlu0 %v4245, 64
      %v4249 = vpop.permute.xlu0 %4248
      %v4251 = vmul.f32 %v4244, %v4249
      %4253 = vrot.lane.b32.xlu0 %v4251, 32
      %v4254 = vpop.permute.xlu0 %4253
      %v4256 = vadd.f32 %v4246, %v4254
      %v4257 = vtanh.pop %v4256
      %4259 = vrot.lane.b32.xlu0 %v4257, 64
      %v4260 = vpop.permute.xlu0 %4259
      %v4262 = vmul.f32 %v4244, %v4260
      %v4264 = vcombine.high %v4262, %v4262
      %v4266 = vunpack.c.l.s4 1966171168
      %v4267 = vunpack.c.0.s8 %v4266
      %v4268 = vlaneseq
      %v4269 = vshrl.u32 %v4268, 7
      %v4270 = vsub.s32 %v4267, %v4269
      %v4271 = vrot.slane %v4262, %v4270
      %v4273 = vunpack.c.l.s4 1966171168
      %v4274 = vunpack.c.0.s8 %v4273
      %v4275 = vlaneseq
      %v4276 = vshrl.u32 %v4275, 7
      %v4277 = vsub.s32 %v4274, %v4276
      %v4278 = vrot.slane %v4264, %v4277
      %v4279 = vcombine.high %v4271, %v4271
      %v4280 = vcombine.high %v4278, %v4278
      %v4282 = vunpack.c.l.s4 1966171168
      %v4283 = vunpack.c.0.s8 %v4282
      %v4284 = vlaneseq
      %v4285 = vshrl.u32 %v4284, 7
      %v4286 = vsub.s32 %v4283, %v4285
      %v4287 = vrot.slane %v4271, %v4286
      %v4289 = vunpack.c.l.s4 1966171168
      %v4290 = vunpack.c.0.s8 %v4289
      %v4291 = vlaneseq
      %v4292 = vshrl.u32 %v4291, 7
      %v4293 = vsub.s32 %v4290, %v4292
      %v4294 = vrot.slane %v4278, %v4293
      %v4296 = vunpack.c.l.s4 1966171168
      %v4297 = vunpack.c.0.s8 %v4296
      %v4298 = vlaneseq
      %v4299 = vshrl.u32 %v4298, 7
      %v4300 = vsub.s32 %v4297, %v4299
      %v4301 = vrot.slane %v4279, %v4300
      %v4303 = vunpack.c.l.s4 1966171168
      %v4304 = vunpack.c.0.s8 %v4303
      %v4305 = vlaneseq
      %v4306 = vshrl.u32 %v4305, 7
      %v4307 = vsub.s32 %v4304, %v4306
      %v4308 = vrot.slane %v4280, %v4307
      %v4309 = vcombine.high %v4287, %v4287
      %v4310 = vcombine.high %v4294, %v4294
      %v4311 = vcombine.high %v4301, %v4301
      %v4312 = vcombine.high %v4308, %v4308
      %v4313 = vlaneseq
      %v4314 = vshrl.u32 %v4313, 7
      %v4315 = vsub.s32 0, %v4314
      %v4316 = vrot.slane %v4287, %v4315
      %v4317 = vlaneseq
      %v4318 = vshrl.u32 %v4317, 7
      %v4319 = vsub.s32 0, %v4318
      %v4320 = vrot.slane %v4301, %v4319
      %v4321 = vlaneseq
      %v4322 = vshrl.u32 %v4321, 7
      %v4323 = vsub.s32 0, %v4322
      %v4324 = vrot.slane %v4309, %v4323
      %v4325 = vlaneseq
      %v4326 = vshrl.u32 %v4325, 7
      %v4327 = vsub.s32 0, %v4326
      %v4328 = vrot.slane %v4311, %v4327
      %v4329 = vlaneseq
      %v4330 = vshrl.u32 %v4329, 7
      %v4331 = vsub.s32 0, %v4330
      %v4332 = vrot.slane %v4294, %v4331
      %v4333 = vlaneseq
      %v4334 = vshrl.u32 %v4333, 7
      %v4335 = vsub.s32 0, %v4334
      %v4336 = vrot.slane %v4308, %v4335
      %v4337 = vlaneseq
      %v4338 = vshrl.u32 %v4337, 7
      %v4339 = vsub.s32 0, %v4338
      %v4340 = vrot.slane %v4310, %v4339
      %v4341 = vlaneseq
      %v4342 = vshrl.u32 %v4341, 7
      %v4343 = vsub.s32 0, %v4342
      %v4344 = vrot.slane %v4312, %v4343
      %4345 = vrot.lane.b32.xlu0 %v4316, 32
      %v4346 = vpop.permute.xlu0 %4345
      %4347 = vrot.lane.b32.xlu0 %v4320, 32
      %v4348 = vpop.permute.xlu0 %4347
      %4349 = vrot.lane.b32.xlu0 %v4324, 32
      %v4350 = vpop.permute.xlu0 %4349
      %4351 = vrot.lane.b32.xlu0 %v4328, 32
      %v4352 = vpop.permute.xlu0 %4351
      %4353 = vrot.lane.b32.xlu0 %v4332, 32
      %v4354 = vpop.permute.xlu0 %4353
      %4355 = vrot.lane.b32.xlu0 %v4336, 32
      %v4356 = vpop.permute.xlu0 %4355
      %4357 = vrot.lane.b32.xlu0 %v4340, 32
      %v4358 = vpop.permute.xlu0 %4357
      %4359 = vrot.lane.b32.xlu0 %v4344, 32
      %v4360 = vpop.permute.xlu0 %4359
      %4369 = vst.msk [vmem:[#allocation2 + $0x3] sm:$0x1] %vm1722, %v4346
      %4370 = vst.msk [vmem:[#allocation2 + $0xb] sm:$0x1] %vm1722, %v4348
      %4371 = vst.msk [vmem:[#allocation2 + $0x13] sm:$0x1] %vm1722, %v4350
      %4372 = vst.msk [vmem:[#allocation2 + $0x1b] sm:$0x1] %vm1722, %v4352
      %4373 = vst.msk [vmem:[#allocation2 + $0x23] sm:$0x1] %vm1722, %v4354
      %4374 = vst.msk [vmem:[#allocation2 + $0x2b] sm:$0x1] %vm1722, %v4356
      %4375 = vst.msk [vmem:[#allocation2 + $0x33] sm:$0x1] %vm1722, %v4358
      %4376 = vst.msk [vmem:[#allocation2 + $0x3b] sm:$0x1] %vm1722, %v4360
      %4377 = vrot.lane.b32.xlu0 %v4262, 32
      %v4378 = vpop.permute.xlu0 %4377
      %v4380 = vsel %vm807, %v4378, %v4256
      %v4382 = vsel %vm815, %v4380, 0
      %4384 = vmatprep.subr.mxu0 0.0
      %4385 = vmatpush1.msra.mxu0 %v785
      %4386 = vmatprep.subr.mxu0 0.0
      %4387 = vmatpush1.msra.mxu0 %v786
      %4388 = vmatprep.subr.mxu0 0.0
      %4389 = vmatpush1.msra.mxu0 %v787
      %4390 = vmatprep.subr.mxu0 0.0
      %4391 = vmatpush1.msra.mxu0 %v788
      %4392 = vmatprep.subr.mxu0 0.0
      %4393 = vmatpush1.msra.mxu0 %v789
      %4394 = vmatprep.subr.mxu0 0.0
      %4395 = vmatpush1.msra.mxu0 %v790
      %4396 = vmatprep.subr.mxu0 0.0
      %4397 = vmatpush1.msra.mxu0 %v791
      %4398 = vmatprep.subr.mxu0 0.0
      %4399 = vmatpush1.msra.mxu0 %v792
      %4400 = vmatprep.subr.mxu0 0.0
      %4401 = vmatpush1.msra.mxu0 0.0
      %4402 = vmatprep.subr.mxu0 0.0
      %4403 = vmatpush1.msra.mxu0 0.0
      %4404 = vmatprep.subr.mxu0 0.0
      %4405 = vmatpush1.msra.mxu0 0.0
      %4406 = vmatprep.subr.mxu0 0.0
      %4407 = vmatpush1.msra.mxu0 0.0
      %4408 = vmatprep.subr.mxu0 0.0
      %4409 = vmatpush1.msra.mxu0 0.0
      %4410 = vmatprep.subr.mxu0 0.0
      %4411 = vmatpush1.msra.mxu0 0.0
      %4412 = vmatprep.subr.mxu0 0.0
      %4413 = vmatpush1.msra.mxu0 0.0
      %4414 = vmatprep.subr.mxu0 0.0
      %4415 = vmatpush1.msra.mxu0 0.0
      %4416 = vmatprep.subr.mxu0 0.0
      %4417 = vmatpush1.msra.mxu0 0.0
      %4418 = vmatprep.subr.mxu0 0.0
      %4419 = vmatpush1.msra.mxu0 0.0
      %4420 = vmatprep.subr.mxu0 0.0
      %4421 = vmatpush1.msra.mxu0 0.0
      %4422 = vmatprep.subr.mxu0 0.0
      %4423 = vmatpush1.msra.mxu0 0.0
      %4424 = vmatprep.subr.mxu0 0.0
      %4425 = vmatpush1.msra.mxu0 0.0
      %4426 = vmatprep.subr.mxu0 0.0
      %4427 = vmatpush1.msra.mxu0 0.0
      %4428 = vmatprep.subr.mxu0 0.0
      %4429 = vmatpush1.msra.mxu0 0.0
      %4430 = vmatprep.subr.mxu0 0.0
      %4431 = vmatpush1.msra.mxu0 0.0
      %4432 = vmatprep.subr.mxu0 0.0
      %4433 = vmatpush1.msra.mxu0 0.0
      %4434 = vmatprep.subr.mxu0 0.0
      %4435 = vmatpush1.msra.mxu0 0.0
      %4436 = vmatprep.subr.mxu0 0.0
      %4437 = vmatpush1.msra.mxu0 0.0
      %4438 = vmatprep.subr.mxu0 0.0
      %4439 = vmatpush1.msra.mxu0 0.0
      %4440 = vmatprep.subr.mxu0 0.0
      %4441 = vmatpush1.msra.mxu0 0.0
      %4442 = vmatprep.subr.mxu0 0.0
      %4443 = vmatpush1.msra.mxu0 0.0
      %4444 = vmatprep.subr.mxu0 0.0
      %4445 = vmatpush1.msra.mxu0 0.0
      %4446 = vmatprep.subr.mxu0 0.0
      %4447 = vmatpush1.msra.mxu0 0.0
      %4448 = vmatprep.mubr.f32.mxu0 0.0
      %4449 = vmatmul.mubr.f32.gmra.mrb[0].mxu0 %v4382
      %v4450 = vpop.f32.mrb[0].mxu0
      %v4451 = vadd.f32 %v813, %v4450
      %v4452 = vpop.f32.mrb[0].mxu0
      %4453 = vdwg.mxu0
      %v4455 = vcombine.high %v4451, %v4451
      %v4457 = vunpack.c.l.s4 1966171168
      %v4458 = vunpack.c.0.s8 %v4457
      %v4459 = vlaneseq
      %v4460 = vshrl.u32 %v4459, 7
      %v4461 = vsub.s32 %v4458, %v4460
      %v4462 = vrot.slane %v4451, %v4461
      %v4464 = vunpack.c.l.s4 1966171168
      %v4465 = vunpack.c.0.s8 %v4464
      %v4466 = vlaneseq
      %v4467 = vshrl.u32 %v4466, 7
      %v4468 = vsub.s32 %v4465, %v4467
      %v4469 = vrot.slane %v4455, %v4468
      %v4470 = vcombine.high %v4462, %v4462
      %v4471 = vcombine.high %v4469, %v4469
      %v4473 = vunpack.c.l.s4 1966171168
      %v4474 = vunpack.c.0.s8 %v4473
      %v4475 = vlaneseq
      %v4476 = vshrl.u32 %v4475, 7
      %v4477 = vsub.s32 %v4474, %v4476
      %v4478 = vrot.slane %v4462, %v4477
      %v4480 = vunpack.c.l.s4 1966171168
      %v4481 = vunpack.c.0.s8 %v4480
      %v4482 = vlaneseq
      %v4483 = vshrl.u32 %v4482, 7
      %v4484 = vsub.s32 %v4481, %v4483
      %v4485 = vrot.slane %v4469, %v4484
      %v4487 = vunpack.c.l.s4 1966171168
      %v4488 = vunpack.c.0.s8 %v4487
      %v4489 = vlaneseq
      %v4490 = vshrl.u32 %v4489, 7
      %v4491 = vsub.s32 %v4488, %v4490
      %v4492 = vrot.slane %v4470, %v4491
      %v4494 = vunpack.c.l.s4 1966171168
      %v4495 = vunpack.c.0.s8 %v4494
      %v4496 = vlaneseq
      %v4497 = vshrl.u32 %v4496, 7
      %v4498 = vsub.s32 %v4495, %v4497
      %v4499 = vrot.slane %v4471, %v4498
      %v4500 = vcombine.high %v4478, %v4478
      %v4501 = vcombine.high %v4485, %v4485
      %v4502 = vcombine.high %v4492, %v4492
      %v4503 = vcombine.high %v4499, %v4499
      %v4504 = vlaneseq
      %v4505 = vshrl.u32 %v4504, 7
      %v4506 = vsub.s32 0, %v4505
      %v4507 = vrot.slane %v4478, %v4506
      %v4508 = vlaneseq
      %v4509 = vshrl.u32 %v4508, 7
      %v4510 = vsub.s32 0, %v4509
      %v4511 = vrot.slane %v4492, %v4510
      %v4512 = vlaneseq
      %v4513 = vshrl.u32 %v4512, 7
      %v4514 = vsub.s32 0, %v4513
      %v4515 = vrot.slane %v4500, %v4514
      %v4516 = vlaneseq
      %v4517 = vshrl.u32 %v4516, 7
      %v4518 = vsub.s32 0, %v4517
      %v4519 = vrot.slane %v4502, %v4518
      %v4520 = vlaneseq
      %v4521 = vshrl.u32 %v4520, 7
      %v4522 = vsub.s32 0, %v4521
      %v4523 = vrot.slane %v4485, %v4522
      %v4524 = vlaneseq
      %v4525 = vshrl.u32 %v4524, 7
      %v4526 = vsub.s32 0, %v4525
      %v4527 = vrot.slane %v4499, %v4526
      %v4528 = vlaneseq
      %v4529 = vshrl.u32 %v4528, 7
      %v4530 = vsub.s32 0, %v4529
      %v4531 = vrot.slane %v4501, %v4530
      %v4532 = vlaneseq
      %v4533 = vshrl.u32 %v4532, 7
      %v4534 = vsub.s32 0, %v4533
      %v4535 = vrot.slane %v4503, %v4534
      %v4544 = vadd.f32 %v747, %v4507
      %v4545 = vadd.f32 %v769, %v4511
      %v4546 = vadd.f32 %v752, %v4515
      %v4547 = vadd.f32 %v770, %v4519
      %v4548 = vadd.f32 %v757, %v4523
      %v4549 = vadd.f32 %v771, %v4527
      %v4550 = vadd.f32 %v762, %v4531
      %v4551 = vadd.f32 %v772, %v4535
      %v4552 = vtanh.pop %v4544
      %v4553 = vtanh.pop %v4545
      %v4554 = vtanh.pop %v4546
      %v4555 = vtanh.pop %v4547
      %v4556 = vtanh.pop %v4548
      %v4557 = vtanh.pop %v4549
      %v4558 = vtanh.pop %v4550
      %v4559 = vtanh.pop %v4551
      %v4560 = vmul.f32 %v4552, %v999
      %v4561 = vmul.f32 %v4553, %v999
      %v4562 = vmul.f32 %v4554, %v999
      %v4563 = vmul.f32 %v4555, %v999
      %v4564 = vmul.f32 %v4556, %v999
      %v4565 = vmul.f32 %v4557, %v999
      %v4566 = vmul.f32 %v4558, %v999
      %v4567 = vmul.f32 %v4559, %v999
      %v4568 = vsel %vm1009, %v4560, 0.0
      %4569 = vadd.xlane.f32.xlu0 %v4568
      %v4570 = vpop.xlane.xlu0 %4569
      %v4571 = vsel %vm1009, %v4561, 0.0
      %4572 = vadd.xlane.f32.xlu0 %v4571
      %v4573 = vpop.xlane.xlu0 %4572
      %v4574 = vsel %vm1009, %v4562, 0.0
      %4575 = vadd.xlane.f32.xlu0 %v4574
      %v4576 = vpop.xlane.xlu0 %4575
      %v4577 = vsel %vm1009, %v4563, 0.0
      %4578 = vadd.xlane.f32.xlu0 %v4577
      %v4579 = vpop.xlane.xlu0 %4578
      %v4580 = vsel %vm1009, %v4564, 0.0
      %4581 = vadd.xlane.f32.xlu0 %v4580
      %v4582 = vpop.xlane.xlu0 %4581
      %v4583 = vsel %vm1009, %v4565, 0.0
      %4584 = vadd.xlane.f32.xlu0 %v4583
      %v4585 = vpop.xlane.xlu0 %4584
      %v4586 = vsel %vm1009, %v4566, 0.0
      %4587 = vadd.xlane.f32.xlu0 %v4586
      %v4588 = vpop.xlane.xlu0 %4587
      %v4589 = vsel %vm1009, %v4567, 0.0
      %4590 = vadd.xlane.f32.xlu0 %v4589
      %v4591 = vpop.xlane.xlu0 %4590
      %v4600 = vlaneseq
      %v4601 = vshrl.u32 %v4600, 7
      %v4602 = vsub.s32 %v1043, %v4601
      %v4603 = vrot.slane %v4570, %v4602
      %v4604 = vlaneseq
      %v4605 = vshrl.u32 %v4604, 7
      %v4606 = vsub.s32 %v1043, %v4605
      %v4607 = vrot.slane %v4573, %v4606
      %v4608 = vlaneseq
      %v4609 = vshrl.u32 %v4608, 7
      %v4610 = vsub.s32 %v1043, %v4609
      %v4611 = vrot.slane %v4576, %v4610
      %v4612 = vlaneseq
      %v4613 = vshrl.u32 %v4612, 7
      %v4614 = vsub.s32 %v1043, %v4613
      %v4615 = vrot.slane %v4579, %v4614
      %v4616 = vlaneseq
      %v4617 = vshrl.u32 %v4616, 7
      %v4618 = vsub.s32 %v1043, %v4617
      %v4619 = vrot.slane %v4582, %v4618
      %v4620 = vlaneseq
      %v4621 = vshrl.u32 %v4620, 7
      %v4622 = vsub.s32 %v1043, %v4621
      %v4623 = vrot.slane %v4585, %v4622
      %v4624 = vlaneseq
      %v4625 = vshrl.u32 %v4624, 7
      %v4626 = vsub.s32 %v1043, %v4625
      %v4627 = vrot.slane %v4588, %v4626
      %v4628 = vlaneseq
      %v4629 = vshrl.u32 %v4628, 7
      %v4630 = vsub.s32 %v1043, %v4629
      %v4631 = vrot.slane %v4591, %v4630
      %v4632 = vsel %vm1076, %v4607, %v4603
      %v4633 = vsel %vm1078, %v4611, %v4632
      %v4634 = vsel %vm1080, %v4615, %v4633
      %v4635 = vsel %vm1082, %v4619, %v4634
      %v4636 = vsel %vm1084, %v4623, %v4635
      %v4637 = vsel %vm1086, %v4627, %v4636
      %v4638 = vsel %vm1088, %v4631, %v4637
      %v4640 = vsel %vm1091, %v4638, -inf
      %4641 = vmax.xlane.f32.xlu0 %v4640
      %v4642 = vpop.xlane.xlu0 %4641
      %v4644 = vlaneseq
      %v4645 = vshrl.u32 %v4644, 7
      %v4646 = vsub.s32 0, %v4645
      %v4647 = vrot.slane %v4642, %v4646
      %v4648 = vlaneseq
      %v4649 = vshrl.u32 %v4648, 7
      %v4650 = vsub.s32 1, %v4649
      %v4651 = vrot.slane %v4642, %v4650
      %v4652 = vlaneseq
      %v4653 = vshrl.u32 %v4652, 7
      %v4654 = vsub.s32 2, %v4653
      %v4655 = vrot.slane %v4642, %v4654
      %v4656 = vlaneseq
      %v4657 = vshrl.u32 %v4656, 7
      %v4658 = vsub.s32 3, %v4657
      %v4659 = vrot.slane %v4642, %v4658
      %v4660 = vlaneseq
      %v4661 = vshrl.u32 %v4660, 7
      %v4662 = vsub.s32 4, %v4661
      %v4663 = vrot.slane %v4642, %v4662
      %v4664 = vlaneseq
      %v4665 = vshrl.u32 %v4664, 7
      %v4666 = vsub.s32 5, %v4665
      %v4667 = vrot.slane %v4642, %v4666
      %v4668 = vlaneseq
      %v4669 = vshrl.u32 %v4668, 7
      %v4670 = vsub.s32 6, %v4669
      %v4671 = vrot.slane %v4642, %v4670
      %v4672 = vlaneseq
      %v4673 = vshrl.u32 %v4672, 7
      %v4674 = vsub.s32 7, %v4673
      %v4675 = vrot.slane %v4642, %v4674
      %v4684 = vsub.f32 %v4570, %v4647
      %v4685 = vsub.f32 %v4573, %v4651
      %v4686 = vsub.f32 %v4576, %v4655
      %v4687 = vsub.f32 %v4579, %v4659
      %v4688 = vsub.f32 %v4582, %v4663
      %v4689 = vsub.f32 %v4585, %v4667
      %v4690 = vsub.f32 %v4588, %v4671
      %v4691 = vsub.f32 %v4591, %v4675
      %v4692 = vmul.f32 %v4684, 1.442695
      %v4693 = vpow.pop %v4692
      %v4694 = vmul.f32 %v4685, 1.442695
      %v4695 = vpow.pop %v4694
      %v4696 = vmul.f32 %v4686, 1.442695
      %v4697 = vpow.pop %v4696
      %v4698 = vmul.f32 %v4687, 1.442695
      %v4699 = vpow.pop %v4698
      %v4700 = vmul.f32 %v4688, 1.442695
      %v4701 = vpow.pop %v4700
      %v4702 = vmul.f32 %v4689, 1.442695
      %v4703 = vpow.pop %v4702
      %v4704 = vmul.f32 %v4690, 1.442695
      %v4705 = vpow.pop %v4704
      %v4706 = vmul.f32 %v4691, 1.442695
      %v4707 = vpow.pop %v4706
      %4716 = vset.pattern.permute.xlu0 0
      %4717 = vperm.xlu0 %4716, %v4693
      %v4718 = vpop.permute.xlu0 %4717
      %4719 = vset.pattern.permute.xlu0 0
      %4720 = vperm.xlu0 %4719, %v4695
      %v4721 = vpop.permute.xlu0 %4720
      %4722 = vset.pattern.permute.xlu0 0
      %4723 = vperm.xlu0 %4722, %v4697
      %v4724 = vpop.permute.xlu0 %4723
      %4725 = vset.pattern.permute.xlu0 0
      %4726 = vperm.xlu0 %4725, %v4699
      %v4727 = vpop.permute.xlu0 %4726
      %4728 = vset.pattern.permute.xlu0 0
      %4729 = vperm.xlu0 %4728, %v4701
      %v4730 = vpop.permute.xlu0 %4729
      %4731 = vset.pattern.permute.xlu0 0
      %4732 = vperm.xlu0 %4731, %v4703
      %v4733 = vpop.permute.xlu0 %4732
      %4734 = vset.pattern.permute.xlu0 0
      %4735 = vperm.xlu0 %4734, %v4705
      %v4736 = vpop.permute.xlu0 %4735
      %4737 = vset.pattern.permute.xlu0 0
      %4738 = vperm.xlu0 %4737, %v4707
      %v4739 = vpop.permute.xlu0 %4738
      %v4740 = vlaneseq
      %v4741 = vshrl.u32 %v4740, 7
      %v4742 = vsub.s32 %v1043, %v4741
      %v4743 = vrot.slane %v4718, %v4742
      %v4744 = vlaneseq
      %v4745 = vshrl.u32 %v4744, 7
      %v4746 = vsub.s32 %v1043, %v4745
      %v4747 = vrot.slane %v4721, %v4746
      %v4748 = vlaneseq
      %v4749 = vshrl.u32 %v4748, 7
      %v4750 = vsub.s32 %v1043, %v4749
      %v4751 = vrot.slane %v4724, %v4750
      %v4752 = vlaneseq
      %v4753 = vshrl.u32 %v4752, 7
      %v4754 = vsub.s32 %v1043, %v4753
      %v4755 = vrot.slane %v4727, %v4754
      %v4756 = vlaneseq
      %v4757 = vshrl.u32 %v4756, 7
      %v4758 = vsub.s32 %v1043, %v4757
      %v4759 = vrot.slane %v4730, %v4758
      %v4760 = vlaneseq
      %v4761 = vshrl.u32 %v4760, 7
      %v4762 = vsub.s32 %v1043, %v4761
      %v4763 = vrot.slane %v4733, %v4762
      %v4764 = vlaneseq
      %v4765 = vshrl.u32 %v4764, 7
      %v4766 = vsub.s32 %v1043, %v4765
      %v4767 = vrot.slane %v4736, %v4766
      %v4768 = vlaneseq
      %v4769 = vshrl.u32 %v4768, 7
      %v4770 = vsub.s32 %v1043, %v4769
      %v4771 = vrot.slane %v4739, %v4770
      %v4772 = vsel %vm1076, %v4747, %v4743
      %v4773 = vsel %vm1078, %v4751, %v4772
      %v4774 = vsel %vm1080, %v4755, %v4773
      %v4775 = vsel %vm1082, %v4759, %v4774
      %v4776 = vsel %vm1084, %v4763, %v4775
      %v4777 = vsel %vm1086, %v4767, %v4776
      %v4778 = vsel %vm1088, %v4771, %v4777
      %v4780 = vsel %vm1091, %v4778, 0.0
      %4781 = vadd.xlane.f32.xlu0 %v4780
      %v4782 = vpop.xlane.xlu0 %4781
      %v4783 = vrcp.pop %v4782
      %v4785 = vlaneseq
      %v4786 = vshrl.u32 %v4785, 7
      %v4787 = vsub.s32 0, %v4786
      %v4788 = vrot.slane %v4783, %v4787
      %v4789 = vlaneseq
      %v4790 = vshrl.u32 %v4789, 7
      %v4791 = vsub.s32 1, %v4790
      %v4792 = vrot.slane %v4783, %v4791
      %v4793 = vlaneseq
      %v4794 = vshrl.u32 %v4793, 7
      %v4795 = vsub.s32 2, %v4794
      %v4796 = vrot.slane %v4783, %v4795
      %v4797 = vlaneseq
      %v4798 = vshrl.u32 %v4797, 7
      %v4799 = vsub.s32 3, %v4798
      %v4800 = vrot.slane %v4783, %v4799
      %v4801 = vlaneseq
      %v4802 = vshrl.u32 %v4801, 7
      %v4803 = vsub.s32 4, %v4802
      %v4804 = vrot.slane %v4783, %v4803
      %v4805 = vlaneseq
      %v4806 = vshrl.u32 %v4805, 7
      %v4807 = vsub.s32 5, %v4806
      %v4808 = vrot.slane %v4783, %v4807
      %v4809 = vlaneseq
      %v4810 = vshrl.u32 %v4809, 7
      %v4811 = vsub.s32 6, %v4810
      %v4812 = vrot.slane %v4783, %v4811
      %v4813 = vlaneseq
      %v4814 = vshrl.u32 %v4813, 7
      %v4815 = vsub.s32 7, %v4814
      %v4816 = vrot.slane %v4783, %v4815
      %v4825 = vmul.f32 %v4693, %v4788
      %v4826 = vmul.f32 %v4695, %v4792
      %v4827 = vmul.f32 %v4697, %v4796
      %v4828 = vmul.f32 %v4699, %v4800
      %v4829 = vmul.f32 %v4701, %v4804
      %v4830 = vmul.f32 %v4703, %v4808
      %v4831 = vmul.f32 %v4705, %v4812
      %v4832 = vmul.f32 %v4707, %v4816
      %v4833 = vlaneseq
      %v4834 = vshrl.u32 %v4833, 7
      %v4835 = vsub.s32 4, %v4834
      %v4836 = vrot.slane %v777, %v4835
      %4838 = vbcast.lane.b32.xlu0 %v4836, 256
      %v4839 = vpop.permute.xlu0 %4838
      %v4840 = vlaneseq
      %v4841 = vshrl.u32 %v4840, 7
      %v4842 = vsub.s32 4, %v4841
      %v4843 = vrot.slane %v778, %v4842
      %4845 = vbcast.lane.b32.xlu0 %v4843, 256
      %v4846 = vpop.permute.xlu0 %4845
      %v4847 = vlaneseq
      %v4848 = vshrl.u32 %v4847, 7
      %v4849 = vsub.s32 4, %v4848
      %v4850 = vrot.slane %v779, %v4849
      %4852 = vbcast.lane.b32.xlu0 %v4850, 256
      %v4853 = vpop.permute.xlu0 %4852
      %v4854 = vlaneseq
      %v4855 = vshrl.u32 %v4854, 7
      %v4856 = vsub.s32 4, %v4855
      %v4857 = vrot.slane %v780, %v4856
      %4859 = vbcast.lane.b32.xlu0 %v4857, 256
      %v4860 = vpop.permute.xlu0 %4859
      %v4861 = vlaneseq
      %v4862 = vshrl.u32 %v4861, 7
      %v4863 = vsub.s32 4, %v4862
      %v4864 = vrot.slane %v781, %v4863
      %4866 = vbcast.lane.b32.xlu0 %v4864, 256
      %v4867 = vpop.permute.xlu0 %4866
      %v4868 = vlaneseq
      %v4869 = vshrl.u32 %v4868, 7
      %v4870 = vsub.s32 4, %v4869
      %v4871 = vrot.slane %v782, %v4870
      %4873 = vbcast.lane.b32.xlu0 %v4871, 256
      %v4874 = vpop.permute.xlu0 %4873
      %v4875 = vlaneseq
      %v4876 = vshrl.u32 %v4875, 7
      %v4877 = vsub.s32 4, %v4876
      %v4878 = vrot.slane %v783, %v4877
      %4880 = vbcast.lane.b32.xlu0 %v4878, 256
      %v4881 = vpop.permute.xlu0 %4880
      %v4882 = vlaneseq
      %v4883 = vshrl.u32 %v4882, 7
      %v4884 = vsub.s32 4, %v4883
      %v4885 = vrot.slane %v784, %v4884
      %4887 = vbcast.lane.b32.xlu0 %v4885, 256
      %v4888 = vpop.permute.xlu0 %4887
      %v4897 = vmul.f32 %v4825, %v4839
      %v4898 = vmul.f32 %v4826, %v4846
      %v4899 = vmul.f32 %v4827, %v4853
      %v4900 = vmul.f32 %v4828, %v4860
      %v4901 = vmul.f32 %v4829, %v4867
      %v4902 = vmul.f32 %v4830, %v4874
      %v4903 = vmul.f32 %v4831, %v4881
      %v4904 = vmul.f32 %v4832, %v4888
      %v4905 = vsel %vm807, %v4378, 0
      %4907 = vmatprep.subr.mxu0 0.0
      %4908 = vmatpush1.msra.mxu0 %v796
      %4909 = vmatprep.subr.mxu0 0.0
      %4910 = vmatpush1.msra.mxu0 %v797
      %4911 = vmatprep.subr.mxu0 0.0
      %4912 = vmatpush1.msra.mxu0 %v798
      %4913 = vmatprep.subr.mxu0 0.0
      %4914 = vmatpush1.msra.mxu0 %v799
      %4915 = vmatprep.subr.mxu0 0.0
      %4916 = vmatpush1.msra.mxu0 0.0
      %4917 = vmatprep.subr.mxu0 0.0
      %4918 = vmatpush1.msra.mxu0 0.0
      %4919 = vmatprep.subr.mxu0 0.0
      %4920 = vmatpush1.msra.mxu0 0.0
      %4921 = vmatprep.subr.mxu0 0.0
      %4922 = vmatpush1.msra.mxu0 0.0
      %4923 = vmatprep.subr.mxu0 0.0
      %4924 = vmatpush1.msra.mxu0 0.0
      %4925 = vmatprep.subr.mxu0 0.0
      %4926 = vmatpush1.msra.mxu0 0.0
      %4927 = vmatprep.subr.mxu0 0.0
      %4928 = vmatpush1.msra.mxu0 0.0
      %4929 = vmatprep.subr.mxu0 0.0
      %4930 = vmatpush1.msra.mxu0 0.0
      %4931 = vmatprep.subr.mxu0 0.0
      %4932 = vmatpush1.msra.mxu0 0.0
      %4933 = vmatprep.subr.mxu0 0.0
      %4934 = vmatpush1.msra.mxu0 0.0
      %4935 = vmatprep.subr.mxu0 0.0
      %4936 = vmatpush1.msra.mxu0 0.0
      %4937 = vmatprep.subr.mxu0 0.0
      %4938 = vmatpush1.msra.mxu0 0.0
      %4939 = vmatprep.subr.mxu0 0.0
      %4940 = vmatpush1.msra.mxu0 0.0
      %4941 = vmatprep.subr.mxu0 0.0
      %4942 = vmatpush1.msra.mxu0 0.0
      %4943 = vmatprep.subr.mxu0 0.0
      %4944 = vmatpush1.msra.mxu0 0.0
      %4945 = vmatprep.subr.mxu0 0.0
      %4946 = vmatpush1.msra.mxu0 0.0
      %4947 = vmatprep.subr.mxu0 0.0
      %4948 = vmatpush1.msra.mxu0 0.0
      %4949 = vmatprep.subr.mxu0 0.0
      %4950 = vmatpush1.msra.mxu0 0.0
      %4951 = vmatprep.subr.mxu0 0.0
      %4952 = vmatpush1.msra.mxu0 0.0
      %4953 = vmatprep.subr.mxu0 0.0
      %4954 = vmatpush1.msra.mxu0 0.0
      %4955 = vmatprep.subr.mxu0 0.0
      %4956 = vmatpush1.msra.mxu0 0.0
      %4957 = vmatprep.subr.mxu0 0.0
      %4958 = vmatpush1.msra.mxu0 0.0
      %4959 = vmatprep.subr.mxu0 0.0
      %4960 = vmatpush1.msra.mxu0 0.0
      %4961 = vmatprep.subr.mxu0 0.0
      %4962 = vmatpush1.msra.mxu0 0.0
      %4963 = vmatprep.subr.mxu0 0.0
      %4964 = vmatpush1.msra.mxu0 0.0
      %4965 = vmatprep.subr.mxu0 0.0
      %4966 = vmatpush1.msra.mxu0 0.0
      %4967 = vmatprep.subr.mxu0 0.0
      %4968 = vmatpush1.msra.mxu0 0.0
      %4969 = vmatprep.subr.mxu0 0.0
      %4970 = vmatpush1.msra.mxu0 0.0
      %4971 = vmatprep.mubr.f32.mxu0 0.0
      %4972 = vmatmul.mubr.f32.gmra.mrb[0].mxu0 %v4905
      %v4973 = vpop.f32.mrb[0].mxu0
      %v4974 = vadd.f32 0.0, %v4973
      %v4975 = vpop.f32.mrb[0].mxu0
      %4976 = vdwg.mxu0
      %4985 = vset.pattern.permute.xlu0 0
      %4986 = vperm.xlu0 %4985, %v4897
      %v4987 = vpop.permute.xlu0 %4986
      %4988 = vset.pattern.permute.xlu0 0
      %4989 = vperm.xlu0 %4988, %v4898
      %v4990 = vpop.permute.xlu0 %4989
      %4991 = vset.pattern.permute.xlu0 0
      %4992 = vperm.xlu0 %4991, %v4899
      %v4993 = vpop.permute.xlu0 %4992
      %4994 = vset.pattern.permute.xlu0 0
      %4995 = vperm.xlu0 %4994, %v4900
      %v4996 = vpop.permute.xlu0 %4995
      %4997 = vset.pattern.permute.xlu0 0
      %4998 = vperm.xlu0 %4997, %v4901
      %v4999 = vpop.permute.xlu0 %4998
      %5000 = vset.pattern.permute.xlu0 0
      %5001 = vperm.xlu0 %5000, %v4902
      %v5002 = vpop.permute.xlu0 %5001
      %5003 = vset.pattern.permute.xlu0 0
      %5004 = vperm.xlu0 %5003, %v4903
      %v5005 = vpop.permute.xlu0 %5004
      %5006 = vset.pattern.permute.xlu0 0
      %5007 = vperm.xlu0 %5006, %v4904
      %v5008 = vpop.permute.xlu0 %5007
      %v5009 = vlaneseq
      %v5010 = vshrl.u32 %v5009, 7
      %v5011 = vsub.s32 %v1043, %v5010
      %v5012 = vrot.slane %v4987, %v5011
      %v5013 = vlaneseq
      %v5014 = vshrl.u32 %v5013, 7
      %v5015 = vsub.s32 %v1043, %v5014
      %v5016 = vrot.slane %v4990, %v5015
      %v5017 = vlaneseq
      %v5018 = vshrl.u32 %v5017, 7
      %v5019 = vsub.s32 %v1043, %v5018
      %v5020 = vrot.slane %v4993, %v5019
      %v5021 = vlaneseq
      %v5022 = vshrl.u32 %v5021, 7
      %v5023 = vsub.s32 %v1043, %v5022
      %v5024 = vrot.slane %v4996, %v5023
      %v5025 = vlaneseq
      %v5026 = vshrl.u32 %v5025, 7
      %v5027 = vsub.s32 %v1043, %v5026
      %v5028 = vrot.slane %v4999, %v5027
      %v5029 = vlaneseq
      %v5030 = vshrl.u32 %v5029, 7
      %v5031 = vsub.s32 %v1043, %v5030
      %v5032 = vrot.slane %v5002, %v5031
      %v5033 = vlaneseq
      %v5034 = vshrl.u32 %v5033, 7
      %v5035 = vsub.s32 %v1043, %v5034
      %v5036 = vrot.slane %v5005, %v5035
      %v5037 = vlaneseq
      %v5038 = vshrl.u32 %v5037, 7
      %v5039 = vsub.s32 %v1043, %v5038
      %v5040 = vrot.slane %v5008, %v5039
      %v5041 = vsel %vm1076, %v5016, %v5012
      %v5042 = vsel %vm1078, %v5020, %v5041
      %v5043 = vsel %vm1080, %v5024, %v5042
      %v5044 = vsel %vm1082, %v5028, %v5043
      %v5045 = vsel %vm1084, %v5032, %v5044
      %v5046 = vsel %vm1086, %v5036, %v5045
      %v5047 = vsel %vm1088, %v5040, %v5046
      %v5048 = vsel %vm1091, %v5047, 0
      %5050 = vmatprep.subr.mxu0 0.0
      %5051 = vmatpush1.msra.mxu0 %v1513
      %5052 = vmatprep.subr.mxu0 0.0
      %5053 = vmatpush1.msra.mxu0 0.0
      %5054 = vmatprep.subr.mxu0 0.0
      %5055 = vmatpush1.msra.mxu0 0.0
      %5056 = vmatprep.subr.mxu0 0.0
      %5057 = vmatpush1.msra.mxu0 0.0
      %5058 = vmatprep.subr.mxu0 0.0
      %5059 = vmatpush1.msra.mxu0 0.0
      %5060 = vmatprep.subr.mxu0 0.0
      %5061 = vmatpush1.msra.mxu0 0.0
      %5062 = vmatprep.subr.mxu0 0.0
      %5063 = vmatpush1.msra.mxu0 0.0
      %5064 = vmatprep.subr.mxu0 0.0
      %5065 = vmatpush1.msra.mxu0 0.0
      %5066 = vmatprep.subr.mxu0 0.0
      %5067 = vmatpush1.msra.mxu0 0.0
      %5068 = vmatprep.subr.mxu0 0.0
      %5069 = vmatpush1.msra.mxu0 0.0
      %5070 = vmatprep.subr.mxu0 0.0
      %5071 = vmatpush1.msra.mxu0 0.0
      %5072 = vmatprep.subr.mxu0 0.0
      %5073 = vmatpush1.msra.mxu0 0.0
      %5074 = vmatprep.subr.mxu0 0.0
      %5075 = vmatpush1.msra.mxu0 0.0
      %5076 = vmatprep.subr.mxu0 0.0
      %5077 = vmatpush1.msra.mxu0 0.0
      %5078 = vmatprep.subr.mxu0 0.0
      %5079 = vmatpush1.msra.mxu0 0.0
      %5080 = vmatprep.subr.mxu0 0.0
      %5081 = vmatpush1.msra.mxu0 0.0
      %5082 = vmatprep.subr.mxu0 0.0
      %5083 = vmatpush1.msra.mxu0 0.0
      %5084 = vmatprep.subr.mxu0 0.0
      %5085 = vmatpush1.msra.mxu0 0.0
      %5086 = vmatprep.subr.mxu0 0.0
      %5087 = vmatpush1.msra.mxu0 0.0
      %5088 = vmatprep.subr.mxu0 0.0
      %5089 = vmatpush1.msra.mxu0 0.0
      %5090 = vmatprep.subr.mxu0 0.0
      %5091 = vmatpush1.msra.mxu0 0.0
      %5092 = vmatprep.subr.mxu0 0.0
      %5093 = vmatpush1.msra.mxu0 0.0
      %5094 = vmatprep.subr.mxu0 0.0
      %5095 = vmatpush1.msra.mxu0 0.0
      %5096 = vmatprep.subr.mxu0 0.0
      %5097 = vmatpush1.msra.mxu0 0.0
      %5098 = vmatprep.subr.mxu0 0.0
      %5099 = vmatpush1.msra.mxu0 0.0
      %5100 = vmatprep.subr.mxu0 0.0
      %5101 = vmatpush1.msra.mxu0 0.0
      %5102 = vmatprep.subr.mxu0 0.0
      %5103 = vmatpush1.msra.mxu0 0.0
      %5104 = vmatprep.subr.mxu0 0.0
      %5105 = vmatpush1.msra.mxu0 0.0
      %5106 = vmatprep.subr.mxu0 0.0
      %5107 = vmatpush1.msra.mxu0 0.0
      %5108 = vmatprep.subr.mxu0 0.0
      %5109 = vmatpush1.msra.mxu0 0.0
      %5110 = vmatprep.subr.mxu0 0.0
      %5111 = vmatpush1.msra.mxu0 0.0
      %5112 = vmatprep.subr.mxu0 0.0
      %5113 = vmatpush1.msra.mxu0 0.0
      %5114 = vmatprep.mubr.f32.mxu0 0.0
      %5115 = vmatmul.mubr.f32.gmra.mrb[0].mxu0 %v5048
      %v5116 = vpop.f32.mrb[0].mxu0
      %v5117 = vadd.f32 %v4974, %v5116
      %v5118 = vpop.f32.mrb[0].mxu0
      %5119 = vdwg.mxu0
      %v5120 = vadd.f32 %v5117, %v1589
      %v5121 = vxor.u32 %v5120, 2147483648
      %v5122 = vmul.f32 %v5121, 1.442695
      %v5123 = vpow.pop %v5122
      %v5124 = vadd.f32 %v5123, 1.0
      %v5125 = vrcp.pop %v5124
      %v5126 = vmul.f32 1.0, %v5125
      %v5127 = vtanh.pop %v5120
      %v5128 = vmul.f32 %v5126, %v4256
      %5130 = vrot.lane.b32.xlu0 %v5127, 64
      %v5131 = vpop.permute.xlu0 %5130
      %v5133 = vmul.f32 %v5126, %v5131
      %5135 = vrot.lane.b32.xlu0 %v5133, 32
      %v5136 = vpop.permute.xlu0 %5135
      %v5138 = vadd.f32 %v5128, %v5136
      %v5139 = vtanh.pop %v5138
      %5141 = vrot.lane.b32.xlu0 %v5139, 64
      %v5142 = vpop.permute.xlu0 %5141
      %v5144 = vmul.f32 %v5126, %v5142
      %v5146 = vcombine.high %v5144, %v5144
      %v5148 = vunpack.c.l.s4 1966171168
      %v5149 = vunpack.c.0.s8 %v5148
      %v5150 = vlaneseq
      %v5151 = vshrl.u32 %v5150, 7
      %v5152 = vsub.s32 %v5149, %v5151
      %v5153 = vrot.slane %v5144, %v5152
      %v5155 = vunpack.c.l.s4 1966171168
      %v5156 = vunpack.c.0.s8 %v5155
      %v5157 = vlaneseq
      %v5158 = vshrl.u32 %v5157, 7
      %v5159 = vsub.s32 %v5156, %v5158
      %v5160 = vrot.slane %v5146, %v5159
      %v5161 = vcombine.high %v5153, %v5153
      %v5162 = vcombine.high %v5160, %v5160
      %v5164 = vunpack.c.l.s4 1966171168
      %v5165 = vunpack.c.0.s8 %v5164
      %v5166 = vlaneseq
      %v5167 = vshrl.u32 %v5166, 7
      %v5168 = vsub.s32 %v5165, %v5167
      %v5169 = vrot.slane %v5153, %v5168
      %v5171 = vunpack.c.l.s4 1966171168
      %v5172 = vunpack.c.0.s8 %v5171
      %v5173 = vlaneseq
      %v5174 = vshrl.u32 %v5173, 7
      %v5175 = vsub.s32 %v5172, %v5174
      %v5176 = vrot.slane %v5160, %v5175
      %v5178 = vunpack.c.l.s4 1966171168
      %v5179 = vunpack.c.0.s8 %v5178
      %v5180 = vlaneseq
      %v5181 = vshrl.u32 %v5180, 7
      %v5182 = vsub.s32 %v5179, %v5181
      %v5183 = vrot.slane %v5161, %v5182
      %v5185 = vunpack.c.l.s4 1966171168
      %v5186 = vunpack.c.0.s8 %v5185
      %v5187 = vlaneseq
      %v5188 = vshrl.u32 %v5187, 7
      %v5189 = vsub.s32 %v5186, %v5188
      %v5190 = vrot.slane %v5162, %v5189
      %v5191 = vcombine.high %v5169, %v5169
      %v5192 = vcombine.high %v5176, %v5176
      %v5193 = vcombine.high %v5183, %v5183
      %v5194 = vcombine.high %v5190, %v5190
      %v5195 = vlaneseq
      %v5196 = vshrl.u32 %v5195, 7
      %v5197 = vsub.s32 0, %v5196
      %v5198 = vrot.slane %v5169, %v5197
      %v5199 = vlaneseq
      %v5200 = vshrl.u32 %v5199, 7
      %v5201 = vsub.s32 0, %v5200
      %v5202 = vrot.slane %v5183, %v5201
      %v5203 = vlaneseq
      %v5204 = vshrl.u32 %v5203, 7
      %v5205 = vsub.s32 0, %v5204
      %v5206 = vrot.slane %v5191, %v5205
      %v5207 = vlaneseq
      %v5208 = vshrl.u32 %v5207, 7
      %v5209 = vsub.s32 0, %v5208
      %v5210 = vrot.slane %v5193, %v5209
      %v5211 = vlaneseq
      %v5212 = vshrl.u32 %v5211, 7
      %v5213 = vsub.s32 0, %v5212
      %v5214 = vrot.slane %v5176, %v5213
      %v5215 = vlaneseq
      %v5216 = vshrl.u32 %v5215, 7
      %v5217 = vsub.s32 0, %v5216
      %v5218 = vrot.slane %v5190, %v5217
      %v5219 = vlaneseq
      %v5220 = vshrl.u32 %v5219, 7
      %v5221 = vsub.s32 0, %v5220
      %v5222 = vrot.slane %v5192, %v5221
      %v5223 = vlaneseq
      %v5224 = vshrl.u32 %v5223, 7
      %v5225 = vsub.s32 0, %v5224
      %v5226 = vrot.slane %v5194, %v5225
      %5227 = vrot.lane.b32.xlu0 %v5198, 32
      %v5228 = vpop.permute.xlu0 %5227
      %5229 = vrot.lane.b32.xlu0 %v5202, 32
      %v5230 = vpop.permute.xlu0 %5229
      %5231 = vrot.lane.b32.xlu0 %v5206, 32
      %v5232 = vpop.permute.xlu0 %5231
      %5233 = vrot.lane.b32.xlu0 %v5210, 32
      %v5234 = vpop.permute.xlu0 %5233
      %5235 = vrot.lane.b32.xlu0 %v5214, 32
      %v5236 = vpop.permute.xlu0 %5235
      %5237 = vrot.lane.b32.xlu0 %v5218, 32
      %v5238 = vpop.permute.xlu0 %5237
      %5239 = vrot.lane.b32.xlu0 %v5222, 32
      %v5240 = vpop.permute.xlu0 %5239
      %5241 = vrot.lane.b32.xlu0 %v5226, 32
      %v5242 = vpop.permute.xlu0 %5241
      %5251 = vst.msk [vmem:[#allocation2 + $0x4] sm:$0x1] %vm1722, %v5228
      %5252 = vst.msk [vmem:[#allocation2 + $0xc] sm:$0x1] %vm1722, %v5230
      %5253 = vst.msk [vmem:[#allocation2 + $0x14] sm:$0x1] %vm1722, %v5232
      %5254 = vst.msk [vmem:[#allocation2 + $0x1c] sm:$0x1] %vm1722, %v5234
      %5255 = vst.msk [vmem:[#allocation2 + $0x24] sm:$0x1] %vm1722, %v5236
      %5256 = vst.msk [vmem:[#allocation2 + $0x2c] sm:$0x1] %vm1722, %v5238
      %5257 = vst.msk [vmem:[#allocation2 + $0x34] sm:$0x1] %vm1722, %v5240
      %5258 = vst.msk [vmem:[#allocation2 + $0x3c] sm:$0x1] %vm1722, %v5242
      %5259 = vrot.lane.b32.xlu0 %v5144, 32
      %v5260 = vpop.permute.xlu0 %5259
      %v5262 = vsel %vm807, %v5260, %v5138
      %v5264 = vsel %vm815, %v5262, 0
      %5266 = vmatprep.subr.mxu0 0.0
      %5267 = vmatpush1.msra.mxu0 %v785
      %5268 = vmatprep.subr.mxu0 0.0
      %5269 = vmatpush1.msra.mxu0 %v786
      %5270 = vmatprep.subr.mxu0 0.0
      %5271 = vmatpush1.msra.mxu0 %v787
      %5272 = vmatprep.subr.mxu0 0.0
      %5273 = vmatpush1.msra.mxu0 %v788
      %5274 = vmatprep.subr.mxu0 0.0
      %5275 = vmatpush1.msra.mxu0 %v789
      %5276 = vmatprep.subr.mxu0 0.0
      %5277 = vmatpush1.msra.mxu0 %v790
      %5278 = vmatprep.subr.mxu0 0.0
      %5279 = vmatpush1.msra.mxu0 %v791
      %5280 = vmatprep.subr.mxu0 0.0
      %5281 = vmatpush1.msra.mxu0 %v792
      %5282 = vmatprep.subr.mxu0 0.0
      %5283 = vmatpush1.msra.mxu0 0.0
      %5284 = vmatprep.subr.mxu0 0.0
      %5285 = vmatpush1.msra.mxu0 0.0
      %5286 = vmatprep.subr.mxu0 0.0
      %5287 = vmatpush1.msra.mxu0 0.0
      %5288 = vmatprep.subr.mxu0 0.0
      %5289 = vmatpush1.msra.mxu0 0.0
      %5290 = vmatprep.subr.mxu0 0.0
      %5291 = vmatpush1.msra.mxu0 0.0
      %5292 = vmatprep.subr.mxu0 0.0
      %5293 = vmatpush1.msra.mxu0 0.0
      %5294 = vmatprep.subr.mxu0 0.0
      %5295 = vmatpush1.msra.mxu0 0.0
      %5296 = vmatprep.subr.mxu0 0.0
      %5297 = vmatpush1.msra.mxu0 0.0
      %5298 = vmatprep.subr.mxu0 0.0
      %5299 = vmatpush1.msra.mxu0 0.0
      %5300 = vmatprep.subr.mxu0 0.0
      %5301 = vmatpush1.msra.mxu0 0.0
      %5302 = vmatprep.subr.mxu0 0.0
      %5303 = vmatpush1.msra.mxu0 0.0
      %5304 = vmatprep.subr.mxu0 0.0
      %5305 = vmatpush1.msra.mxu0 0.0
      %5306 = vmatprep.subr.mxu0 0.0
      %5307 = vmatpush1.msra.mxu0 0.0
      %5308 = vmatprep.subr.mxu0 0.0
      %5309 = vmatpush1.msra.mxu0 0.0
      %5310 = vmatprep.subr.mxu0 0.0
      %5311 = vmatpush1.msra.mxu0 0.0
      %5312 = vmatprep.subr.mxu0 0.0
      %5313 = vmatpush1.msra.mxu0 0.0
      %5314 = vmatprep.subr.mxu0 0.0
      %5315 = vmatpush1.msra.mxu0 0.0
      %5316 = vmatprep.subr.mxu0 0.0
      %5317 = vmatpush1.msra.mxu0 0.0
      %5318 = vmatprep.subr.mxu0 0.0
      %5319 = vmatpush1.msra.mxu0 0.0
      %5320 = vmatprep.subr.mxu0 0.0
      %5321 = vmatpush1.msra.mxu0 0.0
      %5322 = vmatprep.subr.mxu0 0.0
      %5323 = vmatpush1.msra.mxu0 0.0
      %5324 = vmatprep.subr.mxu0 0.0
      %5325 = vmatpush1.msra.mxu0 0.0
      %5326 = vmatprep.subr.mxu0 0.0
      %5327 = vmatpush1.msra.mxu0 0.0
      %5328 = vmatprep.subr.mxu0 0.0
      %5329 = vmatpush1.msra.mxu0 0.0
      %5330 = vmatprep.mubr.f32.mxu0 0.0
      %5331 = vmatmul.mubr.f32.gmra.mrb[0].mxu0 %v5264
      %v5332 = vpop.f32.mrb[0].mxu0
      %v5333 = vadd.f32 %v813, %v5332
      %v5334 = vpop.f32.mrb[0].mxu0
      %5335 = vdwg.mxu0
      %v5337 = vcombine.high %v5333, %v5333
      %v5339 = vunpack.c.l.s4 1966171168
      %v5340 = vunpack.c.0.s8 %v5339
      %v5341 = vlaneseq
      %v5342 = vshrl.u32 %v5341, 7
      %v5343 = vsub.s32 %v5340, %v5342
      %v5344 = vrot.slane %v5333, %v5343
      %v5346 = vunpack.c.l.s4 1966171168
      %v5347 = vunpack.c.0.s8 %v5346
      %v5348 = vlaneseq
      %v5349 = vshrl.u32 %v5348, 7
      %v5350 = vsub.s32 %v5347, %v5349
      %v5351 = vrot.slane %v5337, %v5350
      %v5352 = vcombine.high %v5344, %v5344
      %v5353 = vcombine.high %v5351, %v5351
      %v5355 = vunpack.c.l.s4 1966171168
      %v5356 = vunpack.c.0.s8 %v5355
      %v5357 = vlaneseq
      %v5358 = vshrl.u32 %v5357, 7
      %v5359 = vsub.s32 %v5356, %v5358
      %v5360 = vrot.slane %v5344, %v5359
      %v5362 = vunpack.c.l.s4 1966171168
      %v5363 = vunpack.c.0.s8 %v5362
      %v5364 = vlaneseq
      %v5365 = vshrl.u32 %v5364, 7
      %v5366 = vsub.s32 %v5363, %v5365
      %v5367 = vrot.slane %v5351, %v5366
      %v5369 = vunpack.c.l.s4 1966171168
      %v5370 = vunpack.c.0.s8 %v5369
      %v5371 = vlaneseq
      %v5372 = vshrl.u32 %v5371, 7
      %v5373 = vsub.s32 %v5370, %v5372
      %v5374 = vrot.slane %v5352, %v5373
      %v5376 = vunpack.c.l.s4 1966171168
      %v5377 = vunpack.c.0.s8 %v5376
      %v5378 = vlaneseq
      %v5379 = vshrl.u32 %v5378, 7
      %v5380 = vsub.s32 %v5377, %v5379
      %v5381 = vrot.slane %v5353, %v5380
      %v5382 = vcombine.high %v5360, %v5360
      %v5383 = vcombine.high %v5367, %v5367
      %v5384 = vcombine.high %v5374, %v5374
      %v5385 = vcombine.high %v5381, %v5381
      %v5386 = vlaneseq
      %v5387 = vshrl.u32 %v5386, 7
      %v5388 = vsub.s32 0, %v5387
      %v5389 = vrot.slane %v5360, %v5388
      %v5390 = vlaneseq
      %v5391 = vshrl.u32 %v5390, 7
      %v5392 = vsub.s32 0, %v5391
      %v5393 = vrot.slane %v5374, %v5392
      %v5394 = vlaneseq
      %v5395 = vshrl.u32 %v5394, 7
      %v5396 = vsub.s32 0, %v5395
      %v5397 = vrot.slane %v5382, %v5396
      %v5398 = vlaneseq
      %v5399 = vshrl.u32 %v5398, 7
      %v5400 = vsub.s32 0, %v5399
      %v5401 = vrot.slane %v5384, %v5400
      %v5402 = vlaneseq
      %v5403 = vshrl.u32 %v5402, 7
      %v5404 = vsub.s32 0, %v5403
      %v5405 = vrot.slane %v5367, %v5404
      %v5406 = vlaneseq
      %v5407 = vshrl.u32 %v5406, 7
      %v5408 = vsub.s32 0, %v5407
      %v5409 = vrot.slane %v5381, %v5408
      %v5410 = vlaneseq
      %v5411 = vshrl.u32 %v5410, 7
      %v5412 = vsub.s32 0, %v5411
      %v5413 = vrot.slane %v5383, %v5412
      %v5414 = vlaneseq
      %v5415 = vshrl.u32 %v5414, 7
      %v5416 = vsub.s32 0, %v5415
      %v5417 = vrot.slane %v5385, %v5416
      %v5426 = vadd.f32 %v747, %v5389
      %v5427 = vadd.f32 %v769, %v5393
      %v5428 = vadd.f32 %v752, %v5397
      %v5429 = vadd.f32 %v770, %v5401
      %v5430 = vadd.f32 %v757, %v5405
      %v5431 = vadd.f32 %v771, %v5409
      %v5432 = vadd.f32 %v762, %v5413
      %v5433 = vadd.f32 %v772, %v5417
      %v5434 = vtanh.pop %v5426
      %v5435 = vtanh.pop %v5427
      %v5436 = vtanh.pop %v5428
      %v5437 = vtanh.pop %v5429
      %v5438 = vtanh.pop %v5430
      %v5439 = vtanh.pop %v5431
      %v5440 = vtanh.pop %v5432
      %v5441 = vtanh.pop %v5433
      %v5442 = vmul.f32 %v5434, %v999
      %v5443 = vmul.f32 %v5435, %v999
      %v5444 = vmul.f32 %v5436, %v999
      %v5445 = vmul.f32 %v5437, %v999
      %v5446 = vmul.f32 %v5438, %v999
      %v5447 = vmul.f32 %v5439, %v999
      %v5448 = vmul.f32 %v5440, %v999
      %v5449 = vmul.f32 %v5441, %v999
      %v5450 = vsel %vm1009, %v5442, 0.0
      %5451 = vadd.xlane.f32.xlu0 %v5450
      %v5452 = vpop.xlane.xlu0 %5451
      %v5453 = vsel %vm1009, %v5443, 0.0
      %5454 = vadd.xlane.f32.xlu0 %v5453
      %v5455 = vpop.xlane.xlu0 %5454
      %v5456 = vsel %vm1009, %v5444, 0.0
      %5457 = vadd.xlane.f32.xlu0 %v5456
      %v5458 = vpop.xlane.xlu0 %5457
      %v5459 = vsel %vm1009, %v5445, 0.0
      %5460 = vadd.xlane.f32.xlu0 %v5459
      %v5461 = vpop.xlane.xlu0 %5460
      %v5462 = vsel %vm1009, %v5446, 0.0
      %5463 = vadd.xlane.f32.xlu0 %v5462
      %v5464 = vpop.xlane.xlu0 %5463
      %v5465 = vsel %vm1009, %v5447, 0.0
      %5466 = vadd.xlane.f32.xlu0 %v5465
      %v5467 = vpop.xlane.xlu0 %5466
      %v5468 = vsel %vm1009, %v5448, 0.0
      %5469 = vadd.xlane.f32.xlu0 %v5468
      %v5470 = vpop.xlane.xlu0 %5469
      %v5471 = vsel %vm1009, %v5449, 0.0
      %5472 = vadd.xlane.f32.xlu0 %v5471
      %v5473 = vpop.xlane.xlu0 %5472
      %v5482 = vlaneseq
      %v5483 = vshrl.u32 %v5482, 7
      %v5484 = vsub.s32 %v1043, %v5483
      %v5485 = vrot.slane %v5452, %v5484
      %v5486 = vlaneseq
      %v5487 = vshrl.u32 %v5486, 7
      %v5488 = vsub.s32 %v1043, %v5487
      %v5489 = vrot.slane %v5455, %v5488
      %v5490 = vlaneseq
      %v5491 = vshrl.u32 %v5490, 7
      %v5492 = vsub.s32 %v1043, %v5491
      %v5493 = vrot.slane %v5458, %v5492
      %v5494 = vlaneseq
      %v5495 = vshrl.u32 %v5494, 7
      %v5496 = vsub.s32 %v1043, %v5495
      %v5497 = vrot.slane %v5461, %v5496
      %v5498 = vlaneseq
      %v5499 = vshrl.u32 %v5498, 7
      %v5500 = vsub.s32 %v1043, %v5499
      %v5501 = vrot.slane %v5464, %v5500
      %v5502 = vlaneseq
      %v5503 = vshrl.u32 %v5502, 7
      %v5504 = vsub.s32 %v1043, %v5503
      %v5505 = vrot.slane %v5467, %v5504
      %v5506 = vlaneseq
      %v5507 = vshrl.u32 %v5506, 7
      %v5508 = vsub.s32 %v1043, %v5507
      %v5509 = vrot.slane %v5470, %v5508
      %v5510 = vlaneseq
      %v5511 = vshrl.u32 %v5510, 7
      %v5512 = vsub.s32 %v1043, %v5511
      %v5513 = vrot.slane %v5473, %v5512
      %v5514 = vsel %vm1076, %v5489, %v5485
      %v5515 = vsel %vm1078, %v5493, %v5514
      %v5516 = vsel %vm1080, %v5497, %v5515
      %v5517 = vsel %vm1082, %v5501, %v5516
      %v5518 = vsel %vm1084, %v5505, %v5517
      %v5519 = vsel %vm1086, %v5509, %v5518
      %v5520 = vsel %vm1088, %v5513, %v5519
      %v5522 = vsel %vm1091, %v5520, -inf
      %5523 = vmax.xlane.f32.xlu0 %v5522
      %v5524 = vpop.xlane.xlu0 %5523
      %v5526 = vlaneseq
      %v5527 = vshrl.u32 %v5526, 7
      %v5528 = vsub.s32 0, %v5527
      %v5529 = vrot.slane %v5524, %v5528
      %v5530 = vlaneseq
      %v5531 = vshrl.u32 %v5530, 7
      %v5532 = vsub.s32 1, %v5531
      %v5533 = vrot.slane %v5524, %v5532
      %v5534 = vlaneseq
      %v5535 = vshrl.u32 %v5534, 7
      %v5536 = vsub.s32 2, %v5535
      %v5537 = vrot.slane %v5524, %v5536
      %v5538 = vlaneseq
      %v5539 = vshrl.u32 %v5538, 7
      %v5540 = vsub.s32 3, %v5539
      %v5541 = vrot.slane %v5524, %v5540
      %v5542 = vlaneseq
      %v5543 = vshrl.u32 %v5542, 7
      %v5544 = vsub.s32 4, %v5543
      %v5545 = vrot.slane %v5524, %v5544
      %v5546 = vlaneseq
      %v5547 = vshrl.u32 %v5546, 7
      %v5548 = vsub.s32 5, %v5547
      %v5549 = vrot.slane %v5524, %v5548
      %v5550 = vlaneseq
      %v5551 = vshrl.u32 %v5550, 7
      %v5552 = vsub.s32 6, %v5551
      %v5553 = vrot.slane %v5524, %v5552
      %v5554 = vlaneseq
      %v5555 = vshrl.u32 %v5554, 7
      %v5556 = vsub.s32 7, %v5555
      %v5557 = vrot.slane %v5524, %v5556
      %v5566 = vsub.f32 %v5452, %v5529
      %v5567 = vsub.f32 %v5455, %v5533
      %v5568 = vsub.f32 %v5458, %v5537
      %v5569 = vsub.f32 %v5461, %v5541
      %v5570 = vsub.f32 %v5464, %v5545
      %v5571 = vsub.f32 %v5467, %v5549
      %v5572 = vsub.f32 %v5470, %v5553
      %v5573 = vsub.f32 %v5473, %v5557
      %v5574 = vmul.f32 %v5566, 1.442695
      %v5575 = vpow.pop %v5574
      %v5576 = vmul.f32 %v5567, 1.442695
      %v5577 = vpow.pop %v5576
      %v5578 = vmul.f32 %v5568, 1.442695
      %v5579 = vpow.pop %v5578
      %v5580 = vmul.f32 %v5569, 1.442695
      %v5581 = vpow.pop %v5580
      %v5582 = vmul.f32 %v5570, 1.442695
      %v5583 = vpow.pop %v5582
      %v5584 = vmul.f32 %v5571, 1.442695
      %v5585 = vpow.pop %v5584
      %v5586 = vmul.f32 %v5572, 1.442695
      %v5587 = vpow.pop %v5586
      %v5588 = vmul.f32 %v5573, 1.442695
      %v5589 = vpow.pop %v5588
      %5598 = vset.pattern.permute.xlu0 0
      %5599 = vperm.xlu0 %5598, %v5575
      %v5600 = vpop.permute.xlu0 %5599
      %5601 = vset.pattern.permute.xlu0 0
      %5602 = vperm.xlu0 %5601, %v5577
      %v5603 = vpop.permute.xlu0 %5602
      %5604 = vset.pattern.permute.xlu0 0
      %5605 = vperm.xlu0 %5604, %v5579
      %v5606 = vpop.permute.xlu0 %5605
      %5607 = vset.pattern.permute.xlu0 0
      %5608 = vperm.xlu0 %5607, %v5581
      %v5609 = vpop.permute.xlu0 %5608
      %5610 = vset.pattern.permute.xlu0 0
      %5611 = vperm.xlu0 %5610, %v5583
      %v5612 = vpop.permute.xlu0 %5611
      %5613 = vset.pattern.permute.xlu0 0
      %5614 = vperm.xlu0 %5613, %v5585
      %v5615 = vpop.permute.xlu0 %5614
      %5616 = vset.pattern.permute.xlu0 0
      %5617 = vperm.xlu0 %5616, %v5587
      %v5618 = vpop.permute.xlu0 %5617
      %5619 = vset.pattern.permute.xlu0 0
      %5620 = vperm.xlu0 %5619, %v5589
      %v5621 = vpop.permute.xlu0 %5620
      %v5622 = vlaneseq
      %v5623 = vshrl.u32 %v5622, 7
      %v5624 = vsub.s32 %v1043, %v5623
      %v5625 = vrot.slane %v5600, %v5624
      %v5626 = vlaneseq
      %v5627 = vshrl.u32 %v5626, 7
      %v5628 = vsub.s32 %v1043, %v5627
      %v5629 = vrot.slane %v5603, %v5628
      %v5630 = vlaneseq
      %v5631 = vshrl.u32 %v5630, 7
      %v5632 = vsub.s32 %v1043, %v5631
      %v5633 = vrot.slane %v5606, %v5632
      %v5634 = vlaneseq
      %v5635 = vshrl.u32 %v5634, 7
      %v5636 = vsub.s32 %v1043, %v5635
      %v5637 = vrot.slane %v5609, %v5636
      %v5638 = vlaneseq
      %v5639 = vshrl.u32 %v5638, 7
      %v5640 = vsub.s32 %v1043, %v5639
      %v5641 = vrot.slane %v5612, %v5640
      %v5642 = vlaneseq
      %v5643 = vshrl.u32 %v5642, 7
      %v5644 = vsub.s32 %v1043, %v5643
      %v5645 = vrot.slane %v5615, %v5644
      %v5646 = vlaneseq
      %v5647 = vshrl.u32 %v5646, 7
      %v5648 = vsub.s32 %v1043, %v5647
      %v5649 = vrot.slane %v5618, %v5648
      %v5650 = vlaneseq
      %v5651 = vshrl.u32 %v5650, 7
      %v5652 = vsub.s32 %v1043, %v5651
      %v5653 = vrot.slane %v5621, %v5652
      %v5654 = vsel %vm1076, %v5629, %v5625
      %v5655 = vsel %vm1078, %v5633, %v5654
      %v5656 = vsel %vm1080, %v5637, %v5655
      %v5657 = vsel %vm1082, %v5641, %v5656
      %v5658 = vsel %vm1084, %v5645, %v5657
      %v5659 = vsel %vm1086, %v5649, %v5658
      %v5660 = vsel %vm1088, %v5653, %v5659
      %v5662 = vsel %vm1091, %v5660, 0.0
      %5663 = vadd.xlane.f32.xlu0 %v5662
      %v5664 = vpop.xlane.xlu0 %5663
      %v5665 = vrcp.pop %v5664
      %v5667 = vlaneseq
      %v5668 = vshrl.u32 %v5667, 7
      %v5669 = vsub.s32 0, %v5668
      %v5670 = vrot.slane %v5665, %v5669
      %v5671 = vlaneseq
      %v5672 = vshrl.u32 %v5671, 7
      %v5673 = vsub.s32 1, %v5672
      %v5674 = vrot.slane %v5665, %v5673
      %v5675 = vlaneseq
      %v5676 = vshrl.u32 %v5675, 7
      %v5677 = vsub.s32 2, %v5676
      %v5678 = vrot.slane %v5665, %v5677
      %v5679 = vlaneseq
      %v5680 = vshrl.u32 %v5679, 7
      %v5681 = vsub.s32 3, %v5680
      %v5682 = vrot.slane %v5665, %v5681
      %v5683 = vlaneseq
      %v5684 = vshrl.u32 %v5683, 7
      %v5685 = vsub.s32 4, %v5684
      %v5686 = vrot.slane %v5665, %v5685
      %v5687 = vlaneseq
      %v5688 = vshrl.u32 %v5687, 7
      %v5689 = vsub.s32 5, %v5688
      %v5690 = vrot.slane %v5665, %v5689
      %v5691 = vlaneseq
      %v5692 = vshrl.u32 %v5691, 7
      %v5693 = vsub.s32 6, %v5692
      %v5694 = vrot.slane %v5665, %v5693
      %v5695 = vlaneseq
      %v5696 = vshrl.u32 %v5695, 7
      %v5697 = vsub.s32 7, %v5696
      %v5698 = vrot.slane %v5665, %v5697
      %v5707 = vmul.f32 %v5575, %v5670
      %v5708 = vmul.f32 %v5577, %v5674
      %v5709 = vmul.f32 %v5579, %v5678
      %v5710 = vmul.f32 %v5581, %v5682
      %v5711 = vmul.f32 %v5583, %v5686
      %v5712 = vmul.f32 %v5585, %v5690
      %v5713 = vmul.f32 %v5587, %v5694
      %v5714 = vmul.f32 %v5589, %v5698
      %v5715 = vlaneseq
      %v5716 = vshrl.u32 %v5715, 7
      %v5717 = vsub.s32 5, %v5716
      %v5718 = vrot.slane %v777, %v5717
      %5720 = vbcast.lane.b32.xlu0 %v5718, 256
      %v5721 = vpop.permute.xlu0 %5720
      %v5722 = vlaneseq
      %v5723 = vshrl.u32 %v5722, 7
      %v5724 = vsub.s32 5, %v5723
      %v5725 = vrot.slane %v778, %v5724
      %5727 = vbcast.lane.b32.xlu0 %v5725, 256
      %v5728 = vpop.permute.xlu0 %5727
      %v5729 = vlaneseq
      %v5730 = vshrl.u32 %v5729, 7
      %v5731 = vsub.s32 5, %v5730
      %v5732 = vrot.slane %v779, %v5731
      %5734 = vbcast.lane.b32.xlu0 %v5732, 256
      %v5735 = vpop.permute.xlu0 %5734
      %v5736 = vlaneseq
      %v5737 = vshrl.u32 %v5736, 7
      %v5738 = vsub.s32 5, %v5737
      %v5739 = vrot.slane %v780, %v5738
      %5741 = vbcast.lane.b32.xlu0 %v5739, 256
      %v5742 = vpop.permute.xlu0 %5741
      %v5743 = vlaneseq
      %v5744 = vshrl.u32 %v5743, 7
      %v5745 = vsub.s32 5, %v5744
      %v5746 = vrot.slane %v781, %v5745
      %5748 = vbcast.lane.b32.xlu0 %v5746, 256
      %v5749 = vpop.permute.xlu0 %5748
      %v5750 = vlaneseq
      %v5751 = vshrl.u32 %v5750, 7
      %v5752 = vsub.s32 5, %v5751
      %v5753 = vrot.slane %v782, %v5752
      %5755 = vbcast.lane.b32.xlu0 %v5753, 256
      %v5756 = vpop.permute.xlu0 %5755
      %v5757 = vlaneseq
      %v5758 = vshrl.u32 %v5757, 7
      %v5759 = vsub.s32 5, %v5758
      %v5760 = vrot.slane %v783, %v5759
      %5762 = vbcast.lane.b32.xlu0 %v5760, 256
      %v5763 = vpop.permute.xlu0 %5762
      %v5764 = vlaneseq
      %v5765 = vshrl.u32 %v5764, 7
      %v5766 = vsub.s32 5, %v5765
      %v5767 = vrot.slane %v784, %v5766
      %5769 = vbcast.lane.b32.xlu0 %v5767, 256
      %v5770 = vpop.permute.xlu0 %5769
      %v5779 = vmul.f32 %v5707, %v5721
      %v5780 = vmul.f32 %v5708, %v5728
      %v5781 = vmul.f32 %v5709, %v5735
      %v5782 = vmul.f32 %v5710, %v5742
      %v5783 = vmul.f32 %v5711, %v5749
      %v5784 = vmul.f32 %v5712, %v5756
      %v5785 = vmul.f32 %v5713, %v5763
      %v5786 = vmul.f32 %v5714, %v5770
      %v5787 = vsel %vm807, %v5260, 0
      %5789 = vmatprep.subr.mxu0 0.0
      %5790 = vmatpush1.msra.mxu0 %v796
      %5791 = vmatprep.subr.mxu0 0.0
      %5792 = vmatpush1.msra.mxu0 %v797
      %5793 = vmatprep.subr.mxu0 0.0
      %5794 = vmatpush1.msra.mxu0 %v798
      %5795 = vmatprep.subr.mxu0 0.0
      %5796 = vmatpush1.msra.mxu0 %v799
      %5797 = vmatprep.subr.mxu0 0.0
      %5798 = vmatpush1.msra.mxu0 0.0
      %5799 = vmatprep.subr.mxu0 0.0
      %5800 = vmatpush1.msra.mxu0 0.0
      %5801 = vmatprep.subr.mxu0 0.0
      %5802 = vmatpush1.msra.mxu0 0.0
      %5803 = vmatprep.subr.mxu0 0.0
      %5804 = vmatpush1.msra.mxu0 0.0
      %5805 = vmatprep.subr.mxu0 0.0
      %5806 = vmatpush1.msra.mxu0 0.0
      %5807 = vmatprep.subr.mxu0 0.0
      %5808 = vmatpush1.msra.mxu0 0.0
      %5809 = vmatprep.subr.mxu0 0.0
      %5810 = vmatpush1.msra.mxu0 0.0
      %5811 = vmatprep.subr.mxu0 0.0
      %5812 = vmatpush1.msra.mxu0 0.0
      %5813 = vmatprep.subr.mxu0 0.0
      %5814 = vmatpush1.msra.mxu0 0.0
      %5815 = vmatprep.subr.mxu0 0.0
      %5816 = vmatpush1.msra.mxu0 0.0
      %5817 = vmatprep.subr.mxu0 0.0
      %5818 = vmatpush1.msra.mxu0 0.0
      %5819 = vmatprep.subr.mxu0 0.0
      %5820 = vmatpush1.msra.mxu0 0.0
      %5821 = vmatprep.subr.mxu0 0.0
      %5822 = vmatpush1.msra.mxu0 0.0
      %5823 = vmatprep.subr.mxu0 0.0
      %5824 = vmatpush1.msra.mxu0 0.0
      %5825 = vmatprep.subr.mxu0 0.0
      %5826 = vmatpush1.msra.mxu0 0.0
      %5827 = vmatprep.subr.mxu0 0.0
      %5828 = vmatpush1.msra.mxu0 0.0
      %5829 = vmatprep.subr.mxu0 0.0
      %5830 = vmatpush1.msra.mxu0 0.0
      %5831 = vmatprep.subr.mxu0 0.0
      %5832 = vmatpush1.msra.mxu0 0.0
      %5833 = vmatprep.subr.mxu0 0.0
      %5834 = vmatpush1.msra.mxu0 0.0
      %5835 = vmatprep.subr.mxu0 0.0
      %5836 = vmatpush1.msra.mxu0 0.0
      %5837 = vmatprep.subr.mxu0 0.0
      %5838 = vmatpush1.msra.mxu0 0.0
      %5839 = vmatprep.subr.mxu0 0.0
      %5840 = vmatpush1.msra.mxu0 0.0
      %5841 = vmatprep.subr.mxu0 0.0
      %5842 = vmatpush1.msra.mxu0 0.0
      %5843 = vmatprep.subr.mxu0 0.0
      %5844 = vmatpush1.msra.mxu0 0.0
      %5845 = vmatprep.subr.mxu0 0.0
      %5846 = vmatpush1.msra.mxu0 0.0
      %5847 = vmatprep.subr.mxu0 0.0
      %5848 = vmatpush1.msra.mxu0 0.0
      %5849 = vmatprep.subr.mxu0 0.0
      %5850 = vmatpush1.msra.mxu0 0.0
      %5851 = vmatprep.subr.mxu0 0.0
      %5852 = vmatpush1.msra.mxu0 0.0
      %5853 = vmatprep.mubr.f32.mxu0 0.0
      %5854 = vmatmul.mubr.f32.gmra.mrb[0].mxu0 %v5787
      %v5855 = vpop.f32.mrb[0].mxu0
      %v5856 = vadd.f32 0.0, %v5855
      %v5857 = vpop.f32.mrb[0].mxu0
      %5858 = vdwg.mxu0
      %5867 = vset.pattern.permute.xlu0 0
      %5868 = vperm.xlu0 %5867, %v5779
      %v5869 = vpop.permute.xlu0 %5868
      %5870 = vset.pattern.permute.xlu0 0
      %5871 = vperm.xlu0 %5870, %v5780
      %v5872 = vpop.permute.xlu0 %5871
      %5873 = vset.pattern.permute.xlu0 0
      %5874 = vperm.xlu0 %5873, %v5781
      %v5875 = vpop.permute.xlu0 %5874
      %5876 = vset.pattern.permute.xlu0 0
      %5877 = vperm.xlu0 %5876, %v5782
      %v5878 = vpop.permute.xlu0 %5877
      %5879 = vset.pattern.permute.xlu0 0
      %5880 = vperm.xlu0 %5879, %v5783
      %v5881 = vpop.permute.xlu0 %5880
      %5882 = vset.pattern.permute.xlu0 0
      %5883 = vperm.xlu0 %5882, %v5784
      %v5884 = vpop.permute.xlu0 %5883
      %5885 = vset.pattern.permute.xlu0 0
      %5886 = vperm.xlu0 %5885, %v5785
      %v5887 = vpop.permute.xlu0 %5886
      %5888 = vset.pattern.permute.xlu0 0
      %5889 = vperm.xlu0 %5888, %v5786
      %v5890 = vpop.permute.xlu0 %5889
      %v5891 = vlaneseq
      %v5892 = vshrl.u32 %v5891, 7
      %v5893 = vsub.s32 %v1043, %v5892
      %v5894 = vrot.slane %v5869, %v5893
      %v5895 = vlaneseq
      %v5896 = vshrl.u32 %v5895, 7
      %v5897 = vsub.s32 %v1043, %v5896
      %v5898 = vrot.slane %v5872, %v5897
      %v5899 = vlaneseq
      %v5900 = vshrl.u32 %v5899, 7
      %v5901 = vsub.s32 %v1043, %v5900
      %v5902 = vrot.slane %v5875, %v5901
      %v5903 = vlaneseq
      %v5904 = vshrl.u32 %v5903, 7
      %v5905 = vsub.s32 %v1043, %v5904
      %v5906 = vrot.slane %v5878, %v5905
      %v5907 = vlaneseq
      %v5908 = vshrl.u32 %v5907, 7
      %v5909 = vsub.s32 %v1043, %v5908
      %v5910 = vrot.slane %v5881, %v5909
      %v5911 = vlaneseq
      %v5912 = vshrl.u32 %v5911, 7
      %v5913 = vsub.s32 %v1043, %v5912
      %v5914 = vrot.slane %v5884, %v5913
      %v5915 = vlaneseq
      %v5916 = vshrl.u32 %v5915, 7
      %v5917 = vsub.s32 %v1043, %v5916
      %v5918 = vrot.slane %v5887, %v5917
      %v5919 = vlaneseq
      %v5920 = vshrl.u32 %v5919, 7
      %v5921 = vsub.s32 %v1043, %v5920
      %v5922 = vrot.slane %v5890, %v5921
      %v5923 = vsel %vm1076, %v5898, %v5894
      %v5924 = vsel %vm1078, %v5902, %v5923
      %v5925 = vsel %vm1080, %v5906, %v5924
      %v5926 = vsel %vm1082, %v5910, %v5925
      %v5927 = vsel %vm1084, %v5914, %v5926
      %v5928 = vsel %vm1086, %v5918, %v5927
      %v5929 = vsel %vm1088, %v5922, %v5928
      %v5930 = vsel %vm1091, %v5929, 0
      %5932 = vmatprep.subr.mxu0 0.0
      %5933 = vmatpush1.msra.mxu0 %v1513
      %5934 = vmatprep.subr.mxu0 0.0
      %5935 = vmatpush1.msra.mxu0 0.0
      %5936 = vmatprep.subr.mxu0 0.0
      %5937 = vmatpush1.msra.mxu0 0.0
      %5938 = vmatprep.subr.mxu0 0.0
      %5939 = vmatpush1.msra.mxu0 0.0
      %5940 = vmatprep.subr.mxu0 0.0
      %5941 = vmatpush1.msra.mxu0 0.0
      %5942 = vmatprep.subr.mxu0 0.0
      %5943 = vmatpush1.msra.mxu0 0.0
      %5944 = vmatprep.subr.mxu0 0.0
      %5945 = vmatpush1.msra.mxu0 0.0
      %5946 = vmatprep.subr.mxu0 0.0
      %5947 = vmatpush1.msra.mxu0 0.0
      %5948 = vmatprep.subr.mxu0 0.0
      %5949 = vmatpush1.msra.mxu0 0.0
      %5950 = vmatprep.subr.mxu0 0.0
      %5951 = vmatpush1.msra.mxu0 0.0
      %5952 = vmatprep.subr.mxu0 0.0
      %5953 = vmatpush1.msra.mxu0 0.0
      %5954 = vmatprep.subr.mxu0 0.0
      %5955 = vmatpush1.msra.mxu0 0.0
      %5956 = vmatprep.subr.mxu0 0.0
      %5957 = vmatpush1.msra.mxu0 0.0
      %5958 = vmatprep.subr.mxu0 0.0
      %5959 = vmatpush1.msra.mxu0 0.0
      %5960 = vmatprep.subr.mxu0 0.0
      %5961 = vmatpush1.msra.mxu0 0.0
      %5962 = vmatprep.subr.mxu0 0.0
      %5963 = vmatpush1.msra.mxu0 0.0
      %5964 = vmatprep.subr.mxu0 0.0
      %5965 = vmatpush1.msra.mxu0 0.0
      %5966 = vmatprep.subr.mxu0 0.0
      %5967 = vmatpush1.msra.mxu0 0.0
      %5968 = vmatprep.subr.mxu0 0.0
      %5969 = vmatpush1.msra.mxu0 0.0
      %5970 = vmatprep.subr.mxu0 0.0
      %5971 = vmatpush1.msra.mxu0 0.0
      %5972 = vmatprep.subr.mxu0 0.0
      %5973 = vmatpush1.msra.mxu0 0.0
      %5974 = vmatprep.subr.mxu0 0.0
      %5975 = vmatpush1.msra.mxu0 0.0
      %5976 = vmatprep.subr.mxu0 0.0
      %5977 = vmatpush1.msra.mxu0 0.0
      %5978 = vmatprep.subr.mxu0 0.0
      %5979 = vmatpush1.msra.mxu0 0.0
      %5980 = vmatprep.subr.mxu0 0.0
      %5981 = vmatpush1.msra.mxu0 0.0
      %5982 = vmatprep.subr.mxu0 0.0
      %5983 = vmatpush1.msra.mxu0 0.0
      %5984 = vmatprep.subr.mxu0 0.0
      %5985 = vmatpush1.msra.mxu0 0.0
      %5986 = vmatprep.subr.mxu0 0.0
      %5987 = vmatpush1.msra.mxu0 0.0
      %5988 = vmatprep.subr.mxu0 0.0
      %5989 = vmatpush1.msra.mxu0 0.0
      %5990 = vmatprep.subr.mxu0 0.0
      %5991 = vmatpush1.msra.mxu0 0.0
      %5992 = vmatprep.subr.mxu0 0.0
      %5993 = vmatpush1.msra.mxu0 0.0
      %5994 = vmatprep.subr.mxu0 0.0
      %5995 = vmatpush1.msra.mxu0 0.0
      %5996 = vmatprep.mubr.f32.mxu0 0.0
      %5997 = vmatmul.mubr.f32.gmra.mrb[0].mxu0 %v5930
      %v5998 = vpop.f32.mrb[0].mxu0
      %v5999 = vadd.f32 %v5856, %v5998
      %v6000 = vpop.f32.mrb[0].mxu0
      %6001 = vdwg.mxu0
      %v6002 = vadd.f32 %v5999, %v1589
      %v6003 = vxor.u32 %v6002, 2147483648
      %v6004 = vmul.f32 %v6003, 1.442695
      %v6005 = vpow.pop %v6004
      %v6006 = vadd.f32 %v6005, 1.0
      %v6007 = vrcp.pop %v6006
      %v6008 = vmul.f32 1.0, %v6007
      %v6009 = vtanh.pop %v6002
      %v6010 = vmul.f32 %v6008, %v5138
      %6012 = vrot.lane.b32.xlu0 %v6009, 64
      %v6013 = vpop.permute.xlu0 %6012
      %v6015 = vmul.f32 %v6008, %v6013
      %6017 = vrot.lane.b32.xlu0 %v6015, 32
      %v6018 = vpop.permute.xlu0 %6017
      %v6020 = vadd.f32 %v6010, %v6018
      %v6021 = vtanh.pop %v6020
      %6023 = vrot.lane.b32.xlu0 %v6021, 64
      %v6024 = vpop.permute.xlu0 %6023
      %v6026 = vmul.f32 %v6008, %v6024
      %v6028 = vcombine.high %v6026, %v6026
      %v6030 = vunpack.c.l.s4 1966171168
      %v6031 = vunpack.c.0.s8 %v6030
      %v6032 = vlaneseq
      %v6033 = vshrl.u32 %v6032, 7
      %v6034 = vsub.s32 %v6031, %v6033
      %v6035 = vrot.slane %v6026, %v6034
      %v6037 = vunpack.c.l.s4 1966171168
      %v6038 = vunpack.c.0.s8 %v6037
      %v6039 = vlaneseq
      %v6040 = vshrl.u32 %v6039, 7
      %v6041 = vsub.s32 %v6038, %v6040
      %v6042 = vrot.slane %v6028, %v6041
      %v6043 = vcombine.high %v6035, %v6035
      %v6044 = vcombine.high %v6042, %v6042
      %v6046 = vunpack.c.l.s4 1966171168
      %v6047 = vunpack.c.0.s8 %v6046
      %v6048 = vlaneseq
      %v6049 = vshrl.u32 %v6048, 7
      %v6050 = vsub.s32 %v6047, %v6049
      %v6051 = vrot.slane %v6035, %v6050
      %v6053 = vunpack.c.l.s4 1966171168
      %v6054 = vunpack.c.0.s8 %v6053
      %v6055 = vlaneseq
      %v6056 = vshrl.u32 %v6055, 7
      %v6057 = vsub.s32 %v6054, %v6056
      %v6058 = vrot.slane %v6042, %v6057
      %v6060 = vunpack.c.l.s4 1966171168
      %v6061 = vunpack.c.0.s8 %v6060
      %v6062 = vlaneseq
      %v6063 = vshrl.u32 %v6062, 7
      %v6064 = vsub.s32 %v6061, %v6063
      %v6065 = vrot.slane %v6043, %v6064
      %v6067 = vunpack.c.l.s4 1966171168
      %v6068 = vunpack.c.0.s8 %v6067
      %v6069 = vlaneseq
      %v6070 = vshrl.u32 %v6069, 7
      %v6071 = vsub.s32 %v6068, %v6070
      %v6072 = vrot.slane %v6044, %v6071
      %v6073 = vcombine.high %v6051, %v6051
      %v6074 = vcombine.high %v6058, %v6058
      %v6075 = vcombine.high %v6065, %v6065
      %v6076 = vcombine.high %v6072, %v6072
      %v6077 = vlaneseq
      %v6078 = vshrl.u32 %v6077, 7
      %v6079 = vsub.s32 0, %v6078
      %v6080 = vrot.slane %v6051, %v6079
      %v6081 = vlaneseq
      %v6082 = vshrl.u32 %v6081, 7
      %v6083 = vsub.s32 0, %v6082
      %v6084 = vrot.slane %v6065, %v6083
      %v6085 = vlaneseq
      %v6086 = vshrl.u32 %v6085, 7
      %v6087 = vsub.s32 0, %v6086
      %v6088 = vrot.slane %v6073, %v6087
      %v6089 = vlaneseq
      %v6090 = vshrl.u32 %v6089, 7
      %v6091 = vsub.s32 0, %v6090
      %v6092 = vrot.slane %v6075, %v6091
      %v6093 = vlaneseq
      %v6094 = vshrl.u32 %v6093, 7
      %v6095 = vsub.s32 0, %v6094
      %v6096 = vrot.slane %v6058, %v6095
      %v6097 = vlaneseq
      %v6098 = vshrl.u32 %v6097, 7
      %v6099 = vsub.s32 0, %v6098
      %v6100 = vrot.slane %v6072, %v6099
      %v6101 = vlaneseq
      %v6102 = vshrl.u32 %v6101, 7
      %v6103 = vsub.s32 0, %v6102
      %v6104 = vrot.slane %v6074, %v6103
      %v6105 = vlaneseq
      %v6106 = vshrl.u32 %v6105, 7
      %v6107 = vsub.s32 0, %v6106
      %v6108 = vrot.slane %v6076, %v6107
      %6109 = vrot.lane.b32.xlu0 %v6080, 32
      %v6110 = vpop.permute.xlu0 %6109
      %6111 = vrot.lane.b32.xlu0 %v6084, 32
      %v6112 = vpop.permute.xlu0 %6111
      %6113 = vrot.lane.b32.xlu0 %v6088, 32
      %v6114 = vpop.permute.xlu0 %6113
      %6115 = vrot.lane.b32.xlu0 %v6092, 32
      %v6116 = vpop.permute.xlu0 %6115
      %6117 = vrot.lane.b32.xlu0 %v6096, 32
      %v6118 = vpop.permute.xlu0 %6117
      %6119 = vrot.lane.b32.xlu0 %v6100, 32
      %v6120 = vpop.permute.xlu0 %6119
      %6121 = vrot.lane.b32.xlu0 %v6104, 32
      %v6122 = vpop.permute.xlu0 %6121
      %6123 = vrot.lane.b32.xlu0 %v6108, 32
      %v6124 = vpop.permute.xlu0 %6123
      %6133 = vst.msk [vmem:[#allocation2 + $0x5] sm:$0x1] %vm1722, %v6110
      %6134 = vst.msk [vmem:[#allocation2 + $0xd] sm:$0x1] %vm1722, %v6112
      %6135 = vst.msk [vmem:[#allocation2 + $0x15] sm:$0x1] %vm1722, %v6114
      %6136 = vst.msk [vmem:[#allocation2 + $0x1d] sm:$0x1] %vm1722, %v6116
      %6137 = vst.msk [vmem:[#allocation2 + $0x25] sm:$0x1] %vm1722, %v6118
      %6138 = vst.msk [vmem:[#allocation2 + $0x2d] sm:$0x1] %vm1722, %v6120
      %6139 = vst.msk [vmem:[#allocation2 + $0x35] sm:$0x1] %vm1722, %v6122
      %6140 = vst.msk [vmem:[#allocation2 + $0x3d] sm:$0x1] %vm1722, %v6124
      %6141 = vrot.lane.b32.xlu0 %v6026, 32
      %v6142 = vpop.permute.xlu0 %6141
      %v6144 = vsel %vm807, %v6142, %v6020
      %v6146 = vsel %vm815, %v6144, 0
      %6148 = vmatprep.subr.mxu0 0.0
      %6149 = vmatpush1.msra.mxu0 %v785
      %6150 = vmatprep.subr.mxu0 0.0
      %6151 = vmatpush1.msra.mxu0 %v786
      %6152 = vmatprep.subr.mxu0 0.0
      %6153 = vmatpush1.msra.mxu0 %v787
      %6154 = vmatprep.subr.mxu0 0.0
      %6155 = vmatpush1.msra.mxu0 %v788
      %6156 = vmatprep.subr.mxu0 0.0
      %6157 = vmatpush1.msra.mxu0 %v789
      %6158 = vmatprep.subr.mxu0 0.0
      %6159 = vmatpush1.msra.mxu0 %v790
      %6160 = vmatprep.subr.mxu0 0.0
      %6161 = vmatpush1.msra.mxu0 %v791
      %6162 = vmatprep.subr.mxu0 0.0
      %6163 = vmatpush1.msra.mxu0 %v792
      %6164 = vmatprep.subr.mxu0 0.0
      %6165 = vmatpush1.msra.mxu0 0.0
      %6166 = vmatprep.subr.mxu0 0.0
      %6167 = vmatpush1.msra.mxu0 0.0
      %6168 = vmatprep.subr.mxu0 0.0
      %6169 = vmatpush1.msra.mxu0 0.0
      %6170 = vmatprep.subr.mxu0 0.0
      %6171 = vmatpush1.msra.mxu0 0.0
      %6172 = vmatprep.subr.mxu0 0.0
      %6173 = vmatpush1.msra.mxu0 0.0
      %6174 = vmatprep.subr.mxu0 0.0
      %6175 = vmatpush1.msra.mxu0 0.0
      %6176 = vmatprep.subr.mxu0 0.0
      %6177 = vmatpush1.msra.mxu0 0.0
      %6178 = vmatprep.subr.mxu0 0.0
      %6179 = vmatpush1.msra.mxu0 0.0
      %6180 = vmatprep.subr.mxu0 0.0
      %6181 = vmatpush1.msra.mxu0 0.0
      %6182 = vmatprep.subr.mxu0 0.0
      %6183 = vmatpush1.msra.mxu0 0.0
      %6184 = vmatprep.subr.mxu0 0.0
      %6185 = vmatpush1.msra.mxu0 0.0
      %6186 = vmatprep.subr.mxu0 0.0
      %6187 = vmatpush1.msra.mxu0 0.0
      %6188 = vmatprep.subr.mxu0 0.0
      %6189 = vmatpush1.msra.mxu0 0.0
      %6190 = vmatprep.subr.mxu0 0.0
      %6191 = vmatpush1.msra.mxu0 0.0
      %6192 = vmatprep.subr.mxu0 0.0
      %6193 = vmatpush1.msra.mxu0 0.0
      %6194 = vmatprep.subr.mxu0 0.0
      %6195 = vmatpush1.msra.mxu0 0.0
      %6196 = vmatprep.subr.mxu0 0.0
      %6197 = vmatpush1.msra.mxu0 0.0
      %6198 = vmatprep.subr.mxu0 0.0
      %6199 = vmatpush1.msra.mxu0 0.0
      %6200 = vmatprep.subr.mxu0 0.0
      %6201 = vmatpush1.msra.mxu0 0.0
      %6202 = vmatprep.subr.mxu0 0.0
      %6203 = vmatpush1.msra.mxu0 0.0
      %6204 = vmatprep.subr.mxu0 0.0
      %6205 = vmatpush1.msra.mxu0 0.0
      %6206 = vmatprep.subr.mxu0 0.0
      %6207 = vmatpush1.msra.mxu0 0.0
      %6208 = vmatprep.subr.mxu0 0.0
      %6209 = vmatpush1.msra.mxu0 0.0
      %6210 = vmatprep.subr.mxu0 0.0
      %6211 = vmatpush1.msra.mxu0 0.0
      %6212 = vmatprep.mubr.f32.mxu0 0.0
      %6213 = vmatmul.mubr.f32.gmra.mrb[0].mxu0 %v6146
      %v6214 = vpop.f32.mrb[0].mxu0
      %v6215 = vadd.f32 %v813, %v6214
      %v6216 = vpop.f32.mrb[0].mxu0
      %6217 = vdwg.mxu0
      %v6219 = vcombine.high %v6215, %v6215
      %v6221 = vunpack.c.l.s4 1966171168
      %v6222 = vunpack.c.0.s8 %v6221
      %v6223 = vlaneseq
      %v6224 = vshrl.u32 %v6223, 7
      %v6225 = vsub.s32 %v6222, %v6224
      %v6226 = vrot.slane %v6215, %v6225
      %v6228 = vunpack.c.l.s4 1966171168
      %v6229 = vunpack.c.0.s8 %v6228
      %v6230 = vlaneseq
      %v6231 = vshrl.u32 %v6230, 7
      %v6232 = vsub.s32 %v6229, %v6231
      %v6233 = vrot.slane %v6219, %v6232
      %v6234 = vcombine.high %v6226, %v6226
      %v6235 = vcombine.high %v6233, %v6233
      %v6237 = vunpack.c.l.s4 1966171168
      %v6238 = vunpack.c.0.s8 %v6237
      %v6239 = vlaneseq
      %v6240 = vshrl.u32 %v6239, 7
      %v6241 = vsub.s32 %v6238, %v6240
      %v6242 = vrot.slane %v6226, %v6241
      %v6244 = vunpack.c.l.s4 1966171168
      %v6245 = vunpack.c.0.s8 %v6244
      %v6246 = vlaneseq
      %v6247 = vshrl.u32 %v6246, 7
      %v6248 = vsub.s32 %v6245, %v6247
      %v6249 = vrot.slane %v6233, %v6248
      %v6251 = vunpack.c.l.s4 1966171168
      %v6252 = vunpack.c.0.s8 %v6251
      %v6253 = vlaneseq
      %v6254 = vshrl.u32 %v6253, 7
      %v6255 = vsub.s32 %v6252, %v6254
      %v6256 = vrot.slane %v6234, %v6255
      %v6258 = vunpack.c.l.s4 1966171168
      %v6259 = vunpack.c.0.s8 %v6258
      %v6260 = vlaneseq
      %v6261 = vshrl.u32 %v6260, 7
      %v6262 = vsub.s32 %v6259, %v6261
      %v6263 = vrot.slane %v6235, %v6262
      %v6264 = vcombine.high %v6242, %v6242
      %v6265 = vcombine.high %v6249, %v6249
      %v6266 = vcombine.high %v6256, %v6256
      %v6267 = vcombine.high %v6263, %v6263
      %v6268 = vlaneseq
      %v6269 = vshrl.u32 %v6268, 7
      %v6270 = vsub.s32 0, %v6269
      %v6271 = vrot.slane %v6242, %v6270
      %v6272 = vlaneseq
      %v6273 = vshrl.u32 %v6272, 7
      %v6274 = vsub.s32 0, %v6273
      %v6275 = vrot.slane %v6256, %v6274
      %v6276 = vlaneseq
      %v6277 = vshrl.u32 %v6276, 7
      %v6278 = vsub.s32 0, %v6277
      %v6279 = vrot.slane %v6264, %v6278
      %v6280 = vlaneseq
      %v6281 = vshrl.u32 %v6280, 7
      %v6282 = vsub.s32 0, %v6281
      %v6283 = vrot.slane %v6266, %v6282
      %v6284 = vlaneseq
      %v6285 = vshrl.u32 %v6284, 7
      %v6286 = vsub.s32 0, %v6285
      %v6287 = vrot.slane %v6249, %v6286
      %v6288 = vlaneseq
      %v6289 = vshrl.u32 %v6288, 7
      %v6290 = vsub.s32 0, %v6289
      %v6291 = vrot.slane %v6263, %v6290
      %v6292 = vlaneseq
      %v6293 = vshrl.u32 %v6292, 7
      %v6294 = vsub.s32 0, %v6293
      %v6295 = vrot.slane %v6265, %v6294
      %v6296 = vlaneseq
      %v6297 = vshrl.u32 %v6296, 7
      %v6298 = vsub.s32 0, %v6297
      %v6299 = vrot.slane %v6267, %v6298
      %v6308 = vadd.f32 %v747, %v6271
      %v6309 = vadd.f32 %v769, %v6275
      %v6310 = vadd.f32 %v752, %v6279
      %v6311 = vadd.f32 %v770, %v6283
      %v6312 = vadd.f32 %v757, %v6287
      %v6313 = vadd.f32 %v771, %v6291
      %v6314 = vadd.f32 %v762, %v6295
      %v6315 = vadd.f32 %v772, %v6299
      %v6316 = vtanh.pop %v6308
      %v6317 = vtanh.pop %v6309
      %v6318 = vtanh.pop %v6310
      %v6319 = vtanh.pop %v6311
      %v6320 = vtanh.pop %v6312
      %v6321 = vtanh.pop %v6313
      %v6322 = vtanh.pop %v6314
      %v6323 = vtanh.pop %v6315
      %v6324 = vmul.f32 %v6316, %v999
      %v6325 = vmul.f32 %v6317, %v999
      %v6326 = vmul.f32 %v6318, %v999
      %v6327 = vmul.f32 %v6319, %v999
      %v6328 = vmul.f32 %v6320, %v999
      %v6329 = vmul.f32 %v6321, %v999
      %v6330 = vmul.f32 %v6322, %v999
      %v6331 = vmul.f32 %v6323, %v999
      %v6332 = vsel %vm1009, %v6324, 0.0
      %6333 = vadd.xlane.f32.xlu0 %v6332
      %v6334 = vpop.xlane.xlu0 %6333
      %v6335 = vsel %vm1009, %v6325, 0.0
      %6336 = vadd.xlane.f32.xlu0 %v6335
      %v6337 = vpop.xlane.xlu0 %6336
      %v6338 = vsel %vm1009, %v6326, 0.0
      %6339 = vadd.xlane.f32.xlu0 %v6338
      %v6340 = vpop.xlane.xlu0 %6339
      %v6341 = vsel %vm1009, %v6327, 0.0
      %6342 = vadd.xlane.f32.xlu0 %v6341
      %v6343 = vpop.xlane.xlu0 %6342
      %v6344 = vsel %vm1009, %v6328, 0.0
      %6345 = vadd.xlane.f32.xlu0 %v6344
      %v6346 = vpop.xlane.xlu0 %6345
      %v6347 = vsel %vm1009, %v6329, 0.0
      %6348 = vadd.xlane.f32.xlu0 %v6347
      %v6349 = vpop.xlane.xlu0 %6348
      %v6350 = vsel %vm1009, %v6330, 0.0
      %6351 = vadd.xlane.f32.xlu0 %v6350
      %v6352 = vpop.xlane.xlu0 %6351
      %v6353 = vsel %vm1009, %v6331, 0.0
      %6354 = vadd.xlane.f32.xlu0 %v6353
      %v6355 = vpop.xlane.xlu0 %6354
      %v6364 = vlaneseq
      %v6365 = vshrl.u32 %v6364, 7
      %v6366 = vsub.s32 %v1043, %v6365
      %v6367 = vrot.slane %v6334, %v6366
      %v6368 = vlaneseq
      %v6369 = vshrl.u32 %v6368, 7
      %v6370 = vsub.s32 %v1043, %v6369
      %v6371 = vrot.slane %v6337, %v6370
      %v6372 = vlaneseq
      %v6373 = vshrl.u32 %v6372, 7
      %v6374 = vsub.s32 %v1043, %v6373
      %v6375 = vrot.slane %v6340, %v6374
      %v6376 = vlaneseq
      %v6377 = vshrl.u32 %v6376, 7
      %v6378 = vsub.s32 %v1043, %v6377
      %v6379 = vrot.slane %v6343, %v6378
      %v6380 = vlaneseq
      %v6381 = vshrl.u32 %v6380, 7
      %v6382 = vsub.s32 %v1043, %v6381
      %v6383 = vrot.slane %v6346, %v6382
      %v6384 = vlaneseq
      %v6385 = vshrl.u32 %v6384, 7
      %v6386 = vsub.s32 %v1043, %v6385
      %v6387 = vrot.slane %v6349, %v6386
      %v6388 = vlaneseq
      %v6389 = vshrl.u32 %v6388, 7
      %v6390 = vsub.s32 %v1043, %v6389
      %v6391 = vrot.slane %v6352, %v6390
      %v6392 = vlaneseq
      %v6393 = vshrl.u32 %v6392, 7
      %v6394 = vsub.s32 %v1043, %v6393
      %v6395 = vrot.slane %v6355, %v6394
      %v6396 = vsel %vm1076, %v6371, %v6367
      %v6397 = vsel %vm1078, %v6375, %v6396
      %v6398 = vsel %vm1080, %v6379, %v6397
      %v6399 = vsel %vm1082, %v6383, %v6398
      %v6400 = vsel %vm1084, %v6387, %v6399
      %v6401 = vsel %vm1086, %v6391, %v6400
      %v6402 = vsel %vm1088, %v6395, %v6401
      %v6404 = vsel %vm1091, %v6402, -inf
      %6405 = vmax.xlane.f32.xlu0 %v6404
      %v6406 = vpop.xlane.xlu0 %6405
      %v6408 = vlaneseq
      %v6409 = vshrl.u32 %v6408, 7
      %v6410 = vsub.s32 0, %v6409
      %v6411 = vrot.slane %v6406, %v6410
      %v6412 = vlaneseq
      %v6413 = vshrl.u32 %v6412, 7
      %v6414 = vsub.s32 1, %v6413
      %v6415 = vrot.slane %v6406, %v6414
      %v6416 = vlaneseq
      %v6417 = vshrl.u32 %v6416, 7
      %v6418 = vsub.s32 2, %v6417
      %v6419 = vrot.slane %v6406, %v6418
      %v6420 = vlaneseq
      %v6421 = vshrl.u32 %v6420, 7
      %v6422 = vsub.s32 3, %v6421
      %v6423 = vrot.slane %v6406, %v6422
      %v6424 = vlaneseq
      %v6425 = vshrl.u32 %v6424, 7
      %v6426 = vsub.s32 4, %v6425
      %v6427 = vrot.slane %v6406, %v6426
      %v6428 = vlaneseq
      %v6429 = vshrl.u32 %v6428, 7
      %v6430 = vsub.s32 5, %v6429
      %v6431 = vrot.slane %v6406, %v6430
      %v6432 = vlaneseq
      %v6433 = vshrl.u32 %v6432, 7
      %v6434 = vsub.s32 6, %v6433
      %v6435 = vrot.slane %v6406, %v6434
      %v6436 = vlaneseq
      %v6437 = vshrl.u32 %v6436, 7
      %v6438 = vsub.s32 7, %v6437
      %v6439 = vrot.slane %v6406, %v6438
      %v6448 = vsub.f32 %v6334, %v6411
      %v6449 = vsub.f32 %v6337, %v6415
      %v6450 = vsub.f32 %v6340, %v6419
      %v6451 = vsub.f32 %v6343, %v6423
      %v6452 = vsub.f32 %v6346, %v6427
      %v6453 = vsub.f32 %v6349, %v6431
      %v6454 = vsub.f32 %v6352, %v6435
      %v6455 = vsub.f32 %v6355, %v6439
      %v6456 = vmul.f32 %v6448, 1.442695
      %v6457 = vpow.pop %v6456
      %v6458 = vmul.f32 %v6449, 1.442695
      %v6459 = vpow.pop %v6458
      %v6460 = vmul.f32 %v6450, 1.442695
      %v6461 = vpow.pop %v6460
      %v6462 = vmul.f32 %v6451, 1.442695
      %v6463 = vpow.pop %v6462
      %v6464 = vmul.f32 %v6452, 1.442695
      %v6465 = vpow.pop %v6464
      %v6466 = vmul.f32 %v6453, 1.442695
      %v6467 = vpow.pop %v6466
      %v6468 = vmul.f32 %v6454, 1.442695
      %v6469 = vpow.pop %v6468
      %v6470 = vmul.f32 %v6455, 1.442695
      %v6471 = vpow.pop %v6470
      %6480 = vset.pattern.permute.xlu0 0
      %6481 = vperm.xlu0 %6480, %v6457
      %v6482 = vpop.permute.xlu0 %6481
      %6483 = vset.pattern.permute.xlu0 0
      %6484 = vperm.xlu0 %6483, %v6459
      %v6485 = vpop.permute.xlu0 %6484
      %6486 = vset.pattern.permute.xlu0 0
      %6487 = vperm.xlu0 %6486, %v6461
      %v6488 = vpop.permute.xlu0 %6487
      %6489 = vset.pattern.permute.xlu0 0
      %6490 = vperm.xlu0 %6489, %v6463
      %v6491 = vpop.permute.xlu0 %6490
      %6492 = vset.pattern.permute.xlu0 0
      %6493 = vperm.xlu0 %6492, %v6465
      %v6494 = vpop.permute.xlu0 %6493
      %6495 = vset.pattern.permute.xlu0 0
      %6496 = vperm.xlu0 %6495, %v6467
      %v6497 = vpop.permute.xlu0 %6496
      %6498 = vset.pattern.permute.xlu0 0
      %6499 = vperm.xlu0 %6498, %v6469
      %v6500 = vpop.permute.xlu0 %6499
      %6501 = vset.pattern.permute.xlu0 0
      %6502 = vperm.xlu0 %6501, %v6471
      %v6503 = vpop.permute.xlu0 %6502
      %v6504 = vlaneseq
      %v6505 = vshrl.u32 %v6504, 7
      %v6506 = vsub.s32 %v1043, %v6505
      %v6507 = vrot.slane %v6482, %v6506
      %v6508 = vlaneseq
      %v6509 = vshrl.u32 %v6508, 7
      %v6510 = vsub.s32 %v1043, %v6509
      %v6511 = vrot.slane %v6485, %v6510
      %v6512 = vlaneseq
      %v6513 = vshrl.u32 %v6512, 7
      %v6514 = vsub.s32 %v1043, %v6513
      %v6515 = vrot.slane %v6488, %v6514
      %v6516 = vlaneseq
      %v6517 = vshrl.u32 %v6516, 7
      %v6518 = vsub.s32 %v1043, %v6517
      %v6519 = vrot.slane %v6491, %v6518
      %v6520 = vlaneseq
      %v6521 = vshrl.u32 %v6520, 7
      %v6522 = vsub.s32 %v1043, %v6521
      %v6523 = vrot.slane %v6494, %v6522
      %v6524 = vlaneseq
      %v6525 = vshrl.u32 %v6524, 7
      %v6526 = vsub.s32 %v1043, %v6525
      %v6527 = vrot.slane %v6497, %v6526
      %v6528 = vlaneseq
      %v6529 = vshrl.u32 %v6528, 7
      %v6530 = vsub.s32 %v1043, %v6529
      %v6531 = vrot.slane %v6500, %v6530
      %v6532 = vlaneseq
      %v6533 = vshrl.u32 %v6532, 7
      %v6534 = vsub.s32 %v1043, %v6533
      %v6535 = vrot.slane %v6503, %v6534
      %v6536 = vsel %vm1076, %v6511, %v6507
      %v6537 = vsel %vm1078, %v6515, %v6536
      %v6538 = vsel %vm1080, %v6519, %v6537
      %v6539 = vsel %vm1082, %v6523, %v6538
      %v6540 = vsel %vm1084, %v6527, %v6539
      %v6541 = vsel %vm1086, %v6531, %v6540
      %v6542 = vsel %vm1088, %v6535, %v6541
      %v6544 = vsel %vm1091, %v6542, 0.0
      %6545 = vadd.xlane.f32.xlu0 %v6544
      %v6546 = vpop.xlane.xlu0 %6545
      %v6547 = vrcp.pop %v6546
      %v6549 = vlaneseq
      %v6550 = vshrl.u32 %v6549, 7
      %v6551 = vsub.s32 0, %v6550
      %v6552 = vrot.slane %v6547, %v6551
      %v6553 = vlaneseq
      %v6554 = vshrl.u32 %v6553, 7
      %v6555 = vsub.s32 1, %v6554
      %v6556 = vrot.slane %v6547, %v6555
      %v6557 = vlaneseq
      %v6558 = vshrl.u32 %v6557, 7
      %v6559 = vsub.s32 2, %v6558
      %v6560 = vrot.slane %v6547, %v6559
      %v6561 = vlaneseq
      %v6562 = vshrl.u32 %v6561, 7
      %v6563 = vsub.s32 3, %v6562
      %v6564 = vrot.slane %v6547, %v6563
      %v6565 = vlaneseq
      %v6566 = vshrl.u32 %v6565, 7
      %v6567 = vsub.s32 4, %v6566
      %v6568 = vrot.slane %v6547, %v6567
      %v6569 = vlaneseq
      %v6570 = vshrl.u32 %v6569, 7
      %v6571 = vsub.s32 5, %v6570
      %v6572 = vrot.slane %v6547, %v6571
      %v6573 = vlaneseq
      %v6574 = vshrl.u32 %v6573, 7
      %v6575 = vsub.s32 6, %v6574
      %v6576 = vrot.slane %v6547, %v6575
      %v6577 = vlaneseq
      %v6578 = vshrl.u32 %v6577, 7
      %v6579 = vsub.s32 7, %v6578
      %v6580 = vrot.slane %v6547, %v6579
      %v6589 = vmul.f32 %v6457, %v6552
      %v6590 = vmul.f32 %v6459, %v6556
      %v6591 = vmul.f32 %v6461, %v6560
      %v6592 = vmul.f32 %v6463, %v6564
      %v6593 = vmul.f32 %v6465, %v6568
      %v6594 = vmul.f32 %v6467, %v6572
      %v6595 = vmul.f32 %v6469, %v6576
      %v6596 = vmul.f32 %v6471, %v6580
      %v6597 = vlaneseq
      %v6598 = vshrl.u32 %v6597, 7
      %v6599 = vsub.s32 6, %v6598
      %v6600 = vrot.slane %v777, %v6599
      %6602 = vbcast.lane.b32.xlu0 %v6600, 256
      %v6603 = vpop.permute.xlu0 %6602
      %v6604 = vlaneseq
      %v6605 = vshrl.u32 %v6604, 7
      %v6606 = vsub.s32 6, %v6605
      %v6607 = vrot.slane %v778, %v6606
      %6609 = vbcast.lane.b32.xlu0 %v6607, 256
      %v6610 = vpop.permute.xlu0 %6609
      %v6611 = vlaneseq
      %v6612 = vshrl.u32 %v6611, 7
      %v6613 = vsub.s32 6, %v6612
      %v6614 = vrot.slane %v779, %v6613
      %6616 = vbcast.lane.b32.xlu0 %v6614, 256
      %v6617 = vpop.permute.xlu0 %6616
      %v6618 = vlaneseq
      %v6619 = vshrl.u32 %v6618, 7
      %v6620 = vsub.s32 6, %v6619
      %v6621 = vrot.slane %v780, %v6620
      %6623 = vbcast.lane.b32.xlu0 %v6621, 256
      %v6624 = vpop.permute.xlu0 %6623
      %v6625 = vlaneseq
      %v6626 = vshrl.u32 %v6625, 7
      %v6627 = vsub.s32 6, %v6626
      %v6628 = vrot.slane %v781, %v6627
      %6630 = vbcast.lane.b32.xlu0 %v6628, 256
      %v6631 = vpop.permute.xlu0 %6630
      %v6632 = vlaneseq
      %v6633 = vshrl.u32 %v6632, 7
      %v6634 = vsub.s32 6, %v6633
      %v6635 = vrot.slane %v782, %v6634
      %6637 = vbcast.lane.b32.xlu0 %v6635, 256
      %v6638 = vpop.permute.xlu0 %6637
      %v6639 = vlaneseq
      %v6640 = vshrl.u32 %v6639, 7
      %v6641 = vsub.s32 6, %v6640
      %v6642 = vrot.slane %v783, %v6641
      %6644 = vbcast.lane.b32.xlu0 %v6642, 256
      %v6645 = vpop.permute.xlu0 %6644
      %v6646 = vlaneseq
      %v6647 = vshrl.u32 %v6646, 7
      %v6648 = vsub.s32 6, %v6647
      %v6649 = vrot.slane %v784, %v6648
      %6651 = vbcast.lane.b32.xlu0 %v6649, 256
      %v6652 = vpop.permute.xlu0 %6651
      %v6661 = vmul.f32 %v6589, %v6603
      %v6662 = vmul.f32 %v6590, %v6610
      %v6663 = vmul.f32 %v6591, %v6617
      %v6664 = vmul.f32 %v6592, %v6624
      %v6665 = vmul.f32 %v6593, %v6631
      %v6666 = vmul.f32 %v6594, %v6638
      %v6667 = vmul.f32 %v6595, %v6645
      %v6668 = vmul.f32 %v6596, %v6652
      %v6669 = vsel %vm807, %v6142, 0
      %6671 = vmatprep.subr.mxu0 0.0
      %6672 = vmatpush1.msra.mxu0 %v796
      %6673 = vmatprep.subr.mxu0 0.0
      %6674 = vmatpush1.msra.mxu0 %v797
      %6675 = vmatprep.subr.mxu0 0.0
      %6676 = vmatpush1.msra.mxu0 %v798
      %6677 = vmatprep.subr.mxu0 0.0
      %6678 = vmatpush1.msra.mxu0 %v799
      %6679 = vmatprep.subr.mxu0 0.0
      %6680 = vmatpush1.msra.mxu0 0.0
      %6681 = vmatprep.subr.mxu0 0.0
      %6682 = vmatpush1.msra.mxu0 0.0
      %6683 = vmatprep.subr.mxu0 0.0
      %6684 = vmatpush1.msra.mxu0 0.0
      %6685 = vmatprep.subr.mxu0 0.0
      %6686 = vmatpush1.msra.mxu0 0.0
      %6687 = vmatprep.subr.mxu0 0.0
      %6688 = vmatpush1.msra.mxu0 0.0
      %6689 = vmatprep.subr.mxu0 0.0
      %6690 = vmatpush1.msra.mxu0 0.0
      %6691 = vmatprep.subr.mxu0 0.0
      %6692 = vmatpush1.msra.mxu0 0.0
      %6693 = vmatprep.subr.mxu0 0.0
      %6694 = vmatpush1.msra.mxu0 0.0
      %6695 = vmatprep.subr.mxu0 0.0
      %6696 = vmatpush1.msra.mxu0 0.0
      %6697 = vmatprep.subr.mxu0 0.0
      %6698 = vmatpush1.msra.mxu0 0.0
      %6699 = vmatprep.subr.mxu0 0.0
      %6700 = vmatpush1.msra.mxu0 0.0
      %6701 = vmatprep.subr.mxu0 0.0
      %6702 = vmatpush1.msra.mxu0 0.0
      %6703 = vmatprep.subr.mxu0 0.0
      %6704 = vmatpush1.msra.mxu0 0.0
      %6705 = vmatprep.subr.mxu0 0.0
      %6706 = vmatpush1.msra.mxu0 0.0
      %6707 = vmatprep.subr.mxu0 0.0
      %6708 = vmatpush1.msra.mxu0 0.0
      %6709 = vmatprep.subr.mxu0 0.0
      %6710 = vmatpush1.msra.mxu0 0.0
      %6711 = vmatprep.subr.mxu0 0.0
      %6712 = vmatpush1.msra.mxu0 0.0
      %6713 = vmatprep.subr.mxu0 0.0
      %6714 = vmatpush1.msra.mxu0 0.0
      %6715 = vmatprep.subr.mxu0 0.0
      %6716 = vmatpush1.msra.mxu0 0.0
      %6717 = vmatprep.subr.mxu0 0.0
      %6718 = vmatpush1.msra.mxu0 0.0
      %6719 = vmatprep.subr.mxu0 0.0
      %6720 = vmatpush1.msra.mxu0 0.0
      %6721 = vmatprep.subr.mxu0 0.0
      %6722 = vmatpush1.msra.mxu0 0.0
      %6723 = vmatprep.subr.mxu0 0.0
      %6724 = vmatpush1.msra.mxu0 0.0
      %6725 = vmatprep.subr.mxu0 0.0
      %6726 = vmatpush1.msra.mxu0 0.0
      %6727 = vmatprep.subr.mxu0 0.0
      %6728 = vmatpush1.msra.mxu0 0.0
      %6729 = vmatprep.subr.mxu0 0.0
      %6730 = vmatpush1.msra.mxu0 0.0
      %6731 = vmatprep.subr.mxu0 0.0
      %6732 = vmatpush1.msra.mxu0 0.0
      %6733 = vmatprep.subr.mxu0 0.0
      %6734 = vmatpush1.msra.mxu0 0.0
      %6735 = vmatprep.mubr.f32.mxu0 0.0
      %6736 = vmatmul.mubr.f32.gmra.mrb[0].mxu0 %v6669
      %v6737 = vpop.f32.mrb[0].mxu0
      %v6738 = vadd.f32 0.0, %v6737
      %v6739 = vpop.f32.mrb[0].mxu0
      %6740 = vdwg.mxu0
      %6749 = vset.pattern.permute.xlu0 0
      %6750 = vperm.xlu0 %6749, %v6661
      %v6751 = vpop.permute.xlu0 %6750
      %6752 = vset.pattern.permute.xlu0 0
      %6753 = vperm.xlu0 %6752, %v6662
      %v6754 = vpop.permute.xlu0 %6753
      %6755 = vset.pattern.permute.xlu0 0
      %6756 = vperm.xlu0 %6755, %v6663
      %v6757 = vpop.permute.xlu0 %6756
      %6758 = vset.pattern.permute.xlu0 0
      %6759 = vperm.xlu0 %6758, %v6664
      %v6760 = vpop.permute.xlu0 %6759
      %6761 = vset.pattern.permute.xlu0 0
      %6762 = vperm.xlu0 %6761, %v6665
      %v6763 = vpop.permute.xlu0 %6762
      %6764 = vset.pattern.permute.xlu0 0
      %6765 = vperm.xlu0 %6764, %v6666
      %v6766 = vpop.permute.xlu0 %6765
      %6767 = vset.pattern.permute.xlu0 0
      %6768 = vperm.xlu0 %6767, %v6667
      %v6769 = vpop.permute.xlu0 %6768
      %6770 = vset.pattern.permute.xlu0 0
      %6771 = vperm.xlu0 %6770, %v6668
      %v6772 = vpop.permute.xlu0 %6771
      %v6773 = vlaneseq
      %v6774 = vshrl.u32 %v6773, 7
      %v6775 = vsub.s32 %v1043, %v6774
      %v6776 = vrot.slane %v6751, %v6775
      %v6777 = vlaneseq
      %v6778 = vshrl.u32 %v6777, 7
      %v6779 = vsub.s32 %v1043, %v6778
      %v6780 = vrot.slane %v6754, %v6779
      %v6781 = vlaneseq
      %v6782 = vshrl.u32 %v6781, 7
      %v6783 = vsub.s32 %v1043, %v6782
      %v6784 = vrot.slane %v6757, %v6783
      %v6785 = vlaneseq
      %v6786 = vshrl.u32 %v6785, 7
      %v6787 = vsub.s32 %v1043, %v6786
      %v6788 = vrot.slane %v6760, %v6787
      %v6789 = vlaneseq
      %v6790 = vshrl.u32 %v6789, 7
      %v6791 = vsub.s32 %v1043, %v6790
      %v6792 = vrot.slane %v6763, %v6791
      %v6793 = vlaneseq
      %v6794 = vshrl.u32 %v6793, 7
      %v6795 = vsub.s32 %v1043, %v6794
      %v6796 = vrot.slane %v6766, %v6795
      %v6797 = vlaneseq
      %v6798 = vshrl.u32 %v6797, 7
      %v6799 = vsub.s32 %v1043, %v6798
      %v6800 = vrot.slane %v6769, %v6799
      %v6801 = vlaneseq
      %v6802 = vshrl.u32 %v6801, 7
      %v6803 = vsub.s32 %v1043, %v6802
      %v6804 = vrot.slane %v6772, %v6803
      %v6805 = vsel %vm1076, %v6780, %v6776
      %v6806 = vsel %vm1078, %v6784, %v6805
      %v6807 = vsel %vm1080, %v6788, %v6806
      %v6808 = vsel %vm1082, %v6792, %v6807
      %v6809 = vsel %vm1084, %v6796, %v6808
      %v6810 = vsel %vm1086, %v6800, %v6809
      %v6811 = vsel %vm1088, %v6804, %v6810
      %v6812 = vsel %vm1091, %v6811, 0
      %6814 = vmatprep.subr.mxu0 0.0
      %6815 = vmatpush1.msra.mxu0 %v1513
      %6816 = vmatprep.subr.mxu0 0.0
      %6817 = vmatpush1.msra.mxu0 0.0
      %6818 = vmatprep.subr.mxu0 0.0
      %6819 = vmatpush1.msra.mxu0 0.0
      %6820 = vmatprep.subr.mxu0 0.0
      %6821 = vmatpush1.msra.mxu0 0.0
      %6822 = vmatprep.subr.mxu0 0.0
      %6823 = vmatpush1.msra.mxu0 0.0
      %6824 = vmatprep.subr.mxu0 0.0
      %6825 = vmatpush1.msra.mxu0 0.0
      %6826 = vmatprep.subr.mxu0 0.0
      %6827 = vmatpush1.msra.mxu0 0.0
      %6828 = vmatprep.subr.mxu0 0.0
      %6829 = vmatpush1.msra.mxu0 0.0
      %6830 = vmatprep.subr.mxu0 0.0
      %6831 = vmatpush1.msra.mxu0 0.0
      %6832 = vmatprep.subr.mxu0 0.0
      %6833 = vmatpush1.msra.mxu0 0.0
      %6834 = vmatprep.subr.mxu0 0.0
      %6835 = vmatpush1.msra.mxu0 0.0
      %6836 = vmatprep.subr.mxu0 0.0
      %6837 = vmatpush1.msra.mxu0 0.0
      %6838 = vmatprep.subr.mxu0 0.0
      %6839 = vmatpush1.msra.mxu0 0.0
      %6840 = vmatprep.subr.mxu0 0.0
      %6841 = vmatpush1.msra.mxu0 0.0
      %6842 = vmatprep.subr.mxu0 0.0
      %6843 = vmatpush1.msra.mxu0 0.0
      %6844 = vmatprep.subr.mxu0 0.0
      %6845 = vmatpush1.msra.mxu0 0.0
      %6846 = vmatprep.subr.mxu0 0.0
      %6847 = vmatpush1.msra.mxu0 0.0
      %6848 = vmatprep.subr.mxu0 0.0
      %6849 = vmatpush1.msra.mxu0 0.0
      %6850 = vmatprep.subr.mxu0 0.0
      %6851 = vmatpush1.msra.mxu0 0.0
      %6852 = vmatprep.subr.mxu0 0.0
      %6853 = vmatpush1.msra.mxu0 0.0
      %6854 = vmatprep.subr.mxu0 0.0
      %6855 = vmatpush1.msra.mxu0 0.0
      %6856 = vmatprep.subr.mxu0 0.0
      %6857 = vmatpush1.msra.mxu0 0.0
      %6858 = vmatprep.subr.mxu0 0.0
      %6859 = vmatpush1.msra.mxu0 0.0
      %6860 = vmatprep.subr.mxu0 0.0
      %6861 = vmatpush1.msra.mxu0 0.0
      %6862 = vmatprep.subr.mxu0 0.0
      %6863 = vmatpush1.msra.mxu0 0.0
      %6864 = vmatprep.subr.mxu0 0.0
      %6865 = vmatpush1.msra.mxu0 0.0
      %6866 = vmatprep.subr.mxu0 0.0
      %6867 = vmatpush1.msra.mxu0 0.0
      %6868 = vmatprep.subr.mxu0 0.0
      %6869 = vmatpush1.msra.mxu0 0.0
      %6870 = vmatprep.subr.mxu0 0.0
      %6871 = vmatpush1.msra.mxu0 0.0
      %6872 = vmatprep.subr.mxu0 0.0
      %6873 = vmatpush1.msra.mxu0 0.0
      %6874 = vmatprep.subr.mxu0 0.0
      %6875 = vmatpush1.msra.mxu0 0.0
      %6876 = vmatprep.subr.mxu0 0.0
      %6877 = vmatpush1.msra.mxu0 0.0
      %6878 = vmatprep.mubr.f32.mxu0 0.0
      %6879 = vmatmul.mubr.f32.gmra.mrb[0].mxu0 %v6812
      %v6880 = vpop.f32.mrb[0].mxu0
      %v6881 = vadd.f32 %v6738, %v6880
      %v6882 = vpop.f32.mrb[0].mxu0
      %6883 = vdwg.mxu0
      %v6884 = vadd.f32 %v6881, %v1589
      %v6885 = vxor.u32 %v6884, 2147483648
      %v6886 = vmul.f32 %v6885, 1.442695
      %v6887 = vpow.pop %v6886
      %v6888 = vadd.f32 %v6887, 1.0
      %v6889 = vrcp.pop %v6888
      %v6890 = vmul.f32 1.0, %v6889
      %v6891 = vtanh.pop %v6884
      %v6892 = vmul.f32 %v6890, %v6020
      %6894 = vrot.lane.b32.xlu0 %v6891, 64
      %v6895 = vpop.permute.xlu0 %6894
      %v6897 = vmul.f32 %v6890, %v6895
      %6899 = vrot.lane.b32.xlu0 %v6897, 32
      %v6900 = vpop.permute.xlu0 %6899
      %v6902 = vadd.f32 %v6892, %v6900
      %v6903 = vtanh.pop %v6902
      %6905 = vrot.lane.b32.xlu0 %v6903, 64
      %v6906 = vpop.permute.xlu0 %6905
      %v6908 = vmul.f32 %v6890, %v6906
      %v6910 = vcombine.high %v6908, %v6908
      %v6912 = vunpack.c.l.s4 1966171168
      %v6913 = vunpack.c.0.s8 %v6912
      %v6914 = vlaneseq
      %v6915 = vshrl.u32 %v6914, 7
      %v6916 = vsub.s32 %v6913, %v6915
      %v6917 = vrot.slane %v6908, %v6916
      %v6919 = vunpack.c.l.s4 1966171168
      %v6920 = vunpack.c.0.s8 %v6919
      %v6921 = vlaneseq
      %v6922 = vshrl.u32 %v6921, 7
      %v6923 = vsub.s32 %v6920, %v6922
      %v6924 = vrot.slane %v6910, %v6923
      %v6925 = vcombine.high %v6917, %v6917
      %v6926 = vcombine.high %v6924, %v6924
      %v6928 = vunpack.c.l.s4 1966171168
      %v6929 = vunpack.c.0.s8 %v6928
      %v6930 = vlaneseq
      %v6931 = vshrl.u32 %v6930, 7
      %v6932 = vsub.s32 %v6929, %v6931
      %v6933 = vrot.slane %v6917, %v6932
      %v6935 = vunpack.c.l.s4 1966171168
      %v6936 = vunpack.c.0.s8 %v6935
      %v6937 = vlaneseq
      %v6938 = vshrl.u32 %v6937, 7
      %v6939 = vsub.s32 %v6936, %v6938
      %v6940 = vrot.slane %v6924, %v6939
      %v6942 = vunpack.c.l.s4 1966171168
      %v6943 = vunpack.c.0.s8 %v6942
      %v6944 = vlaneseq
      %v6945 = vshrl.u32 %v6944, 7
      %v6946 = vsub.s32 %v6943, %v6945
      %v6947 = vrot.slane %v6925, %v6946
      %v6949 = vunpack.c.l.s4 1966171168
      %v6950 = vunpack.c.0.s8 %v6949
      %v6951 = vlaneseq
      %v6952 = vshrl.u32 %v6951, 7
      %v6953 = vsub.s32 %v6950, %v6952
      %v6954 = vrot.slane %v6926, %v6953
      %v6955 = vcombine.high %v6933, %v6933
      %v6956 = vcombine.high %v6940, %v6940
      %v6957 = vcombine.high %v6947, %v6947
      %v6958 = vcombine.high %v6954, %v6954
      %v6959 = vlaneseq
      %v6960 = vshrl.u32 %v6959, 7
      %v6961 = vsub.s32 0, %v6960
      %v6962 = vrot.slane %v6933, %v6961
      %v6963 = vlaneseq
      %v6964 = vshrl.u32 %v6963, 7
      %v6965 = vsub.s32 0, %v6964
      %v6966 = vrot.slane %v6947, %v6965
      %v6967 = vlaneseq
      %v6968 = vshrl.u32 %v6967, 7
      %v6969 = vsub.s32 0, %v6968
      %v6970 = vrot.slane %v6955, %v6969
      %v6971 = vlaneseq
      %v6972 = vshrl.u32 %v6971, 7
      %v6973 = vsub.s32 0, %v6972
      %v6974 = vrot.slane %v6957, %v6973
      %v6975 = vlaneseq
      %v6976 = vshrl.u32 %v6975, 7
      %v6977 = vsub.s32 0, %v6976
      %v6978 = vrot.slane %v6940, %v6977
      %v6979 = vlaneseq
      %v6980 = vshrl.u32 %v6979, 7
      %v6981 = vsub.s32 0, %v6980
      %v6982 = vrot.slane %v6954, %v6981
      %v6983 = vlaneseq
      %v6984 = vshrl.u32 %v6983, 7
      %v6985 = vsub.s32 0, %v6984
      %v6986 = vrot.slane %v6956, %v6985
      %v6987 = vlaneseq
      %v6988 = vshrl.u32 %v6987, 7
      %v6989 = vsub.s32 0, %v6988
      %v6990 = vrot.slane %v6958, %v6989
      %6991 = vrot.lane.b32.xlu0 %v6962, 32
      %v6992 = vpop.permute.xlu0 %6991
      %6993 = vrot.lane.b32.xlu0 %v6966, 32
      %v6994 = vpop.permute.xlu0 %6993
      %6995 = vrot.lane.b32.xlu0 %v6970, 32
      %v6996 = vpop.permute.xlu0 %6995
      %6997 = vrot.lane.b32.xlu0 %v6974, 32
      %v6998 = vpop.permute.xlu0 %6997
      %6999 = vrot.lane.b32.xlu0 %v6978, 32
      %v7000 = vpop.permute.xlu0 %6999
      %7001 = vrot.lane.b32.xlu0 %v6982, 32
      %v7002 = vpop.permute.xlu0 %7001
      %7003 = vrot.lane.b32.xlu0 %v6986, 32
      %v7004 = vpop.permute.xlu0 %7003
      %7005 = vrot.lane.b32.xlu0 %v6990, 32
      %v7006 = vpop.permute.xlu0 %7005
      %7015 = vst.msk [vmem:[#allocation2 + $0x6] sm:$0x1] %vm1722, %v6992
      %7016 = vst.msk [vmem:[#allocation2 + $0xe] sm:$0x1] %vm1722, %v6994
      %7017 = vst.msk [vmem:[#allocation2 + $0x16] sm:$0x1] %vm1722, %v6996
      %7018 = vst.msk [vmem:[#allocation2 + $0x1e] sm:$0x1] %vm1722, %v6998
      %7019 = vst.msk [vmem:[#allocation2 + $0x26] sm:$0x1] %vm1722, %v7000
      %7020 = vst.msk [vmem:[#allocation2 + $0x2e] sm:$0x1] %vm1722, %v7002
      %7021 = vst.msk [vmem:[#allocation2 + $0x36] sm:$0x1] %vm1722, %v7004
      %7022 = vst.msk [vmem:[#allocation2 + $0x3e] sm:$0x1] %vm1722, %v7006
      %7023 = vrot.lane.b32.xlu0 %v6908, 32
      %v7024 = vpop.permute.xlu0 %7023
      %v7026 = vsel %vm807, %v7024, %v6902
      %v7028 = vsel %vm815, %v7026, 0
      %7030 = vmatprep.subr.mxu0 0.0
      %7031 = vmatpush1.msra.mxu0 %v785
      %7032 = vmatprep.subr.mxu0 0.0
      %7033 = vmatpush1.msra.mxu0 %v786
      %7034 = vmatprep.subr.mxu0 0.0
      %7035 = vmatpush1.msra.mxu0 %v787
      %7036 = vmatprep.subr.mxu0 0.0
      %7037 = vmatpush1.msra.mxu0 %v788
      %7038 = vmatprep.subr.mxu0 0.0
      %7039 = vmatpush1.msra.mxu0 %v789
      %7040 = vmatprep.subr.mxu0 0.0
      %7041 = vmatpush1.msra.mxu0 %v790
      %7042 = vmatprep.subr.mxu0 0.0
      %7043 = vmatpush1.msra.mxu0 %v791
      %7044 = vmatprep.subr.mxu0 0.0
      %7045 = vmatpush1.msra.mxu0 %v792
      %7046 = vmatprep.subr.mxu0 0.0
      %7047 = vmatpush1.msra.mxu0 0.0
      %7048 = vmatprep.subr.mxu0 0.0
      %7049 = vmatpush1.msra.mxu0 0.0
      %7050 = vmatprep.subr.mxu0 0.0
      %7051 = vmatpush1.msra.mxu0 0.0
      %7052 = vmatprep.subr.mxu0 0.0
      %7053 = vmatpush1.msra.mxu0 0.0
      %7054 = vmatprep.subr.mxu0 0.0
      %7055 = vmatpush1.msra.mxu0 0.0
      %7056 = vmatprep.subr.mxu0 0.0
      %7057 = vmatpush1.msra.mxu0 0.0
      %7058 = vmatprep.subr.mxu0 0.0
      %7059 = vmatpush1.msra.mxu0 0.0
      %7060 = vmatprep.subr.mxu0 0.0
      %7061 = vmatpush1.msra.mxu0 0.0
      %7062 = vmatprep.subr.mxu0 0.0
      %7063 = vmatpush1.msra.mxu0 0.0
      %7064 = vmatprep.subr.mxu0 0.0
      %7065 = vmatpush1.msra.mxu0 0.0
      %7066 = vmatprep.subr.mxu0 0.0
      %7067 = vmatpush1.msra.mxu0 0.0
      %7068 = vmatprep.subr.mxu0 0.0
      %7069 = vmatpush1.msra.mxu0 0.0
      %7070 = vmatprep.subr.mxu0 0.0
      %7071 = vmatpush1.msra.mxu0 0.0
      %7072 = vmatprep.subr.mxu0 0.0
      %7073 = vmatpush1.msra.mxu0 0.0
      %7074 = vmatprep.subr.mxu0 0.0
      %7075 = vmatpush1.msra.mxu0 0.0
      %7076 = vmatprep.subr.mxu0 0.0
      %7077 = vmatpush1.msra.mxu0 0.0
      %7078 = vmatprep.subr.mxu0 0.0
      %7079 = vmatpush1.msra.mxu0 0.0
      %7080 = vmatprep.subr.mxu0 0.0
      %7081 = vmatpush1.msra.mxu0 0.0
      %7082 = vmatprep.subr.mxu0 0.0
      %7083 = vmatpush1.msra.mxu0 0.0
      %7084 = vmatprep.subr.mxu0 0.0
      %7085 = vmatpush1.msra.mxu0 0.0
      %7086 = vmatprep.subr.mxu0 0.0
      %7087 = vmatpush1.msra.mxu0 0.0
      %7088 = vmatprep.subr.mxu0 0.0
      %7089 = vmatpush1.msra.mxu0 0.0
      %7090 = vmatprep.subr.mxu0 0.0
      %7091 = vmatpush1.msra.mxu0 0.0
      %7092 = vmatprep.subr.mxu0 0.0
      %7093 = vmatpush1.msra.mxu0 0.0
      %7094 = vmatprep.mubr.f32.mxu0 0.0
      %7095 = vmatmul.mubr.f32.gmra.mrb[0].mxu0 %v7028
      %v7096 = vpop.f32.mrb[0].mxu0
      %v7097 = vadd.f32 %v813, %v7096
      %v7098 = vpop.f32.mrb[0].mxu0
      %7099 = vdwg.mxu0
      %v7101 = vcombine.high %v7097, %v7097
      %v7103 = vunpack.c.l.s4 1966171168
      %v7104 = vunpack.c.0.s8 %v7103
      %v7105 = vlaneseq
      %v7106 = vshrl.u32 %v7105, 7
      %v7107 = vsub.s32 %v7104, %v7106
      %v7108 = vrot.slane %v7097, %v7107
      %v7110 = vunpack.c.l.s4 1966171168
      %v7111 = vunpack.c.0.s8 %v7110
      %v7112 = vlaneseq
      %v7113 = vshrl.u32 %v7112, 7
      %v7114 = vsub.s32 %v7111, %v7113
      %v7115 = vrot.slane %v7101, %v7114
      %v7116 = vcombine.high %v7108, %v7108
      %v7117 = vcombine.high %v7115, %v7115
      %v7119 = vunpack.c.l.s4 1966171168
      %v7120 = vunpack.c.0.s8 %v7119
      %v7121 = vlaneseq
      %v7122 = vshrl.u32 %v7121, 7
      %v7123 = vsub.s32 %v7120, %v7122
      %v7124 = vrot.slane %v7108, %v7123
      %v7126 = vunpack.c.l.s4 1966171168
      %v7127 = vunpack.c.0.s8 %v7126
      %v7128 = vlaneseq
      %v7129 = vshrl.u32 %v7128, 7
      %v7130 = vsub.s32 %v7127, %v7129
      %v7131 = vrot.slane %v7115, %v7130
      %v7133 = vunpack.c.l.s4 1966171168
      %v7134 = vunpack.c.0.s8 %v7133
      %v7135 = vlaneseq
      %v7136 = vshrl.u32 %v7135, 7
      %v7137 = vsub.s32 %v7134, %v7136
      %v7138 = vrot.slane %v7116, %v7137
      %v7140 = vunpack.c.l.s4 1966171168
      %v7141 = vunpack.c.0.s8 %v7140
      %v7142 = vlaneseq
      %v7143 = vshrl.u32 %v7142, 7
      %v7144 = vsub.s32 %v7141, %v7143
      %v7145 = vrot.slane %v7117, %v7144
      %v7146 = vcombine.high %v7124, %v7124
      %v7147 = vcombine.high %v7131, %v7131
      %v7148 = vcombine.high %v7138, %v7138
      %v7149 = vcombine.high %v7145, %v7145
      %v7150 = vlaneseq
      %v7151 = vshrl.u32 %v7150, 7
      %v7152 = vsub.s32 0, %v7151
      %v7153 = vrot.slane %v7124, %v7152
      %v7154 = vlaneseq
      %v7155 = vshrl.u32 %v7154, 7
      %v7156 = vsub.s32 0, %v7155
      %v7157 = vrot.slane %v7138, %v7156
      %v7158 = vlaneseq
      %v7159 = vshrl.u32 %v7158, 7
      %v7160 = vsub.s32 0, %v7159
      %v7161 = vrot.slane %v7146, %v7160
      %v7162 = vlaneseq
      %v7163 = vshrl.u32 %v7162, 7
      %v7164 = vsub.s32 0, %v7163
      %v7165 = vrot.slane %v7148, %v7164
      %v7166 = vlaneseq
      %v7167 = vshrl.u32 %v7166, 7
      %v7168 = vsub.s32 0, %v7167
      %v7169 = vrot.slane %v7131, %v7168
      %v7170 = vlaneseq
      %v7171 = vshrl.u32 %v7170, 7
      %v7172 = vsub.s32 0, %v7171
      %v7173 = vrot.slane %v7145, %v7172
      %v7174 = vlaneseq
      %v7175 = vshrl.u32 %v7174, 7
      %v7176 = vsub.s32 0, %v7175
      %v7177 = vrot.slane %v7147, %v7176
      %v7178 = vlaneseq
      %v7179 = vshrl.u32 %v7178, 7
      %v7180 = vsub.s32 0, %v7179
      %v7181 = vrot.slane %v7149, %v7180
      %v7190 = vadd.f32 %v747, %v7153
      %v7191 = vadd.f32 %v769, %v7157
      %v7192 = vadd.f32 %v752, %v7161
      %v7193 = vadd.f32 %v770, %v7165
      %v7194 = vadd.f32 %v757, %v7169
      %v7195 = vadd.f32 %v771, %v7173
      %v7196 = vadd.f32 %v762, %v7177
      %v7197 = vadd.f32 %v772, %v7181
      %v7198 = vtanh.pop %v7190
      %v7199 = vtanh.pop %v7191
      %v7200 = vtanh.pop %v7192
      %v7201 = vtanh.pop %v7193
      %v7202 = vtanh.pop %v7194
      %v7203 = vtanh.pop %v7195
      %v7204 = vtanh.pop %v7196
      %v7205 = vtanh.pop %v7197
      %v7206 = vmul.f32 %v7198, %v999
      %v7207 = vmul.f32 %v7199, %v999
      %v7208 = vmul.f32 %v7200, %v999
      %v7209 = vmul.f32 %v7201, %v999
      %v7210 = vmul.f32 %v7202, %v999
      %v7211 = vmul.f32 %v7203, %v999
      %v7212 = vmul.f32 %v7204, %v999
      %v7213 = vmul.f32 %v7205, %v999
      %v7214 = vsel %vm1009, %v7206, 0.0
      %7215 = vadd.xlane.f32.xlu0 %v7214
      %v7216 = vpop.xlane.xlu0 %7215
      %v7217 = vsel %vm1009, %v7207, 0.0
      %7218 = vadd.xlane.f32.xlu0 %v7217
      %v7219 = vpop.xlane.xlu0 %7218
      %v7220 = vsel %vm1009, %v7208, 0.0
      %7221 = vadd.xlane.f32.xlu0 %v7220
      %v7222 = vpop.xlane.xlu0 %7221
      %v7223 = vsel %vm1009, %v7209, 0.0
      %7224 = vadd.xlane.f32.xlu0 %v7223
      %v7225 = vpop.xlane.xlu0 %7224
      %v7226 = vsel %vm1009, %v7210, 0.0
      %7227 = vadd.xlane.f32.xlu0 %v7226
      %v7228 = vpop.xlane.xlu0 %7227
      %v7229 = vsel %vm1009, %v7211, 0.0
      %7230 = vadd.xlane.f32.xlu0 %v7229
      %v7231 = vpop.xlane.xlu0 %7230
      %v7232 = vsel %vm1009, %v7212, 0.0
      %7233 = vadd.xlane.f32.xlu0 %v7232
      %v7234 = vpop.xlane.xlu0 %7233
      %v7235 = vsel %vm1009, %v7213, 0.0
      %7236 = vadd.xlane.f32.xlu0 %v7235
      %v7237 = vpop.xlane.xlu0 %7236
      %v7246 = vlaneseq
      %v7247 = vshrl.u32 %v7246, 7
      %v7248 = vsub.s32 %v1043, %v7247
      %v7249 = vrot.slane %v7216, %v7248
      %v7250 = vlaneseq
      %v7251 = vshrl.u32 %v7250, 7
      %v7252 = vsub.s32 %v1043, %v7251
      %v7253 = vrot.slane %v7219, %v7252
      %v7254 = vlaneseq
      %v7255 = vshrl.u32 %v7254, 7
      %v7256 = vsub.s32 %v1043, %v7255
      %v7257 = vrot.slane %v7222, %v7256
      %v7258 = vlaneseq
      %v7259 = vshrl.u32 %v7258, 7
      %v7260 = vsub.s32 %v1043, %v7259
      %v7261 = vrot.slane %v7225, %v7260
      %v7262 = vlaneseq
      %v7263 = vshrl.u32 %v7262, 7
      %v7264 = vsub.s32 %v1043, %v7263
      %v7265 = vrot.slane %v7228, %v7264
      %v7266 = vlaneseq
      %v7267 = vshrl.u32 %v7266, 7
      %v7268 = vsub.s32 %v1043, %v7267
      %v7269 = vrot.slane %v7231, %v7268
      %v7270 = vlaneseq
      %v7271 = vshrl.u32 %v7270, 7
      %v7272 = vsub.s32 %v1043, %v7271
      %v7273 = vrot.slane %v7234, %v7272
      %v7274 = vlaneseq
      %v7275 = vshrl.u32 %v7274, 7
      %v7276 = vsub.s32 %v1043, %v7275
      %v7277 = vrot.slane %v7237, %v7276
      %v7278 = vsel %vm1076, %v7253, %v7249
      %v7279 = vsel %vm1078, %v7257, %v7278
      %v7280 = vsel %vm1080, %v7261, %v7279
      %v7281 = vsel %vm1082, %v7265, %v7280
      %v7282 = vsel %vm1084, %v7269, %v7281
      %v7283 = vsel %vm1086, %v7273, %v7282
      %v7284 = vsel %vm1088, %v7277, %v7283
      %v7286 = vsel %vm1091, %v7284, -inf
      %7287 = vmax.xlane.f32.xlu0 %v7286
      %v7288 = vpop.xlane.xlu0 %7287
      %v7290 = vlaneseq
      %v7291 = vshrl.u32 %v7290, 7
      %v7292 = vsub.s32 0, %v7291
      %v7293 = vrot.slane %v7288, %v7292
      %v7294 = vlaneseq
      %v7295 = vshrl.u32 %v7294, 7
      %v7296 = vsub.s32 1, %v7295
      %v7297 = vrot.slane %v7288, %v7296
      %v7298 = vlaneseq
      %v7299 = vshrl.u32 %v7298, 7
      %v7300 = vsub.s32 2, %v7299
      %v7301 = vrot.slane %v7288, %v7300
      %v7302 = vlaneseq
      %v7303 = vshrl.u32 %v7302, 7
      %v7304 = vsub.s32 3, %v7303
      %v7305 = vrot.slane %v7288, %v7304
      %v7306 = vlaneseq
      %v7307 = vshrl.u32 %v7306, 7
      %v7308 = vsub.s32 4, %v7307
      %v7309 = vrot.slane %v7288, %v7308
      %v7310 = vlaneseq
      %v7311 = vshrl.u32 %v7310, 7
      %v7312 = vsub.s32 5, %v7311
      %v7313 = vrot.slane %v7288, %v7312
      %v7314 = vlaneseq
      %v7315 = vshrl.u32 %v7314, 7
      %v7316 = vsub.s32 6, %v7315
      %v7317 = vrot.slane %v7288, %v7316
      %v7318 = vlaneseq
      %v7319 = vshrl.u32 %v7318, 7
      %v7320 = vsub.s32 7, %v7319
      %v7321 = vrot.slane %v7288, %v7320
      %v7330 = vsub.f32 %v7216, %v7293
      %v7331 = vsub.f32 %v7219, %v7297
      %v7332 = vsub.f32 %v7222, %v7301
      %v7333 = vsub.f32 %v7225, %v7305
      %v7334 = vsub.f32 %v7228, %v7309
      %v7335 = vsub.f32 %v7231, %v7313
      %v7336 = vsub.f32 %v7234, %v7317
      %v7337 = vsub.f32 %v7237, %v7321
      %v7338 = vmul.f32 %v7330, 1.442695
      %v7339 = vpow.pop %v7338
      %v7340 = vmul.f32 %v7331, 1.442695
      %v7341 = vpow.pop %v7340
      %v7342 = vmul.f32 %v7332, 1.442695
      %v7343 = vpow.pop %v7342
      %v7344 = vmul.f32 %v7333, 1.442695
      %v7345 = vpow.pop %v7344
      %v7346 = vmul.f32 %v7334, 1.442695
      %v7347 = vpow.pop %v7346
      %v7348 = vmul.f32 %v7335, 1.442695
      %v7349 = vpow.pop %v7348
      %v7350 = vmul.f32 %v7336, 1.442695
      %v7351 = vpow.pop %v7350
      %v7352 = vmul.f32 %v7337, 1.442695
      %v7353 = vpow.pop %v7352
      %7362 = vset.pattern.permute.xlu0 0
      %7363 = vperm.xlu0 %7362, %v7339
      %v7364 = vpop.permute.xlu0 %7363
      %7365 = vset.pattern.permute.xlu0 0
      %7366 = vperm.xlu0 %7365, %v7341
      %v7367 = vpop.permute.xlu0 %7366
      %7368 = vset.pattern.permute.xlu0 0
      %7369 = vperm.xlu0 %7368, %v7343
      %v7370 = vpop.permute.xlu0 %7369
      %7371 = vset.pattern.permute.xlu0 0
      %7372 = vperm.xlu0 %7371, %v7345
      %v7373 = vpop.permute.xlu0 %7372
      %7374 = vset.pattern.permute.xlu0 0
      %7375 = vperm.xlu0 %7374, %v7347
      %v7376 = vpop.permute.xlu0 %7375
      %7377 = vset.pattern.permute.xlu0 0
      %7378 = vperm.xlu0 %7377, %v7349
      %v7379 = vpop.permute.xlu0 %7378
      %7380 = vset.pattern.permute.xlu0 0
      %7381 = vperm.xlu0 %7380, %v7351
      %v7382 = vpop.permute.xlu0 %7381
      %7383 = vset.pattern.permute.xlu0 0
      %7384 = vperm.xlu0 %7383, %v7353
      %v7385 = vpop.permute.xlu0 %7384
      %v7386 = vlaneseq
      %v7387 = vshrl.u32 %v7386, 7
      %v7388 = vsub.s32 %v1043, %v7387
      %v7389 = vrot.slane %v7364, %v7388
      %v7390 = vlaneseq
      %v7391 = vshrl.u32 %v7390, 7
      %v7392 = vsub.s32 %v1043, %v7391
      %v7393 = vrot.slane %v7367, %v7392
      %v7394 = vlaneseq
      %v7395 = vshrl.u32 %v7394, 7
      %v7396 = vsub.s32 %v1043, %v7395
      %v7397 = vrot.slane %v7370, %v7396
      %v7398 = vlaneseq
      %v7399 = vshrl.u32 %v7398, 7
      %v7400 = vsub.s32 %v1043, %v7399
      %v7401 = vrot.slane %v7373, %v7400
      %v7402 = vlaneseq
      %v7403 = vshrl.u32 %v7402, 7
      %v7404 = vsub.s32 %v1043, %v7403
      %v7405 = vrot.slane %v7376, %v7404
      %v7406 = vlaneseq
      %v7407 = vshrl.u32 %v7406, 7
      %v7408 = vsub.s32 %v1043, %v7407
      %v7409 = vrot.slane %v7379, %v7408
      %v7410 = vlaneseq
      %v7411 = vshrl.u32 %v7410, 7
      %v7412 = vsub.s32 %v1043, %v7411
      %v7413 = vrot.slane %v7382, %v7412
      %v7414 = vlaneseq
      %v7415 = vshrl.u32 %v7414, 7
      %v7416 = vsub.s32 %v1043, %v7415
      %v7417 = vrot.slane %v7385, %v7416
      %v7418 = vsel %vm1076, %v7393, %v7389
      %v7419 = vsel %vm1078, %v7397, %v7418
      %v7420 = vsel %vm1080, %v7401, %v7419
      %v7421 = vsel %vm1082, %v7405, %v7420
      %v7422 = vsel %vm1084, %v7409, %v7421
      %v7423 = vsel %vm1086, %v7413, %v7422
      %v7424 = vsel %vm1088, %v7417, %v7423
      %v7426 = vsel %vm1091, %v7424, 0.0
      %7427 = vadd.xlane.f32.xlu0 %v7426
      %v7428 = vpop.xlane.xlu0 %7427
      %v7429 = vrcp.pop %v7428
      %v7431 = vlaneseq
      %v7432 = vshrl.u32 %v7431, 7
      %v7433 = vsub.s32 0, %v7432
      %v7434 = vrot.slane %v7429, %v7433
      %v7435 = vlaneseq
      %v7436 = vshrl.u32 %v7435, 7
      %v7437 = vsub.s32 1, %v7436
      %v7438 = vrot.slane %v7429, %v7437
      %v7439 = vlaneseq
      %v7440 = vshrl.u32 %v7439, 7
      %v7441 = vsub.s32 2, %v7440
      %v7442 = vrot.slane %v7429, %v7441
      %v7443 = vlaneseq
      %v7444 = vshrl.u32 %v7443, 7
      %v7445 = vsub.s32 3, %v7444
      %v7446 = vrot.slane %v7429, %v7445
      %v7447 = vlaneseq
      %v7448 = vshrl.u32 %v7447, 7
      %v7449 = vsub.s32 4, %v7448
      %v7450 = vrot.slane %v7429, %v7449
      %v7451 = vlaneseq
      %v7452 = vshrl.u32 %v7451, 7
      %v7453 = vsub.s32 5, %v7452
      %v7454 = vrot.slane %v7429, %v7453
      %v7455 = vlaneseq
      %v7456 = vshrl.u32 %v7455, 7
      %v7457 = vsub.s32 6, %v7456
      %v7458 = vrot.slane %v7429, %v7457
      %v7459 = vlaneseq
      %v7460 = vshrl.u32 %v7459, 7
      %v7461 = vsub.s32 7, %v7460
      %v7462 = vrot.slane %v7429, %v7461
      %v7471 = vmul.f32 %v7339, %v7434
      %v7472 = vmul.f32 %v7341, %v7438
      %v7473 = vmul.f32 %v7343, %v7442
      %v7474 = vmul.f32 %v7345, %v7446
      %v7475 = vmul.f32 %v7347, %v7450
      %v7476 = vmul.f32 %v7349, %v7454
      %v7477 = vmul.f32 %v7351, %v7458
      %v7478 = vmul.f32 %v7353, %v7462
      %v7479 = vlaneseq
      %v7480 = vshrl.u32 %v7479, 7
      %v7481 = vsub.s32 7, %v7480
      %v7482 = vrot.slane %v777, %v7481
      %7484 = vbcast.lane.b32.xlu0 %v7482, 256
      %v7485 = vpop.permute.xlu0 %7484
      %v7486 = vlaneseq
      %v7487 = vshrl.u32 %v7486, 7
      %v7488 = vsub.s32 7, %v7487
      %v7489 = vrot.slane %v778, %v7488
      %7491 = vbcast.lane.b32.xlu0 %v7489, 256
      %v7492 = vpop.permute.xlu0 %7491
      %v7493 = vlaneseq
      %v7494 = vshrl.u32 %v7493, 7
      %v7495 = vsub.s32 7, %v7494
      %v7496 = vrot.slane %v779, %v7495
      %7498 = vbcast.lane.b32.xlu0 %v7496, 256
      %v7499 = vpop.permute.xlu0 %7498
      %v7500 = vlaneseq
      %v7501 = vshrl.u32 %v7500, 7
      %v7502 = vsub.s32 7, %v7501
      %v7503 = vrot.slane %v780, %v7502
      %7505 = vbcast.lane.b32.xlu0 %v7503, 256
      %v7506 = vpop.permute.xlu0 %7505
      %v7507 = vlaneseq
      %v7508 = vshrl.u32 %v7507, 7
      %v7509 = vsub.s32 7, %v7508
      %v7510 = vrot.slane %v781, %v7509
      %7512 = vbcast.lane.b32.xlu0 %v7510, 256
      %v7513 = vpop.permute.xlu0 %7512
      %v7514 = vlaneseq
      %v7515 = vshrl.u32 %v7514, 7
      %v7516 = vsub.s32 7, %v7515
      %v7517 = vrot.slane %v782, %v7516
      %7519 = vbcast.lane.b32.xlu0 %v7517, 256
      %v7520 = vpop.permute.xlu0 %7519
      %v7521 = vlaneseq
      %v7522 = vshrl.u32 %v7521, 7
      %v7523 = vsub.s32 7, %v7522
      %v7524 = vrot.slane %v783, %v7523
      %7526 = vbcast.lane.b32.xlu0 %v7524, 256
      %v7527 = vpop.permute.xlu0 %7526
      %v7528 = vlaneseq
      %v7529 = vshrl.u32 %v7528, 7
      %v7530 = vsub.s32 7, %v7529
      %v7531 = vrot.slane %v784, %v7530
      %7533 = vbcast.lane.b32.xlu0 %v7531, 256
      %v7534 = vpop.permute.xlu0 %7533
      %v7543 = vmul.f32 %v7471, %v7485
      %v7544 = vmul.f32 %v7472, %v7492
      %v7545 = vmul.f32 %v7473, %v7499
      %v7546 = vmul.f32 %v7474, %v7506
      %v7547 = vmul.f32 %v7475, %v7513
      %v7548 = vmul.f32 %v7476, %v7520
      %v7549 = vmul.f32 %v7477, %v7527
      %v7550 = vmul.f32 %v7478, %v7534
      %v7551 = vsel %vm807, %v7024, 0
      %7553 = vmatprep.subr.mxu0 0.0
      %7554 = vmatpush1.msra.mxu0 %v796
      %7555 = vmatprep.subr.mxu0 0.0
      %7556 = vmatpush1.msra.mxu0 %v797
      %7557 = vmatprep.subr.mxu0 0.0
      %7558 = vmatpush1.msra.mxu0 %v798
      %7559 = vmatprep.subr.mxu0 0.0
      %7560 = vmatpush1.msra.mxu0 %v799
      %7561 = vmatprep.subr.mxu0 0.0
      %7562 = vmatpush1.msra.mxu0 0.0
      %7563 = vmatprep.subr.mxu0 0.0
      %7564 = vmatpush1.msra.mxu0 0.0
      %7565 = vmatprep.subr.mxu0 0.0
      %7566 = vmatpush1.msra.mxu0 0.0
      %7567 = vmatprep.subr.mxu0 0.0
      %7568 = vmatpush1.msra.mxu0 0.0
      %7569 = vmatprep.subr.mxu0 0.0
      %7570 = vmatpush1.msra.mxu0 0.0
      %7571 = vmatprep.subr.mxu0 0.0
      %7572 = vmatpush1.msra.mxu0 0.0
      %7573 = vmatprep.subr.mxu0 0.0
      %7574 = vmatpush1.msra.mxu0 0.0
      %7575 = vmatprep.subr.mxu0 0.0
      %7576 = vmatpush1.msra.mxu0 0.0
      %7577 = vmatprep.subr.mxu0 0.0
      %7578 = vmatpush1.msra.mxu0 0.0
      %7579 = vmatprep.subr.mxu0 0.0
      %7580 = vmatpush1.msra.mxu0 0.0
      %7581 = vmatprep.subr.mxu0 0.0
      %7582 = vmatpush1.msra.mxu0 0.0
      %7583 = vmatprep.subr.mxu0 0.0
      %7584 = vmatpush1.msra.mxu0 0.0
      %7585 = vmatprep.subr.mxu0 0.0
      %7586 = vmatpush1.msra.mxu0 0.0
      %7587 = vmatprep.subr.mxu0 0.0
      %7588 = vmatpush1.msra.mxu0 0.0
      %7589 = vmatprep.subr.mxu0 0.0
      %7590 = vmatpush1.msra.mxu0 0.0
      %7591 = vmatprep.subr.mxu0 0.0
      %7592 = vmatpush1.msra.mxu0 0.0
      %7593 = vmatprep.subr.mxu0 0.0
      %7594 = vmatpush1.msra.mxu0 0.0
      %7595 = vmatprep.subr.mxu0 0.0
      %7596 = vmatpush1.msra.mxu0 0.0
      %7597 = vmatprep.subr.mxu0 0.0
      %7598 = vmatpush1.msra.mxu0 0.0
      %7599 = vmatprep.subr.mxu0 0.0
      %7600 = vmatpush1.msra.mxu0 0.0
      %7601 = vmatprep.subr.mxu0 0.0
      %7602 = vmatpush1.msra.mxu0 0.0
      %7603 = vmatprep.subr.mxu0 0.0
      %7604 = vmatpush1.msra.mxu0 0.0
      %7605 = vmatprep.subr.mxu0 0.0
      %7606 = vmatpush1.msra.mxu0 0.0
      %7607 = vmatprep.subr.mxu0 0.0
      %7608 = vmatpush1.msra.mxu0 0.0
      %7609 = vmatprep.subr.mxu0 0.0
      %7610 = vmatpush1.msra.mxu0 0.0
      %7611 = vmatprep.subr.mxu0 0.0
      %7612 = vmatpush1.msra.mxu0 0.0
      %7613 = vmatprep.subr.mxu0 0.0
      %7614 = vmatpush1.msra.mxu0 0.0
      %7615 = vmatprep.subr.mxu0 0.0
      %7616 = vmatpush1.msra.mxu0 0.0
      %7617 = vmatprep.mubr.f32.mxu0 0.0
      %7618 = vmatmul.mubr.f32.gmra.mrb[0].mxu0 %v7551
      %v7619 = vpop.f32.mrb[0].mxu0
      %v7620 = vadd.f32 0.0, %v7619
      %v7621 = vpop.f32.mrb[0].mxu0
      %7622 = vdwg.mxu0
      %7631 = vset.pattern.permute.xlu0 0
      %7632 = vperm.xlu0 %7631, %v7543
      %v7633 = vpop.permute.xlu0 %7632
      %7634 = vset.pattern.permute.xlu0 0
      %7635 = vperm.xlu0 %7634, %v7544
      %v7636 = vpop.permute.xlu0 %7635
      %7637 = vset.pattern.permute.xlu0 0
      %7638 = vperm.xlu0 %7637, %v7545
      %v7639 = vpop.permute.xlu0 %7638
      %7640 = vset.pattern.permute.xlu0 0
      %7641 = vperm.xlu0 %7640, %v7546
      %v7642 = vpop.permute.xlu0 %7641
      %7643 = vset.pattern.permute.xlu0 0
      %7644 = vperm.xlu0 %7643, %v7547
      %v7645 = vpop.permute.xlu0 %7644
      %7646 = vset.pattern.permute.xlu0 0
      %7647 = vperm.xlu0 %7646, %v7548
      %v7648 = vpop.permute.xlu0 %7647
      %7649 = vset.pattern.permute.xlu0 0
      %7650 = vperm.xlu0 %7649, %v7549
      %v7651 = vpop.permute.xlu0 %7650
      %7652 = vset.pattern.permute.xlu0 0
      %7653 = vperm.xlu0 %7652, %v7550
      %v7654 = vpop.permute.xlu0 %7653
      %v7655 = vlaneseq
      %v7656 = vshrl.u32 %v7655, 7
      %v7657 = vsub.s32 %v1043, %v7656
      %v7658 = vrot.slane %v7633, %v7657
      %v7659 = vlaneseq
      %v7660 = vshrl.u32 %v7659, 7
      %v7661 = vsub.s32 %v1043, %v7660
      %v7662 = vrot.slane %v7636, %v7661
      %v7663 = vlaneseq
      %v7664 = vshrl.u32 %v7663, 7
      %v7665 = vsub.s32 %v1043, %v7664
      %v7666 = vrot.slane %v7639, %v7665
      %v7667 = vlaneseq
      %v7668 = vshrl.u32 %v7667, 7
      %v7669 = vsub.s32 %v1043, %v7668
      %v7670 = vrot.slane %v7642, %v7669
      %v7671 = vlaneseq
      %v7672 = vshrl.u32 %v7671, 7
      %v7673 = vsub.s32 %v1043, %v7672
      %v7674 = vrot.slane %v7645, %v7673
      %v7675 = vlaneseq
      %v7676 = vshrl.u32 %v7675, 7
      %v7677 = vsub.s32 %v1043, %v7676
      %v7678 = vrot.slane %v7648, %v7677
      %v7679 = vlaneseq
      %v7680 = vshrl.u32 %v7679, 7
      %v7681 = vsub.s32 %v1043, %v7680
      %v7682 = vrot.slane %v7651, %v7681
      %v7683 = vlaneseq
      %v7684 = vshrl.u32 %v7683, 7
      %v7685 = vsub.s32 %v1043, %v7684
      %v7686 = vrot.slane %v7654, %v7685
      %v7687 = vsel %vm1076, %v7662, %v7658
      %v7688 = vsel %vm1078, %v7666, %v7687
      %v7689 = vsel %vm1080, %v7670, %v7688
      %v7690 = vsel %vm1082, %v7674, %v7689
      %v7691 = vsel %vm1084, %v7678, %v7690
      %v7692 = vsel %vm1086, %v7682, %v7691
      %v7693 = vsel %vm1088, %v7686, %v7692
      %v7694 = vsel %vm1091, %v7693, 0
      %7696 = vmatprep.subr.mxu0 0.0
      %7697 = vmatpush1.msra.mxu0 %v1513
      %7698 = vmatprep.subr.mxu0 0.0
      %7699 = vmatpush1.msra.mxu0 0.0
      %7700 = vmatprep.subr.mxu0 0.0
      %7701 = vmatpush1.msra.mxu0 0.0
      %7702 = vmatprep.subr.mxu0 0.0
      %7703 = vmatpush1.msra.mxu0 0.0
      %7704 = vmatprep.subr.mxu0 0.0
      %7705 = vmatpush1.msra.mxu0 0.0
      %7706 = vmatprep.subr.mxu0 0.0
      %7707 = vmatpush1.msra.mxu0 0.0
      %7708 = vmatprep.subr.mxu0 0.0
      %7709 = vmatpush1.msra.mxu0 0.0
      %7710 = vmatprep.subr.mxu0 0.0
      %7711 = vmatpush1.msra.mxu0 0.0
      %7712 = vmatprep.subr.mxu0 0.0
      %7713 = vmatpush1.msra.mxu0 0.0
      %7714 = vmatprep.subr.mxu0 0.0
      %7715 = vmatpush1.msra.mxu0 0.0
      %7716 = vmatprep.subr.mxu0 0.0
      %7717 = vmatpush1.msra.mxu0 0.0
      %7718 = vmatprep.subr.mxu0 0.0
      %7719 = vmatpush1.msra.mxu0 0.0
      %7720 = vmatprep.subr.mxu0 0.0
      %7721 = vmatpush1.msra.mxu0 0.0
      %7722 = vmatprep.subr.mxu0 0.0
      %7723 = vmatpush1.msra.mxu0 0.0
      %7724 = vmatprep.subr.mxu0 0.0
      %7725 = vmatpush1.msra.mxu0 0.0
      %7726 = vmatprep.subr.mxu0 0.0
      %7727 = vmatpush1.msra.mxu0 0.0
      %7728 = vmatprep.subr.mxu0 0.0
      %7729 = vmatpush1.msra.mxu0 0.0
      %7730 = vmatprep.subr.mxu0 0.0
      %7731 = vmatpush1.msra.mxu0 0.0
      %7732 = vmatprep.subr.mxu0 0.0
      %7733 = vmatpush1.msra.mxu0 0.0
      %7734 = vmatprep.subr.mxu0 0.0
      %7735 = vmatpush1.msra.mxu0 0.0
      %7736 = vmatprep.subr.mxu0 0.0
      %7737 = vmatpush1.msra.mxu0 0.0
      %7738 = vmatprep.subr.mxu0 0.0
      %7739 = vmatpush1.msra.mxu0 0.0
      %7740 = vmatprep.subr.mxu0 0.0
      %7741 = vmatpush1.msra.mxu0 0.0
      %7742 = vmatprep.subr.mxu0 0.0
      %7743 = vmatpush1.msra.mxu0 0.0
      %7744 = vmatprep.subr.mxu0 0.0
      %7745 = vmatpush1.msra.mxu0 0.0
      %7746 = vmatprep.subr.mxu0 0.0
      %7747 = vmatpush1.msra.mxu0 0.0
      %7748 = vmatprep.subr.mxu0 0.0
      %7749 = vmatpush1.msra.mxu0 0.0
      %7750 = vmatprep.subr.mxu0 0.0
      %7751 = vmatpush1.msra.mxu0 0.0
      %7752 = vmatprep.subr.mxu0 0.0
      %7753 = vmatpush1.msra.mxu0 0.0
      %7754 = vmatprep.subr.mxu0 0.0
      %7755 = vmatpush1.msra.mxu0 0.0
      %7756 = vmatprep.subr.mxu0 0.0
      %7757 = vmatpush1.msra.mxu0 0.0
      %7758 = vmatprep.subr.mxu0 0.0
      %7759 = vmatpush1.msra.mxu0 0.0
      %7760 = vmatprep.mubr.f32.mxu0 0.0
      %7761 = vmatmul.mubr.f32.gmra.mrb[0].mxu0 %v7694
      %v7762 = vpop.f32.mrb[0].mxu0
      %v7763 = vadd.f32 %v7620, %v7762
      %v7764 = vpop.f32.mrb[0].mxu0
      %7765 = vdwg.mxu0
      %v7766 = vadd.f32 %v7763, %v1589
      %v7767 = vxor.u32 %v7766, 2147483648
      %v7768 = vmul.f32 %v7767, 1.442695
      %v7769 = vpow.pop %v7768
      %v7770 = vadd.f32 %v7769, 1.0
      %v7771 = vrcp.pop %v7770
      %v7772 = vmul.f32 1.0, %v7771
      %v7773 = vtanh.pop %v7766
      %v7774 = vmul.f32 %v7772, %v6902
      %7776 = vrot.lane.b32.xlu0 %v7773, 64
      %v7777 = vpop.permute.xlu0 %7776
      %v7779 = vmul.f32 %v7772, %v7777
      %7781 = vrot.lane.b32.xlu0 %v7779, 32
      %v7782 = vpop.permute.xlu0 %7781
      %v7784 = vadd.f32 %v7774, %v7782
      %v7785 = vtanh.pop %v7784
      %7787 = vrot.lane.b32.xlu0 %v7785, 64
      %v7788 = vpop.permute.xlu0 %7787
      %v7790 = vmul.f32 %v7772, %v7788
      %v7792 = vcombine.high %v7790, %v7790
      %v7794 = vunpack.c.l.s4 1966171168
      %v7795 = vunpack.c.0.s8 %v7794
      %v7796 = vlaneseq
      %v7797 = vshrl.u32 %v7796, 7
      %v7798 = vsub.s32 %v7795, %v7797
      %v7799 = vrot.slane %v7790, %v7798
      %v7801 = vunpack.c.l.s4 1966171168
      %v7802 = vunpack.c.0.s8 %v7801
      %v7803 = vlaneseq
      %v7804 = vshrl.u32 %v7803, 7
      %v7805 = vsub.s32 %v7802, %v7804
      %v7806 = vrot.slane %v7792, %v7805
      %v7807 = vcombine.high %v7799, %v7799
      %v7808 = vcombine.high %v7806, %v7806
      %v7810 = vunpack.c.l.s4 1966171168
      %v7811 = vunpack.c.0.s8 %v7810
      %v7812 = vlaneseq
      %v7813 = vshrl.u32 %v7812, 7
      %v7814 = vsub.s32 %v7811, %v7813
      %v7815 = vrot.slane %v7799, %v7814
      %v7817 = vunpack.c.l.s4 1966171168
      %v7818 = vunpack.c.0.s8 %v7817
      %v7819 = vlaneseq
      %v7820 = vshrl.u32 %v7819, 7
      %v7821 = vsub.s32 %v7818, %v7820
      %v7822 = vrot.slane %v7806, %v7821
      %v7824 = vunpack.c.l.s4 1966171168
      %v7825 = vunpack.c.0.s8 %v7824
      %v7826 = vlaneseq
      %v7827 = vshrl.u32 %v7826, 7
      %v7828 = vsub.s32 %v7825, %v7827
      %v7829 = vrot.slane %v7807, %v7828
      %v7831 = vunpack.c.l.s4 1966171168
      %v7832 = vunpack.c.0.s8 %v7831
      %v7833 = vlaneseq
      %v7834 = vshrl.u32 %v7833, 7
      %v7835 = vsub.s32 %v7832, %v7834
      %v7836 = vrot.slane %v7808, %v7835
      %v7837 = vcombine.high %v7815, %v7815
      %v7838 = vcombine.high %v7822, %v7822
      %v7839 = vcombine.high %v7829, %v7829
      %v7840 = vcombine.high %v7836, %v7836
      %v7841 = vlaneseq
      %v7842 = vshrl.u32 %v7841, 7
      %v7843 = vsub.s32 0, %v7842
      %v7844 = vrot.slane %v7815, %v7843
      %v7845 = vlaneseq
      %v7846 = vshrl.u32 %v7845, 7
      %v7847 = vsub.s32 0, %v7846
      %v7848 = vrot.slane %v7829, %v7847
      %v7849 = vlaneseq
      %v7850 = vshrl.u32 %v7849, 7
      %v7851 = vsub.s32 0, %v7850
      %v7852 = vrot.slane %v7837, %v7851
      %v7853 = vlaneseq
      %v7854 = vshrl.u32 %v7853, 7
      %v7855 = vsub.s32 0, %v7854
      %v7856 = vrot.slane %v7839, %v7855
      %v7857 = vlaneseq
      %v7858 = vshrl.u32 %v7857, 7
      %v7859 = vsub.s32 0, %v7858
      %v7860 = vrot.slane %v7822, %v7859
      %v7861 = vlaneseq
      %v7862 = vshrl.u32 %v7861, 7
      %v7863 = vsub.s32 0, %v7862
      %v7864 = vrot.slane %v7836, %v7863
      %v7865 = vlaneseq
      %v7866 = vshrl.u32 %v7865, 7
      %v7867 = vsub.s32 0, %v7866
      %v7868 = vrot.slane %v7838, %v7867
      %v7869 = vlaneseq
      %v7870 = vshrl.u32 %v7869, 7
      %v7871 = vsub.s32 0, %v7870
      %v7872 = vrot.slane %v7840, %v7871
      %7873 = vrot.lane.b32.xlu0 %v7844, 32
      %v7874 = vpop.permute.xlu0 %7873
      %7875 = vrot.lane.b32.xlu0 %v7848, 32
      %v7876 = vpop.permute.xlu0 %7875
      %7877 = vrot.lane.b32.xlu0 %v7852, 32
      %v7878 = vpop.permute.xlu0 %7877
      %7879 = vrot.lane.b32.xlu0 %v7856, 32
      %v7880 = vpop.permute.xlu0 %7879
      %7881 = vrot.lane.b32.xlu0 %v7860, 32
      %v7882 = vpop.permute.xlu0 %7881
      %7883 = vrot.lane.b32.xlu0 %v7864, 32
      %v7884 = vpop.permute.xlu0 %7883
      %7885 = vrot.lane.b32.xlu0 %v7868, 32
      %v7886 = vpop.permute.xlu0 %7885
      %7887 = vrot.lane.b32.xlu0 %v7872, 32
      %v7888 = vpop.permute.xlu0 %7887
      %7897 = vst.msk [vmem:[#allocation2 + $0x7] sm:$0x1] %vm1722, %v7874
      %7898 = vst.msk [vmem:[#allocation2 + $0xf] sm:$0x1] %vm1722, %v7876
      %7899 = vst.msk [vmem:[#allocation2 + $0x17] sm:$0x1] %vm1722, %v7878
      %7900 = vst.msk [vmem:[#allocation2 + $0x1f] sm:$0x1] %vm1722, %v7880
      %7901 = vst.msk [vmem:[#allocation2 + $0x27] sm:$0x1] %vm1722, %v7882
      %7902 = vst.msk [vmem:[#allocation2 + $0x2f] sm:$0x1] %vm1722, %v7884
      %7903 = vst.msk [vmem:[#allocation2 + $0x37] sm:$0x1] %vm1722, %v7886
      %7904 = vst.msk [vmem:[#allocation2 + $0x3f] sm:$0x1] %vm1722, %v7888
      %v7905 = vld [vmem:[#allocation2] sm:$0xff]
      %v7906 = vld [vmem:[#allocation2 + $0x8] sm:$0xff]
      %v7907 = vld [vmem:[#allocation2 + $0x10] sm:$0xff]
      %v7908 = vld [vmem:[#allocation2 + $0x18] sm:$0xff]
      %v7909 = vld [vmem:[#allocation2 + $0x20] sm:$0xff]
      %v7910 = vld [vmem:[#allocation2 + $0x28] sm:$0xff]
      %v7911 = vld [vmem:[#allocation2 + $0x30] sm:$0xff]
      %v7912 = vld [vmem:[#allocation2 + $0x38] sm:$0xff]
      %v7913 = vld [vmem:[%s12] sm:$0xff]
      %v7914 = vld [vmem:[%s12 + $0x8] sm:$0xff]
      %v7915 = vld [vmem:[%s12 + $0x10] sm:$0xff]
      %v7916 = vld [vmem:[%s12 + $0x18] sm:$0xff]
      %v7917 = vld [vmem:[%s13] sm:$0x1]
      %v7919 = vlaneseq
      %v7920 = vshrl.u32 %v7919, 7
      %v7921 = vsub.s32 0, %v7920
      %v7922 = vrot.slane %v7917, %v7921
      %v7925 = vsel %vm807, %v7905, 0
      %v7928 = vsel %vm807, %v7906, 0
      %v7931 = vsel %vm807, %v7907, 0
      %v7934 = vsel %vm807, %v7908, 0
      %v7937 = vsel %vm807, %v7909, 0
      %v7940 = vsel %vm807, %v7910, 0
      %v7943 = vsel %vm807, %v7911, 0
      %v7946 = vsel %vm807, %v7912, 0
      %7948 = vmatprep.subr.mxu0 0.0
      %7949 = vmatpush1.msra.mxu0 %v7913
      %7950 = vmatprep.subr.mxu0 0.0
      %7951 = vmatpush1.msra.mxu0 %v7914
      %7952 = vmatprep.subr.mxu0 0.0
      %7953 = vmatpush1.msra.mxu0 %v7915
      %7954 = vmatprep.subr.mxu0 0.0
      %7955 = vmatpush1.msra.mxu0 %v7916
      %7956 = vmatprep.subr.mxu0 0.0
      %7957 = vmatpush1.msra.mxu0 0.0
      %7958 = vmatprep.subr.mxu0 0.0
      %7959 = vmatpush1.msra.mxu0 0.0
      %7960 = vmatprep.subr.mxu0 0.0
      %7961 = vmatpush1.msra.mxu0 0.0
      %7962 = vmatprep.subr.mxu0 0.0
      %7963 = vmatpush1.msra.mxu0 0.0
      %7964 = vmatprep.subr.mxu0 0.0
      %7965 = vmatpush1.msra.mxu0 0.0
      %7966 = vmatprep.subr.mxu0 0.0
      %7967 = vmatpush1.msra.mxu0 0.0
      %7968 = vmatprep.subr.mxu0 0.0
      %7969 = vmatpush1.msra.mxu0 0.0
      %7970 = vmatprep.subr.mxu0 0.0
      %7971 = vmatpush1.msra.mxu0 0.0
      %7972 = vmatprep.subr.mxu0 0.0
      %7973 = vmatpush1.msra.mxu0 0.0
      %7974 = vmatprep.subr.mxu0 0.0
      %7975 = vmatpush1.msra.mxu0 0.0
      %7976 = vmatprep.subr.mxu0 0.0
      %7977 = vmatpush1.msra.mxu0 0.0
      %7978 = vmatprep.subr.mxu0 0.0
      %7979 = vmatpush1.msra.mxu0 0.0
      %7980 = vmatprep.subr.mxu0 0.0
      %7981 = vmatpush1.msra.mxu0 0.0
      %7982 = vmatprep.subr.mxu0 0.0
      %7983 = vmatpush1.msra.mxu0 0.0
      %7984 = vmatprep.subr.mxu0 0.0
      %7985 = vmatpush1.msra.mxu0 0.0
      %7986 = vmatprep.subr.mxu0 0.0
      %7987 = vmatpush1.msra.mxu0 0.0
      %7988 = vmatprep.subr.mxu0 0.0
      %7989 = vmatpush1.msra.mxu0 0.0
      %7990 = vmatprep.subr.mxu0 0.0
      %7991 = vmatpush1.msra.mxu0 0.0
      %7992 = vmatprep.subr.mxu0 0.0
      %7993 = vmatpush1.msra.mxu0 0.0
      %7994 = vmatprep.subr.mxu0 0.0
      %7995 = vmatpush1.msra.mxu0 0.0
      %7996 = vmatprep.subr.mxu0 0.0
      %7997 = vmatpush1.msra.mxu0 0.0
      %7998 = vmatprep.subr.mxu0 0.0
      %7999 = vmatpush1.msra.mxu0 0.0
      %8000 = vmatprep.subr.mxu0 0.0
      %8001 = vmatpush1.msra.mxu0 0.0
      %8002 = vmatprep.subr.mxu0 0.0
      %8003 = vmatpush1.msra.mxu0 0.0
      %8004 = vmatprep.subr.mxu0 0.0
      %8005 = vmatpush1.msra.mxu0 0.0
      %8006 = vmatprep.subr.mxu0 0.0
      %8007 = vmatpush1.msra.mxu0 0.0
      %8008 = vmatprep.subr.mxu0 0.0
      %8009 = vmatpush1.msra.mxu0 0.0
      %8010 = vmatprep.subr.mxu0 0.0
      %8011 = vmatpush1.msra.mxu0 0.0
      %8012 = vmatprep.mubr.f32.mxu0 0.0
      %8013 = vmatmul.mubr.f32.gmra.mrb[0].mxu0 %v7925
      %v8014 = vpop.f32.mrb[0].mxu0
      %v8015 = vadd.f32 %v7922, %v8014
      %v8016 = vpop.f32.mrb[0].mxu0
      %8017 = vmatprep.mubr.f32.mxu0 0.0
      %8018 = vmatmul.mubr.f32.gmra.mrb[0].mxu0 %v7928
      %v8019 = vpop.f32.mrb[0].mxu0
      %v8020 = vadd.f32 %v7922, %v8019
      %v8021 = vpop.f32.mrb[0].mxu0
      %8022 = vmatprep.mubr.f32.mxu0 0.0
      %8023 = vmatmul.mubr.f32.gmra.mrb[0].mxu0 %v7931
      %v8024 = vpop.f32.mrb[0].mxu0
      %v8025 = vadd.f32 %v7922, %v8024
      %v8026 = vpop.f32.mrb[0].mxu0
      %8027 = vmatprep.mubr.f32.mxu0 0.0
      %8028 = vmatmul.mubr.f32.gmra.mrb[0].mxu0 %v7934
      %v8029 = vpop.f32.mrb[0].mxu0
      %v8030 = vadd.f32 %v7922, %v8029
      %v8031 = vpop.f32.mrb[0].mxu0
      %8032 = vmatprep.mubr.f32.mxu0 0.0
      %8033 = vmatmul.mubr.f32.gmra.mrb[0].mxu0 %v7937
      %v8034 = vpop.f32.mrb[0].mxu0
      %v8035 = vadd.f32 %v7922, %v8034
      %v8036 = vpop.f32.mrb[0].mxu0
      %8037 = vmatprep.mubr.f32.mxu0 0.0
      %8038 = vmatmul.mubr.f32.gmra.mrb[0].mxu0 %v7940
      %v8039 = vpop.f32.mrb[0].mxu0
      %v8040 = vadd.f32 %v7922, %v8039
      %v8041 = vpop.f32.mrb[0].mxu0
      %8042 = vmatprep.mubr.f32.mxu0 0.0
      %8043 = vmatmul.mubr.f32.gmra.mrb[0].mxu0 %v7943
      %v8044 = vpop.f32.mrb[0].mxu0
      %v8045 = vadd.f32 %v7922, %v8044
      %v8046 = vpop.f32.mrb[0].mxu0
      %8047 = vmatprep.mubr.f32.mxu0 0.0
      %8048 = vmatmul.mubr.f32.gmra.mrb[0].mxu0 %v7946
      %v8049 = vpop.f32.mrb[0].mxu0
      %v8050 = vadd.f32 %v7922, %v8049
      %v8051 = vpop.f32.mrb[0].mxu0
      %8052 = vdwg.mxu0
      %v8053 = vtanh.pop %v8015
      %v8054 = vtanh.pop %v8020
      %v8055 = vtanh.pop %v8025
      %v8056 = vtanh.pop %v8030
      %v8057 = vtanh.pop %v8035
      %v8058 = vtanh.pop %v8040
      %v8059 = vtanh.pop %v8045
      %v8060 = vtanh.pop %v8050
      %v8061 = vld [vmem:[%s14] sm:$0x1]
      %v8063 = vlaneseq
      %v8064 = vshrl.u32 %v8063, 7
      %v8065 = vsub.s32 0, %v8064
      %v8066 = vrot.slane %v8061, %v8065
      %v8068 = vmul.f32 %v8053, %v8066
      %v8069 = vmul.f32 %v8054, %v8066
      %v8070 = vmul.f32 %v8055, %v8066
      %v8071 = vmul.f32 %v8056, %v8066
      %v8072 = vmul.f32 %v8057, %v8066
      %v8073 = vmul.f32 %v8058, %v8066
      %v8074 = vmul.f32 %v8059, %v8066
      %v8075 = vmul.f32 %v8060, %v8066
      %v8076 = vsel %vm807, %v8068, 0.0
      %8077 = vadd.xlane.f32.xlu0 %v8076
      %v8078 = vpop.xlane.xlu0 %8077
      %v8079 = vsel %vm807, %v8069, 0.0
      %8080 = vadd.xlane.f32.xlu0 %v8079
      %v8081 = vpop.xlane.xlu0 %8080
      %v8082 = vsel %vm807, %v8070, 0.0
      %8083 = vadd.xlane.f32.xlu0 %v8082
      %v8084 = vpop.xlane.xlu0 %8083
      %v8085 = vsel %vm807, %v8071, 0.0
      %8086 = vadd.xlane.f32.xlu0 %v8085
      %v8087 = vpop.xlane.xlu0 %8086
      %v8088 = vsel %vm807, %v8072, 0.0
      %8089 = vadd.xlane.f32.xlu0 %v8088
      %v8090 = vpop.xlane.xlu0 %8089
      %v8091 = vsel %vm807, %v8073, 0.0
      %8092 = vadd.xlane.f32.xlu0 %v8091
      %v8093 = vpop.xlane.xlu0 %8092
      %v8094 = vsel %vm807, %v8074, 0.0
      %8095 = vadd.xlane.f32.xlu0 %v8094
      %v8096 = vpop.xlane.xlu0 %8095
      %v8097 = vsel %vm807, %v8075, 0.0
      %8098 = vadd.xlane.f32.xlu0 %v8097
      %v8099 = vpop.xlane.xlu0 %8098
      %v8108 = vlaneseq
      %v8109 = vshrl.u32 %v8108, 7
      %v8110 = vsub.s32 %v1043, %v8109
      %v8111 = vrot.slane %v8078, %v8110
      %v8112 = vlaneseq
      %v8113 = vshrl.u32 %v8112, 7
      %v8114 = vsub.s32 %v1043, %v8113
      %v8115 = vrot.slane %v8081, %v8114
      %v8116 = vlaneseq
      %v8117 = vshrl.u32 %v8116, 7
      %v8118 = vsub.s32 %v1043, %v8117
      %v8119 = vrot.slane %v8084, %v8118
      %v8120 = vlaneseq
      %v8121 = vshrl.u32 %v8120, 7
      %v8122 = vsub.s32 %v1043, %v8121
      %v8123 = vrot.slane %v8087, %v8122
      %v8124 = vlaneseq
      %v8125 = vshrl.u32 %v8124, 7
      %v8126 = vsub.s32 %v1043, %v8125
      %v8127 = vrot.slane %v8090, %v8126
      %v8128 = vlaneseq
      %v8129 = vshrl.u32 %v8128, 7
      %v8130 = vsub.s32 %v1043, %v8129
      %v8131 = vrot.slane %v8093, %v8130
      %v8132 = vlaneseq
      %v8133 = vshrl.u32 %v8132, 7
      %v8134 = vsub.s32 %v1043, %v8133
      %v8135 = vrot.slane %v8096, %v8134
      %v8136 = vlaneseq
      %v8137 = vshrl.u32 %v8136, 7
      %v8138 = vsub.s32 %v1043, %v8137
      %v8139 = vrot.slane %v8099, %v8138
      %v8140 = vsel %vm1076, %v8115, %v8111
      %v8141 = vsel %vm1078, %v8119, %v8140
      %v8142 = vsel %vm1080, %v8123, %v8141
      %v8143 = vsel %vm1082, %v8127, %v8142
      %v8144 = vsel %vm1084, %v8131, %v8143
      %v8145 = vsel %vm1086, %v8135, %v8144
      %v8146 = vsel %vm1088, %v8139, %v8145
      %v8148 = vsel %vm671, %v8146, -inf
      %8149 = vmax.xlane.f32.xlu0 %v8148
      %v8150 = vpop.xlane.xlu0 %8149
      %v8152 = vlaneseq
      %v8153 = vshrl.u32 %v8152, 7
      %v8154 = vsub.s32 0, %v8153
      %v8155 = vrot.slane %v8150, %v8154
      %v8156 = vlaneseq
      %v8157 = vshrl.u32 %v8156, 7
      %v8158 = vsub.s32 1, %v8157
      %v8159 = vrot.slane %v8150, %v8158
      %v8160 = vlaneseq
      %v8161 = vshrl.u32 %v8160, 7
      %v8162 = vsub.s32 2, %v8161
      %v8163 = vrot.slane %v8150, %v8162
      %v8164 = vlaneseq
      %v8165 = vshrl.u32 %v8164, 7
      %v8166 = vsub.s32 3, %v8165
      %v8167 = vrot.slane %v8150, %v8166
      %v8168 = vlaneseq
      %v8169 = vshrl.u32 %v8168, 7
      %v8170 = vsub.s32 4, %v8169
      %v8171 = vrot.slane %v8150, %v8170
      %v8172 = vlaneseq
      %v8173 = vshrl.u32 %v8172, 7
      %v8174 = vsub.s32 5, %v8173
      %v8175 = vrot.slane %v8150, %v8174
      %v8176 = vlaneseq
      %v8177 = vshrl.u32 %v8176, 7
      %v8178 = vsub.s32 6, %v8177
      %v8179 = vrot.slane %v8150, %v8178
      %v8180 = vlaneseq
      %v8181 = vshrl.u32 %v8180, 7
      %v8182 = vsub.s32 7, %v8181
      %v8183 = vrot.slane %v8150, %v8182
      %v8192 = vsub.f32 %v8078, %v8155
      %v8193 = vsub.f32 %v8081, %v8159
      %v8194 = vsub.f32 %v8084, %v8163
      %v8195 = vsub.f32 %v8087, %v8167
      %v8196 = vsub.f32 %v8090, %v8171
      %v8197 = vsub.f32 %v8093, %v8175
      %v8198 = vsub.f32 %v8096, %v8179
      %v8199 = vsub.f32 %v8099, %v8183
      %v8200 = vmul.f32 %v8192, 1.442695
      %v8201 = vpow.pop %v8200
      %v8202 = vmul.f32 %v8193, 1.442695
      %v8203 = vpow.pop %v8202
      %v8204 = vmul.f32 %v8194, 1.442695
      %v8205 = vpow.pop %v8204
      %v8206 = vmul.f32 %v8195, 1.442695
      %v8207 = vpow.pop %v8206
      %v8208 = vmul.f32 %v8196, 1.442695
      %v8209 = vpow.pop %v8208
      %v8210 = vmul.f32 %v8197, 1.442695
      %v8211 = vpow.pop %v8210
      %v8212 = vmul.f32 %v8198, 1.442695
      %v8213 = vpow.pop %v8212
      %v8214 = vmul.f32 %v8199, 1.442695
      %v8215 = vpow.pop %v8214
      %8224 = vset.pattern.permute.xlu0 0
      %8225 = vperm.xlu0 %8224, %v8201
      %v8226 = vpop.permute.xlu0 %8225
      %8227 = vset.pattern.permute.xlu0 0
      %8228 = vperm.xlu0 %8227, %v8203
      %v8229 = vpop.permute.xlu0 %8228
      %8230 = vset.pattern.permute.xlu0 0
      %8231 = vperm.xlu0 %8230, %v8205
      %v8232 = vpop.permute.xlu0 %8231
      %8233 = vset.pattern.permute.xlu0 0
      %8234 = vperm.xlu0 %8233, %v8207
      %v8235 = vpop.permute.xlu0 %8234
      %8236 = vset.pattern.permute.xlu0 0
      %8237 = vperm.xlu0 %8236, %v8209
      %v8238 = vpop.permute.xlu0 %8237
      %8239 = vset.pattern.permute.xlu0 0
      %8240 = vperm.xlu0 %8239, %v8211
      %v8241 = vpop.permute.xlu0 %8240
      %8242 = vset.pattern.permute.xlu0 0
      %8243 = vperm.xlu0 %8242, %v8213
      %v8244 = vpop.permute.xlu0 %8243
      %8245 = vset.pattern.permute.xlu0 0
      %8246 = vperm.xlu0 %8245, %v8215
      %v8247 = vpop.permute.xlu0 %8246
      %v8248 = vlaneseq
      %v8249 = vshrl.u32 %v8248, 7
      %v8250 = vsub.s32 %v1043, %v8249
      %v8251 = vrot.slane %v8226, %v8250
      %v8252 = vlaneseq
      %v8253 = vshrl.u32 %v8252, 7
      %v8254 = vsub.s32 %v1043, %v8253
      %v8255 = vrot.slane %v8229, %v8254
      %v8256 = vlaneseq
      %v8257 = vshrl.u32 %v8256, 7
      %v8258 = vsub.s32 %v1043, %v8257
      %v8259 = vrot.slane %v8232, %v8258
      %v8260 = vlaneseq
      %v8261 = vshrl.u32 %v8260, 7
      %v8262 = vsub.s32 %v1043, %v8261
      %v8263 = vrot.slane %v8235, %v8262
      %v8264 = vlaneseq
      %v8265 = vshrl.u32 %v8264, 7
      %v8266 = vsub.s32 %v1043, %v8265
      %v8267 = vrot.slane %v8238, %v8266
      %v8268 = vlaneseq
      %v8269 = vshrl.u32 %v8268, 7
      %v8270 = vsub.s32 %v1043, %v8269
      %v8271 = vrot.slane %v8241, %v8270
      %v8272 = vlaneseq
      %v8273 = vshrl.u32 %v8272, 7
      %v8274 = vsub.s32 %v1043, %v8273
      %v8275 = vrot.slane %v8244, %v8274
      %v8276 = vlaneseq
      %v8277 = vshrl.u32 %v8276, 7
      %v8278 = vsub.s32 %v1043, %v8277
      %v8279 = vrot.slane %v8247, %v8278
      %v8280 = vsel %vm1076, %v8255, %v8251
      %v8281 = vsel %vm1078, %v8259, %v8280
      %v8282 = vsel %vm1080, %v8263, %v8281
      %v8283 = vsel %vm1082, %v8267, %v8282
      %v8284 = vsel %vm1084, %v8271, %v8283
      %v8285 = vsel %vm1086, %v8275, %v8284
      %v8286 = vsel %vm1088, %v8279, %v8285
      %v8288 = vsel %vm671, %v8286, 0.0
      %8289 = vadd.xlane.f32.xlu0 %v8288
      %v8290 = vpop.xlane.xlu0 %8289
      %v8291 = vrcp.pop %v8290
      %v8293 = vlaneseq
      %v8294 = vshrl.u32 %v8293, 7
      %v8295 = vsub.s32 0, %v8294
      %v8296 = vrot.slane %v8291, %v8295
      %v8297 = vlaneseq
      %v8298 = vshrl.u32 %v8297, 7
      %v8299 = vsub.s32 1, %v8298
      %v8300 = vrot.slane %v8291, %v8299
      %v8301 = vlaneseq
      %v8302 = vshrl.u32 %v8301, 7
      %v8303 = vsub.s32 2, %v8302
      %v8304 = vrot.slane %v8291, %v8303
      %v8305 = vlaneseq
      %v8306 = vshrl.u32 %v8305, 7
      %v8307 = vsub.s32 3, %v8306
      %v8308 = vrot.slane %v8291, %v8307
      %v8309 = vlaneseq
      %v8310 = vshrl.u32 %v8309, 7
      %v8311 = vsub.s32 4, %v8310
      %v8312 = vrot.slane %v8291, %v8311
      %v8313 = vlaneseq
      %v8314 = vshrl.u32 %v8313, 7
      %v8315 = vsub.s32 5, %v8314
      %v8316 = vrot.slane %v8291, %v8315
      %v8317 = vlaneseq
      %v8318 = vshrl.u32 %v8317, 7
      %v8319 = vsub.s32 6, %v8318
      %v8320 = vrot.slane %v8291, %v8319
      %v8321 = vlaneseq
      %v8322 = vshrl.u32 %v8321, 7
      %v8323 = vsub.s32 7, %v8322
      %v8324 = vrot.slane %v8291, %v8323
      %v8333 = vmul.f32 %v8201, %v8296
      %v8334 = vmul.f32 %v8203, %v8300
      %v8335 = vmul.f32 %v8205, %v8304
      %v8336 = vmul.f32 %v8207, %v8308
      %v8337 = vmul.f32 %v8209, %v8312
      %v8338 = vmul.f32 %v8211, %v8316
      %v8339 = vmul.f32 %v8213, %v8320
      %v8340 = vmul.f32 %v8215, %v8324
      %8349 = vset.pattern.permute.xlu0 0
      %8350 = vperm.xlu0 %8349, %v8333
      %v8351 = vpop.permute.xlu0 %8350
      %8352 = vset.pattern.permute.xlu0 0
      %8353 = vperm.xlu0 %8352, %v8334
      %v8354 = vpop.permute.xlu0 %8353
      %8355 = vset.pattern.permute.xlu0 0
      %8356 = vperm.xlu0 %8355, %v8335
      %v8357 = vpop.permute.xlu0 %8356
      %8358 = vset.pattern.permute.xlu0 0
      %8359 = vperm.xlu0 %8358, %v8336
      %v8360 = vpop.permute.xlu0 %8359
      %8361 = vset.pattern.permute.xlu0 0
      %8362 = vperm.xlu0 %8361, %v8337
      %v8363 = vpop.permute.xlu0 %8362
      %8364 = vset.pattern.permute.xlu0 0
      %8365 = vperm.xlu0 %8364, %v8338
      %v8366 = vpop.permute.xlu0 %8365
      %8367 = vset.pattern.permute.xlu0 0
      %8368 = vperm.xlu0 %8367, %v8339
      %v8369 = vpop.permute.xlu0 %8368
      %8370 = vset.pattern.permute.xlu0 0
      %8371 = vperm.xlu0 %8370, %v8340
      %v8372 = vpop.permute.xlu0 %8371
      %v8373 = vlaneseq
      %v8374 = vshrl.u32 %v8373, 7
      %v8375 = vsub.s32 %v1043, %v8374
      %v8376 = vrot.slane %v8351, %v8375
      %v8377 = vlaneseq
      %v8378 = vshrl.u32 %v8377, 7
      %v8379 = vsub.s32 %v1043, %v8378
      %v8380 = vrot.slane %v8354, %v8379
      %v8381 = vlaneseq
      %v8382 = vshrl.u32 %v8381, 7
      %v8383 = vsub.s32 %v1043, %v8382
      %v8384 = vrot.slane %v8357, %v8383
      %v8385 = vlaneseq
      %v8386 = vshrl.u32 %v8385, 7
      %v8387 = vsub.s32 %v1043, %v8386
      %v8388 = vrot.slane %v8360, %v8387
      %v8389 = vlaneseq
      %v8390 = vshrl.u32 %v8389, 7
      %v8391 = vsub.s32 %v1043, %v8390
      %v8392 = vrot.slane %v8363, %v8391
      %v8393 = vlaneseq
      %v8394 = vshrl.u32 %v8393, 7
      %v8395 = vsub.s32 %v1043, %v8394
      %v8396 = vrot.slane %v8366, %v8395
      %v8397 = vlaneseq
      %v8398 = vshrl.u32 %v8397, 7
      %v8399 = vsub.s32 %v1043, %v8398
      %v8400 = vrot.slane %v8369, %v8399
      %v8401 = vlaneseq
      %v8402 = vshrl.u32 %v8401, 7
      %v8403 = vsub.s32 %v1043, %v8402
      %v8404 = vrot.slane %v8372, %v8403
      %v8405 = vsel %vm1076, %v8380, %v8376
      %v8406 = vsel %vm1078, %v8384, %v8405
      %v8407 = vsel %vm1080, %v8388, %v8406
      %v8408 = vsel %vm1082, %v8392, %v8407
      %v8409 = vsel %vm1084, %v8396, %v8408
      %v8410 = vsel %vm1086, %v8400, %v8409
      %v8411 = vsel %vm1088, %v8404, %v8410
      %8413 = vst.msk [vmem:[%s642] sm:$0xff] %vm671, %v8411
      %v8422 = vmul.f32 %v8351, %v7905
      %v8423 = vmul.f32 %v8354, %v7906
      %v8424 = vmul.f32 %v8357, %v7907
      %v8425 = vmul.f32 %v8360, %v7908
      %v8426 = vmul.f32 %v8363, %v7909
      %v8427 = vmul.f32 %v8366, %v7910
      %v8428 = vmul.f32 %v8369, %v7911
      %v8429 = vmul.f32 %v8372, %v7912
      %v8430 = vsel %vm807, %v8422, 0.0
      %v8431 = vrot.slane %v8430, 4
      %v8432 = vadd.f32 %v8430, %v8431
      %v8433 = vrot.slane %v8432, 2
      %v8434 = vadd.f32 %v8432, %v8433
      %v8435 = vrot.slane %v8434, 1
      %v8436 = vadd.f32 %v8434, %v8435
      %v8437 = vsel %vm807, %v8423, 0.0
      %v8438 = vrot.slane %v8437, 4
      %v8439 = vadd.f32 %v8437, %v8438
      %v8440 = vrot.slane %v8439, 2
      %v8441 = vadd.f32 %v8439, %v8440
      %v8442 = vrot.slane %v8441, 1
      %v8443 = vadd.f32 %v8441, %v8442
      %v8444 = vsel %vm807, %v8424, 0.0
      %v8445 = vrot.slane %v8444, 4
      %v8446 = vadd.f32 %v8444, %v8445
      %v8447 = vrot.slane %v8446, 2
      %v8448 = vadd.f32 %v8446, %v8447
      %v8449 = vrot.slane %v8448, 1
      %v8450 = vadd.f32 %v8448, %v8449
      %v8451 = vsel %vm807, %v8425, 0.0
      %v8452 = vrot.slane %v8451, 4
      %v8453 = vadd.f32 %v8451, %v8452
      %v8454 = vrot.slane %v8453, 2
      %v8455 = vadd.f32 %v8453, %v8454
      %v8456 = vrot.slane %v8455, 1
      %v8457 = vadd.f32 %v8455, %v8456
      %v8458 = vsel %vm807, %v8426, 0.0
      %v8459 = vrot.slane %v8458, 4
      %v8460 = vadd.f32 %v8458, %v8459
      %v8461 = vrot.slane %v8460, 2
      %v8462 = vadd.f32 %v8460, %v8461
      %v8463 = vrot.slane %v8462, 1
      %v8464 = vadd.f32 %v8462, %v8463
      %v8465 = vsel %vm807, %v8427, 0.0
      %v8466 = vrot.slane %v8465, 4
      %v8467 = vadd.f32 %v8465, %v8466
      %v8468 = vrot.slane %v8467, 2
      %v8469 = vadd.f32 %v8467, %v8468
      %v8470 = vrot.slane %v8469, 1
      %v8471 = vadd.f32 %v8469, %v8470
      %v8472 = vsel %vm807, %v8428, 0.0
      %v8473 = vrot.slane %v8472, 4
      %v8474 = vadd.f32 %v8472, %v8473
      %v8475 = vrot.slane %v8474, 2
      %v8476 = vadd.f32 %v8474, %v8475
      %v8477 = vrot.slane %v8476, 1
      %v8478 = vadd.f32 %v8476, %v8477
      %v8479 = vsel %vm807, %v8429, 0.0
      %v8480 = vrot.slane %v8479, 4
      %v8481 = vadd.f32 %v8479, %v8480
      %v8482 = vrot.slane %v8481, 2
      %v8483 = vadd.f32 %v8481, %v8482
      %v8484 = vrot.slane %v8483, 1
      %v8485 = vadd.f32 %v8483, %v8484
      %v8486 = vld [vmem:[%s15] sm:$0xff]
      %v8487 = vld [vmem:[%s15 + $0x8] sm:$0xff]
      %v8488 = vld [vmem:[%s15 + $0x10] sm:$0xff]
      %v8489 = vld [vmem:[%s15 + $0x18] sm:$0xff]
      %v8490 = vld [vmem:[%s16] sm:$0x1]
      %v8492 = vlaneseq
      %v8493 = vshrl.u32 %v8492, 7
      %v8494 = vsub.s32 0, %v8493
      %v8495 = vrot.slane %v8490, %v8494
      %v8505 = vsel %vm1076, %v8443, %v8436
      %v8506 = vsel %vm1078, %v8450, %v8505
      %v8507 = vsel %vm1080, %v8457, %v8506
      %v8508 = vsel %vm1082, %v8464, %v8507
      %v8509 = vsel %vm1084, %v8471, %v8508
      %v8510 = vsel %vm1086, %v8478, %v8509
      %v8511 = vsel %vm1088, %v8485, %v8510
      %v8512 = vsel %vm807, %v8511, 0
      %8514 = vmatprep.subr.mxu0 0.0
      %8515 = vmatpush1.msra.mxu0 %v8486
      %8516 = vmatprep.subr.mxu0 0.0
      %8517 = vmatpush1.msra.mxu0 %v8487
      %8518 = vmatprep.subr.mxu0 0.0
      %8519 = vmatpush1.msra.mxu0 %v8488
      %8520 = vmatprep.subr.mxu0 0.0
      %8521 = vmatpush1.msra.mxu0 %v8489
      %8522 = vmatprep.subr.mxu0 0.0
      %8523 = vmatpush1.msra.mxu0 0.0
      %8524 = vmatprep.subr.mxu0 0.0
      %8525 = vmatpush1.msra.mxu0 0.0
      %8526 = vmatprep.subr.mxu0 0.0
      %8527 = vmatpush1.msra.mxu0 0.0
      %8528 = vmatprep.subr.mxu0 0.0
      %8529 = vmatpush1.msra.mxu0 0.0
      %8530 = vmatprep.subr.mxu0 0.0
      %8531 = vmatpush1.msra.mxu0 0.0
      %8532 = vmatprep.subr.mxu0 0.0
      %8533 = vmatpush1.msra.mxu0 0.0
      %8534 = vmatprep.subr.mxu0 0.0
      %8535 = vmatpush1.msra.mxu0 0.0
      %8536 = vmatprep.subr.mxu0 0.0
      %8537 = vmatpush1.msra.mxu0 0.0
      %8538 = vmatprep.subr.mxu0 0.0
      %8539 = vmatpush1.msra.mxu0 0.0
      %8540 = vmatprep.subr.mxu0 0.0
      %8541 = vmatpush1.msra.mxu0 0.0
      %8542 = vmatprep.subr.mxu0 0.0
      %8543 = vmatpush1.msra.mxu0 0.0
      %8544 = vmatprep.subr.mxu0 0.0
      %8545 = vmatpush1.msra.mxu0 0.0
      %8546 = vmatprep.subr.mxu0 0.0
      %8547 = vmatpush1.msra.mxu0 0.0
      %8548 = vmatprep.subr.mxu0 0.0
      %8549 = vmatpush1.msra.mxu0 0.0
      %8550 = vmatprep.subr.mxu0 0.0
      %8551 = vmatpush1.msra.mxu0 0.0
      %8552 = vmatprep.subr.mxu0 0.0
      %8553 = vmatpush1.msra.mxu0 0.0
      %8554 = vmatprep.subr.mxu0 0.0
      %8555 = vmatpush1.msra.mxu0 0.0
      %8556 = vmatprep.subr.mxu0 0.0
      %8557 = vmatpush1.msra.mxu0 0.0
      %8558 = vmatprep.subr.mxu0 0.0
      %8559 = vmatpush1.msra.mxu0 0.0
      %8560 = vmatprep.subr.mxu0 0.0
      %8561 = vmatpush1.msra.mxu0 0.0
      %8562 = vmatprep.subr.mxu0 0.0
      %8563 = vmatpush1.msra.mxu0 0.0
      %8564 = vmatprep.subr.mxu0 0.0
      %8565 = vmatpush1.msra.mxu0 0.0
      %8566 = vmatprep.subr.mxu0 0.0
      %8567 = vmatpush1.msra.mxu0 0.0
      %8568 = vmatprep.subr.mxu0 0.0
      %8569 = vmatpush1.msra.mxu0 0.0
      %8570 = vmatprep.subr.mxu0 0.0
      %8571 = vmatpush1.msra.mxu0 0.0
      %8572 = vmatprep.subr.mxu0 0.0
      %8573 = vmatpush1.msra.mxu0 0.0
      %8574 = vmatprep.subr.mxu0 0.0
      %8575 = vmatpush1.msra.mxu0 0.0
      %8576 = vmatprep.subr.mxu0 0.0
      %8577 = vmatpush1.msra.mxu0 0.0
      %8578 = vmatprep.mubr.f32.mxu0 0.0
      %8579 = vmatmul.mubr.f32.gmra.mrb[0].mxu0 %v8512
      %v8580 = vpop.f32.mrb[0].mxu0
      %v8581 = vadd.f32 %v8495, %v8580
      %v8582 = vpop.f32.mrb[0].mxu0
      %8583 = vdwg.mxu0
      %vm8584 = vcmask 23552
      %8585 = vst.msk [vmem:[%s638] sm:$0xff] %vm8584, %v8581
      %p8586 = scmp.lt.s32.totalorder %s30, 1
      %s8587 = scalar_select %p8586, %s30, 1
      %s8588 = smul.addr %s8587, 8
      %s8589 = scalar_lea.vmem %s17, %s8588
      %p8590 = scmp.lt.s32.totalorder %s30, 1
      %s8591 = scalar_select %p8590, %s30, 1
      %s8592 = smul.addr %s8591, 8
      %s8593 = scalar_lea.vmem %s18, %s8592
      // Predicated region
      $region89: #{tpu_custom_call.1} parent=87 // pred_check
        %p8594 = pneg %p425
      $region90: #{tpu_custom_call.1} parent=87 // pred_check_branch
        %8596 = sbr.rel (%p8594) target = $region92
      $region91: #{tpu_custom_call.1} parent=87 // pred_region
        _
      $region92: #{tpu_custom_call.1} parent=87 // pred_fallthru
        _
      // Predicated region
      $region93: #{tpu_custom_call.1} parent=87 // pred_check
        %p8597 = pneg %p451
      $region94: #{tpu_custom_call.1} parent=87 // pred_check_branch
        %8599 = sbr.rel (%p8597) target = $region96
      $region95: #{tpu_custom_call.1} parent=87 // pred_region
        _
      $region96: #{tpu_custom_call.1} parent=87 // pred_fallthru
        _
    $region88: #{tpu_custom_call.1} parent=5 // pred_fallthru
      _
    %p8600 = scmp.le.s32.totalorder 2, %s25
    // Predicated region
    $region97: #{tpu_custom_call.1} parent=5 // pred_check
      %p8601 = pneg %p8600
    $region98: #{tpu_custom_call.1} parent=5 // pred_check_branch
      %8603 = sbr.rel (%p8601) target = $region100
    $region99: #{tpu_custom_call.1} parent=5 // pred_region
      %s8604 = ssub.s32 %s25, 2
      // Predicated region
      $region101: #{tpu_custom_call.1} parent=99 // pred_check
        %p8605 = pneg %p431
      $region102: #{tpu_custom_call.1} parent=99 // pred_check_branch
        %8607 = sbr.rel (%p8605) target = $region104
      $region103: #{tpu_custom_call.1} parent=99 // pred_region
        %p8608 = scmp.lt.s32.totalorder %s31, 1
        %s8609 = scalar_select %p8608, %s31, 1
        %s8610 = smul.addr %s8609, 8
        %s8611 = scalar_lea.vmem %s17, %s8610
      $region104: #{tpu_custom_call.1} parent=99 // pred_fallthru
        _
      // Predicated region
      $region105: #{tpu_custom_call.1} parent=99 // pred_check
        %p8612 = pneg %p457
      $region106: #{tpu_custom_call.1} parent=99 // pred_check_branch
        %8614 = sbr.rel (%p8612) target = $region108
      $region107: #{tpu_custom_call.1} parent=99 // pred_region
        %p8615 = scmp.lt.s32.totalorder %s31, 1
        %s8616 = scalar_select %p8615, %s31, 1
        %s8617 = smul.addr %s8616, 8
        %s8618 = scalar_lea.vmem %s18, %s8617
      $region108: #{tpu_custom_call.1} parent=99 // pred_fallthru
        _
    $region100: #{tpu_custom_call.1} parent=5 // pred_fallthru
      _
  $region6: #{tpu_custom_call.1} parent=0 // loop_footer
    %s29 = sadd.s32 1, %s25
  $region7: #{tpu_custom_call.1} parent=0 // loop_footer_branch
    %24 = sbr.rel target = $region3
  $region8: #{tpu_custom_call.1} parent=0 // loop_exit
    _

</llo_original>
